<compile_context>
chip_gen: v5e
topology: v5e:2x2
jax: 0.10.0
libtpu: 0.0.40
codegen_flags: <defaults>
</compile_context>

<pallas_src>
import functools

import jax
import jax.numpy as jnp
from jax.experimental import pallas as pl
from jax.experimental.pallas import tpu as pltpu

_VMEM_LIMIT = 64 * 1024 * 1024   # explicit scoped-VMEM cap (<= v7x physical)


# ---------------- in-kernel helpers ----------------

def _layernorm(x, g, b, eps=1e-5):
    mu = jnp.mean(x, axis=-1, keepdims=True)
    var = jnp.mean(jnp.square(x - mu), axis=-1, keepdims=True)
    return (x - mu) * jax.lax.rsqrt(var + eps) * g + b


def _gelu(x):
    # TODO(synk): PyTorch nn.GELU() default is exact (erf-based); tanh
    # approximation used since erf lowering is not guaranteed in Mosaic.
    c = 0.7978845608028654  # sqrt(2/pi)
    return 0.5 * x * (1.0 + jnp.tanh(c * (x + 0.044715 * x * x * x)))


# ---------------- Pallas kernels ----------------

def patch_embed_kernel(p_ref, g1_ref, b1_ref, w_ref, bw_ref, g2_ref, b2_ref,
                       o_ref):
    x = _layernorm(p_ref[0], g1_ref[...], b1_ref[...])      # (N, patch_dim) f32
    x = jnp.dot(x.astype(jnp.bfloat16), w_ref[...],
                preferred_element_type=jnp.float32) + bw_ref[...]
    o_ref[...] = _layernorm(x, g2_ref[...], b2_ref[...]).astype(o_ref.dtype)


def transformer_layer_kernel(x_ref, ln1g_ref, ln1b_ref, wqkv_ref, wo_ref,
                             bo_ref, ln2g_ref, ln2b_ref, w1_ref, b1_ref,
                             w2_ref, b2_ref, fg_ref, fb_ref, o_ref, tok_ref,
                             *, heads, dim_head, n_tokens, block_b):
    d = pl.program_id(1)
    n = n_tokens

    # Load tokens (bf16 in HBM) into the f32 VMEM-resident residual stream.
    @pl.when(d == 0)
    def _():
        tok_ref[...] = x_ref[...].astype(jnp.float32)

    # ---- multi-head attention + residual (pre-LN) ----
    x = tok_ref[...]                                         # (block_b*n, D) f32
    h = _layernorm(x, ln1g_ref[0], ln1b_ref[0]).astype(jnp.bfloat16)

    # Fused QKV projection: one (block_b*n, D) @ (D, 3*inner) MXU pass.
    # Softmax scale is pre-folded into the q columns of wqkv at init time.
    qkv = jnp.dot(h, wqkv_ref[0], preferred_element_type=jnp.float32)

    wo_h = wo_ref[0]                                         # (heads, dh, D) bf16
    for bi in range(block_b):          # unrolled; attention is strictly per-image
        qkv_i = qkv[bi * n:(bi + 1) * n]                     # (n, 3*inner) f32
        # single relayout per image: (n, 3*heads, dh) -> (3*heads, n, dh)
        qkvh = jnp.transpose(qkv_i.reshape(n, 3 * heads, dim_head), (1, 0, 2))
        qh = qkvh[:heads].astype(jnp.bfloat16)
        kh = qkvh[heads:2 * heads].astype(jnp.bfloat16)
        vh = qkvh[2 * heads:].astype(jnp.bfloat16)

        # TODO(synk): for the real config (N=768, heads=16) tile this
        # flash-style over the KV axis so the (heads, N, N) scores never
        # materialize; at toy scale they fit VMEM comfortably.
        dots = jnp.einsum('hnd,hmd->hnm', qh, kh,
                          preferred_element_type=jnp.float32)
        m = jnp.max(dots, axis=-1, keepdims=True)
        e = jnp.exp(dots - m)
        attn = e * pl.reciprocal(jnp.sum(e, axis=-1, keepdims=True),
                                 approx=True)

        oh = jnp.einsum('hnm,hmd->hnd', attn.astype(jnp.bfloat16), vh,
                        preferred_element_type=jnp.float32)
        # Output projection without the head-concat transpose: contract each
        # head against its (dim_head, D) slab of Wo, then sum over heads.
        o_img = jnp.einsum('hnd,hdk->hnk', oh.astype(jnp.bfloat16), wo_h,
                           preferred_element_type=jnp.float32)
        o_img = jnp.sum(o_img, axis=0) + bo_ref[0]           # (n, D) f32

        rows = pl.ds(bi * n, n)
        tok_ref[rows, :] = tok_ref[rows, :] + o_img          # residual add (f32)

    # ---- feedforward + residual (pre-LN) ----
    x = tok_ref[...]
    hf = _layernorm(x, ln2g_ref[0], ln2b_ref[0]).astype(jnp.bfloat16)
    hf = jnp.dot(hf, w1_ref[0], preferred_element_type=jnp.float32) + b1_ref[0]
    hf = _gelu(hf).astype(jnp.bfloat16)
    hf = jnp.dot(hf, w2_ref[0], preferred_element_type=jnp.float32) + b2_ref[0]
    tok_ref[...] = x + hf

    # Final transformer LayerNorm folded into the last depth step; tokens are
    # written back to HBM (bf16) exactly once per batch block.
    @pl.when(d == pl.num_programs(1) - 1)
    def _():
        o_ref[...] = _layernorm(tok_ref[...], fg_ref[...],
                                fb_ref[...]).astype(o_ref.dtype)


# ---------------- pallas_call wrappers ----------------

def patch_embed(patches, params, dim):
    B, N, pd = patches.shape
    plist = [params["pe_ln1_g"], params["pe_ln1_b"], params["pe_w"],
             params["pe_b"], params["pe_ln2_g"], params["pe_ln2_b"]]
    in_specs = [pl.BlockSpec((1, N, pd), lambda b: (b, 0, 0))]
    in_specs += [pl.BlockSpec(p.shape, lambda b: (0, 0)) for p in plist]
    return pl.pallas_call(
        patch_embed_kernel,
        out_shape=jax.ShapeDtypeStruct((B * N, dim), jnp.bfloat16),
        grid_spec=pltpu.PrefetchScalarGridSpec(
            num_scalar_prefetch=0,
            grid=(B,),
            in_specs=in_specs,
            out_specs=pl.BlockSpec((N, dim), lambda b: (b, 0))),
        compiler_params=pltpu.CompilerParams(
            dimension_semantics=("parallel",),
            vmem_limit_bytes=_VMEM_LIMIT),
    )(patches, *plist)


def transformer(tokens2d, params, *, heads, dim_head, n_tokens, block_b):
    BN, D = tokens2d.shape
    depth = params["wqkv"].shape[0]
    rows_per_block = block_b * n_tokens
    assert BN % rows_per_block == 0
    nb = BN // rows_per_block

    tok_map = lambda b, d: (b, 0)
    lay3 = lambda b, d: (d, 0, 0)
    lay4 = lambda b, d: (d, 0, 0, 0)
    fix2 = lambda b, d: (0, 0)

    layer_keys = ["ln1_g", "ln1_b", "wqkv", "wo", "bo",
                  "ln2_g", "ln2_b", "w1", "b1", "w2", "b2"]
    layer_vals = [params[k] for k in layer_keys]

    in_specs = [pl.BlockSpec((rows_per_block, D), tok_map)]
    for v in layer_vals:
        imap = lay4 if v.ndim == 4 else lay3
        in_specs.append(pl.BlockSpec((1,) + v.shape[1:], imap))
    in_specs += [pl.BlockSpec(params["final_ln_g"].shape, fix2),
                 pl.BlockSpec(params["final_ln_b"].shape, fix2)]

    kernel = functools.partial(transformer_layer_kernel, heads=heads,
                               dim_head=dim_head, n_tokens=n_tokens,
                               block_b=block_b)
    return pl.pallas_call(
        kernel,
        out_shape=jax.ShapeDtypeStruct((BN, D), tokens2d.dtype),
        grid_spec=pltpu.PrefetchScalarGridSpec(
            num_scalar_prefetch=0,
            grid=(nb, depth),
            in_specs=in_specs,
            out_specs=pl.BlockSpec((rows_per_block, D), tok_map),
            scratch_shapes=[pltpu.VMEM((rows_per_block, D), jnp.float32)]),
        compiler_params=pltpu.CompilerParams(
            dimension_semantics=("parallel", "arbitrary"),
            vmem_limit_bytes=_VMEM_LIMIT),
        # donate tokens: transformer output overwrites the token buffer in HBM
        input_output_aliases={0: 0},
    )(tokens2d, *layer_vals, params["final_ln_g"], params["final_ln_b"])


# ---------------- glue: patchify + params + forward ----------------

def img_to_patches(x, p):
    # einops: 'b c (h p1) (w p2) -> b (h w) (p1 p2 c)'
    B, C, H, W = x.shape
    h, w = H // p, W // p
    x = x.reshape(B, C, h, p, w, p)
    x = jnp.transpose(x, (0, 2, 4, 3, 5, 1))           # (B, h, w, p1, p2, c)
    return x.reshape(B, h * w, p * p * C)


def init_params(key, patch_dim, dim, depth, heads, dim_head, mlp_dim):
    inner = heads * dim_head
    scale = dim_head ** -0.5
    ks = jax.random.split(key, 7)

    def lin(k, shape, fan_in):
        return jax.random.normal(k, shape, jnp.float32) / jnp.sqrt(
            jnp.float32(fan_in))

    ones = lambda *s: jnp.ones(s, jnp.float32)
    zeros = lambda *s: jnp.zeros(s, jnp.float32)

    # Fused QKV weight (no bias in ViT attention); softmax scale folded into q.
    wq = lin(ks[1], (depth, dim, inner), dim) * scale
    wk = lin(ks[2], (depth, dim, inner), dim)
    wv = lin(ks[3], (depth, dim, inner), dim)
    wqkv = jnp.concatenate([wq, wk, wv], axis=-1).astype(jnp.bfloat16)
    # Output projection stored head-split: (depth, heads, dim_head, dim).
    wo = lin(ks[4], (depth, inner, dim), inner).reshape(
        depth, heads, dim_head, dim).astype(jnp.bfloat16)

    return {
        # patch embedding: LN(patch_dim) -> Linear(patch_dim, dim) -> LN(dim)
        "pe_ln1_g": ones(1, patch_dim), "pe_ln1_b": zeros(1, patch_dim),
        "pe_w": lin(ks[0], (patch_dim, dim), patch_dim).astype(jnp.bfloat16),
        "pe_b": zeros(1, dim),
        "pe_ln2_g": ones(1, dim), "pe_ln2_b": zeros(1, dim),
        # transformer layers, stacked along a leading depth axis
        "ln1_g": ones(depth, 1, dim), "ln1_b": zeros(depth, 1, dim),
        "wqkv": wqkv,
        "wo": wo,
        "bo": zeros(depth, 1, dim),
        "ln2_g": ones(depth, 1, dim), "ln2_b": zeros(depth, 1, dim),
        "w1": lin(ks[5], (depth, dim, mlp_dim), dim).astype(jnp.bfloat16),
        "b1": zeros(depth, 1, mlp_dim),
        "w2": lin(ks[6], (depth, mlp_dim, dim), mlp_dim).astype(jnp.bfloat16),
        "b2": zeros(depth, 1, dim),
        # final transformer LayerNorm
        "final_ln_g": ones(1, dim), "final_ln_b": zeros(1, dim),
    }


def vision_processor_forward(x, params, *, patch_size, dim, heads, dim_head):
    B = x.shape[0]
    patches = img_to_patches(x, patch_size)             # (B, N, patch_dim) f32
    N = patches.shape[1]
    tokens2d = patch_embed(patches, params, dim)        # (B*N, dim) bf16

    # Batch-block the transformer so per-layer weights are streamed from HBM
    # once per block of images instead of once per image.
    block_b = next(bb for bb in range(min(B, 4), 0, -1) if B % bb == 0)

    out2d = transformer(tokens2d, params, heads=heads, dim_head=dim_head,
                        n_tokens=N, block_b=block_b)
    # TODO(synk): emb_dropout / in-layer dropout are identity (eval semantics).
    # Cast back to f32 to match the PyTorch module's output dtype; the HBM
    # token stream between the two kernels stays bf16.
    return out2d.reshape(B, N, dim).astype(jnp.float32)


if __name__ == "__main__":
    # Scaled-down version of ViT(image_size=(1024, 768), patch_size=32,
    # dim=1024, depth=6, heads=16, mlp_dim=2048) keeping the exact structure.
    B, C, H, W = 2, 3, 64, 48          # 4:3 aspect like 1024x768
    PATCH = 8                          # -> 8*6 = 48 patches (sublane-aligned)
    DIM, DEPTH, HEADS, DIM_HEAD, MLP_DIM = 128, 2, 4, 32, 256  # lane-dense dim
    PATCH_DIM = C * PATCH * PATCH      # 192

    key = jax.random.PRNGKey(0)
    kx, kp = jax.random.split(key)
    x = jax.random.normal(kx, (B, C, H, W), jnp.float32)
    params = init_params(kp, PATCH_DIM, DIM, DEPTH, HEADS, DIM_HEAD, MLP_DIM)

    fwd = jax.jit(functools.partial(vision_processor_forward,
                                    patch_size=PATCH, dim=DIM,
                                    heads=HEADS, dim_head=DIM_HEAD))
    out = jax.block_until_ready(fwd(x, params))

    n_patches = (H // PATCH) * (W // PATCH)
    assert out.shape == (B, n_patches, DIM), out.shape
    assert bool(jnp.all(jnp.isfinite(out)))
    print("KERNEL_OK")
</pallas_src>

<mosaic_0001>
module attributes {stable_mosaic.version = 11 : i64} {
  func.func @patch_embed_kernel(%arg0: i32, %arg1: memref<1x48x192xf32, #tpu.memory_space<vmem>>, %arg2: memref<1x192xf32, #tpu.memory_space<vmem>>, %arg3: memref<1x192xf32, #tpu.memory_space<vmem>>, %arg4: memref<192x128xbf16, #tpu.memory_space<vmem>>, %arg5: memref<1x128xf32, #tpu.memory_space<vmem>>, %arg6: memref<1x128xf32, #tpu.memory_space<vmem>>, %arg7: memref<1x128xf32, #tpu.memory_space<vmem>>, %arg8: memref<48x128xbf16, #tpu.memory_space<vmem>>) attributes {dimension_semantics = [#tpu.dimension_semantics<parallel>], iteration_bounds = array<i64: 2>, scalar_prefetch = 0 : i64, scratch_operands = 0 : i64, tpu.core_type = #tpu.core_type<tc>, window_params = [{transform_indices = @transform_0, window_bounds = array<i64: 1, 48, 192>}, {pipeline_mode = #tpu.pipeline_mode<synchronous>, transform_indices = @transform_1, window_bounds = array<i64: 1, 192>}, {pipeline_mode = #tpu.pipeline_mode<synchronous>, transform_indices = @transform_2, window_bounds = array<i64: 1, 192>}, {pipeline_mode = #tpu.pipeline_mode<synchronous>, transform_indices = @transform_3, window_bounds = array<i64: 192, 128>}, {pipeline_mode = #tpu.pipeline_mode<synchronous>, transform_indices = @transform_4, window_bounds = array<i64: 1, 128>}, {pipeline_mode = #tpu.pipeline_mode<synchronous>, transform_indices = @transform_5, window_bounds = array<i64: 1, 128>}, {pipeline_mode = #tpu.pipeline_mode<synchronous>, transform_indices = @transform_6, window_bounds = array<i64: 1, 128>}, {transform_indices = @transform_7, window_bounds = array<i64: 48, 128>}]} {
    %c0 = arith.constant 0 : index
    %c0_0 = arith.constant 0 : index
    %c0_1 = arith.constant 0 : index
    %0 = vector.load %arg1[%c0, %c0_0, %c0_1] : memref<1x48x192xf32, #tpu.memory_space<vmem>>, vector<1x48x192xf32>
    %1 = vector.shape_cast %0 : vector<1x48x192xf32> to vector<48x192xf32>
    %c0_2 = arith.constant 0 : index
    %c0_3 = arith.constant 0 : index
    %2 = vector.load %arg2[%c0_2, %c0_3] : memref<1x192xf32, #tpu.memory_space<vmem>>, vector<1x192xf32>
    %c0_4 = arith.constant 0 : index
    %c0_5 = arith.constant 0 : index
    %3 = vector.load %arg3[%c0_4, %c0_5] : memref<1x192xf32, #tpu.memory_space<vmem>>, vector<1x192xf32>
    %cst = arith.constant dense<0.000000e+00> : vector<48xf32>
    %4 = vector.multi_reduction <add>, %1, %cst [1] : vector<48x192xf32> to vector<48xf32>
    %5 = vector.shape_cast %4 : vector<48xf32> to vector<48x1xf32>
    %cst_6 = arith.constant 1.920000e+02 : f32
    %6 = vector.broadcast %cst_6 : f32 to vector<48x1xf32>
    %7 = arith.divf %5, %6 : vector<48x1xf32>
    %8 = vector.broadcast %7 : vector<48x1xf32> to vector<48x192xf32>
    %9 = arith.subf %1, %8 : vector<48x192xf32>
    %10 = arith.mulf %9, %9 : vector<48x192xf32>
    %cst_7 = arith.constant dense<0.000000e+00> : vector<48xf32>
    %11 = vector.multi_reduction <add>, %10, %cst_7 [1] : vector<48x192xf32> to vector<48xf32>
    %12 = vector.shape_cast %11 : vector<48xf32> to vector<48x1xf32>
    %cst_8 = arith.constant 1.920000e+02 : f32
    %13 = vector.broadcast %cst_8 : f32 to vector<48x1xf32>
    %14 = arith.divf %12, %13 : vector<48x1xf32>
    %15 = vector.broadcast %7 : vector<48x1xf32> to vector<48x192xf32>
    %16 = arith.subf %1, %15 : vector<48x192xf32>
    %cst_9 = arith.constant 9.99999974E-6 : f32
    %17 = vector.broadcast %cst_9 : f32 to vector<48x1xf32>
    %18 = arith.addf %14, %17 : vector<48x1xf32>
    %19 = math.rsqrt %18 : vector<48x1xf32>
    %20 = vector.broadcast %19 : vector<48x1xf32> to vector<48x192xf32>
    %21 = arith.mulf %16, %20 : vector<48x192xf32>
    %22 = vector.broadcast %2 : vector<1x192xf32> to vector<48x192xf32>
    %23 = arith.mulf %21, %22 : vector<48x192xf32>
    %24 = vector.broadcast %3 : vector<1x192xf32> to vector<48x192xf32>
    %25 = arith.addf %23, %24 : vector<48x192xf32>
    %26 = arith.truncf %25 : vector<48x192xf32> to vector<48x192xbf16>
    %c0_10 = arith.constant 0 : index
    %c0_11 = arith.constant 0 : index
    %27 = vector.load %arg4[%c0_10, %c0_11] : memref<192x128xbf16, #tpu.memory_space<vmem>>, vector<192x128xbf16>
    %cst_12 = arith.constant dense<0.000000e+00> : vector<48x128xf32>
    %28 = tpu.matmul %26, %27, %cst_12 {dimension_numbers = #tpu.dot_dimension_numbers<[1], [0], [0], [1], [0, 0, 1, 1], [], []>} : vector<48x192xbf16>, vector<192x128xbf16>, vector<48x128xf32> -> vector<48x128xf32>
    %c0_13 = arith.constant 0 : index
    %c0_14 = arith.constant 0 : index
    %29 = vector.load %arg5[%c0_13, %c0_14] : memref<1x128xf32, #tpu.memory_space<vmem>>, vector<1x128xf32>
    %30 = vector.broadcast %29 : vector<1x128xf32> to vector<48x128xf32>
    %31 = arith.addf %28, %30 : vector<48x128xf32>
    %c0_15 = arith.constant 0 : index
    %c0_16 = arith.constant 0 : index
    %32 = vector.load %arg6[%c0_15, %c0_16] : memref<1x128xf32, #tpu.memory_space<vmem>>, vector<1x128xf32>
    %c0_17 = arith.constant 0 : index
    %c0_18 = arith.constant 0 : index
    %33 = vector.load %arg7[%c0_17, %c0_18] : memref<1x128xf32, #tpu.memory_space<vmem>>, vector<1x128xf32>
    %cst_19 = arith.constant dense<0.000000e+00> : vector<48xf32>
    %34 = vector.multi_reduction <add>, %31, %cst_19 [1] : vector<48x128xf32> to vector<48xf32>
    %35 = vector.shape_cast %34 : vector<48xf32> to vector<48x1xf32>
    %cst_20 = arith.constant 1.280000e+02 : f32
    %36 = vector.broadcast %cst_20 : f32 to vector<48x1xf32>
    %37 = arith.divf %35, %36 : vector<48x1xf32>
    %38 = vector.broadcast %37 : vector<48x1xf32> to vector<48x128xf32>
    %39 = arith.subf %31, %38 : vector<48x128xf32>
    %40 = arith.mulf %39, %39 : vector<48x128xf32>
    %cst_21 = arith.constant dense<0.000000e+00> : vector<48xf32>
    %41 = vector.multi_reduction <add>, %40, %cst_21 [1] : vector<48x128xf32> to vector<48xf32>
    %42 = vector.shape_cast %41 : vector<48xf32> to vector<48x1xf32>
    %cst_22 = arith.constant 1.280000e+02 : f32
    %43 = vector.broadcast %cst_22 : f32 to vector<48x1xf32>
    %44 = arith.divf %42, %43 : vector<48x1xf32>
    %45 = vector.broadcast %37 : vector<48x1xf32> to vector<48x128xf32>
    %46 = arith.subf %31, %45 : vector<48x128xf32>
    %cst_23 = arith.constant 9.99999974E-6 : f32
    %47 = vector.broadcast %cst_23 : f32 to vector<48x1xf32>
    %48 = arith.addf %44, %47 : vector<48x1xf32>
    %49 = math.rsqrt %48 : vector<48x1xf32>
    %50 = vector.broadcast %49 : vector<48x1xf32> to vector<48x128xf32>
    %51 = arith.mulf %46, %50 : vector<48x128xf32>
    %52 = vector.broadcast %32 : vector<1x128xf32> to vector<48x128xf32>
    %53 = arith.mulf %51, %52 : vector<48x128xf32>
    %54 = vector.broadcast %33 : vector<1x128xf32> to vector<48x128xf32>
    %55 = arith.addf %53, %54 : vector<48x128xf32>
    %56 = arith.truncf %55 : vector<48x128xf32> to vector<48x128xbf16>
    %c0_24 = arith.constant 0 : index
    %c0_25 = arith.constant 0 : index
    %57 = vector.load %arg8[%c0_24, %c0_25] : memref<48x128xbf16, #tpu.memory_space<vmem>>, vector<48x128xbf16>
    tpu.vector_store %arg8[%c0_24, %c0_25], %56 {strides = array<i32>} : memref<48x128xbf16, #tpu.memory_space<vmem>>, vector<48x128xbf16>,
    return
  }
  func.func @transform_0(%arg0: i32) -> (i32, i32, i32) {
    %c0_i32 = arith.constant 0 : i32
    %c0_i32_0 = arith.constant 0 : i32
    %c0_i32_1 = arith.constant 0 : i32
    return %arg0, %c0_i32, %c0_i32_0 : i32, i32, i32
  }
  func.func @transform_1(%arg0: i32) -> (i32, i32) {
    %c0_i32 = arith.constant 0 : i32
    %c0_i32_0 = arith.constant 0 : i32
    %c0_i32_1 = arith.constant 0 : i32
    return %c0_i32, %c0_i32_0 : i32, i32
  }
  func.func @transform_2(%arg0: i32) -> (i32, i32) {
    %c0_i32 = arith.constant 0 : i32
    %c0_i32_0 = arith.constant 0 : i32
    %c0_i32_1 = arith.constant 0 : i32
    return %c0_i32, %c0_i32_0 : i32, i32
  }
  func.func @transform_3(%arg0: i32) -> (i32, i32) {
    %c0_i32 = arith.constant 0 : i32
    %c0_i32_0 = arith.constant 0 : i32
    %c0_i32_1 = arith.constant 0 : i32
    return %c0_i32, %c0_i32_0 : i32, i32
  }
  func.func @transform_4(%arg0: i32) -> (i32, i32) {
    %c0_i32 = arith.constant 0 : i32
    %c0_i32_0 = arith.constant 0 : i32
    %c0_i32_1 = arith.constant 0 : i32
    return %c0_i32, %c0_i32_0 : i32, i32
  }
  func.func @transform_5(%arg0: i32) -> (i32, i32) {
    %c0_i32 = arith.constant 0 : i32
    %c0_i32_0 = arith.constant 0 : i32
    %c0_i32_1 = arith.constant 0 : i32
    return %c0_i32, %c0_i32_0 : i32, i32
  }
  func.func @transform_6(%arg0: i32) -> (i32, i32) {
    %c0_i32 = arith.constant 0 : i32
    %c0_i32_0 = arith.constant 0 : i32
    %c0_i32_1 = arith.constant 0 : i32
    return %c0_i32, %c0_i32_0 : i32, i32
  }
  func.func @transform_7(%arg0: i32) -> (i32, i32) {
    %c0_i32 = arith.constant 0 : i32
    %c0_i32_0 = arith.constant 0 : i32
    return %arg0, %c0_i32 : i32, i32
  }
}

module attributes {stable_mosaic.version = 11 : i64} {
  func.func @transformer_layer_kernel(%arg0: i32, %arg1: i32, %arg2: memref<96x128xbf16, #tpu.memory_space<vmem>>, %arg3: memref<1x1x128xf32, #tpu.memory_space<vmem>>, %arg4: memref<1x1x128xf32, #tpu.memory_space<vmem>>, %arg5: memref<1x128x384xbf16, #tpu.memory_space<vmem>>, %arg6: memref<1x4x32x128xbf16, #tpu.memory_space<vmem>>, %arg7: memref<1x1x128xf32, #tpu.memory_space<vmem>>, %arg8: memref<1x1x128xf32, #tpu.memory_space<vmem>>, %arg9: memref<1x1x128xf32, #tpu.memory_space<vmem>>, %arg10: memref<1x128x256xbf16, #tpu.memory_space<vmem>>, %arg11: memref<1x1x256xf32, #tpu.memory_space<vmem>>, %arg12: memref<1x256x128xbf16, #tpu.memory_space<vmem>>, %arg13: memref<1x1x128xf32, #tpu.memory_space<vmem>>, %arg14: memref<1x128xf32, #tpu.memory_space<vmem>>, %arg15: memref<1x128xf32, #tpu.memory_space<vmem>>, %arg16: memref<96x128xbf16, #tpu.memory_space<vmem>>, %arg17: memref<96x128xf32, #tpu.memory_space<vmem>>) attributes {dimension_semantics = [#tpu.dimension_semantics<parallel>, #tpu.dimension_semantics<arbitrary>], iteration_bounds = array<i64: 1, 2>, scalar_prefetch = 0 : i64, scratch_operands = 1 : i64, tpu.core_type = #tpu.core_type<tc>, window_params = [{transform_indices = @transform_0, window_bounds = array<i64: 96, 128>}, {transform_indices = @transform_1, window_bounds = array<i64: 1, 1, 128>}, {transform_indices = @transform_2, window_bounds = array<i64: 1, 1, 128>}, {transform_indices = @transform_3, window_bounds = array<i64: 1, 128, 384>}, {transform_indices = @transform_4, window_bounds = array<i64: 1, 4, 32, 128>}, {transform_indices = @transform_5, window_bounds = array<i64: 1, 1, 128>}, {transform_indices = @transform_6, window_bounds = array<i64: 1, 1, 128>}, {transform_indices = @transform_7, window_bounds = array<i64: 1, 1, 128>}, {transform_indices = @transform_8, window_bounds = array<i64: 1, 128, 256>}, {transform_indices = @transform_9, window_bounds = array<i64: 1, 1, 256>}, {transform_indices = @transform_10, window_bounds = array<i64: 1, 256, 128>}, {transform_indices = @transform_11, window_bounds = array<i64: 1, 1, 128>}, {pipeline_mode = #tpu.pipeline_mode<synchronous>, transform_indices = @transform_12, window_bounds = array<i64: 1, 128>}, {pipeline_mode = #tpu.pipeline_mode<synchronous>, transform_indices = @transform_13, window_bounds = array<i64: 1, 128>}, {transform_indices = @transform_14, window_bounds = array<i64: 96, 128>}]} {
    %c0_i32 = arith.constant 0 : i32
    %0 = arith.cmpi eq, %arg1, %c0_i32 : i32
    %1 = arith.extui %0 : i1 to i32
    %c0_i32_0 = arith.constant 0 : i32
    %2 = arith.cmpi ne, %1, %c0_i32_0 : i32
    scf.if %2 {
      %c0_79 = arith.constant 0 : index
      %c0_80 = arith.constant 0 : index
      %161 = vector.load %arg2[%c0_79, %c0_80] : memref<96x128xbf16, #tpu.memory_space<vmem>>, vector<96x128xbf16>
      %162 = arith.extf %161 : vector<96x128xbf16> to vector<96x128xf32>
      %c0_81 = arith.constant 0 : index
      %c0_82 = arith.constant 0 : index
      %163 = vector.load %arg17[%c0_81, %c0_82] : memref<96x128xf32, #tpu.memory_space<vmem>>, vector<96x128xf32>
      tpu.vector_store %arg17[%c0_81, %c0_82], %162 {strides = array<i32>} : memref<96x128xf32, #tpu.memory_space<vmem>>, vector<96x128xf32>,
    } else {
    }
    %c0 = arith.constant 0 : index
    %c0_1 = arith.constant 0 : index
    %3 = vector.load %arg17[%c0, %c0_1] : memref<96x128xf32, #tpu.memory_space<vmem>>, vector<96x128xf32>
    %c0_2 = arith.constant 0 : index
    %c0_3 = arith.constant 0 : index
    %c0_4 = arith.constant 0 : index
    %4 = vector.load %arg3[%c0_2, %c0_3, %c0_4] : memref<1x1x128xf32, #tpu.memory_space<vmem>>, vector<1x1x128xf32>
    %5 = vector.shape_cast %4 : vector<1x1x128xf32> to vector<1x128xf32>
    %c0_5 = arith.constant 0 : index
    %c0_6 = arith.constant 0 : index
    %c0_7 = arith.constant 0 : index
    %6 = vector.load %arg4[%c0_5, %c0_6, %c0_7] : memref<1x1x128xf32, #tpu.memory_space<vmem>>, vector<1x1x128xf32>
    %7 = vector.shape_cast %6 : vector<1x1x128xf32> to vector<1x128xf32>
    %cst = arith.constant dense<0.000000e+00> : vector<96xf32>
    %8 = vector.multi_reduction <add>, %3, %cst [1] : vector<96x128xf32> to vector<96xf32>
    %9 = vector.shape_cast %8 : vector<96xf32> to vector<96x1xf32>
    %cst_8 = arith.constant 1.280000e+02 : f32
    %10 = vector.broadcast %cst_8 : f32 to vector<96x1xf32>
    %11 = arith.divf %9, %10 : vector<96x1xf32>
    %12 = vector.broadcast %11 : vector<96x1xf32> to vector<96x128xf32>
    %13 = arith.subf %3, %12 : vector<96x128xf32>
    %14 = arith.mulf %13, %13 : vector<96x128xf32>
    %cst_9 = arith.constant dense<0.000000e+00> : vector<96xf32>
    %15 = vector.multi_reduction <add>, %14, %cst_9 [1] : vector<96x128xf32> to vector<96xf32>
    %16 = vector.shape_cast %15 : vector<96xf32> to vector<96x1xf32>
    %cst_10 = arith.constant 1.280000e+02 : f32
    %17 = vector.broadcast %cst_10 : f32 to vector<96x1xf32>
    %18 = arith.divf %16, %17 : vector<96x1xf32>
    %19 = vector.broadcast %11 : vector<96x1xf32> to vector<96x128xf32>
    %20 = arith.subf %3, %19 : vector<96x128xf32>
    %cst_11 = arith.constant 9.99999974E-6 : f32
    %21 = vector.broadcast %cst_11 : f32 to vector<96x1xf32>
    %22 = arith.addf %18, %21 : vector<96x1xf32>
    %23 = math.rsqrt %22 : vector<96x1xf32>
    %24 = vector.broadcast %23 : vector<96x1xf32> to vector<96x128xf32>
    %25 = arith.mulf %20, %24 : vector<96x128xf32>
    %26 = vector.broadcast %5 : vector<1x128xf32> to vector<96x128xf32>
    %27 = arith.mulf %25, %26 : vector<96x128xf32>
    %28 = vector.broadcast %7 : vector<1x128xf32> to vector<96x128xf32>
    %29 = arith.addf %27, %28 : vector<96x128xf32>
    %30 = arith.truncf %29 : vector<96x128xf32> to vector<96x128xbf16>
    %c0_12 = arith.constant 0 : index
    %c0_13 = arith.constant 0 : index
    %c0_14 = arith.constant 0 : index
    %31 = vector.load %arg5[%c0_12, %c0_13, %c0_14] : memref<1x128x384xbf16, #tpu.memory_space<vmem>>, vector<1x128x384xbf16>
    %32 = vector.shape_cast %31 : vector<1x128x384xbf16> to vector<128x384xbf16>
    %cst_15 = arith.constant dense<0.000000e+00> : vector<96x384xf32>
    %33 = tpu.matmul %30, %32, %cst_15 {dimension_numbers = #tpu.dot_dimension_numbers<[1], [0], [0], [1], [0, 0, 1, 1], [], []>} : vector<96x128xbf16>, vector<128x384xbf16>, vector<96x384xf32> -> vector<96x384xf32>
    %c0_16 = arith.constant 0 : index
    %c0_17 = arith.constant 0 : index
    %c0_18 = arith.constant 0 : index
    %c0_19 = arith.constant 0 : index
    %34 = vector.load %arg6[%c0_16, %c0_17, %c0_18, %c0_19] : memref<1x4x32x128xbf16, #tpu.memory_space<vmem>>, vector<1x4x32x128xbf16>
    %35 = vector.shape_cast %34 : vector<1x4x32x128xbf16> to vector<4x32x128xbf16>
    %36 = vector.extract_strided_slice %33 {offsets = [0, 0], sizes = [48, 384], strides = [1, 1]} : vector<96x384xf32> to vector<48x384xf32>
    %37 = vector.shape_cast %36 : vector<48x384xf32> to vector<48x12x32xf32>
    %38 = tpu.transpose %37, [1, 0, 2] : vector<48x12x32xf32> -> vector<12x48x32xf32>
    %39 = vector.extract_strided_slice %38 {offsets = [0, 0, 0], sizes = [4, 48, 32], strides = [1, 1, 1]} : vector<12x48x32xf32> to vector<4x48x32xf32>
    %40 = arith.truncf %39 : vector<4x48x32xf32> to vector<4x48x32xbf16>
    %41 = vector.extract_strided_slice %38 {offsets = [4, 0, 0], sizes = [4, 48, 32], strides = [1, 1, 1]} : vector<12x48x32xf32> to vector<4x48x32xf32>
    %42 = arith.truncf %41 : vector<4x48x32xf32> to vector<4x48x32xbf16>
    %43 = vector.extract_strided_slice %38 {offsets = [8, 0, 0], sizes = [4, 48, 32], strides = [1, 1, 1]} : vector<12x48x32xf32> to vector<4x48x32xf32>
    %44 = arith.truncf %43 : vector<4x48x32xf32> to vector<4x48x32xbf16>
    "tpu.trace_start"() <{level = 10 : i32, message = "hnd,hmd->hnm"}> : () -> ()
    %cst_20 = arith.constant dense<0.000000e+00> : vector<4x48x48xf32>
    %45 = tpu.matmul %40, %42, %cst_20 {dimension_numbers = #tpu.dot_dimension_numbers<[2], [2], [1], [1], [0, 0, 0, 1, 1, 1], [0], [0]>} : vector<4x48x32xbf16>, vector<4x48x32xbf16>, vector<4x48x48xf32> -> vector<4x48x48xf32>
    "tpu.trace_stop"() : () -> ()
    %cst_21 = arith.constant dense<0xFF800000> : vector<4x48xf32>
    %46 = vector.multi_reduction <maximumf>, %45, %cst_21 [2] : vector<4x48x48xf32> to vector<4x48xf32>
    %47 = vector.shape_cast %46 : vector<4x48xf32> to vector<4x48x1xf32>
    %48 = vector.broadcast %47 : vector<4x48x1xf32> to vector<4x48x48xf32>
    %49 = arith.subf %45, %48 : vector<4x48x48xf32>
    %50 = math.exp %49 : vector<4x48x48xf32>
    %cst_22 = arith.constant dense<0.000000e+00> : vector<4x48xf32>
    %51 = vector.multi_reduction <add>, %50, %cst_22 [2] : vector<4x48x48xf32> to vector<4x48xf32>
    %52 = vector.shape_cast %51 : vector<4x48xf32> to vector<4x48x1xf32>
    %53 = tpu.reciprocal %52 {approx = true} : vector<4x48x1xf32> -> vector<4x48x1xf32>
    %54 = vector.broadcast %53 : vector<4x48x1xf32> to vector<4x48x48xf32>
    %55 = arith.mulf %50, %54 : vector<4x48x48xf32>
    %56 = arith.truncf %55 : vector<4x48x48xf32> to vector<4x48x48xbf16>
    "tpu.trace_start"() <{level = 10 : i32, message = "hnm,hmd->hnd"}> : () -> ()
    %cst_23 = arith.constant dense<0.000000e+00> : vector<4x48x32xf32>
    %57 = tpu.matmul %56, %44, %cst_23 {dimension_numbers = #tpu.dot_dimension_numbers<[2], [1], [1], [2], [0, 0, 0, 1, 1, 2], [0], [0]>} : vector<4x48x48xbf16>, vector<4x48x32xbf16>, vector<4x48x32xf32> -> vector<4x48x32xf32>
    "tpu.trace_stop"() : () -> ()
    %58 = arith.truncf %57 : vector<4x48x32xf32> to vector<4x48x32xbf16>
    "tpu.trace_start"() <{level = 10 : i32, message = "hnd,hdk->hnk"}> : () -> ()
    %cst_24 = arith.constant dense<0.000000e+00> : vector<4x48x128xf32>
    %59 = tpu.matmul %58, %35, %cst_24 {dimension_numbers = #tpu.dot_dimension_numbers<[2], [1], [1], [2], [0, 0, 0, 1, 1, 2], [0], [0]>} : vector<4x48x32xbf16>, vector<4x32x128xbf16>, vector<4x48x128xf32> -> vector<4x48x128xf32>
    "tpu.trace_stop"() : () -> ()
    %cst_25 = arith.constant dense<0.000000e+00> : vector<48x128xf32>
    %60 = vector.multi_reduction <add>, %59, %cst_25 [0] : vector<4x48x128xf32> to vector<48x128xf32>
    %c0_26 = arith.constant 0 : index
    %c0_27 = arith.constant 0 : index
    %c0_28 = arith.constant 0 : index
    %61 = vector.load %arg7[%c0_26, %c0_27, %c0_28] : memref<1x1x128xf32, #tpu.memory_space<vmem>>, vector<1x1x128xf32>
    %62 = vector.shape_cast %61 : vector<1x1x128xf32> to vector<1x128xf32>
    %63 = vector.broadcast %62 : vector<1x128xf32> to vector<48x128xf32>
    %64 = arith.addf %60, %63 : vector<48x128xf32>
    %c0_29 = arith.constant 0 : index
    %c0_30 = arith.constant 0 : index
    %65 = vector.load %arg17[%c0_29, %c0_30] : memref<96x128xf32, #tpu.memory_space<vmem>>, vector<48x128xf32>
    %66 = arith.addf %65, %64 : vector<48x128xf32>
    %c0_31 = arith.constant 0 : index
    %c0_32 = arith.constant 0 : index
    %67 = vector.load %arg17[%c0_31, %c0_32] : memref<96x128xf32, #tpu.memory_space<vmem>>, vector<48x128xf32>
    tpu.vector_store %arg17[%c0_31, %c0_32], %66 {strides = array<i32>} : memref<96x128xf32, #tpu.memory_space<vmem>>, vector<48x128xf32>,
    %68 = vector.extract_strided_slice %33 {offsets = [48, 0], sizes = [48, 384], strides = [1, 1]} : vector<96x384xf32> to vector<48x384xf32>
    %69 = vector.shape_cast %68 : vector<48x384xf32> to vector<48x12x32xf32>
    %70 = tpu.transpose %69, [1, 0, 2] : vector<48x12x32xf32> -> vector<12x48x32xf32>
    %71 = vector.extract_strided_slice %70 {offsets = [0, 0, 0], sizes = [4, 48, 32], strides = [1, 1, 1]} : vector<12x48x32xf32> to vector<4x48x32xf32>
    %72 = arith.truncf %71 : vector<4x48x32xf32> to vector<4x48x32xbf16>
    %73 = vector.extract_strided_slice %70 {offsets = [4, 0, 0], sizes = [4, 48, 32], strides = [1, 1, 1]} : vector<12x48x32xf32> to vector<4x48x32xf32>
    %74 = arith.truncf %73 : vector<4x48x32xf32> to vector<4x48x32xbf16>
    %75 = vector.extract_strided_slice %70 {offsets = [8, 0, 0], sizes = [4, 48, 32], strides = [1, 1, 1]} : vector<12x48x32xf32> to vector<4x48x32xf32>
    %76 = arith.truncf %75 : vector<4x48x32xf32> to vector<4x48x32xbf16>
    "tpu.trace_start"() <{level = 10 : i32, message = "hnd,hmd->hnm"}> : () -> ()
    %cst_33 = arith.constant dense<0.000000e+00> : vector<4x48x48xf32>
    %77 = tpu.matmul %72, %74, %cst_33 {dimension_numbers = #tpu.dot_dimension_numbers<[2], [2], [1], [1], [0, 0, 0, 1, 1, 1], [0], [0]>} : vector<4x48x32xbf16>, vector<4x48x32xbf16>, vector<4x48x48xf32> -> vector<4x48x48xf32>
    "tpu.trace_stop"() : () -> ()
    %cst_34 = arith.constant dense<0xFF800000> : vector<4x48xf32>
    %78 = vector.multi_reduction <maximumf>, %77, %cst_34 [2] : vector<4x48x48xf32> to vector<4x48xf32>
    %79 = vector.shape_cast %78 : vector<4x48xf32> to vector<4x48x1xf32>
    %80 = vector.broadcast %79 : vector<4x48x1xf32> to vector<4x48x48xf32>
    %81 = arith.subf %77, %80 : vector<4x48x48xf32>
    %82 = math.exp %81 : vector<4x48x48xf32>
    %cst_35 = arith.constant dense<0.000000e+00> : vector<4x48xf32>
    %83 = vector.multi_reduction <add>, %82, %cst_35 [2] : vector<4x48x48xf32> to vector<4x48xf32>
    %84 = vector.shape_cast %83 : vector<4x48xf32> to vector<4x48x1xf32>
    %85 = tpu.reciprocal %84 {approx = true} : vector<4x48x1xf32> -> vector<4x48x1xf32>
    %86 = vector.broadcast %85 : vector<4x48x1xf32> to vector<4x48x48xf32>
    %87 = arith.mulf %82, %86 : vector<4x48x48xf32>
    %88 = arith.truncf %87 : vector<4x48x48xf32> to vector<4x48x48xbf16>
    "tpu.trace_start"() <{level = 10 : i32, message = "hnm,hmd->hnd"}> : () -> ()
    %cst_36 = arith.constant dense<0.000000e+00> : vector<4x48x32xf32>
    %89 = tpu.matmul %88, %76, %cst_36 {dimension_numbers = #tpu.dot_dimension_numbers<[2], [1], [1], [2], [0, 0, 0, 1, 1, 2], [0], [0]>} : vector<4x48x48xbf16>, vector<4x48x32xbf16>, vector<4x48x32xf32> -> vector<4x48x32xf32>
    "tpu.trace_stop"() : () -> ()
    %90 = arith.truncf %89 : vector<4x48x32xf32> to vector<4x48x32xbf16>
    "tpu.trace_start"() <{level = 10 : i32, message = "hnd,hdk->hnk"}> : () -> ()
    %cst_37 = arith.constant dense<0.000000e+00> : vector<4x48x128xf32>
    %91 = tpu.matmul %90, %35, %cst_37 {dimension_numbers = #tpu.dot_dimension_numbers<[2], [1], [1], [2], [0, 0, 0, 1, 1, 2], [0], [0]>} : vector<4x48x32xbf16>, vector<4x32x128xbf16>, vector<4x48x128xf32> -> vector<4x48x128xf32>
    "tpu.trace_stop"() : () -> ()
    %cst_38 = arith.constant dense<0.000000e+00> : vector<48x128xf32>
    %92 = vector.multi_reduction <add>, %91, %cst_38 [0] : vector<4x48x128xf32> to vector<48x128xf32>
    %c0_39 = arith.constant 0 : index
    %c0_40 = arith.constant 0 : index
    %c0_41 = arith.constant 0 : index
    %93 = vector.load %arg7[%c0_39, %c0_40, %c0_41] : memref<1x1x128xf32, #tpu.memory_space<vmem>>, vector<1x1x128xf32>
    %94 = vector.shape_cast %93 : vector<1x1x128xf32> to vector<1x128xf32>
    %95 = vector.broadcast %94 : vector<1x128xf32> to vector<48x128xf32>
    %96 = arith.addf %92, %95 : vector<48x128xf32>
    %c48 = arith.constant 48 : index
    %c0_42 = arith.constant 0 : index
    %97 = vector.load %arg17[%c48, %c0_42] : memref<96x128xf32, #tpu.memory_space<vmem>>, vector<48x128xf32>
    %98 = arith.addf %97, %96 : vector<48x128xf32>
    %c48_43 = arith.constant 48 : index
    %c0_44 = arith.constant 0 : index
    %99 = vector.load %arg17[%c48_43, %c0_44] : memref<96x128xf32, #tpu.memory_space<vmem>>, vector<48x128xf32>
    tpu.vector_store %arg17[%c48_43, %c0_44], %98 {strides = array<i32>} : memref<96x128xf32, #tpu.memory_space<vmem>>, vector<48x128xf32>,
    %c0_45 = arith.constant 0 : index
    %c0_46 = arith.constant 0 : index
    %100 = vector.load %arg17[%c0_45, %c0_46] : memref<96x128xf32, #tpu.memory_space<vmem>>, vector<96x128xf32>
    %c0_47 = arith.constant 0 : index
    %c0_48 = arith.constant 0 : index
    %c0_49 = arith.constant 0 : index
    %101 = vector.load %arg8[%c0_47, %c0_48, %c0_49] : memref<1x1x128xf32, #tpu.memory_space<vmem>>, vector<1x1x128xf32>
    %102 = vector.shape_cast %101 : vector<1x1x128xf32> to vector<1x128xf32>
    %c0_50 = arith.constant 0 : index
    %c0_51 = arith.constant 0 : index
    %c0_52 = arith.constant 0 : index
    %103 = vector.load %arg9[%c0_50, %c0_51, %c0_52] : memref<1x1x128xf32, #tpu.memory_space<vmem>>, vector<1x1x128xf32>
    %104 = vector.shape_cast %103 : vector<1x1x128xf32> to vector<1x128xf32>
    %cst_53 = arith.constant dense<0.000000e+00> : vector<96xf32>
    %105 = vector.multi_reduction <add>, %100, %cst_53 [1] : vector<96x128xf32> to vector<96xf32>
    %106 = vector.shape_cast %105 : vector<96xf32> to vector<96x1xf32>
    %cst_54 = arith.constant 1.280000e+02 : f32
    %107 = vector.broadcast %cst_54 : f32 to vector<96x1xf32>
    %108 = arith.divf %106, %107 : vector<96x1xf32>
    %109 = vector.broadcast %108 : vector<96x1xf32> to vector<96x128xf32>
    %110 = arith.subf %100, %109 : vector<96x128xf32>
    %111 = arith.mulf %110, %110 : vector<96x128xf32>
    %cst_55 = arith.constant dense<0.000000e+00> : vector<96xf32>
    %112 = vector.multi_reduction <add>, %111, %cst_55 [1] : vector<96x128xf32> to vector<96xf32>
    %113 = vector.shape_cast %112 : vector<96xf32> to vector<96x1xf32>
    %cst_56 = arith.constant 1.280000e+02 : f32
    %114 = vector.broadcast %cst_56 : f32 to vector<96x1xf32>
    %115 = arith.divf %113, %114 : vector<96x1xf32>
    %116 = vector.broadcast %108 : vector<96x1xf32> to vector<96x128xf32>
    %117 = arith.subf %100, %116 : vector<96x128xf32>
    %cst_57 = arith.constant 9.99999974E-6 : f32
    %118 = vector.broadcast %cst_57 : f32 to vector<96x1xf32>
    %119 = arith.addf %115, %118 : vector<96x1xf32>
    %120 = math.rsqrt %119 : vector<96x1xf32>
    %121 = vector.broadcast %120 : vector<96x1xf32> to vector<96x128xf32>
    %122 = arith.mulf %117, %121 : vector<96x128xf32>
    %123 = vector.broadcast %102 : vector<1x128xf32> to vector<96x128xf32>
    %124 = arith.mulf %122, %123 : vector<96x128xf32>
    %125 = vector.broadcast %104 : vector<1x128xf32> to vector<96x128xf32>
    %126 = arith.addf %124, %125 : vector<96x128xf32>
    %127 = arith.truncf %126 : vector<96x128xf32> to vector<96x128xbf16>
    %c0_58 = arith.constant 0 : index
    %c0_59 = arith.constant 0 : index
    %c0_60 = arith.constant 0 : index
    %128 = vector.load %arg10[%c0_58, %c0_59, %c0_60] : memref<1x128x256xbf16, #tpu.memory_space<vmem>>, vector<1x128x256xbf16>
    %129 = vector.shape_cast %128 : vector<1x128x256xbf16> to vector<128x256xbf16>
    %cst_61 = arith.constant dense<0.000000e+00> : vector<96x256xf32>
    %130 = tpu.matmul %127, %129, %cst_61 {dimension_numbers = #tpu.dot_dimension_numbers<[1], [0], [0], [1], [0, 0, 1, 1], [], []>} : vector<96x128xbf16>, vector<128x256xbf16>, vector<96x256xf32> -> vector<96x256xf32>
    %c0_62 = arith.constant 0 : index
    %c0_63 = arith.constant 0 : index
    %c0_64 = arith.constant 0 : index
    %131 = vector.load %arg11[%c0_62, %c0_63, %c0_64] : memref<1x1x256xf32, #tpu.memory_space<vmem>>, vector<1x1x256xf32>
    %132 = vector.shape_cast %131 : vector<1x1x256xf32> to vector<1x256xf32>
    %133 = vector.broadcast %132 : vector<1x256xf32> to vector<96x256xf32>
    %134 = arith.addf %130, %133 : vector<96x256xf32>
    %cst_65 = arith.constant 5.000000e-01 : f32
    %135 = vector.broadcast %cst_65 : f32 to vector<96x256xf32>
    %136 = arith.mulf %135, %134 : vector<96x256xf32>
    %cst_66 = arith.constant 4.471500e-02 : f32
    %137 = vector.broadcast %cst_66 : f32 to vector<96x256xf32>
    %138 = arith.mulf %137, %134 : vector<96x256xf32>
    %139 = arith.mulf %138, %134 : vector<96x256xf32>
    %140 = arith.mulf %139, %134 : vector<96x256xf32>
    %141 = arith.addf %134, %140 : vector<96x256xf32>
    %cst_67 = arith.constant 0.797884583 : f32
    %142 = vector.broadcast %cst_67 : f32 to vector<96x256xf32>
    %143 = arith.mulf %142, %141 : vector<96x256xf32>
    %144 = math.tanh %143 : vector<96x256xf32>
    %cst_68 = arith.constant 1.000000e+00 : f32
    %145 = vector.broadcast %cst_68 : f32 to vector<96x256xf32>
    %146 = arith.addf %145, %144 : vector<96x256xf32>
    %147 = arith.mulf %136, %146 : vector<96x256xf32>
    %148 = arith.truncf %147 : vector<96x256xf32> to vector<96x256xbf16>
    %c0_69 = arith.constant 0 : index
    %c0_70 = arith.constant 0 : index
    %c0_71 = arith.constant 0 : index
    %149 = vector.load %arg12[%c0_69, %c0_70, %c0_71] : memref<1x256x128xbf16, #tpu.memory_space<vmem>>, vector<1x256x128xbf16>
    %150 = vector.shape_cast %149 : vector<1x256x128xbf16> to vector<256x128xbf16>
    %cst_72 = arith.constant dense<0.000000e+00> : vector<96x128xf32>
    %151 = tpu.matmul %148, %150, %cst_72 {dimension_numbers = #tpu.dot_dimension_numbers<[1], [0], [0], [1], [0, 0, 1, 1], [], []>} : vector<96x256xbf16>, vector<256x128xbf16>, vector<96x128xf32> -> vector<96x128xf32>
    %c0_73 = arith.constant 0 : index
    %c0_74 = arith.constant 0 : index
    %c0_75 = arith.constant 0 : index
    %152 = vector.load %arg13[%c0_73, %c0_74, %c0_75] : memref<1x1x128xf32, #tpu.memory_space<vmem>>, vector<1x1x128xf32>
    %153 = vector.shape_cast %152 : vector<1x1x128xf32> to vector<1x128xf32>
    %154 = vector.broadcast %153 : vector<1x128xf32> to vector<96x128xf32>
    %155 = arith.addf %151, %154 : vector<96x128xf32>
    %156 = arith.addf %100, %155 : vector<96x128xf32>
    %c0_76 = arith.constant 0 : index
    %c0_77 = arith.constant 0 : index
    %157 = vector.load %arg17[%c0_76, %c0_77] : memref<96x128xf32, #tpu.memory_space<vmem>>, vector<96x128xf32>
    tpu.vector_store %arg17[%c0_76, %c0_77], %156 {strides = array<i32>} : memref<96x128xf32, #tpu.memory_space<vmem>>, vector<96x128xf32>,
    %c1_i32 = arith.constant 1 : i32
    %158 = arith.cmpi eq, %arg1, %c1_i32 : i32
    %159 = arith.extui %158 : i1 to i32
    %c0_i32_78 = arith.constant 0 : i32
    %160 = arith.cmpi ne, %159, %c0_i32_78 : i32
    scf.if %160 {
      %c0_79 = arith.constant 0 : index
      %c0_80 = arith.constant 0 : index
      %161 = vector.load %arg17[%c0_79, %c0_80] : memref<96x128xf32, #tpu.memory_space<vmem>>, vector<96x128xf32>
      %c0_81 = arith.constant 0 : index
      %c0_82 = arith.constant 0 : index
      %162 = vector.load %arg14[%c0_81, %c0_82] : memref<1x128xf32, #tpu.memory_space<vmem>>, vector<1x128xf32>
      %c0_83 = arith.constant 0 : index
      %c0_84 = arith.constant 0 : index
      %163 = vector.load %arg15[%c0_83, %c0_84] : memref<1x128xf32, #tpu.memory_space<vmem>>, vector<1x128xf32>
      %cst_85 = arith.constant dense<0.000000e+00> : vector<96xf32>
      %164 = vector.multi_reduction <add>, %161, %cst_85 [1] : vector<96x128xf32> to vector<96xf32>
      %165 = vector.shape_cast %164 : vector<96xf32> to vector<96x1xf32>
      %cst_86 = arith.constant 1.280000e+02 : f32
      %166 = vector.broadcast %cst_86 : f32 to vector<96x1xf32>
      %167 = arith.divf %165, %166 : vector<96x1xf32>
      %168 = vector.broadcast %167 : vector<96x1xf32> to vector<96x128xf32>
      %169 = arith.subf %161, %168 : vector<96x128xf32>
      %170 = arith.mulf %169, %169 : vector<96x128xf32>
      %cst_87 = arith.constant dense<0.000000e+00> : vector<96xf32>
      %171 = vector.multi_reduction <add>, %170, %cst_87 [1] : vector<96x128xf32> to vector<96xf32>
      %172 = vector.shape_cast %171 : vector<96xf32> to vector<96x1xf32>
      %cst_88 = arith.constant 1.280000e+02 : f32
      %173 = vector.broadcast %cst_88 : f32 to vector<96x1xf32>
      %174 = arith.divf %172, %173 : vector<96x1xf32>
      %175 = vector.broadcast %167 : vector<96x1xf32> to vector<96x128xf32>
      %176 = arith.subf %161, %175 : vector<96x128xf32>
      %cst_89 = arith.constant 9.99999974E-6 : f32
      %177 = vector.broadcast %cst_89 : f32 to vector<96x1xf32>
      %178 = arith.addf %174, %177 : vector<96x1xf32>
      %179 = math.rsqrt %178 : vector<96x1xf32>
      %180 = vector.broadcast %179 : vector<96x1xf32> to vector<96x128xf32>
      %181 = arith.mulf %176, %180 : vector<96x128xf32>
      %182 = vector.broadcast %162 : vector<1x128xf32> to vector<96x128xf32>
      %183 = arith.mulf %181, %182 : vector<96x128xf32>
      %184 = vector.broadcast %163 : vector<1x128xf32> to vector<96x128xf32>
      %185 = arith.addf %183, %184 : vector<96x128xf32>
      %186 = arith.truncf %185 : vector<96x128xf32> to vector<96x128xbf16>
      %c0_90 = arith.constant 0 : index
      %c0_91 = arith.constant 0 : index
      %187 = vector.load %arg16[%c0_90, %c0_91] : memref<96x128xbf16, #tpu.memory_space<vmem>>, vector<96x128xbf16>
      tpu.vector_store %arg16[%c0_90, %c0_91], %186 {strides = array<i32>} : memref<96x128xbf16, #tpu.memory_space<vmem>>, vector<96x128xbf16>,
    } else {
    }
    return
  }
  func.func @transform_0(%arg0: i32, %arg1: i32) -> (i32, i32) {
    %c0_i32 = arith.constant 0 : i32
    %c0_i32_0 = arith.constant 0 : i32
    return %arg0, %c0_i32 : i32, i32
  }
  func.func @transform_1(%arg0: i32, %arg1: i32) -> (i32, i32, i32) {
    %c0_i32 = arith.constant 0 : i32
    %c0_i32_0 = arith.constant 0 : i32
    %c0_i32_1 = arith.constant 0 : i32
    return %arg1, %c0_i32, %c0_i32_0 : i32, i32, i32
  }
  func.func @transform_2(%arg0: i32, %arg1: i32) -> (i32, i32, i32) {
    %c0_i32 = arith.constant 0 : i32
    %c0_i32_0 = arith.constant 0 : i32
    %c0_i32_1 = arith.constant 0 : i32
    return %arg1, %c0_i32, %c0_i32_0 : i32, i32, i32
  }
  func.func @transform_3(%arg0: i32, %arg1: i32) -> (i32, i32, i32) {
    %c0_i32 = arith.constant 0 : i32
    %c0_i32_0 = arith.constant 0 : i32
    %c0_i32_1 = arith.constant 0 : i32
    return %arg1, %c0_i32, %c0_i32_0 : i32, i32, i32
  }
  func.func @transform_4(%arg0: i32, %arg1: i32) -> (i32, i32, i32, i32) {
    %c0_i32 = arith.constant 0 : i32
    %c0_i32_0 = arith.constant 0 : i32
    %c0_i32_1 = arith.constant 0 : i32
    %c0_i32_2 = arith.constant 0 : i32
    return %arg1, %c0_i32, %c0_i32_0, %c0_i32_1 : i32, i32, i32, i32
  }
  func.func @transform_5(%arg0: i32, %arg1: i32) -> (i32, i32, i32) {
    %c0_i32 = arith.constant 0 : i32
    %c0_i32_0 = arith.constant 0 : i32
    %c0_i32_1 = arith.constant 0 : i32
    return %arg1, %c0_i32, %c0_i32_0 : i32, i32, i32
  }
  func.func @transform_6(%arg0: i32, %arg1: i32) -> (i32, i32, i32) {
    %c0_i32 = arith.constant 0 : i32
    %c0_i32_0 = arith.constant 0 : i32
    %c0_i32_1 = arith.constant 0 : i32
    return %arg1, %c0_i32, %c0_i32_0 : i32, i32, i32
  }
  func.func @transform_7(%arg0: i32, %arg1: i32) -> (i32, i32, i32) {
    %c0_i32 = arith.constant 0 : i32
    %c0_i32_0 = arith.constant 0 : i32
    %c0_i32_1 = arith.constant 0 : i32
    return %arg1, %c0_i32, %c0_i32_0 : i32, i32, i32
  }
  func.func @transform_8(%arg0: i32, %arg1: i32) -> (i32, i32, i32) {
    %c0_i32 = arith.constant 0 : i32
    %c0_i32_0 = arith.constant 0 : i32
    %c0_i32_1 = arith.constant 0 : i32
    return %arg1, %c0_i32, %c0_i32_0 : i32, i32, i32
  }
  func.func @transform_9(%arg0: i32, %arg1: i32) -> (i32, i32, i32) {
    %c0_i32 = arith.constant 0 : i32
    %c0_i32_0 = arith.constant 0 : i32
    %c0_i32_1 = arith.constant 0 : i32
    return %arg1, %c0_i32, %c0_i32_0 : i32, i32, i32
  }
  func.func @transform_10(%arg0: i32, %arg1: i32) -> (i32, i32, i32) {
    %c0_i32 = arith.constant 0 : i32
    %c0_i32_0 = arith.constant 0 : i32
    %c0_i32_1 = arith.constant 0 : i32
    return %arg1, %c0_i32, %c0_i32_0 : i32, i32, i32
  }
  func.func @transform_11(%arg0: i32, %arg1: i32) -> (i32, i32, i32) {
    %c0_i32 = arith.constant 0 : i32
    %c0_i32_0 = arith.constant 0 : i32
    %c0_i32_1 = arith.constant 0 : i32
    return %arg1, %c0_i32, %c0_i32_0 : i32, i32, i32
  }
  func.func @transform_12(%arg0: i32, %arg1: i32) -> (i32, i32) {
    %c0_i32 = arith.constant 0 : i32
    %c0_i32_0 = arith.constant 0 : i32
    %c0_i32_1 = arith.constant 0 : i32
    return %c0_i32, %c0_i32_0 : i32, i32
  }
  func.func @transform_13(%arg0: i32, %arg1: i32) -> (i32, i32) {
    %c0_i32 = arith.constant 0 : i32
    %c0_i32_0 = arith.constant 0 : i32
    %c0_i32_1 = arith.constant 0 : i32
    return %c0_i32, %c0_i32_0 : i32, i32
  }
  func.func @transform_14(%arg0: i32, %arg1: i32) -> (i32, i32) {
    %c0_i32 = arith.constant 0 : i32
    %c0_i32_0 = arith.constant 0 : i32
    return %arg0, %c0_i32 : i32, i32
  }
}

</mosaic_0001>

<llo_original>
// kernel: vision_processor_forward.2
$region0: #{vision_processor_forward.2}
  #allocation0 [shape = 'u32[]', space=smem, size = 0x4, offset = 0x4, fixed_abs, tag = 'smem constant byte address 0x4 - core index']
  #allocation1 [shape = 'u32[72,128]{1,0:T(1,128)}', space=vmem, size = 0x9000, scoped, tag = 'internal scratch']
  %s0 = inlined_call_operand.vmem [shape: f32[2,48,192], index: 0, kind: input, shape index: {}]
  %s1 = inlined_call_operand.vmem [shape: f32[1,192], index: 1, kind: input, shape index: {}]
  %s2 = inlined_call_operand.vmem [shape: f32[1,192], index: 2, kind: input, shape index: {}]
  %s3 = inlined_call_operand.vmem [shape: bf16[192,128], index: 3, kind: input, shape index: {}]
  %s4 = inlined_call_operand.vmem [shape: f32[1,128], index: 4, kind: input, shape index: {}]
  %s5 = inlined_call_operand.vmem [shape: f32[1,128], index: 5, kind: input, shape index: {}]
  %s6 = inlined_call_operand.vmem [shape: f32[1,128], index: 6, kind: input, shape index: {}]
  %s7 = inlined_call_operand.vmem [shape: bf16[96,128], index: 7, kind: output, shape index: {}]
  %s8 = sld [smem:[#allocation0]]
  $region61: #{vision_processor_forward.2} parent=0
    _
  %s10 = ssub.s32 1, %s8
  %s11 = scalar_select 0, %s10, %s8
  loop: start=0, step=1, limit=4
  $region2: #{vision_processor_forward.2} parent=0 // loop_pre_header
    _
  $region3: #{vision_processor_forward.2} parent=0 // loop_header
    %s13 = sphi 0, %s17
    %p14 = scmp.ge.s32.totalorder %s13, 4
    %s23 = sphi 0, %s25
    %s26 = sphi 0, %s23
    %s27 = sphi 0, %s26
    %s43 = sphi 0, %s27
    %s47 = sphi 0, %s47
    %s49 = sphi 0, %s47
    %s50 = sphi 0, %s49
    %s64 = sphi 0, %s50
    %s68 = sphi 0, %s68
    %s70 = sphi 0, %s68
    %s71 = sphi 0, %s70
    %s85 = sphi 0, %s71
    %s89 = sphi 0, %s89
    %s91 = sphi 0, %s89
    %s92 = sphi 0, %s91
    %s106 = sphi 0, %s92
    %s110 = sphi 0, %s110
    %s112 = sphi 0, %s110
    %s113 = sphi 0, %s112
    %s127 = sphi 0, %s113
    %s131 = sphi 0, %s131
    %s133 = sphi 0, %s131
    %s134 = sphi 0, %s133
    %s148 = sphi 0, %s134
    %s152 = sphi 0, %s152
    %s154 = sphi 0, %s152
    %s155 = sphi 0, %s154
    %s169 = sphi 0, %s155
    %s175 = sphi 0, %s177
    %s178 = sphi 0, %s175
    %s179 = sphi 0, %s178
    %s195 = sphi 0, %s179
  $region4: #{vision_processor_forward.2} parent=0 // loop_header_branch
    %16 = sbr.rel (%p14) target = $region8
  $region5: #{vision_processor_forward.2} parent=0 // loop_body
    %s18 = ssub.s32 %s13, 1
    %s19 = ssub.s32 %s13, 2
    %s20 = sadd.s32 %s13, 1
    %s21 = ssub.s32 %s13, %s20
    %p22 = scmp.eq.s32.totalorder %s21, 0
    %s24 = sadd.s32 %s23, 1
    %s25 = scalar_select %p22, %s23, %s24
    %p28 = pneg %p22
    %p29 = scmp.eq.s32.totalorder %s13, 1
    %p30 = por %p28, %p29
    %p31 = scmp.ne.s32.totalorder %s23, %s26
    %p32 = scmp.eq.s32.totalorder %s13, 0
    %p33 = por %p31, %p32
    %p34 = scmp.ne.s32.totalorder %s23, %s26
    %p35 = scmp.eq.s32.totalorder %s18, 1
    %p36 = por %p34, %p35
    %p37 = scmp.ne.s32.totalorder %s26, %s27
    %p38 = scmp.eq.s32.totalorder %s18, 0
    %p39 = por %p37, %p38
    %p40 = scmp.ne.s32.totalorder %s26, %s27
    %p41 = scmp.eq.s32.totalorder %s19, 1
    %p42 = por %p40, %p41
    %p44 = scmp.ne.s32.totalorder %s27, %s43
    %p45 = scmp.eq.s32.totalorder %s19, 0
    %p46 = por %p44, %p45
    %s48 = sadd.s32 %s47, 1
    %p51 = scmp.eq.s32.totalorder %s13, 1
    %p52 = scmp.ne.s32.totalorder %s47, %s49
    %p53 = scmp.eq.s32.totalorder %s13, 0
    %p54 = por %p52, %p53
    %p55 = scmp.ne.s32.totalorder %s47, %s49
    %p56 = scmp.eq.s32.totalorder %s18, 1
    %p57 = por %p55, %p56
    %p58 = scmp.ne.s32.totalorder %s49, %s50
    %p59 = scmp.eq.s32.totalorder %s18, 0
    %p60 = por %p58, %p59
    %p61 = scmp.ne.s32.totalorder %s49, %s50
    %p62 = scmp.eq.s32.totalorder %s19, 1
    %p63 = por %p61, %p62
    %p65 = scmp.ne.s32.totalorder %s50, %s64
    %p66 = scmp.eq.s32.totalorder %s19, 0
    %p67 = por %p65, %p66
    %s69 = sadd.s32 %s68, 1
    %p72 = scmp.eq.s32.totalorder %s13, 1
    %p73 = scmp.ne.s32.totalorder %s68, %s70
    %p74 = scmp.eq.s32.totalorder %s13, 0
    %p75 = por %p73, %p74
    %p76 = scmp.ne.s32.totalorder %s68, %s70
    %p77 = scmp.eq.s32.totalorder %s18, 1
    %p78 = por %p76, %p77
    %p79 = scmp.ne.s32.totalorder %s70, %s71
    %p80 = scmp.eq.s32.totalorder %s18, 0
    %p81 = por %p79, %p80
    %p82 = scmp.ne.s32.totalorder %s70, %s71
    %p83 = scmp.eq.s32.totalorder %s19, 1
    %p84 = por %p82, %p83
    %p86 = scmp.ne.s32.totalorder %s71, %s85
    %p87 = scmp.eq.s32.totalorder %s19, 0
    %p88 = por %p86, %p87
    %s90 = sadd.s32 %s89, 1
    %p93 = scmp.eq.s32.totalorder %s13, 1
    %p94 = scmp.ne.s32.totalorder %s89, %s91
    %p95 = scmp.eq.s32.totalorder %s13, 0
    %p96 = por %p94, %p95
    %p97 = scmp.ne.s32.totalorder %s89, %s91
    %p98 = scmp.eq.s32.totalorder %s18, 1
    %p99 = por %p97, %p98
    %p100 = scmp.ne.s32.totalorder %s91, %s92
    %p101 = scmp.eq.s32.totalorder %s18, 0
    %p102 = por %p100, %p101
    %p103 = scmp.ne.s32.totalorder %s91, %s92
    %p104 = scmp.eq.s32.totalorder %s19, 1
    %p105 = por %p103, %p104
    %p107 = scmp.ne.s32.totalorder %s92, %s106
    %p108 = scmp.eq.s32.totalorder %s19, 0
    %p109 = por %p107, %p108
    %s111 = sadd.s32 %s110, 1
    %p114 = scmp.eq.s32.totalorder %s13, 1
    %p115 = scmp.ne.s32.totalorder %s110, %s112
    %p116 = scmp.eq.s32.totalorder %s13, 0
    %p117 = por %p115, %p116
    %p118 = scmp.ne.s32.totalorder %s110, %s112
    %p119 = scmp.eq.s32.totalorder %s18, 1
    %p120 = por %p118, %p119
    %p121 = scmp.ne.s32.totalorder %s112, %s113
    %p122 = scmp.eq.s32.totalorder %s18, 0
    %p123 = por %p121, %p122
    %p124 = scmp.ne.s32.totalorder %s112, %s113
    %p125 = scmp.eq.s32.totalorder %s19, 1
    %p126 = por %p124, %p125
    %p128 = scmp.ne.s32.totalorder %s113, %s127
    %p129 = scmp.eq.s32.totalorder %s19, 0
    %p130 = por %p128, %p129
    %s132 = sadd.s32 %s131, 1
    %p135 = scmp.eq.s32.totalorder %s13, 1
    %p136 = scmp.ne.s32.totalorder %s131, %s133
    %p137 = scmp.eq.s32.totalorder %s13, 0
    %p138 = por %p136, %p137
    %p139 = scmp.ne.s32.totalorder %s131, %s133
    %p140 = scmp.eq.s32.totalorder %s18, 1
    %p141 = por %p139, %p140
    %p142 = scmp.ne.s32.totalorder %s133, %s134
    %p143 = scmp.eq.s32.totalorder %s18, 0
    %p144 = por %p142, %p143
    %p145 = scmp.ne.s32.totalorder %s133, %s134
    %p146 = scmp.eq.s32.totalorder %s19, 1
    %p147 = por %p145, %p146
    %p149 = scmp.ne.s32.totalorder %s134, %s148
    %p150 = scmp.eq.s32.totalorder %s19, 0
    %p151 = por %p149, %p150
    %s153 = sadd.s32 %s152, 1
    %p156 = scmp.eq.s32.totalorder %s13, 1
    %p157 = scmp.ne.s32.totalorder %s152, %s154
    %p158 = scmp.eq.s32.totalorder %s13, 0
    %p159 = por %p157, %p158
    %p160 = scmp.ne.s32.totalorder %s152, %s154
    %p161 = scmp.eq.s32.totalorder %s18, 1
    %p162 = por %p160, %p161
    %p163 = scmp.ne.s32.totalorder %s154, %s155
    %p164 = scmp.eq.s32.totalorder %s18, 0
    %p165 = por %p163, %p164
    %p166 = scmp.ne.s32.totalorder %s154, %s155
    %p167 = scmp.eq.s32.totalorder %s19, 1
    %p168 = por %p166, %p167
    %p170 = scmp.ne.s32.totalorder %s155, %s169
    %p171 = scmp.eq.s32.totalorder %s19, 0
    %p172 = por %p170, %p171
    %s173 = ssub.s32 %s13, %s20
    %p174 = scmp.eq.s32.totalorder %s173, 0
    %s176 = sadd.s32 %s175, 1
    %s177 = scalar_select %p174, %s175, %s176
    %p180 = pneg %p174
    %p181 = scmp.eq.s32.totalorder %s13, 1
    %p182 = por %p180, %p181
    %p183 = scmp.ne.s32.totalorder %s175, %s178
    %p184 = scmp.eq.s32.totalorder %s13, 0
    %p185 = por %p183, %p184
    %p186 = scmp.ne.s32.totalorder %s175, %s178
    %p187 = scmp.eq.s32.totalorder %s18, 1
    %p188 = por %p186, %p187
    %p189 = scmp.ne.s32.totalorder %s178, %s179
    %p190 = scmp.eq.s32.totalorder %s18, 0
    %p191 = por %p189, %p190
    %p192 = scmp.ne.s32.totalorder %s178, %s179
    %p193 = scmp.eq.s32.totalorder %s19, 1
    %p194 = por %p192, %p193
    %p196 = scmp.ne.s32.totalorder %s179, %s195
    %p197 = scmp.eq.s32.totalorder %s19, 0
    %p198 = por %p196, %p197
    %p199 = scmp.le.s32.totalorder 1, %s13
    %p200 = scmp.lt.s32.totalorder %s13, 3
    %p201 = pnand %p199, %p200
    %p202 = pneg %p201
    // Predicated region
    $region9: #{vision_processor_forward.2} parent=5 // pred_check
      _
    $region10: #{vision_processor_forward.2} parent=5 // pred_check_branch
      %204 = sbr.rel (%p201) target = $region12
    $region11: #{vision_processor_forward.2} parent=5 // pred_region
      %s205 = ssub.s32 %s13, 1
      // Predicated region
      $region13: #{vision_processor_forward.2} parent=11 // pred_check
        %p206 = pneg %p60
      $region14: #{vision_processor_forward.2} parent=11 // pred_check_branch
        %208 = sbr.rel (%p206) target = $region16
      $region15: #{vision_processor_forward.2} parent=11 // pred_region
        _
      $region16: #{vision_processor_forward.2} parent=11 // pred_fallthru
        _
      // Predicated region
      $region17: #{vision_processor_forward.2} parent=11 // pred_check
        %p209 = pneg %p81
      $region18: #{vision_processor_forward.2} parent=11 // pred_check_branch
        %211 = sbr.rel (%p209) target = $region20
      $region19: #{vision_processor_forward.2} parent=11 // pred_region
        _
      $region20: #{vision_processor_forward.2} parent=11 // pred_fallthru
        _
      // Predicated region
      $region21: #{vision_processor_forward.2} parent=11 // pred_check
        %p212 = pneg %p102
      $region22: #{vision_processor_forward.2} parent=11 // pred_check_branch
        %214 = sbr.rel (%p212) target = $region24
      $region23: #{vision_processor_forward.2} parent=11 // pred_region
        _
      $region24: #{vision_processor_forward.2} parent=11 // pred_fallthru
        _
      // Predicated region
      $region25: #{vision_processor_forward.2} parent=11 // pred_check
        %p215 = pneg %p123
      $region26: #{vision_processor_forward.2} parent=11 // pred_check_branch
        %217 = sbr.rel (%p215) target = $region28
      $region27: #{vision_processor_forward.2} parent=11 // pred_region
        _
      $region28: #{vision_processor_forward.2} parent=11 // pred_fallthru
        _
      // Predicated region
      $region29: #{vision_processor_forward.2} parent=11 // pred_check
        %p218 = pneg %p144
      $region30: #{vision_processor_forward.2} parent=11 // pred_check_branch
        %220 = sbr.rel (%p218) target = $region32
      $region31: #{vision_processor_forward.2} parent=11 // pred_region
        _
      $region32: #{vision_processor_forward.2} parent=11 // pred_fallthru
        _
      // Predicated region
      $region33: #{vision_processor_forward.2} parent=11 // pred_check
        %p221 = pneg %p165
      $region34: #{vision_processor_forward.2} parent=11 // pred_check_branch
        %223 = sbr.rel (%p221) target = $region36
      $region35: #{vision_processor_forward.2} parent=11 // pred_region
        _
      $region36: #{vision_processor_forward.2} parent=11 // pred_fallthru
        _
    $region12: #{vision_processor_forward.2} parent=5 // pred_fallthru
      _
    %p224 = scmp.lt.s32.totalorder %s13, 2
    // Predicated region
    $region37: #{vision_processor_forward.2} parent=5 // pred_check
      %p225 = pneg %p224
    $region38: #{vision_processor_forward.2} parent=5 // pred_check_branch
      %227 = sbr.rel (%p225) target = $region40
    $region39: #{vision_processor_forward.2} parent=5 // pred_region
      // Predicated region
      $region41: #{vision_processor_forward.2} parent=39 // pred_check
        %p228 = pneg %p33
      $region42: #{vision_processor_forward.2} parent=39 // pred_check_branch
        %230 = sbr.rel (%p228) target = $region44
      $region43: #{vision_processor_forward.2} parent=39 // pred_region
        %p231 = scmp.lt.s32.totalorder %s13, 1
        %s232 = scalar_select %p231, %s13, 1
        %s233 = smul.addr %s232, 12
        %s234 = smul.addr %s233, 8
        %s235 = scalar_lea.vmem %s0, %s234
      $region44: #{vision_processor_forward.2} parent=39 // pred_fallthru
        _
    $region40: #{vision_processor_forward.2} parent=5 // pred_fallthru
      _
    %p236 = scmp.le.s32.totalorder 1, %s13
    %p237 = scmp.lt.s32.totalorder %s13, 3
    %p238 = pnand %p236, %p237
    %p239 = pneg %p238
    // Predicated region
    $region45: #{vision_processor_forward.2} parent=5 // pred_check
      _
    $region46: #{vision_processor_forward.2} parent=5 // pred_check_branch
      %241 = sbr.rel (%p238) target = $region48
    $region47: #{vision_processor_forward.2} parent=5 // pred_region
      %s242 = ssub.s32 %s13, 1
      %p243 = scmp.lt.s32.totalorder %s18, 1
      %s244 = scalar_select %p243, %s18, 1
      %s245 = smul.addr %s244, 12
      %s246 = smul.addr %s245, 8
      %s247 = scalar_lea.vmem %s0, %s246
      %p248 = pneg %p39
      %p249 = pneg %p36
      %p250 = pneg %p60
      %p251 = pneg %p57
      %p252 = pneg %p81
      %p253 = pneg %p78
      %p254 = pneg %p102
      %p255 = pneg %p99
      %p256 = pneg %p123
      %p257 = pneg %p120
      %p258 = pneg %p144
      %p259 = pneg %p141
      %p260 = pneg %p165
      %p261 = pneg %p162
      %p262 = pneg %p191
      %p263 = pneg %p188
      %s264 = smul.u32 6, %s18
      %p265 = scmp.lt.s32.totalorder %s264, 11
      %s266 = scalar_select %p265, %s264, 11
      %s267 = smul.addr %s266, 4
      %s268 = scalar_lea.vmem %s7, %s267
      %p269 = scmp.lt.s32.totalorder %s18, 1
      %s270 = scalar_select %p269, %s18, 1
      %s271 = smul.addr %s270, 12
      %s272 = smul.addr %s271, 8
      %s273 = scalar_lea.vmem %s0, %s272
      %s274 = smul.u32 6, %s18
      %p275 = scmp.lt.s32.totalorder %s274, 11
      %s276 = scalar_select %p275, %s274, 11
      %s277 = smul.addr %s276, 4
      %s278 = scalar_lea.vmem %s7, %s277
      %s279 = smul.u32 6, %s18
      %v281 = vld [vmem:[%s273] sm:$0xff]
      %v282 = vld [vmem:[%s273 + $0x8] sm:$0xff]
      %v283 = vld [vmem:[%s273 + $0x10] sm:$0xff]
      %v284 = vld [vmem:[%s273 + $0x18] sm:$0xff]
      %v285 = vld [vmem:[%s273 + $0x20] sm:$0xff]
      %v286 = vld [vmem:[%s273 + $0x28] sm:$0xff]
      %v287 = vld [vmem:[%s273 + $0x30] sm:$0xff]
      %v288 = vld [vmem:[%s273 + $0x38] sm:$0xff]
      %v289 = vld [vmem:[%s273 + $0x40] sm:$0xff]
      %v290 = vld [vmem:[%s273 + $0x48] sm:$0xff]
      %v291 = vld [vmem:[%s273 + $0x50] sm:$0xff]
      %v292 = vld [vmem:[%s273 + $0x58] sm:$0xff]
      %v293 = vld [vmem:[%s1] sm:$0x3]
      %v294 = vld [vmem:[%s2] sm:$0x3]
      %vm295 = vcmask 523264
      %v296 = vsel %vm295, %v282, 0.0
      %v297 = vadd.f32 %v281, %v296
      %298 = vadd.xlane.f32.xlu0 %v297
      %v299 = vpop.xlane.xlu0 %298
      %v300 = vsel %vm295, %v284, 0.0
      %v301 = vadd.f32 %v283, %v300
      %302 = vadd.xlane.f32.xlu0 %v301
      %v303 = vpop.xlane.xlu0 %302
      %v304 = vsel %vm295, %v286, 0.0
      %v305 = vadd.f32 %v285, %v304
      %306 = vadd.xlane.f32.xlu0 %v305
      %v307 = vpop.xlane.xlu0 %306
      %v308 = vsel %vm295, %v288, 0.0
      %v309 = vadd.f32 %v287, %v308
      %310 = vadd.xlane.f32.xlu0 %v309
      %v311 = vpop.xlane.xlu0 %310
      %v312 = vsel %vm295, %v290, 0.0
      %v313 = vadd.f32 %v289, %v312
      %314 = vadd.xlane.f32.xlu0 %v313
      %v315 = vpop.xlane.xlu0 %314
      %v316 = vsel %vm295, %v292, 0.0
      %v317 = vadd.f32 %v291, %v316
      %318 = vadd.xlane.f32.xlu0 %v317
      %v319 = vpop.xlane.xlu0 %318
      %v320 = vrcp.pop 192.0
      %v321 = vmul.f32 192.0, %v320
      %v322 = vsub.f32 1.0, %v321
      %v323 = vmul.f32 %v320, %v322
      %v324 = vadd.f32 %v320, %v323
      %vm325 = vweird.f32 %v320
      %v326 = vsel %vm325, %v320, %v324
      %v327 = vmul.f32 %v299, %v326
      %v328 = vmul.f32 %v303, %v326
      %v329 = vmul.f32 %v307, %v326
      %v330 = vmul.f32 %v311, %v326
      %v331 = vmul.f32 %v315, %v326
      %v332 = vmul.f32 %v319, %v326
      %v333 = vsub.f32 %v281, %v327
      %v334 = vsub.f32 %v282, %v327
      %v335 = vsub.f32 %v283, %v328
      %v336 = vsub.f32 %v284, %v328
      %v337 = vsub.f32 %v285, %v329
      %v338 = vsub.f32 %v286, %v329
      %v339 = vsub.f32 %v287, %v330
      %v340 = vsub.f32 %v288, %v330
      %v341 = vsub.f32 %v289, %v331
      %v342 = vsub.f32 %v290, %v331
      %v343 = vsub.f32 %v291, %v332
      %v344 = vsub.f32 %v292, %v332
      %v345 = vmul.f32 %v333, %v333
      %v346 = vmul.f32 %v334, %v334
      %v347 = vmul.f32 %v335, %v335
      %v348 = vmul.f32 %v336, %v336
      %v349 = vmul.f32 %v337, %v337
      %v350 = vmul.f32 %v338, %v338
      %v351 = vmul.f32 %v339, %v339
      %v352 = vmul.f32 %v340, %v340
      %v353 = vmul.f32 %v341, %v341
      %v354 = vmul.f32 %v342, %v342
      %v355 = vmul.f32 %v343, %v343
      %v356 = vmul.f32 %v344, %v344
      %v357 = vsel %vm295, %v346, 0.0
      %v358 = vadd.f32 %v345, %v357
      %359 = vadd.xlane.f32.xlu0 %v358
      %v360 = vpop.xlane.xlu0 %359
      %v361 = vsel %vm295, %v348, 0.0
      %v362 = vadd.f32 %v347, %v361
      %363 = vadd.xlane.f32.xlu0 %v362
      %v364 = vpop.xlane.xlu0 %363
      %v365 = vsel %vm295, %v350, 0.0
      %v366 = vadd.f32 %v349, %v365
      %367 = vadd.xlane.f32.xlu0 %v366
      %v368 = vpop.xlane.xlu0 %367
      %v369 = vsel %vm295, %v352, 0.0
      %v370 = vadd.f32 %v351, %v369
      %371 = vadd.xlane.f32.xlu0 %v370
      %v372 = vpop.xlane.xlu0 %371
      %v373 = vsel %vm295, %v354, 0.0
      %v374 = vadd.f32 %v353, %v373
      %375 = vadd.xlane.f32.xlu0 %v374
      %v376 = vpop.xlane.xlu0 %375
      %v377 = vsel %vm295, %v356, 0.0
      %v378 = vadd.f32 %v355, %v377
      %379 = vadd.xlane.f32.xlu0 %v378
      %v380 = vpop.xlane.xlu0 %379
      %v381 = vmul.f32 %v360, %v326
      %v382 = vmul.f32 %v364, %v326
      %v383 = vmul.f32 %v368, %v326
      %v384 = vmul.f32 %v372, %v326
      %v385 = vmul.f32 %v376, %v326
      %v386 = vmul.f32 %v380, %v326
      %v387 = vadd.f32 %v381, 1e-05
      %v388 = vadd.f32 %v382, 1e-05
      %v389 = vadd.f32 %v383, 1e-05
      %v390 = vadd.f32 %v384, 1e-05
      %v391 = vadd.f32 %v385, 1e-05
      %v392 = vadd.f32 %v386, 1e-05
      %v393 = vrsqrt.pop %v387
      %v394 = vmul.f32 %v393, %v387
      %v395 = vmul.f32 %v394, %v393
      %v396 = vmul.f32 0.5, %v395
      %v397 = vsub.f32 1.5, %v396
      %v398 = vmul.f32 %v393, %v397
      %vm399 = vweird.f32 %v387
      %vm400 = vweird.f32 %v393
      %vm401 = vmor %vm399, %vm400
      %v402 = vsel %vm401, %v393, %v398
      %v403 = vrsqrt.pop %v388
      %v404 = vmul.f32 %v403, %v388
      %v405 = vmul.f32 %v404, %v403
      %v406 = vmul.f32 0.5, %v405
      %v407 = vsub.f32 1.5, %v406
      %v408 = vmul.f32 %v403, %v407
      %vm409 = vweird.f32 %v388
      %vm410 = vweird.f32 %v403
      %vm411 = vmor %vm409, %vm410
      %v412 = vsel %vm411, %v403, %v408
      %v413 = vrsqrt.pop %v389
      %v414 = vmul.f32 %v413, %v389
      %v415 = vmul.f32 %v414, %v413
      %v416 = vmul.f32 0.5, %v415
      %v417 = vsub.f32 1.5, %v416
      %v418 = vmul.f32 %v413, %v417
      %vm419 = vweird.f32 %v389
      %vm420 = vweird.f32 %v413
      %vm421 = vmor %vm419, %vm420
      %v422 = vsel %vm421, %v413, %v418
      %v423 = vrsqrt.pop %v390
      %v424 = vmul.f32 %v423, %v390
      %v425 = vmul.f32 %v424, %v423
      %v426 = vmul.f32 0.5, %v425
      %v427 = vsub.f32 1.5, %v426
      %v428 = vmul.f32 %v423, %v427
      %vm429 = vweird.f32 %v390
      %vm430 = vweird.f32 %v423
      %vm431 = vmor %vm429, %vm430
      %v432 = vsel %vm431, %v423, %v428
      %v433 = vrsqrt.pop %v391
      %v434 = vmul.f32 %v433, %v391
      %v435 = vmul.f32 %v434, %v433
      %v436 = vmul.f32 0.5, %v435
      %v437 = vsub.f32 1.5, %v436
      %v438 = vmul.f32 %v433, %v437
      %vm439 = vweird.f32 %v391
      %vm440 = vweird.f32 %v433
      %vm441 = vmor %vm439, %vm440
      %v442 = vsel %vm441, %v433, %v438
      %v443 = vrsqrt.pop %v392
      %v444 = vmul.f32 %v443, %v392
      %v445 = vmul.f32 %v444, %v443
      %v446 = vmul.f32 0.5, %v445
      %v447 = vsub.f32 1.5, %v446
      %v448 = vmul.f32 %v443, %v447
      %vm449 = vweird.f32 %v392
      %vm450 = vweird.f32 %v443
      %vm451 = vmor %vm449, %vm450
      %v452 = vsel %vm451, %v443, %v448
      %v453 = vmul.f32 %v333, %v402
      %v454 = vmul.f32 %v334, %v402
      %v455 = vmul.f32 %v335, %v412
      %v456 = vmul.f32 %v336, %v412
      %v457 = vmul.f32 %v337, %v422
      %v458 = vmul.f32 %v338, %v422
      %v459 = vmul.f32 %v339, %v432
      %v460 = vmul.f32 %v340, %v432
      %v461 = vmul.f32 %v341, %v442
      %v462 = vmul.f32 %v342, %v442
      %v463 = vmul.f32 %v343, %v452
      %v464 = vmul.f32 %v344, %v452
      %v466 = vperm.slane %v293, 0
      %v467 = vperm.slane %v293, 1
      %v470 = vmul.f32 %v453, %v466
      %v471 = vmul.f32 %v454, %v467
      %v472 = vmul.f32 %v455, %v466
      %v473 = vmul.f32 %v456, %v467
      %v474 = vmul.f32 %v457, %v466
      %v475 = vmul.f32 %v458, %v467
      %v476 = vmul.f32 %v459, %v466
      %v477 = vmul.f32 %v460, %v467
      %v478 = vmul.f32 %v461, %v466
      %v479 = vmul.f32 %v462, %v467
      %v480 = vmul.f32 %v463, %v466
      %v481 = vmul.f32 %v464, %v467
      %v483 = vperm.slane %v294, 0
      %v484 = vperm.slane %v294, 1
      %v487 = vadd.f32 %v470, %v483
      %v488 = vadd.f32 %v471, %v484
      %v489 = vadd.f32 %v472, %v483
      %v490 = vadd.f32 %v473, %v484
      %v491 = vadd.f32 %v474, %v483
      %v492 = vadd.f32 %v475, %v484
      %v493 = vadd.f32 %v476, %v483
      %v494 = vadd.f32 %v477, %v484
      %v495 = vadd.f32 %v478, %v483
      %v496 = vadd.f32 %v479, %v484
      %v497 = vadd.f32 %v480, %v483
      %v498 = vadd.f32 %v481, %v484
      %v499 = vpack.c.bf16 %v489, %v487
      %v500 = vpack.c.bf16 %v490, %v488
      %v501 = vpack.c.bf16 %v493, %v491
      %v502 = vpack.c.bf16 %v494, %v492
      %v503 = vpack.c.bf16 %v497, %v495
      %v504 = vpack.c.bf16 %v498, %v496
      %v505 = vld [vmem:[%s3] sm:$0xf]
      %v506 = vld [vmem:[%s3 + $0x4] sm:$0xf]
      %v507 = vld [vmem:[%s3 + $0x8] sm:$0xf]
      %v508 = vld [vmem:[%s3 + $0xc] sm:$0xf]
      %v509 = vld [vmem:[%s3 + $0x10] sm:$0xf]
      %v510 = vld [vmem:[%s3 + $0x14] sm:$0xf]
      %v511 = vld [vmem:[%s3 + $0x18] sm:$0xf]
      %v512 = vld [vmem:[%s3 + $0x1c] sm:$0xf]
      %v513 = vld [vmem:[%s3 + $0x20] sm:$0xf]
      %v514 = vld [vmem:[%s3 + $0x24] sm:$0xf]
      %v515 = vld [vmem:[%s3 + $0x28] sm:$0xf]
      %v516 = vld [vmem:[%s3 + $0x2c] sm:$0xf]
      %v517 = vld [vmem:[%s3 + $0x30] sm:$0xf]
      %v518 = vld [vmem:[%s3 + $0x34] sm:$0xf]
      %v519 = vld [vmem:[%s3 + $0x38] sm:$0xf]
      %v520 = vld [vmem:[%s3 + $0x3c] sm:$0xf]
      %v521 = vld [vmem:[%s3 + $0x40] sm:$0xf]
      %v522 = vld [vmem:[%s3 + $0x44] sm:$0xf]
      %v523 = vld [vmem:[%s3 + $0x48] sm:$0xf]
      %v524 = vld [vmem:[%s3 + $0x4c] sm:$0xf]
      %v525 = vld [vmem:[%s3 + $0x50] sm:$0xf]
      %v526 = vld [vmem:[%s3 + $0x54] sm:$0xf]
      %v527 = vld [vmem:[%s3 + $0x58] sm:$0xf]
      %v528 = vld [vmem:[%s3 + $0x5c] sm:$0xf]
      %v529 = vld [vmem:[%s4] sm:$0x1]
      %v531 = vperm.slane %v529, 0
      %v557 = vunpack.c.l.b16 %v505
      %v558 = vunpack.c.l.b16 %v506
      %v559 = vunpack.c.l.b16 %v507
      %v560 = vunpack.c.l.b16 %v508
      %v561 = vunpack.c.l.b16 %v509
      %v562 = vunpack.c.l.b16 %v510
      %v563 = vunpack.c.l.b16 %v511
      %v564 = vunpack.c.l.b16 %v512
      %v565 = vunpack.c.l.b16 %v513
      %v566 = vunpack.c.l.b16 %v514
      %v567 = vunpack.c.l.b16 %v515
      %v568 = vunpack.c.l.b16 %v516
      %v569 = vunpack.c.l.b16 %v517
      %v570 = vunpack.c.l.b16 %v518
      %v571 = vunpack.c.l.b16 %v519
      %v572 = vunpack.c.l.b16 %v520
      %v573 = vunpack.c.l.b16 %v521
      %v574 = vunpack.c.l.b16 %v522
      %v575 = vunpack.c.l.b16 %v523
      %v576 = vunpack.c.l.b16 %v524
      %v577 = vunpack.c.l.b16 %v525
      %v578 = vunpack.c.l.b16 %v526
      %v579 = vunpack.c.l.b16 %v527
      %v580 = vunpack.c.l.b16 %v528
      %v581 = vpack.c.b16 %v558, %v557
      %v582 = vpack.c.b16 %v560, %v559
      %v583 = vpack.c.b16 %v562, %v561
      %v584 = vpack.c.b16 %v564, %v563
      %v585 = vpack.c.b16 %v566, %v565
      %v586 = vpack.c.b16 %v568, %v567
      %v587 = vpack.c.b16 %v570, %v569
      %v588 = vpack.c.b16 %v572, %v571
      %v589 = vpack.c.b16 %v574, %v573
      %v590 = vpack.c.b16 %v576, %v575
      %v591 = vpack.c.b16 %v578, %v577
      %v592 = vpack.c.b16 %v580, %v579
      %v606 = vsel %vm295, %v500, 0
      %v609 = vsel %vm295, %v502, 0
      %v612 = vsel %vm295, %v504, 0
      %614 = vmatpush.bf16.msra.mxu0 %v588
      %615 = vmatpush.bf16.msra.mxu0 %v587
      %616 = vmatpush.bf16.msra.mxu0 %v586
      %617 = vmatpush.bf16.msra.mxu0 %v585
      %618 = vmatpush.bf16.msra.mxu0 %v584
      %619 = vmatpush.bf16.msra.mxu0 %v583
      %620 = vmatpush.bf16.msra.mxu0 %v582
      %621 = vmatpush.bf16.msra.mxu0 %v581
      %622 = vmatmul.bf16.gmra.mxu0 %v499
      %v623 = vpop.f32.mrf.mxu0
      %v624 = vadd.f32 %v531, %v623
      %v625 = vpop.f32.mrf.mxu0
      %v626 = vadd.f32 %v531, %v625
      %627 = vmatmul.bf16.gmra.mxu0 %v501
      %v628 = vpop.f32.mrf.mxu0
      %v629 = vadd.f32 %v531, %v628
      %v630 = vpop.f32.mrf.mxu0
      %v631 = vadd.f32 %v531, %v630
      %632 = vmatmul.bf16.gmra.mxu0 %v503
      %v633 = vpop.f32.mrf.mxu0
      %v634 = vadd.f32 %v531, %v633
      %v635 = vpop.f32.mrf.mxu0
      %v636 = vadd.f32 %v531, %v635
      %637 = vdwg.mxu0
      %638 = vmatpush.bf16.msra.mxu0 0
      %639 = vmatpush.bf16.msra.mxu0 0
      %640 = vmatpush.bf16.msra.mxu0 0
      %641 = vmatpush.bf16.msra.mxu0 0
      %642 = vmatpush.bf16.msra.mxu0 %v592
      %643 = vmatpush.bf16.msra.mxu0 %v591
      %644 = vmatpush.bf16.msra.mxu0 %v590
      %645 = vmatpush.bf16.msra.mxu0 %v589
      %646 = vmatmul.bf16.gmra.mxu0 %v606
      %v647 = vpop.f32.mrf.mxu0
      %v648 = vadd.f32 %v624, %v647
      %v649 = vpop.f32.mrf.mxu0
      %v650 = vadd.f32 %v626, %v649
      %651 = vmatmul.bf16.gmra.mxu0 %v609
      %v652 = vpop.f32.mrf.mxu0
      %v653 = vadd.f32 %v629, %v652
      %v654 = vpop.f32.mrf.mxu0
      %v655 = vadd.f32 %v631, %v654
      %656 = vmatmul.bf16.gmra.mxu0 %v612
      %v657 = vpop.f32.mrf.mxu0
      %v658 = vadd.f32 %v634, %v657
      %v659 = vpop.f32.mrf.mxu0
      %v660 = vadd.f32 %v636, %v659
      %661 = vdwg.mxu0
      %v662 = vld [vmem:[%s5] sm:$0x1]
      %v663 = vld [vmem:[%s6] sm:$0x1]
      %664 = vadd.xlane.f32.xlu0 %v648
      %v665 = vpop.xlane.xlu0 %664
      %666 = vadd.xlane.f32.xlu0 %v650
      %v667 = vpop.xlane.xlu0 %666
      %668 = vadd.xlane.f32.xlu0 %v653
      %v669 = vpop.xlane.xlu0 %668
      %670 = vadd.xlane.f32.xlu0 %v655
      %v671 = vpop.xlane.xlu0 %670
      %672 = vadd.xlane.f32.xlu0 %v658
      %v673 = vpop.xlane.xlu0 %672
      %674 = vadd.xlane.f32.xlu0 %v660
      %v675 = vpop.xlane.xlu0 %674
      %v676 = vrcp.pop 128.0
      %v677 = vmul.f32 128.0, %v676
      %v678 = vsub.f32 1.0, %v677
      %v679 = vmul.f32 %v676, %v678
      %v680 = vadd.f32 %v676, %v679
      %vm681 = vweird.f32 %v676
      %v682 = vsel %vm681, %v676, %v680
      %v683 = vmul.f32 %v665, %v682
      %v684 = vmul.f32 %v667, %v682
      %v685 = vmul.f32 %v669, %v682
      %v686 = vmul.f32 %v671, %v682
      %v687 = vmul.f32 %v673, %v682
      %v688 = vmul.f32 %v675, %v682
      %v689 = vsub.f32 %v648, %v683
      %v690 = vsub.f32 %v650, %v684
      %v691 = vsub.f32 %v653, %v685
      %v692 = vsub.f32 %v655, %v686
      %v693 = vsub.f32 %v658, %v687
      %v694 = vsub.f32 %v660, %v688
      %v695 = vmul.f32 %v689, %v689
      %v696 = vmul.f32 %v690, %v690
      %v697 = vmul.f32 %v691, %v691
      %v698 = vmul.f32 %v692, %v692
      %v699 = vmul.f32 %v693, %v693
      %v700 = vmul.f32 %v694, %v694
      %701 = vadd.xlane.f32.xlu0 %v695
      %v702 = vpop.xlane.xlu0 %701
      %703 = vadd.xlane.f32.xlu0 %v696
      %v704 = vpop.xlane.xlu0 %703
      %705 = vadd.xlane.f32.xlu0 %v697
      %v706 = vpop.xlane.xlu0 %705
      %707 = vadd.xlane.f32.xlu0 %v698
      %v708 = vpop.xlane.xlu0 %707
      %709 = vadd.xlane.f32.xlu0 %v699
      %v710 = vpop.xlane.xlu0 %709
      %711 = vadd.xlane.f32.xlu0 %v700
      %v712 = vpop.xlane.xlu0 %711
      %v713 = vmul.f32 %v702, %v682
      %v714 = vmul.f32 %v704, %v682
      %v715 = vmul.f32 %v706, %v682
      %v716 = vmul.f32 %v708, %v682
      %v717 = vmul.f32 %v710, %v682
      %v718 = vmul.f32 %v712, %v682
      %v719 = vadd.f32 %v713, 1e-05
      %v720 = vadd.f32 %v714, 1e-05
      %v721 = vadd.f32 %v715, 1e-05
      %v722 = vadd.f32 %v716, 1e-05
      %v723 = vadd.f32 %v717, 1e-05
      %v724 = vadd.f32 %v718, 1e-05
      %v725 = vrsqrt.pop %v719
      %v726 = vmul.f32 %v725, %v719
      %v727 = vmul.f32 %v726, %v725
      %v728 = vmul.f32 0.5, %v727
      %v729 = vsub.f32 1.5, %v728
      %v730 = vmul.f32 %v725, %v729
      %vm731 = vweird.f32 %v719
      %vm732 = vweird.f32 %v725
      %vm733 = vmor %vm731, %vm732
      %v734 = vsel %vm733, %v725, %v730
      %v735 = vrsqrt.pop %v720
      %v736 = vmul.f32 %v735, %v720
      %v737 = vmul.f32 %v736, %v735
      %v738 = vmul.f32 0.5, %v737
      %v739 = vsub.f32 1.5, %v738
      %v740 = vmul.f32 %v735, %v739
      %vm741 = vweird.f32 %v720
      %vm742 = vweird.f32 %v735
      %vm743 = vmor %vm741, %vm742
      %v744 = vsel %vm743, %v735, %v740
      %v745 = vrsqrt.pop %v721
      %v746 = vmul.f32 %v745, %v721
      %v747 = vmul.f32 %v746, %v745
      %v748 = vmul.f32 0.5, %v747
      %v749 = vsub.f32 1.5, %v748
      %v750 = vmul.f32 %v745, %v749
      %vm751 = vweird.f32 %v721
      %vm752 = vweird.f32 %v745
      %vm753 = vmor %vm751, %vm752
      %v754 = vsel %vm753, %v745, %v750
      %v755 = vrsqrt.pop %v722
      %v756 = vmul.f32 %v755, %v722
      %v757 = vmul.f32 %v756, %v755
      %v758 = vmul.f32 0.5, %v757
      %v759 = vsub.f32 1.5, %v758
      %v760 = vmul.f32 %v755, %v759
      %vm761 = vweird.f32 %v722
      %vm762 = vweird.f32 %v755
      %vm763 = vmor %vm761, %vm762
      %v764 = vsel %vm763, %v755, %v760
      %v765 = vrsqrt.pop %v723
      %v766 = vmul.f32 %v765, %v723
      %v767 = vmul.f32 %v766, %v765
      %v768 = vmul.f32 0.5, %v767
      %v769 = vsub.f32 1.5, %v768
      %v770 = vmul.f32 %v765, %v769
      %vm771 = vweird.f32 %v723
      %vm772 = vweird.f32 %v765
      %vm773 = vmor %vm771, %vm772
      %v774 = vsel %vm773, %v765, %v770
      %v775 = vrsqrt.pop %v724
      %v776 = vmul.f32 %v775, %v724
      %v777 = vmul.f32 %v776, %v775
      %v778 = vmul.f32 0.5, %v777
      %v779 = vsub.f32 1.5, %v778
      %v780 = vmul.f32 %v775, %v779
      %vm781 = vweird.f32 %v724
      %vm782 = vweird.f32 %v775
      %vm783 = vmor %vm781, %vm782
      %v784 = vsel %vm783, %v775, %v780
      %v785 = vmul.f32 %v689, %v734
      %v786 = vmul.f32 %v690, %v744
      %v787 = vmul.f32 %v691, %v754
      %v788 = vmul.f32 %v692, %v764
      %v789 = vmul.f32 %v693, %v774
      %v790 = vmul.f32 %v694, %v784
      %v792 = vperm.slane %v662, 0
      %v794 = vmul.f32 %v785, %v792
      %v795 = vmul.f32 %v786, %v792
      %v796 = vmul.f32 %v787, %v792
      %v797 = vmul.f32 %v788, %v792
      %v798 = vmul.f32 %v789, %v792
      %v799 = vmul.f32 %v790, %v792
      %v801 = vperm.slane %v663, 0
      %v803 = vadd.f32 %v794, %v801
      %v804 = vadd.f32 %v795, %v801
      %v805 = vadd.f32 %v796, %v801
      %v806 = vadd.f32 %v797, %v801
      %v807 = vadd.f32 %v798, %v801
      %v808 = vadd.f32 %v799, %v801
      %v809 = vpack.c.bf16 %v803, %v803
      %v810 = vpack.c.bf16 %v804, %v804
      %v811 = vpack.c.bf16 %v805, %v805
      %v812 = vpack.c.bf16 %v806, %v806
      %v813 = vpack.c.bf16 %v807, %v807
      %v814 = vpack.c.bf16 %v808, %v808
      %815 = vst [vmem:[%s278] sm:$0xf] %v809
      %816 = vst [vmem:[%s278 + $0x4] sm:$0xf] %v810
      %817 = vst [vmem:[%s278 + $0x8] sm:$0xf] %v811
      %818 = vst [vmem:[%s278 + $0xc] sm:$0xf] %v812
      %819 = vst [vmem:[%s278 + $0x10] sm:$0xf] %v813
      %820 = vst [vmem:[%s278 + $0x14] sm:$0xf] %v814
      %s821 = smul.u32 6, %s18
      %p822 = scmp.lt.s32.totalorder %s821, 11
      %s823 = scalar_select %p822, %s821, 11
      %s824 = smul.addr %s823, 4
      %s825 = scalar_lea.vmem %s7, %s824
      // Predicated region
      $region49: #{vision_processor_forward.2} parent=47 // pred_check
        %p826 = pneg %p188
      $region50: #{vision_processor_forward.2} parent=47 // pred_check_branch
        %828 = sbr.rel (%p826) target = $region52
      $region51: #{vision_processor_forward.2} parent=47 // pred_region
        %s829 = smul.u32 6, %s18
      $region52: #{vision_processor_forward.2} parent=47 // pred_fallthru
        _
    $region48: #{vision_processor_forward.2} parent=5 // pred_fallthru
      _
    %p830 = scmp.le.s32.totalorder 2, %s13
    // Predicated region
    $region53: #{vision_processor_forward.2} parent=5 // pred_check
      %p831 = pneg %p830
    $region54: #{vision_processor_forward.2} parent=5 // pred_check_branch
      %833 = sbr.rel (%p831) target = $region56
    $region55: #{vision_processor_forward.2} parent=5 // pred_region
      %s834 = ssub.s32 %s13, 2
      // Predicated region
      $region57: #{vision_processor_forward.2} parent=55 // pred_check
        %p835 = pneg %p194
      $region58: #{vision_processor_forward.2} parent=55 // pred_check_branch
        %837 = sbr.rel (%p835) target = $region60
      $region59: #{vision_processor_forward.2} parent=55 // pred_region
        %s838 = smul.u32 6, %s19
        %p839 = scmp.lt.s32.totalorder %s838, 11
        %s840 = scalar_select %p839, %s838, 11
        %s841 = smul.addr %s840, 4
        %s842 = scalar_lea.vmem %s7, %s841
      $region60: #{vision_processor_forward.2} parent=55 // pred_fallthru
        _
    $region56: #{vision_processor_forward.2} parent=5 // pred_fallthru
      _
  $region6: #{vision_processor_forward.2} parent=0 // loop_footer
    %s17 = sadd.s32 1, %s13
  $region7: #{vision_processor_forward.2} parent=0 // loop_footer_branch
    %12 = sbr.rel target = $region3
  $region8: #{vision_processor_forward.2} parent=0 // loop_exit
    _

// kernel: vision_processor_forward.3
$region0: #{vision_processor_forward.3}
  #allocation0 [shape = 'u32[]', space=smem, size = 0x4, offset = 0x4, fixed_abs, tag = 'smem constant byte address 0x4 - core index']
  #allocation1 [shape = 'u32[72,128]{1,0:T(1,128)}', space=vmem, size = 0x9000, scoped, tag = 'internal scratch']
  #allocation2 [shape = 'f32[96,128]{1,0:T(8,128)}', space=vmem, size = 0xc000, scoped, tag = 'scratch operand']
  %s0 = inlined_call_operand.vmem [shape: bf16[96,128], index: 0, kind: input, shape index: {}, may-alias: {0,14}]
  %s1 = inlined_call_operand.vmem [shape: f32[2,1,128], index: 1, kind: input, shape index: {}]
  %s2 = inlined_call_operand.vmem [shape: f32[2,1,128], index: 2, kind: input, shape index: {}]
  %s3 = inlined_call_operand.vmem [shape: bf16[2,128,384], index: 3, kind: input, shape index: {}]
  %s4 = inlined_call_operand.vmem [shape: bf16[2,4,32,128], index: 4, kind: input, shape index: {}]
  %s5 = inlined_call_operand.vmem [shape: f32[2,1,128], index: 5, kind: input, shape index: {}]
  %s6 = inlined_call_operand.vmem [shape: f32[2,1,128], index: 6, kind: input, shape index: {}]
  %s7 = inlined_call_operand.vmem [shape: f32[2,1,128], index: 7, kind: input, shape index: {}]
  %s8 = inlined_call_operand.vmem [shape: bf16[2,128,256], index: 8, kind: input, shape index: {}]
  %s9 = inlined_call_operand.vmem [shape: f32[2,1,256], index: 9, kind: input, shape index: {}]
  %s10 = inlined_call_operand.vmem [shape: bf16[2,256,128], index: 10, kind: input, shape index: {}]
  %s11 = inlined_call_operand.vmem [shape: f32[2,1,128], index: 11, kind: input, shape index: {}]
  %s12 = inlined_call_operand.vmem [shape: f32[1,128], index: 12, kind: input, shape index: {}]
  %s13 = inlined_call_operand.vmem [shape: f32[1,128], index: 13, kind: input, shape index: {}]
  %s14 = inlined_call_operand.vmem [shape: bf16[96,128], index: 14, kind: output, shape index: {}, may-alias: {0,14}]
  %s15 = sld [smem:[#allocation0]]
  $region97: #{vision_processor_forward.3} parent=0
    _
  %s17 = ssub.s32 1, %s15
  %s18 = scalar_select 0, %s17, %s15
  loop: start=0, step=1, limit=4
  $region2: #{vision_processor_forward.3} parent=0 // loop_pre_header
    _
  $region3: #{vision_processor_forward.3} parent=0 // loop_header
    %s20 = sphi 0, %s24
    %p21 = scmp.ge.s32.totalorder %s20, 4
    %s27 = sphi 0, %s39
    %s28 = sphi 0, %s35
    %s29 = sphi 0, %s27
    %s30 = sphi 0, %s28
    %s31 = sphi 0, %s29
    %s32 = sphi 0, %s30
    %s42 = sphi 0, %s44
    %s45 = sphi 0, %s42
    %s46 = sphi 0, %s45
    %s62 = sphi 0, %s46
    %s68 = sphi 0, %s70
    %s71 = sphi 0, %s68
    %s72 = sphi 0, %s71
    %s88 = sphi 0, %s72
    %s94 = sphi 0, %s96
    %s97 = sphi 0, %s94
    %s98 = sphi 0, %s97
    %s114 = sphi 0, %s98
    %s120 = sphi 0, %s122
    %s123 = sphi 0, %s120
    %s124 = sphi 0, %s123
    %s140 = sphi 0, %s124
    %s146 = sphi 0, %s148
    %s149 = sphi 0, %s146
    %s150 = sphi 0, %s149
    %s166 = sphi 0, %s150
    %s172 = sphi 0, %s174
    %s175 = sphi 0, %s172
    %s176 = sphi 0, %s175
    %s192 = sphi 0, %s176
    %s198 = sphi 0, %s200
    %s201 = sphi 0, %s198
    %s202 = sphi 0, %s201
    %s218 = sphi 0, %s202
    %s224 = sphi 0, %s226
    %s227 = sphi 0, %s224
    %s228 = sphi 0, %s227
    %s244 = sphi 0, %s228
    %s250 = sphi 0, %s252
    %s253 = sphi 0, %s250
    %s254 = sphi 0, %s253
    %s270 = sphi 0, %s254
    %s276 = sphi 0, %s278
    %s279 = sphi 0, %s276
    %s280 = sphi 0, %s279
    %s296 = sphi 0, %s280
    %s302 = sphi 0, %s304
    %s305 = sphi 0, %s302
    %s306 = sphi 0, %s305
    %s322 = sphi 0, %s306
    %s328 = sphi 0, %s330
    %s331 = sphi 0, %s328
    %s332 = sphi 0, %s331
    %s348 = sphi 0, %s332
    %s352 = sphi 0, %s352
    %s354 = sphi 0, %s352
    %s355 = sphi 0, %s354
    %s369 = sphi 0, %s355
    %s373 = sphi 0, %s373
    %s375 = sphi 0, %s373
    %s376 = sphi 0, %s375
    %s390 = sphi 0, %s376
    %s396 = sphi 0, %s398
    %s399 = sphi 0, %s396
    %s400 = sphi 0, %s399
    %s416 = sphi 0, %s400
  $region4: #{vision_processor_forward.3} parent=0 // loop_header_branch
    %23 = sbr.rel (%p21) target = $region8
  $region5: #{vision_processor_forward.3} parent=0 // loop_body
    %s25 = ssub.s32 %s20, 1
    %s26 = ssub.s32 %s20, 2
    %s33 = sadd.s32 1, %s28
    %p34 = scmp.ge.s32.totalorder %s33, 2
    %s35 = scalar_select %p34, 0, %s33
    %s36 = sadd.s32 1, %s27
    %s37 = scalar_select %p34, %s36, %s27
    %p38 = scmp.ge.s32.totalorder %s37, 1
    %s39 = scalar_select %p38, 0, %s37
    %s40 = ssub.s32 %s27, %s39
    %p41 = scmp.eq.s32.totalorder %s40, 0
    %s43 = sadd.s32 %s42, 1
    %s44 = scalar_select %p41, %s42, %s43
    %p47 = pneg %p41
    %p48 = scmp.eq.s32.totalorder %s20, 1
    %p49 = por %p47, %p48
    %p50 = scmp.ne.s32.totalorder %s42, %s45
    %p51 = scmp.eq.s32.totalorder %s20, 0
    %p52 = por %p50, %p51
    %p53 = scmp.ne.s32.totalorder %s42, %s45
    %p54 = scmp.eq.s32.totalorder %s25, 1
    %p55 = por %p53, %p54
    %p56 = scmp.ne.s32.totalorder %s45, %s46
    %p57 = scmp.eq.s32.totalorder %s25, 0
    %p58 = por %p56, %p57
    %p59 = scmp.ne.s32.totalorder %s45, %s46
    %p60 = scmp.eq.s32.totalorder %s26, 1
    %p61 = por %p59, %p60
    %p63 = scmp.ne.s32.totalorder %s46, %s62
    %p64 = scmp.eq.s32.totalorder %s26, 0
    %p65 = por %p63, %p64
    %s66 = ssub.s32 %s28, %s35
    %p67 = scmp.eq.s32.totalorder %s66, 0
    %s69 = sadd.s32 %s68, 1
    %s70 = scalar_select %p67, %s68, %s69
    %p73 = pneg %p67
    %p74 = scmp.eq.s32.totalorder %s20, 1
    %p75 = por %p73, %p74
    %p76 = scmp.ne.s32.totalorder %s68, %s71
    %p77 = scmp.eq.s32.totalorder %s20, 0
    %p78 = por %p76, %p77
    %p79 = scmp.ne.s32.totalorder %s68, %s71
    %p80 = scmp.eq.s32.totalorder %s25, 1
    %p81 = por %p79, %p80
    %p82 = scmp.ne.s32.totalorder %s71, %s72
    %p83 = scmp.eq.s32.totalorder %s25, 0
    %p84 = por %p82, %p83
    %p85 = scmp.ne.s32.totalorder %s71, %s72
    %p86 = scmp.eq.s32.totalorder %s26, 1
    %p87 = por %p85, %p86
    %p89 = scmp.ne.s32.totalorder %s72, %s88
    %p90 = scmp.eq.s32.totalorder %s26, 0
    %p91 = por %p89, %p90
    %s92 = ssub.s32 %s28, %s35
    %p93 = scmp.eq.s32.totalorder %s92, 0
    %s95 = sadd.s32 %s94, 1
    %s96 = scalar_select %p93, %s94, %s95
    %p99 = pneg %p93
    %p100 = scmp.eq.s32.totalorder %s20, 1
    %p101 = por %p99, %p100
    %p102 = scmp.ne.s32.totalorder %s94, %s97
    %p103 = scmp.eq.s32.totalorder %s20, 0
    %p104 = por %p102, %p103
    %p105 = scmp.ne.s32.totalorder %s94, %s97
    %p106 = scmp.eq.s32.totalorder %s25, 1
    %p107 = por %p105, %p106
    %p108 = scmp.ne.s32.totalorder %s97, %s98
    %p109 = scmp.eq.s32.totalorder %s25, 0
    %p110 = por %p108, %p109
    %p111 = scmp.ne.s32.totalorder %s97, %s98
    %p112 = scmp.eq.s32.totalorder %s26, 1
    %p113 = por %p111, %p112
    %p115 = scmp.ne.s32.totalorder %s98, %s114
    %p116 = scmp.eq.s32.totalorder %s26, 0
    %p117 = por %p115, %p116
    %s118 = ssub.s32 %s28, %s35
    %p119 = scmp.eq.s32.totalorder %s118, 0
    %s121 = sadd.s32 %s120, 1
    %s122 = scalar_select %p119, %s120, %s121
    %p125 = pneg %p119
    %p126 = scmp.eq.s32.totalorder %s20, 1
    %p127 = por %p125, %p126
    %p128 = scmp.ne.s32.totalorder %s120, %s123
    %p129 = scmp.eq.s32.totalorder %s20, 0
    %p130 = por %p128, %p129
    %p131 = scmp.ne.s32.totalorder %s120, %s123
    %p132 = scmp.eq.s32.totalorder %s25, 1
    %p133 = por %p131, %p132
    %p134 = scmp.ne.s32.totalorder %s123, %s124
    %p135 = scmp.eq.s32.totalorder %s25, 0
    %p136 = por %p134, %p135
    %p137 = scmp.ne.s32.totalorder %s123, %s124
    %p138 = scmp.eq.s32.totalorder %s26, 1
    %p139 = por %p137, %p138
    %p141 = scmp.ne.s32.totalorder %s124, %s140
    %p142 = scmp.eq.s32.totalorder %s26, 0
    %p143 = por %p141, %p142
    %s144 = ssub.s32 %s28, %s35
    %p145 = scmp.eq.s32.totalorder %s144, 0
    %s147 = sadd.s32 %s146, 1
    %s148 = scalar_select %p145, %s146, %s147
    %p151 = pneg %p145
    %p152 = scmp.eq.s32.totalorder %s20, 1
    %p153 = por %p151, %p152
    %p154 = scmp.ne.s32.totalorder %s146, %s149
    %p155 = scmp.eq.s32.totalorder %s20, 0
    %p156 = por %p154, %p155
    %p157 = scmp.ne.s32.totalorder %s146, %s149
    %p158 = scmp.eq.s32.totalorder %s25, 1
    %p159 = por %p157, %p158
    %p160 = scmp.ne.s32.totalorder %s149, %s150
    %p161 = scmp.eq.s32.totalorder %s25, 0
    %p162 = por %p160, %p161
    %p163 = scmp.ne.s32.totalorder %s149, %s150
    %p164 = scmp.eq.s32.totalorder %s26, 1
    %p165 = por %p163, %p164
    %p167 = scmp.ne.s32.totalorder %s150, %s166
    %p168 = scmp.eq.s32.totalorder %s26, 0
    %p169 = por %p167, %p168
    %s170 = ssub.s32 %s28, %s35
    %p171 = scmp.eq.s32.totalorder %s170, 0
    %s173 = sadd.s32 %s172, 1
    %s174 = scalar_select %p171, %s172, %s173
    %p177 = pneg %p171
    %p178 = scmp.eq.s32.totalorder %s20, 1
    %p179 = por %p177, %p178
    %p180 = scmp.ne.s32.totalorder %s172, %s175
    %p181 = scmp.eq.s32.totalorder %s20, 0
    %p182 = por %p180, %p181
    %p183 = scmp.ne.s32.totalorder %s172, %s175
    %p184 = scmp.eq.s32.totalorder %s25, 1
    %p185 = por %p183, %p184
    %p186 = scmp.ne.s32.totalorder %s175, %s176
    %p187 = scmp.eq.s32.totalorder %s25, 0
    %p188 = por %p186, %p187
    %p189 = scmp.ne.s32.totalorder %s175, %s176
    %p190 = scmp.eq.s32.totalorder %s26, 1
    %p191 = por %p189, %p190
    %p193 = scmp.ne.s32.totalorder %s176, %s192
    %p194 = scmp.eq.s32.totalorder %s26, 0
    %p195 = por %p193, %p194
    %s196 = ssub.s32 %s28, %s35
    %p197 = scmp.eq.s32.totalorder %s196, 0
    %s199 = sadd.s32 %s198, 1
    %s200 = scalar_select %p197, %s198, %s199
    %p203 = pneg %p197
    %p204 = scmp.eq.s32.totalorder %s20, 1
    %p205 = por %p203, %p204
    %p206 = scmp.ne.s32.totalorder %s198, %s201
    %p207 = scmp.eq.s32.totalorder %s20, 0
    %p208 = por %p206, %p207
    %p209 = scmp.ne.s32.totalorder %s198, %s201
    %p210 = scmp.eq.s32.totalorder %s25, 1
    %p211 = por %p209, %p210
    %p212 = scmp.ne.s32.totalorder %s201, %s202
    %p213 = scmp.eq.s32.totalorder %s25, 0
    %p214 = por %p212, %p213
    %p215 = scmp.ne.s32.totalorder %s201, %s202
    %p216 = scmp.eq.s32.totalorder %s26, 1
    %p217 = por %p215, %p216
    %p219 = scmp.ne.s32.totalorder %s202, %s218
    %p220 = scmp.eq.s32.totalorder %s26, 0
    %p221 = por %p219, %p220
    %s222 = ssub.s32 %s28, %s35
    %p223 = scmp.eq.s32.totalorder %s222, 0
    %s225 = sadd.s32 %s224, 1
    %s226 = scalar_select %p223, %s224, %s225
    %p229 = pneg %p223
    %p230 = scmp.eq.s32.totalorder %s20, 1
    %p231 = por %p229, %p230
    %p232 = scmp.ne.s32.totalorder %s224, %s227
    %p233 = scmp.eq.s32.totalorder %s20, 0
    %p234 = por %p232, %p233
    %p235 = scmp.ne.s32.totalorder %s224, %s227
    %p236 = scmp.eq.s32.totalorder %s25, 1
    %p237 = por %p235, %p236
    %p238 = scmp.ne.s32.totalorder %s227, %s228
    %p239 = scmp.eq.s32.totalorder %s25, 0
    %p240 = por %p238, %p239
    %p241 = scmp.ne.s32.totalorder %s227, %s228
    %p242 = scmp.eq.s32.totalorder %s26, 1
    %p243 = por %p241, %p242
    %p245 = scmp.ne.s32.totalorder %s228, %s244
    %p246 = scmp.eq.s32.totalorder %s26, 0
    %p247 = por %p245, %p246
    %s248 = ssub.s32 %s28, %s35
    %p249 = scmp.eq.s32.totalorder %s248, 0
    %s251 = sadd.s32 %s250, 1
    %s252 = scalar_select %p249, %s250, %s251
    %p255 = pneg %p249
    %p256 = scmp.eq.s32.totalorder %s20, 1
    %p257 = por %p255, %p256
    %p258 = scmp.ne.s32.totalorder %s250, %s253
    %p259 = scmp.eq.s32.totalorder %s20, 0
    %p260 = por %p258, %p259
    %p261 = scmp.ne.s32.totalorder %s250, %s253
    %p262 = scmp.eq.s32.totalorder %s25, 1
    %p263 = por %p261, %p262
    %p264 = scmp.ne.s32.totalorder %s253, %s254
    %p265 = scmp.eq.s32.totalorder %s25, 0
    %p266 = por %p264, %p265
    %p267 = scmp.ne.s32.totalorder %s253, %s254
    %p268 = scmp.eq.s32.totalorder %s26, 1
    %p269 = por %p267, %p268
    %p271 = scmp.ne.s32.totalorder %s254, %s270
    %p272 = scmp.eq.s32.totalorder %s26, 0
    %p273 = por %p271, %p272
    %s274 = ssub.s32 %s28, %s35
    %p275 = scmp.eq.s32.totalorder %s274, 0
    %s277 = sadd.s32 %s276, 1
    %s278 = scalar_select %p275, %s276, %s277
    %p281 = pneg %p275
    %p282 = scmp.eq.s32.totalorder %s20, 1
    %p283 = por %p281, %p282
    %p284 = scmp.ne.s32.totalorder %s276, %s279
    %p285 = scmp.eq.s32.totalorder %s20, 0
    %p286 = por %p284, %p285
    %p287 = scmp.ne.s32.totalorder %s276, %s279
    %p288 = scmp.eq.s32.totalorder %s25, 1
    %p289 = por %p287, %p288
    %p290 = scmp.ne.s32.totalorder %s279, %s280
    %p291 = scmp.eq.s32.totalorder %s25, 0
    %p292 = por %p290, %p291
    %p293 = scmp.ne.s32.totalorder %s279, %s280
    %p294 = scmp.eq.s32.totalorder %s26, 1
    %p295 = por %p293, %p294
    %p297 = scmp.ne.s32.totalorder %s280, %s296
    %p298 = scmp.eq.s32.totalorder %s26, 0
    %p299 = por %p297, %p298
    %s300 = ssub.s32 %s28, %s35
    %p301 = scmp.eq.s32.totalorder %s300, 0
    %s303 = sadd.s32 %s302, 1
    %s304 = scalar_select %p301, %s302, %s303
    %p307 = pneg %p301
    %p308 = scmp.eq.s32.totalorder %s20, 1
    %p309 = por %p307, %p308
    %p310 = scmp.ne.s32.totalorder %s302, %s305
    %p311 = scmp.eq.s32.totalorder %s20, 0
    %p312 = por %p310, %p311
    %p313 = scmp.ne.s32.totalorder %s302, %s305
    %p314 = scmp.eq.s32.totalorder %s25, 1
    %p315 = por %p313, %p314
    %p316 = scmp.ne.s32.totalorder %s305, %s306
    %p317 = scmp.eq.s32.totalorder %s25, 0
    %p318 = por %p316, %p317
    %p319 = scmp.ne.s32.totalorder %s305, %s306
    %p320 = scmp.eq.s32.totalorder %s26, 1
    %p321 = por %p319, %p320
    %p323 = scmp.ne.s32.totalorder %s306, %s322
    %p324 = scmp.eq.s32.totalorder %s26, 0
    %p325 = por %p323, %p324
    %s326 = ssub.s32 %s28, %s35
    %p327 = scmp.eq.s32.totalorder %s326, 0
    %s329 = sadd.s32 %s328, 1
    %s330 = scalar_select %p327, %s328, %s329
    %p333 = pneg %p327
    %p334 = scmp.eq.s32.totalorder %s20, 1
    %p335 = por %p333, %p334
    %p336 = scmp.ne.s32.totalorder %s328, %s331
    %p337 = scmp.eq.s32.totalorder %s20, 0
    %p338 = por %p336, %p337
    %p339 = scmp.ne.s32.totalorder %s328, %s331
    %p340 = scmp.eq.s32.totalorder %s25, 1
    %p341 = por %p339, %p340
    %p342 = scmp.ne.s32.totalorder %s331, %s332
    %p343 = scmp.eq.s32.totalorder %s25, 0
    %p344 = por %p342, %p343
    %p345 = scmp.ne.s32.totalorder %s331, %s332
    %p346 = scmp.eq.s32.totalorder %s26, 1
    %p347 = por %p345, %p346
    %p349 = scmp.ne.s32.totalorder %s332, %s348
    %p350 = scmp.eq.s32.totalorder %s26, 0
    %p351 = por %p349, %p350
    %s353 = sadd.s32 %s352, 1
    %p356 = scmp.eq.s32.totalorder %s20, 1
    %p357 = scmp.ne.s32.totalorder %s352, %s354
    %p358 = scmp.eq.s32.totalorder %s20, 0
    %p359 = por %p357, %p358
    %p360 = scmp.ne.s32.totalorder %s352, %s354
    %p361 = scmp.eq.s32.totalorder %s25, 1
    %p362 = por %p360, %p361
    %p363 = scmp.ne.s32.totalorder %s354, %s355
    %p364 = scmp.eq.s32.totalorder %s25, 0
    %p365 = por %p363, %p364
    %p366 = scmp.ne.s32.totalorder %s354, %s355
    %p367 = scmp.eq.s32.totalorder %s26, 1
    %p368 = por %p366, %p367
    %p370 = scmp.ne.s32.totalorder %s355, %s369
    %p371 = scmp.eq.s32.totalorder %s26, 0
    %p372 = por %p370, %p371
    %s374 = sadd.s32 %s373, 1
    %p377 = scmp.eq.s32.totalorder %s20, 1
    %p378 = scmp.ne.s32.totalorder %s373, %s375
    %p379 = scmp.eq.s32.totalorder %s20, 0
    %p380 = por %p378, %p379
    %p381 = scmp.ne.s32.totalorder %s373, %s375
    %p382 = scmp.eq.s32.totalorder %s25, 1
    %p383 = por %p381, %p382
    %p384 = scmp.ne.s32.totalorder %s375, %s376
    %p385 = scmp.eq.s32.totalorder %s25, 0
    %p386 = por %p384, %p385
    %p387 = scmp.ne.s32.totalorder %s375, %s376
    %p388 = scmp.eq.s32.totalorder %s26, 1
    %p389 = por %p387, %p388
    %p391 = scmp.ne.s32.totalorder %s376, %s390
    %p392 = scmp.eq.s32.totalorder %s26, 0
    %p393 = por %p391, %p392
    %s394 = ssub.s32 %s27, %s39
    %p395 = scmp.eq.s32.totalorder %s394, 0
    %s397 = sadd.s32 %s396, 1
    %s398 = scalar_select %p395, %s396, %s397
    %p401 = pneg %p395
    %p402 = scmp.eq.s32.totalorder %s20, 1
    %p403 = por %p401, %p402
    %p404 = scmp.ne.s32.totalorder %s396, %s399
    %p405 = scmp.eq.s32.totalorder %s20, 0
    %p406 = por %p404, %p405
    %p407 = scmp.ne.s32.totalorder %s396, %s399
    %p408 = scmp.eq.s32.totalorder %s25, 1
    %p409 = por %p407, %p408
    %p410 = scmp.ne.s32.totalorder %s399, %s400
    %p411 = scmp.eq.s32.totalorder %s25, 0
    %p412 = por %p410, %p411
    %p413 = scmp.ne.s32.totalorder %s399, %s400
    %p414 = scmp.eq.s32.totalorder %s26, 1
    %p415 = por %p413, %p414
    %p417 = scmp.ne.s32.totalorder %s400, %s416
    %p418 = scmp.eq.s32.totalorder %s26, 0
    %p419 = por %p417, %p418
    %p420 = scmp.le.s32.totalorder 1, %s20
    %p421 = scmp.lt.s32.totalorder %s20, 3
    %p422 = pnand %p420, %p421
    %p423 = pneg %p422
    // Predicated region
    $region9: #{vision_processor_forward.3} parent=5 // pred_check
      _
    $region10: #{vision_processor_forward.3} parent=5 // pred_check_branch
      %425 = sbr.rel (%p422) target = $region12
    $region11: #{vision_processor_forward.3} parent=5 // pred_region
      %s426 = ssub.s32 %s20, 1
      // Predicated region
      $region13: #{vision_processor_forward.3} parent=11 // pred_check
        %p427 = pneg %p58
      $region14: #{vision_processor_forward.3} parent=11 // pred_check_branch
        %429 = sbr.rel (%p427) target = $region16
      $region15: #{vision_processor_forward.3} parent=11 // pred_region
        %s430 = smul.u32 12, %s29
        %p431 = scmp.lt.s32.totalorder %s430, 11
        %s432 = scalar_select %p431, %s430, 11
        %s433 = smul.addr %s432, 4
        %s434 = scalar_lea.vmem %s0, %s433
        %s435 = smul.u32 12, %s29
      $region16: #{vision_processor_forward.3} parent=11 // pred_fallthru
        _
      // Predicated region
      $region17: #{vision_processor_forward.3} parent=11 // pred_check
        %p436 = pneg %p365
      $region18: #{vision_processor_forward.3} parent=11 // pred_check_branch
        %438 = sbr.rel (%p436) target = $region20
      $region19: #{vision_processor_forward.3} parent=11 // pred_region
        _
      $region20: #{vision_processor_forward.3} parent=11 // pred_fallthru
        _
      // Predicated region
      $region21: #{vision_processor_forward.3} parent=11 // pred_check
        %p439 = pneg %p386
      $region22: #{vision_processor_forward.3} parent=11 // pred_check_branch
        %441 = sbr.rel (%p439) target = $region24
      $region23: #{vision_processor_forward.3} parent=11 // pred_region
        _
      $region24: #{vision_processor_forward.3} parent=11 // pred_fallthru
        _
    $region12: #{vision_processor_forward.3} parent=5 // pred_fallthru
      _
    %p442 = scmp.lt.s32.totalorder %s20, 2
    // Predicated region
    $region25: #{vision_processor_forward.3} parent=5 // pred_check
      %p443 = pneg %p442
    $region26: #{vision_processor_forward.3} parent=5 // pred_check_branch
      %445 = sbr.rel (%p443) target = $region28
    $region27: #{vision_processor_forward.3} parent=5 // pred_region
      // Predicated region
      $region29: #{vision_processor_forward.3} parent=27 // pred_check
        %p446 = pneg %p78
      $region30: #{vision_processor_forward.3} parent=27 // pred_check_branch
        %448 = sbr.rel (%p446) target = $region32
      $region31: #{vision_processor_forward.3} parent=27 // pred_region
        %p449 = scmp.lt.s32.totalorder %s28, 1
        %s450 = scalar_select %p449, %s28, 1
        %s451 = scalar_lea.vmem %s1, %s450
      $region32: #{vision_processor_forward.3} parent=27 // pred_fallthru
        _
      // Predicated region
      $region33: #{vision_processor_forward.3} parent=27 // pred_check
        %p452 = pneg %p104
      $region34: #{vision_processor_forward.3} parent=27 // pred_check_branch
        %454 = sbr.rel (%p452) target = $region36
      $region35: #{vision_processor_forward.3} parent=27 // pred_region
        %p455 = scmp.lt.s32.totalorder %s28, 1
        %s456 = scalar_select %p455, %s28, 1
        %s457 = scalar_lea.vmem %s2, %s456
      $region36: #{vision_processor_forward.3} parent=27 // pred_fallthru
        _
      // Predicated region
      $region37: #{vision_processor_forward.3} parent=27 // pred_check
        %p458 = pneg %p130
      $region38: #{vision_processor_forward.3} parent=27 // pred_check_branch
        %460 = sbr.rel (%p458) target = $region40
      $region39: #{vision_processor_forward.3} parent=27 // pred_region
        %p461 = scmp.lt.s32.totalorder %s28, 1
        %s462 = scalar_select %p461, %s28, 1
        %s463 = smul.addr %s462, 48
        %s464 = smul.addr %s463, 4
        %s465 = scalar_lea.vmem %s3, %s464
      $region40: #{vision_processor_forward.3} parent=27 // pred_fallthru
        _
      // Predicated region
      $region41: #{vision_processor_forward.3} parent=27 // pred_check
        %p466 = pneg %p156
      $region42: #{vision_processor_forward.3} parent=27 // pred_check_branch
        %468 = sbr.rel (%p466) target = $region44
      $region43: #{vision_processor_forward.3} parent=27 // pred_region
        %p469 = scmp.lt.s32.totalorder %s28, 1
        %s470 = scalar_select %p469, %s28, 1
        %s471 = smul.addr %s470, 16
        %s472 = smul.addr %s471, 4
        %s473 = scalar_lea.vmem %s4, %s472
      $region44: #{vision_processor_forward.3} parent=27 // pred_fallthru
        _
      // Predicated region
      $region45: #{vision_processor_forward.3} parent=27 // pred_check
        %p474 = pneg %p182
      $region46: #{vision_processor_forward.3} parent=27 // pred_check_branch
        %476 = sbr.rel (%p474) target = $region48
      $region47: #{vision_processor_forward.3} parent=27 // pred_region
        %p477 = scmp.lt.s32.totalorder %s28, 1
        %s478 = scalar_select %p477, %s28, 1
        %s479 = scalar_lea.vmem %s5, %s478
      $region48: #{vision_processor_forward.3} parent=27 // pred_fallthru
        _
      // Predicated region
      $region49: #{vision_processor_forward.3} parent=27 // pred_check
        %p480 = pneg %p208
      $region50: #{vision_processor_forward.3} parent=27 // pred_check_branch
        %482 = sbr.rel (%p480) target = $region52
      $region51: #{vision_processor_forward.3} parent=27 // pred_region
        %p483 = scmp.lt.s32.totalorder %s28, 1
        %s484 = scalar_select %p483, %s28, 1
        %s485 = scalar_lea.vmem %s6, %s484
      $region52: #{vision_processor_forward.3} parent=27 // pred_fallthru
        _
      // Predicated region
      $region53: #{vision_processor_forward.3} parent=27 // pred_check
        %p486 = pneg %p234
      $region54: #{vision_processor_forward.3} parent=27 // pred_check_branch
        %488 = sbr.rel (%p486) target = $region56
      $region55: #{vision_processor_forward.3} parent=27 // pred_region
        %p489 = scmp.lt.s32.totalorder %s28, 1
        %s490 = scalar_select %p489, %s28, 1
        %s491 = scalar_lea.vmem %s7, %s490
      $region56: #{vision_processor_forward.3} parent=27 // pred_fallthru
        _
      // Predicated region
      $region57: #{vision_processor_forward.3} parent=27 // pred_check
        %p492 = pneg %p260
      $region58: #{vision_processor_forward.3} parent=27 // pred_check_branch
        %494 = sbr.rel (%p492) target = $region60
      $region59: #{vision_processor_forward.3} parent=27 // pred_region
        %p495 = scmp.lt.s32.totalorder %s28, 1
        %s496 = scalar_select %p495, %s28, 1
        %s497 = smul.addr %s496, 32
        %s498 = smul.addr %s497, 4
        %s499 = scalar_lea.vmem %s8, %s498
      $region60: #{vision_processor_forward.3} parent=27 // pred_fallthru
        _
      // Predicated region
      $region61: #{vision_processor_forward.3} parent=27 // pred_check
        %p500 = pneg %p286
      $region62: #{vision_processor_forward.3} parent=27 // pred_check_branch
        %502 = sbr.rel (%p500) target = $region64
      $region63: #{vision_processor_forward.3} parent=27 // pred_region
        %p503 = scmp.lt.s32.totalorder %s28, 1
        %s504 = scalar_select %p503, %s28, 1
        %s505 = smul.addr %s504, 2
        %s506 = scalar_lea.vmem %s9, %s505
      $region64: #{vision_processor_forward.3} parent=27 // pred_fallthru
        _
      // Predicated region
      $region65: #{vision_processor_forward.3} parent=27 // pred_check
        %p507 = pneg %p312
      $region66: #{vision_processor_forward.3} parent=27 // pred_check_branch
        %509 = sbr.rel (%p507) target = $region68
      $region67: #{vision_processor_forward.3} parent=27 // pred_region
        %p510 = scmp.lt.s32.totalorder %s28, 1
        %s511 = scalar_select %p510, %s28, 1
        %s512 = smul.addr %s511, 32
        %s513 = smul.addr %s512, 4
        %s514 = scalar_lea.vmem %s10, %s513
      $region68: #{vision_processor_forward.3} parent=27 // pred_fallthru
        _
      // Predicated region
      $region69: #{vision_processor_forward.3} parent=27 // pred_check
        %p515 = pneg %p338
      $region70: #{vision_processor_forward.3} parent=27 // pred_check_branch
        %517 = sbr.rel (%p515) target = $region72
      $region71: #{vision_processor_forward.3} parent=27 // pred_region
        %p518 = scmp.lt.s32.totalorder %s28, 1
        %s519 = scalar_select %p518, %s28, 1
        %s520 = scalar_lea.vmem %s11, %s519
      $region72: #{vision_processor_forward.3} parent=27 // pred_fallthru
        _
    $region28: #{vision_processor_forward.3} parent=5 // pred_fallthru
      _
    %p521 = scmp.le.s32.totalorder 1, %s20
    %p522 = scmp.lt.s32.totalorder %s20, 3
    %p523 = pnand %p521, %p522
    %p524 = pneg %p523
    // Predicated region
    $region73: #{vision_processor_forward.3} parent=5 // pred_check
      _
    $region74: #{vision_processor_forward.3} parent=5 // pred_check_branch
      %526 = sbr.rel (%p523) target = $region76
    $region75: #{vision_processor_forward.3} parent=5 // pred_region
      %s527 = ssub.s32 %s20, 1
      %s528 = smul.u32 12, %s29
      %p529 = scmp.lt.s32.totalorder %s528, 11
      %s530 = scalar_select %p529, %s528, 11
      %s531 = smul.addr %s530, 4
      %s532 = scalar_lea.vmem %s0, %s531
      %p533 = pneg %p58
      %p534 = pneg %p55
      %p535 = scmp.lt.s32.totalorder %s30, 1
      %s536 = scalar_select %p535, %s30, 1
      %s537 = scalar_lea.vmem %s1, %s536
      %p538 = pneg %p84
      %p539 = pneg %p81
      %p540 = scmp.lt.s32.totalorder %s30, 1
      %s541 = scalar_select %p540, %s30, 1
      %s542 = scalar_lea.vmem %s2, %s541
      %p543 = pneg %p110
      %p544 = pneg %p107
      %p545 = scmp.lt.s32.totalorder %s30, 1
      %s546 = scalar_select %p545, %s30, 1
      %s547 = smul.addr %s546, 48
      %s548 = smul.addr %s547, 4
      %s549 = scalar_lea.vmem %s3, %s548
      %p550 = pneg %p136
      %p551 = pneg %p133
      %p552 = scmp.lt.s32.totalorder %s30, 1
      %s553 = scalar_select %p552, %s30, 1
      %s554 = smul.addr %s553, 16
      %s555 = smul.addr %s554, 4
      %s556 = scalar_lea.vmem %s4, %s555
      %p557 = pneg %p162
      %p558 = pneg %p159
      %p559 = scmp.lt.s32.totalorder %s30, 1
      %s560 = scalar_select %p559, %s30, 1
      %s561 = scalar_lea.vmem %s5, %s560
      %p562 = pneg %p188
      %p563 = pneg %p185
      %p564 = scmp.lt.s32.totalorder %s30, 1
      %s565 = scalar_select %p564, %s30, 1
      %s566 = scalar_lea.vmem %s6, %s565
      %p567 = pneg %p214
      %p568 = pneg %p211
      %p569 = scmp.lt.s32.totalorder %s30, 1
      %s570 = scalar_select %p569, %s30, 1
      %s571 = scalar_lea.vmem %s7, %s570
      %p572 = pneg %p240
      %p573 = pneg %p237
      %p574 = scmp.lt.s32.totalorder %s30, 1
      %s575 = scalar_select %p574, %s30, 1
      %s576 = smul.addr %s575, 32
      %s577 = smul.addr %s576, 4
      %s578 = scalar_lea.vmem %s8, %s577
      %p579 = pneg %p266
      %p580 = pneg %p263
      %p581 = scmp.lt.s32.totalorder %s30, 1
      %s582 = scalar_select %p581, %s30, 1
      %s583 = smul.addr %s582, 2
      %s584 = scalar_lea.vmem %s9, %s583
      %p585 = pneg %p292
      %p586 = pneg %p289
      %p587 = scmp.lt.s32.totalorder %s30, 1
      %s588 = scalar_select %p587, %s30, 1
      %s589 = smul.addr %s588, 32
      %s590 = smul.addr %s589, 4
      %s591 = scalar_lea.vmem %s10, %s590
      %p592 = pneg %p318
      %p593 = pneg %p315
      %p594 = scmp.lt.s32.totalorder %s30, 1
      %s595 = scalar_select %p594, %s30, 1
      %s596 = scalar_lea.vmem %s11, %s595
      %p597 = pneg %p344
      %p598 = pneg %p341
      %p599 = pneg %p365
      %p600 = pneg %p362
      %p601 = pneg %p386
      %p602 = pneg %p383
      %p603 = pneg %p412
      %p604 = pneg %p409
      %s605 = smul.u32 12, %s29
      %p606 = scmp.lt.s32.totalorder %s605, 11
      %s607 = scalar_select %p606, %s605, 11
      %s608 = smul.addr %s607, 4
      %s609 = scalar_lea.vmem %s14, %s608
      %s610 = smul.u32 12, %s29
      %p611 = scmp.lt.s32.totalorder %s610, 11
      %s612 = scalar_select %p611, %s610, 11
      %s613 = smul.addr %s612, 4
      %s614 = scalar_lea.vmem %s0, %s613
      %s615 = smul.u32 12, %s29
      %p616 = scmp.lt.s32.totalorder %s30, 1
      %s617 = scalar_select %p616, %s30, 1
      %s618 = scalar_lea.vmem %s1, %s617
      %p619 = scmp.lt.s32.totalorder %s30, 1
      %s620 = scalar_select %p619, %s30, 1
      %s621 = scalar_lea.vmem %s2, %s620
      %p622 = scmp.lt.s32.totalorder %s30, 1
      %s623 = scalar_select %p622, %s30, 1
      %s624 = smul.addr %s623, 48
      %s625 = smul.addr %s624, 4
      %s626 = scalar_lea.vmem %s3, %s625
      %p627 = scmp.lt.s32.totalorder %s30, 1
      %s628 = scalar_select %p627, %s30, 1
      %s629 = smul.addr %s628, 16
      %s630 = smul.addr %s629, 4
      %s631 = scalar_lea.vmem %s4, %s630
      %p632 = scmp.lt.s32.totalorder %s30, 1
      %s633 = scalar_select %p632, %s30, 1
      %s634 = scalar_lea.vmem %s5, %s633
      %p635 = scmp.lt.s32.totalorder %s30, 1
      %s636 = scalar_select %p635, %s30, 1
      %s637 = scalar_lea.vmem %s6, %s636
      %p638 = scmp.lt.s32.totalorder %s30, 1
      %s639 = scalar_select %p638, %s30, 1
      %s640 = scalar_lea.vmem %s7, %s639
      %p641 = scmp.lt.s32.totalorder %s30, 1
      %s642 = scalar_select %p641, %s30, 1
      %s643 = smul.addr %s642, 32
      %s644 = smul.addr %s643, 4
      %s645 = scalar_lea.vmem %s8, %s644
      %p646 = scmp.lt.s32.totalorder %s30, 1
      %s647 = scalar_select %p646, %s30, 1
      %s648 = smul.addr %s647, 2
      %s649 = scalar_lea.vmem %s9, %s648
      %p650 = scmp.lt.s32.totalorder %s30, 1
      %s651 = scalar_select %p650, %s30, 1
      %s652 = smul.addr %s651, 32
      %s653 = smul.addr %s652, 4
      %s654 = scalar_lea.vmem %s10, %s653
      %p655 = scmp.lt.s32.totalorder %s30, 1
      %s656 = scalar_select %p655, %s30, 1
      %s657 = scalar_lea.vmem %s11, %s656
      %s658 = smul.u32 12, %s29
      %p659 = scmp.lt.s32.totalorder %s658, 11
      %s660 = scalar_select %p659, %s658, 11
      %s661 = smul.addr %s660, 4
      %s662 = scalar_lea.vmem %s14, %s661
      %s663 = smul.u32 12, %s29
      %p665 = scmp.eq.s32.totalorder %s30, 0
      // Predicated region
      $region77: #{vision_processor_forward.3} parent=75 // pred_check
        %p666 = pneg %p665
      $region78: #{vision_processor_forward.3} parent=75 // pred_check_branch
        %668 = sbr.rel (%p666) target = $region80
      $region79: #{vision_processor_forward.3} parent=75 // pred_region
        %v669 = vld [vmem:[%s614] sm:$0xf]
        %v670 = vld [vmem:[%s614 + $0x4] sm:$0xf]
        %v671 = vld [vmem:[%s614 + $0x8] sm:$0xf]
        %v672 = vld [vmem:[%s614 + $0xc] sm:$0xf]
        %v673 = vld [vmem:[%s614 + $0x10] sm:$0xf]
        %v674 = vld [vmem:[%s614 + $0x14] sm:$0xf]
        %v675 = vld [vmem:[%s614 + $0x18] sm:$0xf]
        %v676 = vld [vmem:[%s614 + $0x1c] sm:$0xf]
        %v677 = vld [vmem:[%s614 + $0x20] sm:$0xf]
        %v678 = vld [vmem:[%s614 + $0x24] sm:$0xf]
        %v679 = vld [vmem:[%s614 + $0x28] sm:$0xf]
        %v680 = vld [vmem:[%s614 + $0x2c] sm:$0xf]
        %v681 = vunpack.c.l.bf16 %v669
        %v682 = vunpack.c.l.bf16 %v670
        %v683 = vunpack.c.l.bf16 %v671
        %v684 = vunpack.c.l.bf16 %v672
        %v685 = vunpack.c.l.bf16 %v673
        %v686 = vunpack.c.l.bf16 %v674
        %v687 = vunpack.c.l.bf16 %v675
        %v688 = vunpack.c.l.bf16 %v676
        %v689 = vunpack.c.l.bf16 %v677
        %v690 = vunpack.c.l.bf16 %v678
        %v691 = vunpack.c.l.bf16 %v679
        %v692 = vunpack.c.l.bf16 %v680
        %693 = vst [vmem:[#allocation2] sm:$0xff] %v681
        %694 = vst [vmem:[#allocation2 + $0x8] sm:$0xff] %v682
        %695 = vst [vmem:[#allocation2 + $0x10] sm:$0xff] %v683
        %696 = vst [vmem:[#allocation2 + $0x18] sm:$0xff] %v684
        %697 = vst [vmem:[#allocation2 + $0x20] sm:$0xff] %v685
        %698 = vst [vmem:[#allocation2 + $0x28] sm:$0xff] %v686
        %699 = vst [vmem:[#allocation2 + $0x30] sm:$0xff] %v687
        %700 = vst [vmem:[#allocation2 + $0x38] sm:$0xff] %v688
        %701 = vst [vmem:[#allocation2 + $0x40] sm:$0xff] %v689
        %702 = vst [vmem:[#allocation2 + $0x48] sm:$0xff] %v690
        %703 = vst [vmem:[#allocation2 + $0x50] sm:$0xff] %v691
        %704 = vst [vmem:[#allocation2 + $0x58] sm:$0xff] %v692
      $region80: #{vision_processor_forward.3} parent=75 // pred_fallthru
        _
      %v705 = vld [vmem:[#allocation2] sm:$0xff]
      %v706 = vld [vmem:[#allocation2 + $0x8] sm:$0xff]
      %v707 = vld [vmem:[#allocation2 + $0x10] sm:$0xff]
      %v708 = vld [vmem:[#allocation2 + $0x18] sm:$0xff]
      %v709 = vld [vmem:[#allocation2 + $0x20] sm:$0xff]
      %v710 = vld [vmem:[#allocation2 + $0x28] sm:$0xff]
      %v711 = vld [vmem:[#allocation2 + $0x30] sm:$0xff]
      %v712 = vld [vmem:[#allocation2 + $0x38] sm:$0xff]
      %v713 = vld [vmem:[#allocation2 + $0x40] sm:$0xff]
      %v714 = vld [vmem:[#allocation2 + $0x48] sm:$0xff]
      %v715 = vld [vmem:[#allocation2 + $0x50] sm:$0xff]
      %v716 = vld [vmem:[#allocation2 + $0x58] sm:$0xff]
      %v717 = vld [vmem:[%s618] sm:$0x1]
      %v718 = vld [vmem:[%s621] sm:$0x1]
      %719 = vadd.xlane.f32.xlu0 %v705
      %v720 = vpop.xlane.xlu0 %719
      %721 = vadd.xlane.f32.xlu0 %v706
      %v722 = vpop.xlane.xlu0 %721
      %723 = vadd.xlane.f32.xlu0 %v707
      %v724 = vpop.xlane.xlu0 %723
      %725 = vadd.xlane.f32.xlu0 %v708
      %v726 = vpop.xlane.xlu0 %725
      %727 = vadd.xlane.f32.xlu0 %v709
      %v728 = vpop.xlane.xlu0 %727
      %729 = vadd.xlane.f32.xlu0 %v710
      %v730 = vpop.xlane.xlu0 %729
      %731 = vadd.xlane.f32.xlu0 %v711
      %v732 = vpop.xlane.xlu0 %731
      %733 = vadd.xlane.f32.xlu0 %v712
      %v734 = vpop.xlane.xlu0 %733
      %735 = vadd.xlane.f32.xlu0 %v713
      %v736 = vpop.xlane.xlu0 %735
      %737 = vadd.xlane.f32.xlu0 %v714
      %v738 = vpop.xlane.xlu0 %737
      %739 = vadd.xlane.f32.xlu0 %v715
      %v740 = vpop.xlane.xlu0 %739
      %741 = vadd.xlane.f32.xlu0 %v716
      %v742 = vpop.xlane.xlu0 %741
      %v743 = vrcp.pop 128.0
      %v744 = vmul.f32 128.0, %v743
      %v745 = vsub.f32 1.0, %v744
      %v746 = vmul.f32 %v743, %v745
      %v747 = vadd.f32 %v743, %v746
      %vm748 = vweird.f32 %v743
      %v749 = vsel %vm748, %v743, %v747
      %v750 = vmul.f32 %v720, %v749
      %v751 = vmul.f32 %v722, %v749
      %v752 = vmul.f32 %v724, %v749
      %v753 = vmul.f32 %v726, %v749
      %v754 = vmul.f32 %v728, %v749
      %v755 = vmul.f32 %v730, %v749
      %v756 = vmul.f32 %v732, %v749
      %v757 = vmul.f32 %v734, %v749
      %v758 = vmul.f32 %v736, %v749
      %v759 = vmul.f32 %v738, %v749
      %v760 = vmul.f32 %v740, %v749
      %v761 = vmul.f32 %v742, %v749
      %v762 = vsub.f32 %v705, %v750
      %v763 = vsub.f32 %v706, %v751
      %v764 = vsub.f32 %v707, %v752
      %v765 = vsub.f32 %v708, %v753
      %v766 = vsub.f32 %v709, %v754
      %v767 = vsub.f32 %v710, %v755
      %v768 = vsub.f32 %v711, %v756
      %v769 = vsub.f32 %v712, %v757
      %v770 = vsub.f32 %v713, %v758
      %v771 = vsub.f32 %v714, %v759
      %v772 = vsub.f32 %v715, %v760
      %v773 = vsub.f32 %v716, %v761
      %v774 = vmul.f32 %v762, %v762
      %v775 = vmul.f32 %v763, %v763
      %v776 = vmul.f32 %v764, %v764
      %v777 = vmul.f32 %v765, %v765
      %v778 = vmul.f32 %v766, %v766
      %v779 = vmul.f32 %v767, %v767
      %v780 = vmul.f32 %v768, %v768
      %v781 = vmul.f32 %v769, %v769
      %v782 = vmul.f32 %v770, %v770
      %v783 = vmul.f32 %v771, %v771
      %v784 = vmul.f32 %v772, %v772
      %v785 = vmul.f32 %v773, %v773
      %786 = vadd.xlane.f32.xlu0 %v774
      %v787 = vpop.xlane.xlu0 %786
      %788 = vadd.xlane.f32.xlu0 %v775
      %v789 = vpop.xlane.xlu0 %788
      %790 = vadd.xlane.f32.xlu0 %v776
      %v791 = vpop.xlane.xlu0 %790
      %792 = vadd.xlane.f32.xlu0 %v777
      %v793 = vpop.xlane.xlu0 %792
      %794 = vadd.xlane.f32.xlu0 %v778
      %v795 = vpop.xlane.xlu0 %794
      %796 = vadd.xlane.f32.xlu0 %v779
      %v797 = vpop.xlane.xlu0 %796
      %798 = vadd.xlane.f32.xlu0 %v780
      %v799 = vpop.xlane.xlu0 %798
      %800 = vadd.xlane.f32.xlu0 %v781
      %v801 = vpop.xlane.xlu0 %800
      %802 = vadd.xlane.f32.xlu0 %v782
      %v803 = vpop.xlane.xlu0 %802
      %804 = vadd.xlane.f32.xlu0 %v783
      %v805 = vpop.xlane.xlu0 %804
      %806 = vadd.xlane.f32.xlu0 %v784
      %v807 = vpop.xlane.xlu0 %806
      %808 = vadd.xlane.f32.xlu0 %v785
      %v809 = vpop.xlane.xlu0 %808
      %v810 = vmul.f32 %v787, %v749
      %v811 = vmul.f32 %v789, %v749
      %v812 = vmul.f32 %v791, %v749
      %v813 = vmul.f32 %v793, %v749
      %v814 = vmul.f32 %v795, %v749
      %v815 = vmul.f32 %v797, %v749
      %v816 = vmul.f32 %v799, %v749
      %v817 = vmul.f32 %v801, %v749
      %v818 = vmul.f32 %v803, %v749
      %v819 = vmul.f32 %v805, %v749
      %v820 = vmul.f32 %v807, %v749
      %v821 = vmul.f32 %v809, %v749
      %v822 = vadd.f32 %v810, 1e-05
      %v823 = vadd.f32 %v811, 1e-05
      %v824 = vadd.f32 %v812, 1e-05
      %v825 = vadd.f32 %v813, 1e-05
      %v826 = vadd.f32 %v814, 1e-05
      %v827 = vadd.f32 %v815, 1e-05
      %v828 = vadd.f32 %v816, 1e-05
      %v829 = vadd.f32 %v817, 1e-05
      %v830 = vadd.f32 %v818, 1e-05
      %v831 = vadd.f32 %v819, 1e-05
      %v832 = vadd.f32 %v820, 1e-05
      %v833 = vadd.f32 %v821, 1e-05
      %v834 = vrsqrt.pop %v822
      %v835 = vmul.f32 %v834, %v822
      %v836 = vmul.f32 %v835, %v834
      %v837 = vmul.f32 0.5, %v836
      %v838 = vsub.f32 1.5, %v837
      %v839 = vmul.f32 %v834, %v838
      %vm840 = vweird.f32 %v822
      %vm841 = vweird.f32 %v834
      %vm842 = vmor %vm840, %vm841
      %v843 = vsel %vm842, %v834, %v839
      %v844 = vrsqrt.pop %v823
      %v845 = vmul.f32 %v844, %v823
      %v846 = vmul.f32 %v845, %v844
      %v847 = vmul.f32 0.5, %v846
      %v848 = vsub.f32 1.5, %v847
      %v849 = vmul.f32 %v844, %v848
      %vm850 = vweird.f32 %v823
      %vm851 = vweird.f32 %v844
      %vm852 = vmor %vm850, %vm851
      %v853 = vsel %vm852, %v844, %v849
      %v854 = vrsqrt.pop %v824
      %v855 = vmul.f32 %v854, %v824
      %v856 = vmul.f32 %v855, %v854
      %v857 = vmul.f32 0.5, %v856
      %v858 = vsub.f32 1.5, %v857
      %v859 = vmul.f32 %v854, %v858
      %vm860 = vweird.f32 %v824
      %vm861 = vweird.f32 %v854
      %vm862 = vmor %vm860, %vm861
      %v863 = vsel %vm862, %v854, %v859
      %v864 = vrsqrt.pop %v825
      %v865 = vmul.f32 %v864, %v825
      %v866 = vmul.f32 %v865, %v864
      %v867 = vmul.f32 0.5, %v866
      %v868 = vsub.f32 1.5, %v867
      %v869 = vmul.f32 %v864, %v868
      %vm870 = vweird.f32 %v825
      %vm871 = vweird.f32 %v864
      %vm872 = vmor %vm870, %vm871
      %v873 = vsel %vm872, %v864, %v869
      %v874 = vrsqrt.pop %v826
      %v875 = vmul.f32 %v874, %v826
      %v876 = vmul.f32 %v875, %v874
      %v877 = vmul.f32 0.5, %v876
      %v878 = vsub.f32 1.5, %v877
      %v879 = vmul.f32 %v874, %v878
      %vm880 = vweird.f32 %v826
      %vm881 = vweird.f32 %v874
      %vm882 = vmor %vm880, %vm881
      %v883 = vsel %vm882, %v874, %v879
      %v884 = vrsqrt.pop %v827
      %v885 = vmul.f32 %v884, %v827
      %v886 = vmul.f32 %v885, %v884
      %v887 = vmul.f32 0.5, %v886
      %v888 = vsub.f32 1.5, %v887
      %v889 = vmul.f32 %v884, %v888
      %vm890 = vweird.f32 %v827
      %vm891 = vweird.f32 %v884
      %vm892 = vmor %vm890, %vm891
      %v893 = vsel %vm892, %v884, %v889
      %v894 = vrsqrt.pop %v828
      %v895 = vmul.f32 %v894, %v828
      %v896 = vmul.f32 %v895, %v894
      %v897 = vmul.f32 0.5, %v896
      %v898 = vsub.f32 1.5, %v897
      %v899 = vmul.f32 %v894, %v898
      %vm900 = vweird.f32 %v828
      %vm901 = vweird.f32 %v894
      %vm902 = vmor %vm900, %vm901
      %v903 = vsel %vm902, %v894, %v899
      %v904 = vrsqrt.pop %v829
      %v905 = vmul.f32 %v904, %v829
      %v906 = vmul.f32 %v905, %v904
      %v907 = vmul.f32 0.5, %v906
      %v908 = vsub.f32 1.5, %v907
      %v909 = vmul.f32 %v904, %v908
      %vm910 = vweird.f32 %v829
      %vm911 = vweird.f32 %v904
      %vm912 = vmor %vm910, %vm911
      %v913 = vsel %vm912, %v904, %v909
      %v914 = vrsqrt.pop %v830
      %v915 = vmul.f32 %v914, %v830
      %v916 = vmul.f32 %v915, %v914
      %v917 = vmul.f32 0.5, %v916
      %v918 = vsub.f32 1.5, %v917
      %v919 = vmul.f32 %v914, %v918
      %vm920 = vweird.f32 %v830
      %vm921 = vweird.f32 %v914
      %vm922 = vmor %vm920, %vm921
      %v923 = vsel %vm922, %v914, %v919
      %v924 = vrsqrt.pop %v831
      %v925 = vmul.f32 %v924, %v831
      %v926 = vmul.f32 %v925, %v924
      %v927 = vmul.f32 0.5, %v926
      %v928 = vsub.f32 1.5, %v927
      %v929 = vmul.f32 %v924, %v928
      %vm930 = vweird.f32 %v831
      %vm931 = vweird.f32 %v924
      %vm932 = vmor %vm930, %vm931
      %v933 = vsel %vm932, %v924, %v929
      %v934 = vrsqrt.pop %v832
      %v935 = vmul.f32 %v934, %v832
      %v936 = vmul.f32 %v935, %v934
      %v937 = vmul.f32 0.5, %v936
      %v938 = vsub.f32 1.5, %v937
      %v939 = vmul.f32 %v934, %v938
      %vm940 = vweird.f32 %v832
      %vm941 = vweird.f32 %v934
      %vm942 = vmor %vm940, %vm941
      %v943 = vsel %vm942, %v934, %v939
      %v944 = vrsqrt.pop %v833
      %v945 = vmul.f32 %v944, %v833
      %v946 = vmul.f32 %v945, %v944
      %v947 = vmul.f32 0.5, %v946
      %v948 = vsub.f32 1.5, %v947
      %v949 = vmul.f32 %v944, %v948
      %vm950 = vweird.f32 %v833
      %vm951 = vweird.f32 %v944
      %vm952 = vmor %vm950, %vm951
      %v953 = vsel %vm952, %v944, %v949
      %v954 = vmul.f32 %v762, %v843
      %v955 = vmul.f32 %v763, %v853
      %v956 = vmul.f32 %v764, %v863
      %v957 = vmul.f32 %v765, %v873
      %v958 = vmul.f32 %v766, %v883
      %v959 = vmul.f32 %v767, %v893
      %v960 = vmul.f32 %v768, %v903
      %v961 = vmul.f32 %v769, %v913
      %v962 = vmul.f32 %v770, %v923
      %v963 = vmul.f32 %v771, %v933
      %v964 = vmul.f32 %v772, %v943
      %v965 = vmul.f32 %v773, %v953
      %v967 = vperm.slane %v717, 0
      %v969 = vmul.f32 %v954, %v967
      %v970 = vmul.f32 %v955, %v967
      %v971 = vmul.f32 %v956, %v967
      %v972 = vmul.f32 %v957, %v967
      %v973 = vmul.f32 %v958, %v967
      %v974 = vmul.f32 %v959, %v967
      %v975 = vmul.f32 %v960, %v967
      %v976 = vmul.f32 %v961, %v967
      %v977 = vmul.f32 %v962, %v967
      %v978 = vmul.f32 %v963, %v967
      %v979 = vmul.f32 %v964, %v967
      %v980 = vmul.f32 %v965, %v967
      %v982 = vperm.slane %v718, 0
      %v984 = vadd.f32 %v969, %v982
      %v985 = vadd.f32 %v970, %v982
      %v986 = vadd.f32 %v971, %v982
      %v987 = vadd.f32 %v972, %v982
      %v988 = vadd.f32 %v973, %v982
      %v989 = vadd.f32 %v974, %v982
      %v990 = vadd.f32 %v975, %v982
      %v991 = vadd.f32 %v976, %v982
      %v992 = vadd.f32 %v977, %v982
      %v993 = vadd.f32 %v978, %v982
      %v994 = vadd.f32 %v979, %v982
      %v995 = vadd.f32 %v980, %v982
      %v996 = vpack.c.bf16 %v985, %v984
      %v997 = vpack.c.bf16 %v987, %v986
      %v998 = vpack.c.bf16 %v989, %v988
      %v999 = vpack.c.bf16 %v991, %v990
      %v1000 = vpack.c.bf16 %v993, %v992
      %v1001 = vpack.c.bf16 %v995, %v994
      %v1002 = vld [vmem:[%s626] sm:$0xff]
      %v1003 = vld [vmem:[%s626 + $0x8] sm:$0xf]
      %v1004 = vld [vmem:[%s626 + $0xc] sm:$0xff]
      %v1005 = vld [vmem:[%s626 + $0x14] sm:$0xf]
      %v1006 = vld [vmem:[%s626 + $0x18] sm:$0xff]
      %v1007 = vld [vmem:[%s626 + $0x20] sm:$0xf]
      %v1008 = vld [vmem:[%s626 + $0x24] sm:$0xff]
      %v1009 = vld [vmem:[%s626 + $0x2c] sm:$0xf]
      %v1010 = vld [vmem:[%s626 + $0x30] sm:$0xff]
      %v1011 = vld [vmem:[%s626 + $0x38] sm:$0xf]
      %v1012 = vld [vmem:[%s626 + $0x3c] sm:$0xff]
      %v1013 = vld [vmem:[%s626 + $0x44] sm:$0xf]
      %v1014 = vld [vmem:[%s626 + $0x48] sm:$0xff]
      %v1015 = vld [vmem:[%s626 + $0x50] sm:$0xf]
      %v1016 = vld [vmem:[%s626 + $0x54] sm:$0xff]
      %v1017 = vld [vmem:[%s626 + $0x5c] sm:$0xf]
      %v1018 = vld [vmem:[%s626 + $0x60] sm:$0xff]
      %v1019 = vld [vmem:[%s626 + $0x68] sm:$0xf]
      %v1020 = vld [vmem:[%s626 + $0x6c] sm:$0xff]
      %v1021 = vld [vmem:[%s626 + $0x74] sm:$0xf]
      %v1022 = vld [vmem:[%s626 + $0x78] sm:$0xff]
      %v1023 = vld [vmem:[%s626 + $0x80] sm:$0xf]
      %v1024 = vld [vmem:[%s626 + $0x84] sm:$0xff]
      %v1025 = vld [vmem:[%s626 + $0x8c] sm:$0xf]
      %v1026 = vld [vmem:[%s626 + $0x90] sm:$0xff]
      %v1027 = vld [vmem:[%s626 + $0x98] sm:$0xf]
      %v1028 = vld [vmem:[%s626 + $0x9c] sm:$0xff]
      %v1029 = vld [vmem:[%s626 + $0xa4] sm:$0xf]
      %v1030 = vld [vmem:[%s626 + $0xa8] sm:$0xff]
      %v1031 = vld [vmem:[%s626 + $0xb0] sm:$0xf]
      %v1032 = vld [vmem:[%s626 + $0xb4] sm:$0xff]
      %v1033 = vld [vmem:[%s626 + $0xbc] sm:$0xf]
      %v1066 = vunpack.c.l.b16 %v1002
      %v1067 = vunpack.c.h.b16 %v1002
      %v1068 = vunpack.c.l.b16 %v1003
      %v1069 = vunpack.c.l.b16 %v1004
      %v1070 = vunpack.c.h.b16 %v1004
      %v1071 = vunpack.c.l.b16 %v1005
      %v1072 = vunpack.c.l.b16 %v1006
      %v1073 = vunpack.c.h.b16 %v1006
      %v1074 = vunpack.c.l.b16 %v1007
      %v1075 = vunpack.c.l.b16 %v1008
      %v1076 = vunpack.c.h.b16 %v1008
      %v1077 = vunpack.c.l.b16 %v1009
      %v1078 = vunpack.c.l.b16 %v1010
      %v1079 = vunpack.c.h.b16 %v1010
      %v1080 = vunpack.c.l.b16 %v1011
      %v1081 = vunpack.c.l.b16 %v1012
      %v1082 = vunpack.c.h.b16 %v1012
      %v1083 = vunpack.c.l.b16 %v1013
      %v1084 = vunpack.c.l.b16 %v1014
      %v1085 = vunpack.c.h.b16 %v1014
      %v1086 = vunpack.c.l.b16 %v1015
      %v1087 = vunpack.c.l.b16 %v1016
      %v1088 = vunpack.c.h.b16 %v1016
      %v1089 = vunpack.c.l.b16 %v1017
      %v1090 = vunpack.c.l.b16 %v1018
      %v1091 = vunpack.c.h.b16 %v1018
      %v1092 = vunpack.c.l.b16 %v1019
      %v1093 = vunpack.c.l.b16 %v1020
      %v1094 = vunpack.c.h.b16 %v1020
      %v1095 = vunpack.c.l.b16 %v1021
      %v1096 = vunpack.c.l.b16 %v1022
      %v1097 = vunpack.c.h.b16 %v1022
      %v1098 = vunpack.c.l.b16 %v1023
      %v1099 = vunpack.c.l.b16 %v1024
      %v1100 = vunpack.c.h.b16 %v1024
      %v1101 = vunpack.c.l.b16 %v1025
      %v1102 = vunpack.c.l.b16 %v1026
      %v1103 = vunpack.c.h.b16 %v1026
      %v1104 = vunpack.c.l.b16 %v1027
      %v1105 = vunpack.c.l.b16 %v1028
      %v1106 = vunpack.c.h.b16 %v1028
      %v1107 = vunpack.c.l.b16 %v1029
      %v1108 = vunpack.c.l.b16 %v1030
      %v1109 = vunpack.c.h.b16 %v1030
      %v1110 = vunpack.c.l.b16 %v1031
      %v1111 = vunpack.c.l.b16 %v1032
      %v1112 = vunpack.c.h.b16 %v1032
      %v1113 = vunpack.c.l.b16 %v1033
      %v1114 = vpack.c.b16 %v1069, %v1066
      %v1115 = vpack.c.b16 %v1070, %v1067
      %v1116 = vpack.c.b16 %v1071, %v1068
      %v1117 = vpack.c.b16 %v1075, %v1072
      %v1118 = vpack.c.b16 %v1076, %v1073
      %v1119 = vpack.c.b16 %v1077, %v1074
      %v1120 = vpack.c.b16 %v1081, %v1078
      %v1121 = vpack.c.b16 %v1082, %v1079
      %v1122 = vpack.c.b16 %v1083, %v1080
      %v1123 = vpack.c.b16 %v1087, %v1084
      %v1124 = vpack.c.b16 %v1088, %v1085
      %v1125 = vpack.c.b16 %v1089, %v1086
      %v1126 = vpack.c.b16 %v1093, %v1090
      %v1127 = vpack.c.b16 %v1094, %v1091
      %v1128 = vpack.c.b16 %v1095, %v1092
      %v1129 = vpack.c.b16 %v1099, %v1096
      %v1130 = vpack.c.b16 %v1100, %v1097
      %v1131 = vpack.c.b16 %v1101, %v1098
      %v1132 = vpack.c.b16 %v1105, %v1102
      %v1133 = vpack.c.b16 %v1106, %v1103
      %v1134 = vpack.c.b16 %v1107, %v1104
      %v1135 = vpack.c.b16 %v1111, %v1108
      %v1136 = vpack.c.b16 %v1112, %v1109
      %v1137 = vpack.c.b16 %v1113, %v1110
      %1162 = vmatpush.bf16.msra.mxu0 %v1135
      %1163 = vmatpush.bf16.msra.mxu0 %v1132
      %1164 = vmatpush.bf16.msra.mxu0 %v1129
      %1165 = vmatpush.bf16.msra.mxu0 %v1126
      %1166 = vmatpush.bf16.msra.mxu0 %v1123
      %1167 = vmatpush.bf16.msra.mxu0 %v1120
      %1168 = vmatpush.bf16.msra.mxu0 %v1117
      %1169 = vmatpush.bf16.msra.mxu0 %v1114
      %1170 = vmatmul.bf16.gmra.mxu0 %v996
      %v1171 = vpop.f32.mrf.mxu0
      %v1172 = vadd.f32 0.0, %v1171
      %v1173 = vpop.f32.mrf.mxu0
      %v1174 = vadd.f32 0.0, %v1173
      %1175 = vmatmul.bf16.gmra.mxu0 %v997
      %v1176 = vpop.f32.mrf.mxu0
      %v1177 = vadd.f32 0.0, %v1176
      %v1178 = vpop.f32.mrf.mxu0
      %v1179 = vadd.f32 0.0, %v1178
      %1180 = vmatmul.bf16.gmra.mxu0 %v998
      %v1181 = vpop.f32.mrf.mxu0
      %v1182 = vadd.f32 0.0, %v1181
      %v1183 = vpop.f32.mrf.mxu0
      %v1184 = vadd.f32 0.0, %v1183
      %1185 = vmatmul.bf16.gmra.mxu0 %v999
      %v1186 = vpop.f32.mrf.mxu0
      %v1187 = vadd.f32 0.0, %v1186
      %v1188 = vpop.f32.mrf.mxu0
      %v1189 = vadd.f32 0.0, %v1188
      %1190 = vmatmul.bf16.gmra.mxu0 %v1000
      %v1191 = vpop.f32.mrf.mxu0
      %v1192 = vadd.f32 0.0, %v1191
      %v1193 = vpop.f32.mrf.mxu0
      %v1194 = vadd.f32 0.0, %v1193
      %1195 = vmatmul.bf16.gmra.mxu0 %v1001
      %v1196 = vpop.f32.mrf.mxu0
      %v1197 = vadd.f32 0.0, %v1196
      %v1198 = vpop.f32.mrf.mxu0
      %v1199 = vadd.f32 0.0, %v1198
      %1200 = vdwg.mxu0
      %1201 = vmatpush.bf16.msra.mxu0 %v1136
      %1202 = vmatpush.bf16.msra.mxu0 %v1133
      %1203 = vmatpush.bf16.msra.mxu0 %v1130
      %1204 = vmatpush.bf16.msra.mxu0 %v1127
      %1205 = vmatpush.bf16.msra.mxu0 %v1124
      %1206 = vmatpush.bf16.msra.mxu0 %v1121
      %1207 = vmatpush.bf16.msra.mxu0 %v1118
      %1208 = vmatpush.bf16.msra.mxu0 %v1115
      %1209 = vmatmul.bf16.gmra.mxu0 %v996
      %v1210 = vpop.f32.mrf.mxu0
      %v1211 = vadd.f32 0.0, %v1210
      %v1212 = vpop.f32.mrf.mxu0
      %v1213 = vadd.f32 0.0, %v1212
      %1214 = vmatmul.bf16.gmra.mxu0 %v997
      %v1215 = vpop.f32.mrf.mxu0
      %v1216 = vadd.f32 0.0, %v1215
      %v1217 = vpop.f32.mrf.mxu0
      %v1218 = vadd.f32 0.0, %v1217
      %1219 = vmatmul.bf16.gmra.mxu0 %v998
      %v1220 = vpop.f32.mrf.mxu0
      %v1221 = vadd.f32 0.0, %v1220
      %v1222 = vpop.f32.mrf.mxu0
      %v1223 = vadd.f32 0.0, %v1222
      %1224 = vmatmul.bf16.gmra.mxu0 %v999
      %v1225 = vpop.f32.mrf.mxu0
      %v1226 = vadd.f32 0.0, %v1225
      %v1227 = vpop.f32.mrf.mxu0
      %v1228 = vadd.f32 0.0, %v1227
      %1229 = vmatmul.bf16.gmra.mxu0 %v1000
      %v1230 = vpop.f32.mrf.mxu0
      %v1231 = vadd.f32 0.0, %v1230
      %v1232 = vpop.f32.mrf.mxu0
      %v1233 = vadd.f32 0.0, %v1232
      %1234 = vmatmul.bf16.gmra.mxu0 %v1001
      %v1235 = vpop.f32.mrf.mxu0
      %v1236 = vadd.f32 0.0, %v1235
      %v1237 = vpop.f32.mrf.mxu0
      %v1238 = vadd.f32 0.0, %v1237
      %1239 = vdwg.mxu0
      %1240 = vmatpush.bf16.msra.mxu0 %v1137
      %1241 = vmatpush.bf16.msra.mxu0 %v1134
      %1242 = vmatpush.bf16.msra.mxu0 %v1131
      %1243 = vmatpush.bf16.msra.mxu0 %v1128
      %1244 = vmatpush.bf16.msra.mxu0 %v1125
      %1245 = vmatpush.bf16.msra.mxu0 %v1122
      %1246 = vmatpush.bf16.msra.mxu0 %v1119
      %1247 = vmatpush.bf16.msra.mxu0 %v1116
      %1248 = vmatmul.bf16.gmra.mxu0 %v996
      %v1249 = vpop.f32.mrf.mxu0
      %v1250 = vadd.f32 0.0, %v1249
      %v1251 = vpop.f32.mrf.mxu0
      %v1252 = vadd.f32 0.0, %v1251
      %1253 = vmatmul.bf16.gmra.mxu0 %v997
      %v1254 = vpop.f32.mrf.mxu0
      %v1255 = vadd.f32 0.0, %v1254
      %v1256 = vpop.f32.mrf.mxu0
      %v1257 = vadd.f32 0.0, %v1256
      %1258 = vmatmul.bf16.gmra.mxu0 %v998
      %v1259 = vpop.f32.mrf.mxu0
      %v1260 = vadd.f32 0.0, %v1259
      %v1261 = vpop.f32.mrf.mxu0
      %v1262 = vadd.f32 0.0, %v1261
      %1263 = vmatmul.bf16.gmra.mxu0 %v999
      %v1264 = vpop.f32.mrf.mxu0
      %v1265 = vadd.f32 0.0, %v1264
      %v1266 = vpop.f32.mrf.mxu0
      %v1267 = vadd.f32 0.0, %v1266
      %1268 = vmatmul.bf16.gmra.mxu0 %v1000
      %v1269 = vpop.f32.mrf.mxu0
      %v1270 = vadd.f32 0.0, %v1269
      %v1271 = vpop.f32.mrf.mxu0
      %v1272 = vadd.f32 0.0, %v1271
      %1273 = vmatmul.bf16.gmra.mxu0 %v1001
      %v1274 = vpop.f32.mrf.mxu0
      %v1275 = vadd.f32 0.0, %v1274
      %v1276 = vpop.f32.mrf.mxu0
      %v1277 = vadd.f32 0.0, %v1276
      %1278 = vdwg.mxu0
      %v1279 = vld [vmem:[%s631] sm:$0xf]
      %v1280 = vld [vmem:[%s631 + $0x4] sm:$0xf]
      %v1281 = vld [vmem:[%s631 + $0x8] sm:$0xf]
      %v1282 = vld [vmem:[%s631 + $0xc] sm:$0xf]
      %v1283 = vld [vmem:[%s631 + $0x10] sm:$0xf]
      %v1284 = vld [vmem:[%s631 + $0x14] sm:$0xf]
      %v1285 = vld [vmem:[%s631 + $0x18] sm:$0xf]
      %v1286 = vld [vmem:[%s631 + $0x1c] sm:$0xf]
      %v1287 = vld [vmem:[%s631 + $0x20] sm:$0xf]
      %v1288 = vld [vmem:[%s631 + $0x24] sm:$0xf]
      %v1289 = vld [vmem:[%s631 + $0x28] sm:$0xf]
      %v1290 = vld [vmem:[%s631 + $0x2c] sm:$0xf]
      %v1291 = vld [vmem:[%s631 + $0x30] sm:$0xf]
      %v1292 = vld [vmem:[%s631 + $0x34] sm:$0xf]
      %v1293 = vld [vmem:[%s631 + $0x38] sm:$0xf]
      %v1294 = vld [vmem:[%s631 + $0x3c] sm:$0xf]
      %1301 = vrot.lane.b32.xlu0 %v1172, 96
      %v1302 = vpop.permute.xlu0 %1301
      %1303 = vrot.lane.b32.xlu0 %v1174, 96
      %v1304 = vpop.permute.xlu0 %1303
      %1305 = vrot.lane.b32.xlu0 %v1177, 96
      %v1306 = vpop.permute.xlu0 %1305
      %1307 = vrot.lane.b32.xlu0 %v1179, 96
      %v1308 = vpop.permute.xlu0 %1307
      %1309 = vrot.lane.b32.xlu0 %v1182, 96
      %v1310 = vpop.permute.xlu0 %1309
      %1311 = vrot.lane.b32.xlu0 %v1184, 96
      %v1312 = vpop.permute.xlu0 %1311
      %1319 = vrot.lane.b32.xlu0 %v1172, 64
      %v1320 = vpop.permute.xlu0 %1319
      %1321 = vrot.lane.b32.xlu0 %v1174, 64
      %v1322 = vpop.permute.xlu0 %1321
      %1323 = vrot.lane.b32.xlu0 %v1177, 64
      %v1324 = vpop.permute.xlu0 %1323
      %1325 = vrot.lane.b32.xlu0 %v1179, 64
      %v1326 = vpop.permute.xlu0 %1325
      %1327 = vrot.lane.b32.xlu0 %v1182, 64
      %v1328 = vpop.permute.xlu0 %1327
      %1329 = vrot.lane.b32.xlu0 %v1184, 64
      %v1330 = vpop.permute.xlu0 %1329
      %1337 = vrot.lane.b32.xlu0 %v1172, 32
      %v1338 = vpop.permute.xlu0 %1337
      %1339 = vrot.lane.b32.xlu0 %v1174, 32
      %v1340 = vpop.permute.xlu0 %1339
      %1341 = vrot.lane.b32.xlu0 %v1177, 32
      %v1342 = vpop.permute.xlu0 %1341
      %1343 = vrot.lane.b32.xlu0 %v1179, 32
      %v1344 = vpop.permute.xlu0 %1343
      %1345 = vrot.lane.b32.xlu0 %v1182, 32
      %v1346 = vpop.permute.xlu0 %1345
      %1347 = vrot.lane.b32.xlu0 %v1184, 32
      %v1348 = vpop.permute.xlu0 %1347
      %1361 = vrot.lane.b32.xlu0 %v1211, 96
      %v1362 = vpop.permute.xlu0 %1361
      %1363 = vrot.lane.b32.xlu0 %v1213, 96
      %v1364 = vpop.permute.xlu0 %1363
      %1365 = vrot.lane.b32.xlu0 %v1216, 96
      %v1366 = vpop.permute.xlu0 %1365
      %1367 = vrot.lane.b32.xlu0 %v1218, 96
      %v1368 = vpop.permute.xlu0 %1367
      %1369 = vrot.lane.b32.xlu0 %v1221, 96
      %v1370 = vpop.permute.xlu0 %1369
      %1371 = vrot.lane.b32.xlu0 %v1223, 96
      %v1372 = vpop.permute.xlu0 %1371
      %1379 = vrot.lane.b32.xlu0 %v1211, 64
      %v1380 = vpop.permute.xlu0 %1379
      %1381 = vrot.lane.b32.xlu0 %v1213, 64
      %v1382 = vpop.permute.xlu0 %1381
      %1383 = vrot.lane.b32.xlu0 %v1216, 64
      %v1384 = vpop.permute.xlu0 %1383
      %1385 = vrot.lane.b32.xlu0 %v1218, 64
      %v1386 = vpop.permute.xlu0 %1385
      %1387 = vrot.lane.b32.xlu0 %v1221, 64
      %v1388 = vpop.permute.xlu0 %1387
      %1389 = vrot.lane.b32.xlu0 %v1223, 64
      %v1390 = vpop.permute.xlu0 %1389
      %1397 = vrot.lane.b32.xlu0 %v1211, 32
      %v1398 = vpop.permute.xlu0 %1397
      %1399 = vrot.lane.b32.xlu0 %v1213, 32
      %v1400 = vpop.permute.xlu0 %1399
      %1401 = vrot.lane.b32.xlu0 %v1216, 32
      %v1402 = vpop.permute.xlu0 %1401
      %1403 = vrot.lane.b32.xlu0 %v1218, 32
      %v1404 = vpop.permute.xlu0 %1403
      %1405 = vrot.lane.b32.xlu0 %v1221, 32
      %v1406 = vpop.permute.xlu0 %1405
      %1407 = vrot.lane.b32.xlu0 %v1223, 32
      %v1408 = vpop.permute.xlu0 %1407
      %1421 = vrot.lane.b32.xlu0 %v1250, 96
      %v1422 = vpop.permute.xlu0 %1421
      %1423 = vrot.lane.b32.xlu0 %v1252, 96
      %v1424 = vpop.permute.xlu0 %1423
      %1425 = vrot.lane.b32.xlu0 %v1255, 96
      %v1426 = vpop.permute.xlu0 %1425
      %1427 = vrot.lane.b32.xlu0 %v1257, 96
      %v1428 = vpop.permute.xlu0 %1427
      %1429 = vrot.lane.b32.xlu0 %v1260, 96
      %v1430 = vpop.permute.xlu0 %1429
      %1431 = vrot.lane.b32.xlu0 %v1262, 96
      %v1432 = vpop.permute.xlu0 %1431
      %1439 = vrot.lane.b32.xlu0 %v1250, 64
      %v1440 = vpop.permute.xlu0 %1439
      %1441 = vrot.lane.b32.xlu0 %v1252, 64
      %v1442 = vpop.permute.xlu0 %1441
      %1443 = vrot.lane.b32.xlu0 %v1255, 64
      %v1444 = vpop.permute.xlu0 %1443
      %1445 = vrot.lane.b32.xlu0 %v1257, 64
      %v1446 = vpop.permute.xlu0 %1445
      %1447 = vrot.lane.b32.xlu0 %v1260, 64
      %v1448 = vpop.permute.xlu0 %1447
      %1449 = vrot.lane.b32.xlu0 %v1262, 64
      %v1450 = vpop.permute.xlu0 %1449
      %1457 = vrot.lane.b32.xlu0 %v1250, 32
      %v1458 = vpop.permute.xlu0 %1457
      %1459 = vrot.lane.b32.xlu0 %v1252, 32
      %v1460 = vpop.permute.xlu0 %1459
      %1461 = vrot.lane.b32.xlu0 %v1255, 32
      %v1462 = vpop.permute.xlu0 %1461
      %1463 = vrot.lane.b32.xlu0 %v1257, 32
      %v1464 = vpop.permute.xlu0 %1463
      %1465 = vrot.lane.b32.xlu0 %v1260, 32
      %v1466 = vpop.permute.xlu0 %1465
      %1467 = vrot.lane.b32.xlu0 %v1262, 32
      %v1468 = vpop.permute.xlu0 %1467
      %v1475 = vrot.slane %v1320, 4
      %vm1476 = vcmask 1047556
      %v1477 = vsel %vm1476, %v1475, %v1172
      %v1478 = vrot.slane %v1172, 4
      %v1479 = vsel %vm1476, %v1320, %v1478
      %v1481 = vunpack.c.l.s4 1983009808
      %v1482 = vunpack.c.0.s8 %v1481
      %v1483 = vperm.slane %v1477, %v1482
      %v1485 = vunpack.c.l.s4 1983009808
      %v1486 = vunpack.c.0.s8 %v1485
      %v1487 = vperm.slane %v1479, %v1486
      %v1488 = vrot.slane %v1338, 4
      %v1489 = vsel %vm1476, %v1488, %v1302
      %v1490 = vrot.slane %v1302, 4
      %v1491 = vsel %vm1476, %v1338, %v1490
      %v1493 = vunpack.c.l.s4 1983009808
      %v1494 = vunpack.c.0.s8 %v1493
      %v1495 = vperm.slane %v1489, %v1494
      %v1497 = vunpack.c.l.s4 1983009808
      %v1498 = vunpack.c.0.s8 %v1497
      %v1499 = vperm.slane %v1491, %v1498
      %v1500 = vrot.slane %v1380, 4
      %v1501 = vsel %vm1476, %v1500, %v1211
      %v1502 = vrot.slane %v1211, 4
      %v1503 = vsel %vm1476, %v1380, %v1502
      %v1505 = vunpack.c.l.s4 1983009808
      %v1506 = vunpack.c.0.s8 %v1505
      %v1507 = vperm.slane %v1501, %v1506
      %v1509 = vunpack.c.l.s4 1983009808
      %v1510 = vunpack.c.0.s8 %v1509
      %v1511 = vperm.slane %v1503, %v1510
      %v1512 = vrot.slane %v1398, 4
      %v1513 = vsel %vm1476, %v1512, %v1362
      %v1514 = vrot.slane %v1362, 4
      %v1515 = vsel %vm1476, %v1398, %v1514
      %v1517 = vunpack.c.l.s4 1983009808
      %v1518 = vunpack.c.0.s8 %v1517
      %v1519 = vperm.slane %v1513, %v1518
      %v1521 = vunpack.c.l.s4 1983009808
      %v1522 = vunpack.c.0.s8 %v1521
      %v1523 = vperm.slane %v1515, %v1522
      %v1524 = vrot.slane %v1495, 4
      %v1525 = vsel %vm1476, %v1524, %v1483
      %v1526 = vrot.slane %v1483, 4
      %v1527 = vsel %vm1476, %v1495, %v1526
      %v1529 = vunpack.c.l.s4 1934713408
      %v1530 = vunpack.c.0.s8 %v1529
      %v1531 = vperm.slane %v1525, %v1530
      %v1533 = vunpack.c.l.s4 1934713408
      %v1534 = vunpack.c.0.s8 %v1533
      %v1535 = vperm.slane %v1527, %v1534
      %v1536 = vrot.slane %v1499, 4
      %v1537 = vsel %vm1476, %v1536, %v1487
      %v1538 = vrot.slane %v1487, 4
      %v1539 = vsel %vm1476, %v1499, %v1538
      %v1541 = vunpack.c.l.s4 1934713408
      %v1542 = vunpack.c.0.s8 %v1541
      %v1543 = vperm.slane %v1537, %v1542
      %v1545 = vunpack.c.l.s4 1934713408
      %v1546 = vunpack.c.0.s8 %v1545
      %v1547 = vperm.slane %v1539, %v1546
      %v1548 = vrot.slane %v1519, 4
      %v1549 = vsel %vm1476, %v1548, %v1507
      %v1550 = vrot.slane %v1507, 4
      %v1551 = vsel %vm1476, %v1519, %v1550
      %v1553 = vunpack.c.l.s4 1934713408
      %v1554 = vunpack.c.0.s8 %v1553
      %v1555 = vperm.slane %v1549, %v1554
      %v1557 = vunpack.c.l.s4 1934713408
      %v1558 = vunpack.c.0.s8 %v1557
      %v1559 = vperm.slane %v1551, %v1558
      %v1560 = vrot.slane %v1523, 4
      %v1561 = vsel %vm1476, %v1560, %v1511
      %v1562 = vrot.slane %v1511, 4
      %v1563 = vsel %vm1476, %v1523, %v1562
      %v1565 = vunpack.c.l.s4 1934713408
      %v1566 = vunpack.c.0.s8 %v1565
      %v1567 = vperm.slane %v1561, %v1566
      %v1569 = vunpack.c.l.s4 1934713408
      %v1570 = vunpack.c.0.s8 %v1569
      %v1571 = vperm.slane %v1563, %v1570
      %v1572 = vrot.slane %v1555, 4
      %v1573 = vsel %vm1476, %v1572, %v1531
      %v1574 = vrot.slane %v1531, 4
      %v1575 = vsel %vm1476, %v1555, %v1574
      %v1576 = vrot.slane %v1559, 4
      %v1577 = vsel %vm1476, %v1576, %v1535
      %v1578 = vrot.slane %v1535, 4
      %v1579 = vsel %vm1476, %v1559, %v1578
      %v1580 = vrot.slane %v1567, 4
      %v1581 = vsel %vm1476, %v1580, %v1543
      %v1582 = vrot.slane %v1543, 4
      %v1583 = vsel %vm1476, %v1567, %v1582
      %v1584 = vrot.slane %v1571, 4
      %v1585 = vsel %vm1476, %v1584, %v1547
      %v1586 = vrot.slane %v1547, 4
      %v1587 = vsel %vm1476, %v1571, %v1586
      %v1588 = vrot.slane %v1440, 4
      %v1589 = vsel %vm1476, %v1588, %v1250
      %v1590 = vrot.slane %v1250, 4
      %v1591 = vsel %vm1476, %v1440, %v1590
      %v1593 = vunpack.c.l.s4 1983009808
      %v1594 = vunpack.c.0.s8 %v1593
      %v1595 = vperm.slane %v1589, %v1594
      %v1597 = vunpack.c.l.s4 1983009808
      %v1598 = vunpack.c.0.s8 %v1597
      %v1599 = vperm.slane %v1591, %v1598
      %v1600 = vrot.slane %v1458, 4
      %v1601 = vsel %vm1476, %v1600, %v1422
      %v1602 = vrot.slane %v1422, 4
      %v1603 = vsel %vm1476, %v1458, %v1602
      %v1605 = vunpack.c.l.s4 1983009808
      %v1606 = vunpack.c.0.s8 %v1605
      %v1607 = vperm.slane %v1601, %v1606
      %v1609 = vunpack.c.l.s4 1983009808
      %v1610 = vunpack.c.0.s8 %v1609
      %v1611 = vperm.slane %v1603, %v1610
      %v1612 = vrot.slane %v1607, 4
      %v1613 = vsel %vm1476, %v1612, %v1595
      %v1614 = vrot.slane %v1595, 4
      %v1615 = vsel %vm1476, %v1607, %v1614
      %v1617 = vunpack.c.l.s4 1934713408
      %v1618 = vunpack.c.0.s8 %v1617
      %v1619 = vperm.slane %v1613, %v1618
      %v1621 = vunpack.c.l.s4 1934713408
      %v1622 = vunpack.c.0.s8 %v1621
      %v1623 = vperm.slane %v1615, %v1622
      %v1624 = vrot.slane %v1611, 4
      %v1625 = vsel %vm1476, %v1624, %v1599
      %v1626 = vrot.slane %v1599, 4
      %v1627 = vsel %vm1476, %v1611, %v1626
      %v1629 = vunpack.c.l.s4 1934713408
      %v1630 = vunpack.c.0.s8 %v1629
      %v1631 = vperm.slane %v1625, %v1630
      %v1633 = vunpack.c.l.s4 1934713408
      %v1634 = vunpack.c.0.s8 %v1633
      %v1635 = vperm.slane %v1627, %v1634
      %v1636 = vrot.slane %v1619, 4
      %v1637 = vsel %vm1476, 0.0, %v1636
      %v1638 = vrot.slane %v1623, 4
      %v1639 = vsel %vm1476, 0.0, %v1638
      %v1640 = vrot.slane %v1631, 4
      %v1641 = vsel %vm1476, 0.0, %v1640
      %v1642 = vrot.slane %v1635, 4
      %v1643 = vsel %vm1476, 0.0, %v1642
      %v1644 = vrot.slane %v1322, 4
      %v1645 = vsel %vm1476, %v1644, %v1174
      %v1646 = vrot.slane %v1174, 4
      %v1647 = vsel %vm1476, %v1322, %v1646
      %v1649 = vunpack.c.l.s4 1983009808
      %v1650 = vunpack.c.0.s8 %v1649
      %v1651 = vperm.slane %v1645, %v1650
      %v1653 = vunpack.c.l.s4 1983009808
      %v1654 = vunpack.c.0.s8 %v1653
      %v1655 = vperm.slane %v1647, %v1654
      %v1656 = vrot.slane %v1340, 4
      %v1657 = vsel %vm1476, %v1656, %v1304
      %v1658 = vrot.slane %v1304, 4
      %v1659 = vsel %vm1476, %v1340, %v1658
      %v1661 = vunpack.c.l.s4 1983009808
      %v1662 = vunpack.c.0.s8 %v1661
      %v1663 = vperm.slane %v1657, %v1662
      %v1665 = vunpack.c.l.s4 1983009808
      %v1666 = vunpack.c.0.s8 %v1665
      %v1667 = vperm.slane %v1659, %v1666
      %v1668 = vrot.slane %v1382, 4
      %v1669 = vsel %vm1476, %v1668, %v1213
      %v1670 = vrot.slane %v1213, 4
      %v1671 = vsel %vm1476, %v1382, %v1670
      %v1673 = vunpack.c.l.s4 1983009808
      %v1674 = vunpack.c.0.s8 %v1673
      %v1675 = vperm.slane %v1669, %v1674
      %v1677 = vunpack.c.l.s4 1983009808
      %v1678 = vunpack.c.0.s8 %v1677
      %v1679 = vperm.slane %v1671, %v1678
      %v1680 = vrot.slane %v1400, 4
      %v1681 = vsel %vm1476, %v1680, %v1364
      %v1682 = vrot.slane %v1364, 4
      %v1683 = vsel %vm1476, %v1400, %v1682
      %v1685 = vunpack.c.l.s4 1983009808
      %v1686 = vunpack.c.0.s8 %v1685
      %v1687 = vperm.slane %v1681, %v1686
      %v1689 = vunpack.c.l.s4 1983009808
      %v1690 = vunpack.c.0.s8 %v1689
      %v1691 = vperm.slane %v1683, %v1690
      %v1692 = vrot.slane %v1663, 4
      %v1693 = vsel %vm1476, %v1692, %v1651
      %v1694 = vrot.slane %v1651, 4
      %v1695 = vsel %vm1476, %v1663, %v1694
      %v1697 = vunpack.c.l.s4 1934713408
      %v1698 = vunpack.c.0.s8 %v1697
      %v1699 = vperm.slane %v1693, %v1698
      %v1701 = vunpack.c.l.s4 1934713408
      %v1702 = vunpack.c.0.s8 %v1701
      %v1703 = vperm.slane %v1695, %v1702
      %v1704 = vrot.slane %v1667, 4
      %v1705 = vsel %vm1476, %v1704, %v1655
      %v1706 = vrot.slane %v1655, 4
      %v1707 = vsel %vm1476, %v1667, %v1706
      %v1709 = vunpack.c.l.s4 1934713408
      %v1710 = vunpack.c.0.s8 %v1709
      %v1711 = vperm.slane %v1705, %v1710
      %v1713 = vunpack.c.l.s4 1934713408
      %v1714 = vunpack.c.0.s8 %v1713
      %v1715 = vperm.slane %v1707, %v1714
      %v1716 = vrot.slane %v1687, 4
      %v1717 = vsel %vm1476, %v1716, %v1675
      %v1718 = vrot.slane %v1675, 4
      %v1719 = vsel %vm1476, %v1687, %v1718
      %v1721 = vunpack.c.l.s4 1934713408
      %v1722 = vunpack.c.0.s8 %v1721
      %v1723 = vperm.slane %v1717, %v1722
      %v1725 = vunpack.c.l.s4 1934713408
      %v1726 = vunpack.c.0.s8 %v1725
      %v1727 = vperm.slane %v1719, %v1726
      %v1728 = vrot.slane %v1691, 4
      %v1729 = vsel %vm1476, %v1728, %v1679
      %v1730 = vrot.slane %v1679, 4
      %v1731 = vsel %vm1476, %v1691, %v1730
      %v1733 = vunpack.c.l.s4 1934713408
      %v1734 = vunpack.c.0.s8 %v1733
      %v1735 = vperm.slane %v1729, %v1734
      %v1737 = vunpack.c.l.s4 1934713408
      %v1738 = vunpack.c.0.s8 %v1737
      %v1739 = vperm.slane %v1731, %v1738
      %v1740 = vrot.slane %v1723, 4
      %v1741 = vsel %vm1476, %v1740, %v1699
      %v1742 = vrot.slane %v1699, 4
      %v1743 = vsel %vm1476, %v1723, %v1742
      %v1744 = vrot.slane %v1727, 4
      %v1745 = vsel %vm1476, %v1744, %v1703
      %v1746 = vrot.slane %v1703, 4
      %v1747 = vsel %vm1476, %v1727, %v1746
      %v1748 = vrot.slane %v1735, 4
      %v1749 = vsel %vm1476, %v1748, %v1711
      %v1750 = vrot.slane %v1711, 4
      %v1751 = vsel %vm1476, %v1735, %v1750
      %v1752 = vrot.slane %v1739, 4
      %v1753 = vsel %vm1476, %v1752, %v1715
      %v1754 = vrot.slane %v1715, 4
      %v1755 = vsel %vm1476, %v1739, %v1754
      %v1756 = vrot.slane %v1442, 4
      %v1757 = vsel %vm1476, %v1756, %v1252
      %v1758 = vrot.slane %v1252, 4
      %v1759 = vsel %vm1476, %v1442, %v1758
      %v1761 = vunpack.c.l.s4 1983009808
      %v1762 = vunpack.c.0.s8 %v1761
      %v1763 = vperm.slane %v1757, %v1762
      %v1765 = vunpack.c.l.s4 1983009808
      %v1766 = vunpack.c.0.s8 %v1765
      %v1767 = vperm.slane %v1759, %v1766
      %v1768 = vrot.slane %v1460, 4
      %v1769 = vsel %vm1476, %v1768, %v1424
      %v1770 = vrot.slane %v1424, 4
      %v1771 = vsel %vm1476, %v1460, %v1770
      %v1773 = vunpack.c.l.s4 1983009808
      %v1774 = vunpack.c.0.s8 %v1773
      %v1775 = vperm.slane %v1769, %v1774
      %v1777 = vunpack.c.l.s4 1983009808
      %v1778 = vunpack.c.0.s8 %v1777
      %v1779 = vperm.slane %v1771, %v1778
      %v1780 = vrot.slane %v1775, 4
      %v1781 = vsel %vm1476, %v1780, %v1763
      %v1782 = vrot.slane %v1763, 4
      %v1783 = vsel %vm1476, %v1775, %v1782
      %v1785 = vunpack.c.l.s4 1934713408
      %v1786 = vunpack.c.0.s8 %v1785
      %v1787 = vperm.slane %v1781, %v1786
      %v1789 = vunpack.c.l.s4 1934713408
      %v1790 = vunpack.c.0.s8 %v1789
      %v1791 = vperm.slane %v1783, %v1790
      %v1792 = vrot.slane %v1779, 4
      %v1793 = vsel %vm1476, %v1792, %v1767
      %v1794 = vrot.slane %v1767, 4
      %v1795 = vsel %vm1476, %v1779, %v1794
      %v1797 = vunpack.c.l.s4 1934713408
      %v1798 = vunpack.c.0.s8 %v1797
      %v1799 = vperm.slane %v1793, %v1798
      %v1801 = vunpack.c.l.s4 1934713408
      %v1802 = vunpack.c.0.s8 %v1801
      %v1803 = vperm.slane %v1795, %v1802
      %v1804 = vrot.slane %v1787, 4
      %v1805 = vsel %vm1476, 0.0, %v1804
      %v1806 = vrot.slane %v1791, 4
      %v1807 = vsel %vm1476, 0.0, %v1806
      %v1808 = vrot.slane %v1799, 4
      %v1809 = vsel %vm1476, 0.0, %v1808
      %v1810 = vrot.slane %v1803, 4
      %v1811 = vsel %vm1476, 0.0, %v1810
      %v1812 = vrot.slane %v1324, 4
      %v1813 = vsel %vm1476, %v1812, %v1177
      %v1814 = vrot.slane %v1177, 4
      %v1815 = vsel %vm1476, %v1324, %v1814
      %v1817 = vunpack.c.l.s4 1983009808
      %v1818 = vunpack.c.0.s8 %v1817
      %v1819 = vperm.slane %v1813, %v1818
      %v1821 = vunpack.c.l.s4 1983009808
      %v1822 = vunpack.c.0.s8 %v1821
      %v1823 = vperm.slane %v1815, %v1822
      %v1824 = vrot.slane %v1342, 4
      %v1825 = vsel %vm1476, %v1824, %v1306
      %v1826 = vrot.slane %v1306, 4
      %v1827 = vsel %vm1476, %v1342, %v1826
      %v1829 = vunpack.c.l.s4 1983009808
      %v1830 = vunpack.c.0.s8 %v1829
      %v1831 = vperm.slane %v1825, %v1830
      %v1833 = vunpack.c.l.s4 1983009808
      %v1834 = vunpack.c.0.s8 %v1833
      %v1835 = vperm.slane %v1827, %v1834
      %v1836 = vrot.slane %v1384, 4
      %v1837 = vsel %vm1476, %v1836, %v1216
      %v1838 = vrot.slane %v1216, 4
      %v1839 = vsel %vm1476, %v1384, %v1838
      %v1841 = vunpack.c.l.s4 1983009808
      %v1842 = vunpack.c.0.s8 %v1841
      %v1843 = vperm.slane %v1837, %v1842
      %v1845 = vunpack.c.l.s4 1983009808
      %v1846 = vunpack.c.0.s8 %v1845
      %v1847 = vperm.slane %v1839, %v1846
      %v1848 = vrot.slane %v1402, 4
      %v1849 = vsel %vm1476, %v1848, %v1366
      %v1850 = vrot.slane %v1366, 4
      %v1851 = vsel %vm1476, %v1402, %v1850
      %v1853 = vunpack.c.l.s4 1983009808
      %v1854 = vunpack.c.0.s8 %v1853
      %v1855 = vperm.slane %v1849, %v1854
      %v1857 = vunpack.c.l.s4 1983009808
      %v1858 = vunpack.c.0.s8 %v1857
      %v1859 = vperm.slane %v1851, %v1858
      %v1860 = vrot.slane %v1831, 4
      %v1861 = vsel %vm1476, %v1860, %v1819
      %v1862 = vrot.slane %v1819, 4
      %v1863 = vsel %vm1476, %v1831, %v1862
      %v1865 = vunpack.c.l.s4 1934713408
      %v1866 = vunpack.c.0.s8 %v1865
      %v1867 = vperm.slane %v1861, %v1866
      %v1869 = vunpack.c.l.s4 1934713408
      %v1870 = vunpack.c.0.s8 %v1869
      %v1871 = vperm.slane %v1863, %v1870
      %v1872 = vrot.slane %v1835, 4
      %v1873 = vsel %vm1476, %v1872, %v1823
      %v1874 = vrot.slane %v1823, 4
      %v1875 = vsel %vm1476, %v1835, %v1874
      %v1877 = vunpack.c.l.s4 1934713408
      %v1878 = vunpack.c.0.s8 %v1877
      %v1879 = vperm.slane %v1873, %v1878
      %v1881 = vunpack.c.l.s4 1934713408
      %v1882 = vunpack.c.0.s8 %v1881
      %v1883 = vperm.slane %v1875, %v1882
      %v1884 = vrot.slane %v1855, 4
      %v1885 = vsel %vm1476, %v1884, %v1843
      %v1886 = vrot.slane %v1843, 4
      %v1887 = vsel %vm1476, %v1855, %v1886
      %v1889 = vunpack.c.l.s4 1934713408
      %v1890 = vunpack.c.0.s8 %v1889
      %v1891 = vperm.slane %v1885, %v1890
      %v1893 = vunpack.c.l.s4 1934713408
      %v1894 = vunpack.c.0.s8 %v1893
      %v1895 = vperm.slane %v1887, %v1894
      %v1896 = vrot.slane %v1859, 4
      %v1897 = vsel %vm1476, %v1896, %v1847
      %v1898 = vrot.slane %v1847, 4
      %v1899 = vsel %vm1476, %v1859, %v1898
      %v1901 = vunpack.c.l.s4 1934713408
      %v1902 = vunpack.c.0.s8 %v1901
      %v1903 = vperm.slane %v1897, %v1902
      %v1905 = vunpack.c.l.s4 1934713408
      %v1906 = vunpack.c.0.s8 %v1905
      %v1907 = vperm.slane %v1899, %v1906
      %v1908 = vrot.slane %v1891, 4
      %v1909 = vsel %vm1476, %v1908, %v1867
      %v1910 = vrot.slane %v1867, 4
      %v1911 = vsel %vm1476, %v1891, %v1910
      %v1912 = vrot.slane %v1895, 4
      %v1913 = vsel %vm1476, %v1912, %v1871
      %v1914 = vrot.slane %v1871, 4
      %v1915 = vsel %vm1476, %v1895, %v1914
      %v1916 = vrot.slane %v1903, 4
      %v1917 = vsel %vm1476, %v1916, %v1879
      %v1918 = vrot.slane %v1879, 4
      %v1919 = vsel %vm1476, %v1903, %v1918
      %v1920 = vrot.slane %v1907, 4
      %v1921 = vsel %vm1476, %v1920, %v1883
      %v1922 = vrot.slane %v1883, 4
      %v1923 = vsel %vm1476, %v1907, %v1922
      %v1924 = vrot.slane %v1444, 4
      %v1925 = vsel %vm1476, %v1924, %v1255
      %v1926 = vrot.slane %v1255, 4
      %v1927 = vsel %vm1476, %v1444, %v1926
      %v1929 = vunpack.c.l.s4 1983009808
      %v1930 = vunpack.c.0.s8 %v1929
      %v1931 = vperm.slane %v1925, %v1930
      %v1933 = vunpack.c.l.s4 1983009808
      %v1934 = vunpack.c.0.s8 %v1933
      %v1935 = vperm.slane %v1927, %v1934
      %v1936 = vrot.slane %v1462, 4
      %v1937 = vsel %vm1476, %v1936, %v1426
      %v1938 = vrot.slane %v1426, 4
      %v1939 = vsel %vm1476, %v1462, %v1938
      %v1941 = vunpack.c.l.s4 1983009808
      %v1942 = vunpack.c.0.s8 %v1941
      %v1943 = vperm.slane %v1937, %v1942
      %v1945 = vunpack.c.l.s4 1983009808
      %v1946 = vunpack.c.0.s8 %v1945
      %v1947 = vperm.slane %v1939, %v1946
      %v1948 = vrot.slane %v1943, 4
      %v1949 = vsel %vm1476, %v1948, %v1931
      %v1950 = vrot.slane %v1931, 4
      %v1951 = vsel %vm1476, %v1943, %v1950
      %v1953 = vunpack.c.l.s4 1934713408
      %v1954 = vunpack.c.0.s8 %v1953
      %v1955 = vperm.slane %v1949, %v1954
      %v1957 = vunpack.c.l.s4 1934713408
      %v1958 = vunpack.c.0.s8 %v1957
      %v1959 = vperm.slane %v1951, %v1958
      %v1960 = vrot.slane %v1947, 4
      %v1961 = vsel %vm1476, %v1960, %v1935
      %v1962 = vrot.slane %v1935, 4
      %v1963 = vsel %vm1476, %v1947, %v1962
      %v1965 = vunpack.c.l.s4 1934713408
      %v1966 = vunpack.c.0.s8 %v1965
      %v1967 = vperm.slane %v1961, %v1966
      %v1969 = vunpack.c.l.s4 1934713408
      %v1970 = vunpack.c.0.s8 %v1969
      %v1971 = vperm.slane %v1963, %v1970
      %v1972 = vrot.slane %v1955, 4
      %v1973 = vsel %vm1476, 0.0, %v1972
      %v1974 = vrot.slane %v1959, 4
      %v1975 = vsel %vm1476, 0.0, %v1974
      %v1976 = vrot.slane %v1967, 4
      %v1977 = vsel %vm1476, 0.0, %v1976
      %v1978 = vrot.slane %v1971, 4
      %v1979 = vsel %vm1476, 0.0, %v1978
      %v1980 = vrot.slane %v1326, 4
      %v1981 = vsel %vm1476, %v1980, %v1179
      %v1982 = vrot.slane %v1179, 4
      %v1983 = vsel %vm1476, %v1326, %v1982
      %v1985 = vunpack.c.l.s4 1983009808
      %v1986 = vunpack.c.0.s8 %v1985
      %v1987 = vperm.slane %v1981, %v1986
      %v1989 = vunpack.c.l.s4 1983009808
      %v1990 = vunpack.c.0.s8 %v1989
      %v1991 = vperm.slane %v1983, %v1990
      %v1992 = vrot.slane %v1344, 4
      %v1993 = vsel %vm1476, %v1992, %v1308
      %v1994 = vrot.slane %v1308, 4
      %v1995 = vsel %vm1476, %v1344, %v1994
      %v1997 = vunpack.c.l.s4 1983009808
      %v1998 = vunpack.c.0.s8 %v1997
      %v1999 = vperm.slane %v1993, %v1998
      %v2001 = vunpack.c.l.s4 1983009808
      %v2002 = vunpack.c.0.s8 %v2001
      %v2003 = vperm.slane %v1995, %v2002
      %v2004 = vrot.slane %v1386, 4
      %v2005 = vsel %vm1476, %v2004, %v1218
      %v2006 = vrot.slane %v1218, 4
      %v2007 = vsel %vm1476, %v1386, %v2006
      %v2009 = vunpack.c.l.s4 1983009808
      %v2010 = vunpack.c.0.s8 %v2009
      %v2011 = vperm.slane %v2005, %v2010
      %v2013 = vunpack.c.l.s4 1983009808
      %v2014 = vunpack.c.0.s8 %v2013
      %v2015 = vperm.slane %v2007, %v2014
      %v2016 = vrot.slane %v1404, 4
      %v2017 = vsel %vm1476, %v2016, %v1368
      %v2018 = vrot.slane %v1368, 4
      %v2019 = vsel %vm1476, %v1404, %v2018
      %v2021 = vunpack.c.l.s4 1983009808
      %v2022 = vunpack.c.0.s8 %v2021
      %v2023 = vperm.slane %v2017, %v2022
      %v2025 = vunpack.c.l.s4 1983009808
      %v2026 = vunpack.c.0.s8 %v2025
      %v2027 = vperm.slane %v2019, %v2026
      %v2028 = vrot.slane %v1999, 4
      %v2029 = vsel %vm1476, %v2028, %v1987
      %v2030 = vrot.slane %v1987, 4
      %v2031 = vsel %vm1476, %v1999, %v2030
      %v2033 = vunpack.c.l.s4 1934713408
      %v2034 = vunpack.c.0.s8 %v2033
      %v2035 = vperm.slane %v2029, %v2034
      %v2037 = vunpack.c.l.s4 1934713408
      %v2038 = vunpack.c.0.s8 %v2037
      %v2039 = vperm.slane %v2031, %v2038
      %v2040 = vrot.slane %v2003, 4
      %v2041 = vsel %vm1476, %v2040, %v1991
      %v2042 = vrot.slane %v1991, 4
      %v2043 = vsel %vm1476, %v2003, %v2042
      %v2045 = vunpack.c.l.s4 1934713408
      %v2046 = vunpack.c.0.s8 %v2045
      %v2047 = vperm.slane %v2041, %v2046
      %v2049 = vunpack.c.l.s4 1934713408
      %v2050 = vunpack.c.0.s8 %v2049
      %v2051 = vperm.slane %v2043, %v2050
      %v2052 = vrot.slane %v2023, 4
      %v2053 = vsel %vm1476, %v2052, %v2011
      %v2054 = vrot.slane %v2011, 4
      %v2055 = vsel %vm1476, %v2023, %v2054
      %v2057 = vunpack.c.l.s4 1934713408
      %v2058 = vunpack.c.0.s8 %v2057
      %v2059 = vperm.slane %v2053, %v2058
      %v2061 = vunpack.c.l.s4 1934713408
      %v2062 = vunpack.c.0.s8 %v2061
      %v2063 = vperm.slane %v2055, %v2062
      %v2064 = vrot.slane %v2027, 4
      %v2065 = vsel %vm1476, %v2064, %v2015
      %v2066 = vrot.slane %v2015, 4
      %v2067 = vsel %vm1476, %v2027, %v2066
      %v2069 = vunpack.c.l.s4 1934713408
      %v2070 = vunpack.c.0.s8 %v2069
      %v2071 = vperm.slane %v2065, %v2070
      %v2073 = vunpack.c.l.s4 1934713408
      %v2074 = vunpack.c.0.s8 %v2073
      %v2075 = vperm.slane %v2067, %v2074
      %v2076 = vrot.slane %v2059, 4
      %v2077 = vsel %vm1476, %v2076, %v2035
      %v2078 = vrot.slane %v2035, 4
      %v2079 = vsel %vm1476, %v2059, %v2078
      %v2080 = vrot.slane %v2063, 4
      %v2081 = vsel %vm1476, %v2080, %v2039
      %v2082 = vrot.slane %v2039, 4
      %v2083 = vsel %vm1476, %v2063, %v2082
      %v2084 = vrot.slane %v2071, 4
      %v2085 = vsel %vm1476, %v2084, %v2047
      %v2086 = vrot.slane %v2047, 4
      %v2087 = vsel %vm1476, %v2071, %v2086
      %v2088 = vrot.slane %v2075, 4
      %v2089 = vsel %vm1476, %v2088, %v2051
      %v2090 = vrot.slane %v2051, 4
      %v2091 = vsel %vm1476, %v2075, %v2090
      %v2092 = vrot.slane %v1446, 4
      %v2093 = vsel %vm1476, %v2092, %v1257
      %v2094 = vrot.slane %v1257, 4
      %v2095 = vsel %vm1476, %v1446, %v2094
      %v2097 = vunpack.c.l.s4 1983009808
      %v2098 = vunpack.c.0.s8 %v2097
      %v2099 = vperm.slane %v2093, %v2098
      %v2101 = vunpack.c.l.s4 1983009808
      %v2102 = vunpack.c.0.s8 %v2101
      %v2103 = vperm.slane %v2095, %v2102
      %v2104 = vrot.slane %v1464, 4
      %v2105 = vsel %vm1476, %v2104, %v1428
      %v2106 = vrot.slane %v1428, 4
      %v2107 = vsel %vm1476, %v1464, %v2106
      %v2109 = vunpack.c.l.s4 1983009808
      %v2110 = vunpack.c.0.s8 %v2109
      %v2111 = vperm.slane %v2105, %v2110
      %v2113 = vunpack.c.l.s4 1983009808
      %v2114 = vunpack.c.0.s8 %v2113
      %v2115 = vperm.slane %v2107, %v2114
      %v2116 = vrot.slane %v2111, 4
      %v2117 = vsel %vm1476, %v2116, %v2099
      %v2118 = vrot.slane %v2099, 4
      %v2119 = vsel %vm1476, %v2111, %v2118
      %v2121 = vunpack.c.l.s4 1934713408
      %v2122 = vunpack.c.0.s8 %v2121
      %v2123 = vperm.slane %v2117, %v2122
      %v2125 = vunpack.c.l.s4 1934713408
      %v2126 = vunpack.c.0.s8 %v2125
      %v2127 = vperm.slane %v2119, %v2126
      %v2128 = vrot.slane %v2115, 4
      %v2129 = vsel %vm1476, %v2128, %v2103
      %v2130 = vrot.slane %v2103, 4
      %v2131 = vsel %vm1476, %v2115, %v2130
      %v2133 = vunpack.c.l.s4 1934713408
      %v2134 = vunpack.c.0.s8 %v2133
      %v2135 = vperm.slane %v2129, %v2134
      %v2137 = vunpack.c.l.s4 1934713408
      %v2138 = vunpack.c.0.s8 %v2137
      %v2139 = vperm.slane %v2131, %v2138
      %v2140 = vrot.slane %v2123, 4
      %v2141 = vsel %vm1476, 0.0, %v2140
      %v2142 = vrot.slane %v2127, 4
      %v2143 = vsel %vm1476, 0.0, %v2142
      %v2144 = vrot.slane %v2135, 4
      %v2145 = vsel %vm1476, 0.0, %v2144
      %v2146 = vrot.slane %v2139, 4
      %v2147 = vsel %vm1476, 0.0, %v2146
      %v2148 = vrot.slane %v1328, 4
      %v2149 = vsel %vm1476, %v2148, %v1182
      %v2150 = vrot.slane %v1182, 4
      %v2151 = vsel %vm1476, %v1328, %v2150
      %v2153 = vunpack.c.l.s4 1983009808
      %v2154 = vunpack.c.0.s8 %v2153
      %v2155 = vperm.slane %v2149, %v2154
      %v2157 = vunpack.c.l.s4 1983009808
      %v2158 = vunpack.c.0.s8 %v2157
      %v2159 = vperm.slane %v2151, %v2158
      %v2160 = vrot.slane %v1346, 4
      %v2161 = vsel %vm1476, %v2160, %v1310
      %v2162 = vrot.slane %v1310, 4
      %v2163 = vsel %vm1476, %v1346, %v2162
      %v2165 = vunpack.c.l.s4 1983009808
      %v2166 = vunpack.c.0.s8 %v2165
      %v2167 = vperm.slane %v2161, %v2166
      %v2169 = vunpack.c.l.s4 1983009808
      %v2170 = vunpack.c.0.s8 %v2169
      %v2171 = vperm.slane %v2163, %v2170
      %v2172 = vrot.slane %v1388, 4
      %v2173 = vsel %vm1476, %v2172, %v1221
      %v2174 = vrot.slane %v1221, 4
      %v2175 = vsel %vm1476, %v1388, %v2174
      %v2177 = vunpack.c.l.s4 1983009808
      %v2178 = vunpack.c.0.s8 %v2177
      %v2179 = vperm.slane %v2173, %v2178
      %v2181 = vunpack.c.l.s4 1983009808
      %v2182 = vunpack.c.0.s8 %v2181
      %v2183 = vperm.slane %v2175, %v2182
      %v2184 = vrot.slane %v1406, 4
      %v2185 = vsel %vm1476, %v2184, %v1370
      %v2186 = vrot.slane %v1370, 4
      %v2187 = vsel %vm1476, %v1406, %v2186
      %v2189 = vunpack.c.l.s4 1983009808
      %v2190 = vunpack.c.0.s8 %v2189
      %v2191 = vperm.slane %v2185, %v2190
      %v2193 = vunpack.c.l.s4 1983009808
      %v2194 = vunpack.c.0.s8 %v2193
      %v2195 = vperm.slane %v2187, %v2194
      %v2196 = vrot.slane %v2167, 4
      %v2197 = vsel %vm1476, %v2196, %v2155
      %v2198 = vrot.slane %v2155, 4
      %v2199 = vsel %vm1476, %v2167, %v2198
      %v2201 = vunpack.c.l.s4 1934713408
      %v2202 = vunpack.c.0.s8 %v2201
      %v2203 = vperm.slane %v2197, %v2202
      %v2205 = vunpack.c.l.s4 1934713408
      %v2206 = vunpack.c.0.s8 %v2205
      %v2207 = vperm.slane %v2199, %v2206
      %v2208 = vrot.slane %v2171, 4
      %v2209 = vsel %vm1476, %v2208, %v2159
      %v2210 = vrot.slane %v2159, 4
      %v2211 = vsel %vm1476, %v2171, %v2210
      %v2213 = vunpack.c.l.s4 1934713408
      %v2214 = vunpack.c.0.s8 %v2213
      %v2215 = vperm.slane %v2209, %v2214
      %v2217 = vunpack.c.l.s4 1934713408
      %v2218 = vunpack.c.0.s8 %v2217
      %v2219 = vperm.slane %v2211, %v2218
      %v2220 = vrot.slane %v2191, 4
      %v2221 = vsel %vm1476, %v2220, %v2179
      %v2222 = vrot.slane %v2179, 4
      %v2223 = vsel %vm1476, %v2191, %v2222
      %v2225 = vunpack.c.l.s4 1934713408
      %v2226 = vunpack.c.0.s8 %v2225
      %v2227 = vperm.slane %v2221, %v2226
      %v2229 = vunpack.c.l.s4 1934713408
      %v2230 = vunpack.c.0.s8 %v2229
      %v2231 = vperm.slane %v2223, %v2230
      %v2232 = vrot.slane %v2195, 4
      %v2233 = vsel %vm1476, %v2232, %v2183
      %v2234 = vrot.slane %v2183, 4
      %v2235 = vsel %vm1476, %v2195, %v2234
      %v2237 = vunpack.c.l.s4 1934713408
      %v2238 = vunpack.c.0.s8 %v2237
      %v2239 = vperm.slane %v2233, %v2238
      %v2241 = vunpack.c.l.s4 1934713408
      %v2242 = vunpack.c.0.s8 %v2241
      %v2243 = vperm.slane %v2235, %v2242
      %v2244 = vrot.slane %v2227, 4
      %v2245 = vsel %vm1476, %v2244, %v2203
      %v2246 = vrot.slane %v2203, 4
      %v2247 = vsel %vm1476, %v2227, %v2246
      %v2248 = vrot.slane %v2231, 4
      %v2249 = vsel %vm1476, %v2248, %v2207
      %v2250 = vrot.slane %v2207, 4
      %v2251 = vsel %vm1476, %v2231, %v2250
      %v2252 = vrot.slane %v2239, 4
      %v2253 = vsel %vm1476, %v2252, %v2215
      %v2254 = vrot.slane %v2215, 4
      %v2255 = vsel %vm1476, %v2239, %v2254
      %v2256 = vrot.slane %v2243, 4
      %v2257 = vsel %vm1476, %v2256, %v2219
      %v2258 = vrot.slane %v2219, 4
      %v2259 = vsel %vm1476, %v2243, %v2258
      %v2260 = vrot.slane %v1448, 4
      %v2261 = vsel %vm1476, %v2260, %v1260
      %v2262 = vrot.slane %v1260, 4
      %v2263 = vsel %vm1476, %v1448, %v2262
      %v2265 = vunpack.c.l.s4 1983009808
      %v2266 = vunpack.c.0.s8 %v2265
      %v2267 = vperm.slane %v2261, %v2266
      %v2269 = vunpack.c.l.s4 1983009808
      %v2270 = vunpack.c.0.s8 %v2269
      %v2271 = vperm.slane %v2263, %v2270
      %v2272 = vrot.slane %v1466, 4
      %v2273 = vsel %vm1476, %v2272, %v1430
      %v2274 = vrot.slane %v1430, 4
      %v2275 = vsel %vm1476, %v1466, %v2274
      %v2277 = vunpack.c.l.s4 1983009808
      %v2278 = vunpack.c.0.s8 %v2277
      %v2279 = vperm.slane %v2273, %v2278
      %v2281 = vunpack.c.l.s4 1983009808
      %v2282 = vunpack.c.0.s8 %v2281
      %v2283 = vperm.slane %v2275, %v2282
      %v2284 = vrot.slane %v2279, 4
      %v2285 = vsel %vm1476, %v2284, %v2267
      %v2286 = vrot.slane %v2267, 4
      %v2287 = vsel %vm1476, %v2279, %v2286
      %v2289 = vunpack.c.l.s4 1934713408
      %v2290 = vunpack.c.0.s8 %v2289
      %v2291 = vperm.slane %v2285, %v2290
      %v2293 = vunpack.c.l.s4 1934713408
      %v2294 = vunpack.c.0.s8 %v2293
      %v2295 = vperm.slane %v2287, %v2294
      %v2296 = vrot.slane %v2283, 4
      %v2297 = vsel %vm1476, %v2296, %v2271
      %v2298 = vrot.slane %v2271, 4
      %v2299 = vsel %vm1476, %v2283, %v2298
      %v2301 = vunpack.c.l.s4 1934713408
      %v2302 = vunpack.c.0.s8 %v2301
      %v2303 = vperm.slane %v2297, %v2302
      %v2305 = vunpack.c.l.s4 1934713408
      %v2306 = vunpack.c.0.s8 %v2305
      %v2307 = vperm.slane %v2299, %v2306
      %v2308 = vrot.slane %v2291, 4
      %v2309 = vsel %vm1476, 0.0, %v2308
      %v2310 = vrot.slane %v2295, 4
      %v2311 = vsel %vm1476, 0.0, %v2310
      %v2312 = vrot.slane %v2303, 4
      %v2313 = vsel %vm1476, 0.0, %v2312
      %v2314 = vrot.slane %v2307, 4
      %v2315 = vsel %vm1476, 0.0, %v2314
      %v2316 = vrot.slane %v1330, 4
      %v2317 = vsel %vm1476, %v2316, %v1184
      %v2318 = vrot.slane %v1184, 4
      %v2319 = vsel %vm1476, %v1330, %v2318
      %v2321 = vunpack.c.l.s4 1983009808
      %v2322 = vunpack.c.0.s8 %v2321
      %v2323 = vperm.slane %v2317, %v2322
      %v2325 = vunpack.c.l.s4 1983009808
      %v2326 = vunpack.c.0.s8 %v2325
      %v2327 = vperm.slane %v2319, %v2326
      %v2328 = vrot.slane %v1348, 4
      %v2329 = vsel %vm1476, %v2328, %v1312
      %v2330 = vrot.slane %v1312, 4
      %v2331 = vsel %vm1476, %v1348, %v2330
      %v2333 = vunpack.c.l.s4 1983009808
      %v2334 = vunpack.c.0.s8 %v2333
      %v2335 = vperm.slane %v2329, %v2334
      %v2337 = vunpack.c.l.s4 1983009808
      %v2338 = vunpack.c.0.s8 %v2337
      %v2339 = vperm.slane %v2331, %v2338
      %v2340 = vrot.slane %v1390, 4
      %v2341 = vsel %vm1476, %v2340, %v1223
      %v2342 = vrot.slane %v1223, 4
      %v2343 = vsel %vm1476, %v1390, %v2342
      %v2345 = vunpack.c.l.s4 1983009808
      %v2346 = vunpack.c.0.s8 %v2345
      %v2347 = vperm.slane %v2341, %v2346
      %v2349 = vunpack.c.l.s4 1983009808
      %v2350 = vunpack.c.0.s8 %v2349
      %v2351 = vperm.slane %v2343, %v2350
      %v2352 = vrot.slane %v1408, 4
      %v2353 = vsel %vm1476, %v2352, %v1372
      %v2354 = vrot.slane %v1372, 4
      %v2355 = vsel %vm1476, %v1408, %v2354
      %v2357 = vunpack.c.l.s4 1983009808
      %v2358 = vunpack.c.0.s8 %v2357
      %v2359 = vperm.slane %v2353, %v2358
      %v2361 = vunpack.c.l.s4 1983009808
      %v2362 = vunpack.c.0.s8 %v2361
      %v2363 = vperm.slane %v2355, %v2362
      %v2364 = vrot.slane %v2335, 4
      %v2365 = vsel %vm1476, %v2364, %v2323
      %v2366 = vrot.slane %v2323, 4
      %v2367 = vsel %vm1476, %v2335, %v2366
      %v2369 = vunpack.c.l.s4 1934713408
      %v2370 = vunpack.c.0.s8 %v2369
      %v2371 = vperm.slane %v2365, %v2370
      %v2373 = vunpack.c.l.s4 1934713408
      %v2374 = vunpack.c.0.s8 %v2373
      %v2375 = vperm.slane %v2367, %v2374
      %v2376 = vrot.slane %v2339, 4
      %v2377 = vsel %vm1476, %v2376, %v2327
      %v2378 = vrot.slane %v2327, 4
      %v2379 = vsel %vm1476, %v2339, %v2378
      %v2381 = vunpack.c.l.s4 1934713408
      %v2382 = vunpack.c.0.s8 %v2381
      %v2383 = vperm.slane %v2377, %v2382
      %v2385 = vunpack.c.l.s4 1934713408
      %v2386 = vunpack.c.0.s8 %v2385
      %v2387 = vperm.slane %v2379, %v2386
      %v2388 = vrot.slane %v2359, 4
      %v2389 = vsel %vm1476, %v2388, %v2347
      %v2390 = vrot.slane %v2347, 4
      %v2391 = vsel %vm1476, %v2359, %v2390
      %v2393 = vunpack.c.l.s4 1934713408
      %v2394 = vunpack.c.0.s8 %v2393
      %v2395 = vperm.slane %v2389, %v2394
      %v2397 = vunpack.c.l.s4 1934713408
      %v2398 = vunpack.c.0.s8 %v2397
      %v2399 = vperm.slane %v2391, %v2398
      %v2400 = vrot.slane %v2363, 4
      %v2401 = vsel %vm1476, %v2400, %v2351
      %v2402 = vrot.slane %v2351, 4
      %v2403 = vsel %vm1476, %v2363, %v2402
      %v2405 = vunpack.c.l.s4 1934713408
      %v2406 = vunpack.c.0.s8 %v2405
      %v2407 = vperm.slane %v2401, %v2406
      %v2409 = vunpack.c.l.s4 1934713408
      %v2410 = vunpack.c.0.s8 %v2409
      %v2411 = vperm.slane %v2403, %v2410
      %v2412 = vrot.slane %v2395, 4
      %v2413 = vsel %vm1476, %v2412, %v2371
      %v2414 = vrot.slane %v2371, 4
      %v2415 = vsel %vm1476, %v2395, %v2414
      %v2416 = vrot.slane %v2399, 4
      %v2417 = vsel %vm1476, %v2416, %v2375
      %v2418 = vrot.slane %v2375, 4
      %v2419 = vsel %vm1476, %v2399, %v2418
      %v2420 = vrot.slane %v2407, 4
      %v2421 = vsel %vm1476, %v2420, %v2383
      %v2422 = vrot.slane %v2383, 4
      %v2423 = vsel %vm1476, %v2407, %v2422
      %v2424 = vrot.slane %v2411, 4
      %v2425 = vsel %vm1476, %v2424, %v2387
      %v2426 = vrot.slane %v2387, 4
      %v2427 = vsel %vm1476, %v2411, %v2426
      %v2428 = vrot.slane %v1450, 4
      %v2429 = vsel %vm1476, %v2428, %v1262
      %v2430 = vrot.slane %v1262, 4
      %v2431 = vsel %vm1476, %v1450, %v2430
      %v2433 = vunpack.c.l.s4 1983009808
      %v2434 = vunpack.c.0.s8 %v2433
      %v2435 = vperm.slane %v2429, %v2434
      %v2437 = vunpack.c.l.s4 1983009808
      %v2438 = vunpack.c.0.s8 %v2437
      %v2439 = vperm.slane %v2431, %v2438
      %v2440 = vrot.slane %v1468, 4
      %v2441 = vsel %vm1476, %v2440, %v1432
      %v2442 = vrot.slane %v1432, 4
      %v2443 = vsel %vm1476, %v1468, %v2442
      %v2445 = vunpack.c.l.s4 1983009808
      %v2446 = vunpack.c.0.s8 %v2445
      %v2447 = vperm.slane %v2441, %v2446
      %v2449 = vunpack.c.l.s4 1983009808
      %v2450 = vunpack.c.0.s8 %v2449
      %v2451 = vperm.slane %v2443, %v2450
      %v2452 = vrot.slane %v2447, 4
      %v2453 = vsel %vm1476, %v2452, %v2435
      %v2454 = vrot.slane %v2435, 4
      %v2455 = vsel %vm1476, %v2447, %v2454
      %v2457 = vunpack.c.l.s4 1934713408
      %v2458 = vunpack.c.0.s8 %v2457
      %v2459 = vperm.slane %v2453, %v2458
      %v2461 = vunpack.c.l.s4 1934713408
      %v2462 = vunpack.c.0.s8 %v2461
      %v2463 = vperm.slane %v2455, %v2462
      %v2464 = vrot.slane %v2451, 4
      %v2465 = vsel %vm1476, %v2464, %v2439
      %v2466 = vrot.slane %v2439, 4
      %v2467 = vsel %vm1476, %v2451, %v2466
      %v2469 = vunpack.c.l.s4 1934713408
      %v2470 = vunpack.c.0.s8 %v2469
      %v2471 = vperm.slane %v2465, %v2470
      %v2473 = vunpack.c.l.s4 1934713408
      %v2474 = vunpack.c.0.s8 %v2473
      %v2475 = vperm.slane %v2467, %v2474
      %v2476 = vrot.slane %v2459, 4
      %v2477 = vsel %vm1476, 0.0, %v2476
      %v2478 = vrot.slane %v2463, 4
      %v2479 = vsel %vm1476, 0.0, %v2478
      %v2480 = vrot.slane %v2471, 4
      %v2481 = vsel %vm1476, 0.0, %v2480
      %v2482 = vrot.slane %v2475, 4
      %v2483 = vsel %vm1476, 0.0, %v2482
      %v2484 = vrot.slane %v1577, 4
      %v2485 = vsel %vm1476, %v2484, %v1573
      %v2486 = vrot.slane %v1573, 4
      %v2487 = vsel %vm1476, %v1577, %v2486
      %v2489 = vunpack.c.l.s4 1983009808
      %v2490 = vunpack.c.0.s8 %v2489
      %v2491 = vperm.slane %v2485, %v2490
      %v2493 = vunpack.c.l.s4 1983009808
      %v2494 = vunpack.c.0.s8 %v2493
      %v2495 = vperm.slane %v2487, %v2494
      %v2496 = vrot.slane %v1579, 4
      %v2497 = vsel %vm1476, %v2496, %v1575
      %v2498 = vrot.slane %v1575, 4
      %v2499 = vsel %vm1476, %v1579, %v2498
      %v2501 = vunpack.c.l.s4 1983009808
      %v2502 = vunpack.c.0.s8 %v2501
      %v2503 = vperm.slane %v2497, %v2502
      %v2505 = vunpack.c.l.s4 1983009808
      %v2506 = vunpack.c.0.s8 %v2505
      %v2507 = vperm.slane %v2499, %v2506
      %v2508 = vrot.slane %v1585, 4
      %v2509 = vsel %vm1476, %v2508, %v1581
      %v2510 = vrot.slane %v1581, 4
      %v2511 = vsel %vm1476, %v1585, %v2510
      %v2513 = vunpack.c.l.s4 1983009808
      %v2514 = vunpack.c.0.s8 %v2513
      %v2515 = vperm.slane %v2509, %v2514
      %v2517 = vunpack.c.l.s4 1983009808
      %v2518 = vunpack.c.0.s8 %v2517
      %v2519 = vperm.slane %v2511, %v2518
      %v2520 = vrot.slane %v1587, 4
      %v2521 = vsel %vm1476, %v2520, %v1583
      %v2522 = vrot.slane %v1583, 4
      %v2523 = vsel %vm1476, %v1587, %v2522
      %v2525 = vunpack.c.l.s4 1983009808
      %v2526 = vunpack.c.0.s8 %v2525
      %v2527 = vperm.slane %v2521, %v2526
      %v2529 = vunpack.c.l.s4 1983009808
      %v2530 = vunpack.c.0.s8 %v2529
      %v2531 = vperm.slane %v2523, %v2530
      %v2532 = vrot.slane %v2503, 4
      %v2533 = vsel %vm1476, %v2532, %v2491
      %v2534 = vrot.slane %v2491, 4
      %v2535 = vsel %vm1476, %v2503, %v2534
      %v2537 = vunpack.c.l.s4 1934713408
      %v2538 = vunpack.c.0.s8 %v2537
      %v2539 = vperm.slane %v2533, %v2538
      %v2541 = vunpack.c.l.s4 1934713408
      %v2542 = vunpack.c.0.s8 %v2541
      %v2543 = vperm.slane %v2535, %v2542
      %v2544 = vrot.slane %v2507, 4
      %v2545 = vsel %vm1476, %v2544, %v2495
      %v2546 = vrot.slane %v2495, 4
      %v2547 = vsel %vm1476, %v2507, %v2546
      %v2549 = vunpack.c.l.s4 1934713408
      %v2550 = vunpack.c.0.s8 %v2549
      %v2551 = vperm.slane %v2545, %v2550
      %v2553 = vunpack.c.l.s4 1934713408
      %v2554 = vunpack.c.0.s8 %v2553
      %v2555 = vperm.slane %v2547, %v2554
      %v2556 = vrot.slane %v2527, 4
      %v2557 = vsel %vm1476, %v2556, %v2515
      %v2558 = vrot.slane %v2515, 4
      %v2559 = vsel %vm1476, %v2527, %v2558
      %v2561 = vunpack.c.l.s4 1934713408
      %v2562 = vunpack.c.0.s8 %v2561
      %v2563 = vperm.slane %v2557, %v2562
      %v2565 = vunpack.c.l.s4 1934713408
      %v2566 = vunpack.c.0.s8 %v2565
      %v2567 = vperm.slane %v2559, %v2566
      %v2568 = vrot.slane %v2531, 4
      %v2569 = vsel %vm1476, %v2568, %v2519
      %v2570 = vrot.slane %v2519, 4
      %v2571 = vsel %vm1476, %v2531, %v2570
      %v2573 = vunpack.c.l.s4 1934713408
      %v2574 = vunpack.c.0.s8 %v2573
      %v2575 = vperm.slane %v2569, %v2574
      %v2577 = vunpack.c.l.s4 1934713408
      %v2578 = vunpack.c.0.s8 %v2577
      %v2579 = vperm.slane %v2571, %v2578
      %v2580 = vrot.slane %v2563, 4
      %v2581 = vsel %vm1476, %v2580, %v2539
      %v2582 = vrot.slane %v2539, 4
      %v2583 = vsel %vm1476, %v2563, %v2582
      %v2584 = vrot.slane %v2567, 4
      %v2585 = vsel %vm1476, %v2584, %v2543
      %v2586 = vrot.slane %v2543, 4
      %v2587 = vsel %vm1476, %v2567, %v2586
      %v2588 = vrot.slane %v2575, 4
      %v2589 = vsel %vm1476, %v2588, %v2551
      %v2590 = vrot.slane %v2551, 4
      %v2591 = vsel %vm1476, %v2575, %v2590
      %v2592 = vrot.slane %v2579, 4
      %v2593 = vsel %vm1476, %v2592, %v2555
      %v2594 = vrot.slane %v2555, 4
      %v2595 = vsel %vm1476, %v2579, %v2594
      %v2596 = vrot.slane %v1745, 4
      %v2597 = vsel %vm1476, %v2596, %v1741
      %v2598 = vrot.slane %v1741, 4
      %v2599 = vsel %vm1476, %v1745, %v2598
      %v2601 = vunpack.c.l.s4 1983009808
      %v2602 = vunpack.c.0.s8 %v2601
      %v2603 = vperm.slane %v2597, %v2602
      %v2605 = vunpack.c.l.s4 1983009808
      %v2606 = vunpack.c.0.s8 %v2605
      %v2607 = vperm.slane %v2599, %v2606
      %v2608 = vrot.slane %v1747, 4
      %v2609 = vsel %vm1476, %v2608, %v1743
      %v2610 = vrot.slane %v1743, 4
      %v2611 = vsel %vm1476, %v1747, %v2610
      %v2613 = vunpack.c.l.s4 1983009808
      %v2614 = vunpack.c.0.s8 %v2613
      %v2615 = vperm.slane %v2609, %v2614
      %v2617 = vunpack.c.l.s4 1983009808
      %v2618 = vunpack.c.0.s8 %v2617
      %v2619 = vperm.slane %v2611, %v2618
      %v2620 = vrot.slane %v1753, 4
      %v2621 = vsel %vm1476, %v2620, %v1749
      %v2622 = vrot.slane %v1749, 4
      %v2623 = vsel %vm1476, %v1753, %v2622
      %v2625 = vunpack.c.l.s4 1983009808
      %v2626 = vunpack.c.0.s8 %v2625
      %v2627 = vperm.slane %v2621, %v2626
      %v2629 = vunpack.c.l.s4 1983009808
      %v2630 = vunpack.c.0.s8 %v2629
      %v2631 = vperm.slane %v2623, %v2630
      %v2632 = vrot.slane %v1755, 4
      %v2633 = vsel %vm1476, %v2632, %v1751
      %v2634 = vrot.slane %v1751, 4
      %v2635 = vsel %vm1476, %v1755, %v2634
      %v2637 = vunpack.c.l.s4 1983009808
      %v2638 = vunpack.c.0.s8 %v2637
      %v2639 = vperm.slane %v2633, %v2638
      %v2641 = vunpack.c.l.s4 1983009808
      %v2642 = vunpack.c.0.s8 %v2641
      %v2643 = vperm.slane %v2635, %v2642
      %v2644 = vrot.slane %v2615, 4
      %v2645 = vsel %vm1476, %v2644, %v2603
      %v2646 = vrot.slane %v2603, 4
      %v2647 = vsel %vm1476, %v2615, %v2646
      %v2649 = vunpack.c.l.s4 1934713408
      %v2650 = vunpack.c.0.s8 %v2649
      %v2651 = vperm.slane %v2645, %v2650
      %v2653 = vunpack.c.l.s4 1934713408
      %v2654 = vunpack.c.0.s8 %v2653
      %v2655 = vperm.slane %v2647, %v2654
      %v2656 = vrot.slane %v2619, 4
      %v2657 = vsel %vm1476, %v2656, %v2607
      %v2658 = vrot.slane %v2607, 4
      %v2659 = vsel %vm1476, %v2619, %v2658
      %v2661 = vunpack.c.l.s4 1934713408
      %v2662 = vunpack.c.0.s8 %v2661
      %v2663 = vperm.slane %v2657, %v2662
      %v2665 = vunpack.c.l.s4 1934713408
      %v2666 = vunpack.c.0.s8 %v2665
      %v2667 = vperm.slane %v2659, %v2666
      %v2668 = vrot.slane %v2639, 4
      %v2669 = vsel %vm1476, %v2668, %v2627
      %v2670 = vrot.slane %v2627, 4
      %v2671 = vsel %vm1476, %v2639, %v2670
      %v2673 = vunpack.c.l.s4 1934713408
      %v2674 = vunpack.c.0.s8 %v2673
      %v2675 = vperm.slane %v2669, %v2674
      %v2677 = vunpack.c.l.s4 1934713408
      %v2678 = vunpack.c.0.s8 %v2677
      %v2679 = vperm.slane %v2671, %v2678
      %v2680 = vrot.slane %v2643, 4
      %v2681 = vsel %vm1476, %v2680, %v2631
      %v2682 = vrot.slane %v2631, 4
      %v2683 = vsel %vm1476, %v2643, %v2682
      %v2685 = vunpack.c.l.s4 1934713408
      %v2686 = vunpack.c.0.s8 %v2685
      %v2687 = vperm.slane %v2681, %v2686
      %v2689 = vunpack.c.l.s4 1934713408
      %v2690 = vunpack.c.0.s8 %v2689
      %v2691 = vperm.slane %v2683, %v2690
      %v2692 = vrot.slane %v2675, 4
      %v2693 = vsel %vm1476, %v2692, %v2651
      %v2694 = vrot.slane %v2651, 4
      %v2695 = vsel %vm1476, %v2675, %v2694
      %v2696 = vrot.slane %v2679, 4
      %v2697 = vsel %vm1476, %v2696, %v2655
      %v2698 = vrot.slane %v2655, 4
      %v2699 = vsel %vm1476, %v2679, %v2698
      %v2700 = vrot.slane %v2687, 4
      %v2701 = vsel %vm1476, %v2700, %v2663
      %v2702 = vrot.slane %v2663, 4
      %v2703 = vsel %vm1476, %v2687, %v2702
      %v2704 = vrot.slane %v2691, 4
      %v2705 = vsel %vm1476, %v2704, %v2667
      %v2706 = vrot.slane %v2667, 4
      %v2707 = vsel %vm1476, %v2691, %v2706
      %v2708 = vrot.slane %v1913, 4
      %v2709 = vsel %vm1476, %v2708, %v1909
      %v2710 = vrot.slane %v1909, 4
      %v2711 = vsel %vm1476, %v1913, %v2710
      %v2713 = vunpack.c.l.s4 1983009808
      %v2714 = vunpack.c.0.s8 %v2713
      %v2715 = vperm.slane %v2709, %v2714
      %v2717 = vunpack.c.l.s4 1983009808
      %v2718 = vunpack.c.0.s8 %v2717
      %v2719 = vperm.slane %v2711, %v2718
      %v2720 = vrot.slane %v1915, 4
      %v2721 = vsel %vm1476, %v2720, %v1911
      %v2722 = vrot.slane %v1911, 4
      %v2723 = vsel %vm1476, %v1915, %v2722
      %v2725 = vunpack.c.l.s4 1983009808
      %v2726 = vunpack.c.0.s8 %v2725
      %v2727 = vperm.slane %v2721, %v2726
      %v2729 = vunpack.c.l.s4 1983009808
      %v2730 = vunpack.c.0.s8 %v2729
      %v2731 = vperm.slane %v2723, %v2730
      %v2732 = vrot.slane %v1921, 4
      %v2733 = vsel %vm1476, %v2732, %v1917
      %v2734 = vrot.slane %v1917, 4
      %v2735 = vsel %vm1476, %v1921, %v2734
      %v2737 = vunpack.c.l.s4 1983009808
      %v2738 = vunpack.c.0.s8 %v2737
      %v2739 = vperm.slane %v2733, %v2738
      %v2741 = vunpack.c.l.s4 1983009808
      %v2742 = vunpack.c.0.s8 %v2741
      %v2743 = vperm.slane %v2735, %v2742
      %v2744 = vrot.slane %v1923, 4
      %v2745 = vsel %vm1476, %v2744, %v1919
      %v2746 = vrot.slane %v1919, 4
      %v2747 = vsel %vm1476, %v1923, %v2746
      %v2749 = vunpack.c.l.s4 1983009808
      %v2750 = vunpack.c.0.s8 %v2749
      %v2751 = vperm.slane %v2745, %v2750
      %v2753 = vunpack.c.l.s4 1983009808
      %v2754 = vunpack.c.0.s8 %v2753
      %v2755 = vperm.slane %v2747, %v2754
      %v2756 = vrot.slane %v2727, 4
      %v2757 = vsel %vm1476, %v2756, %v2715
      %v2758 = vrot.slane %v2715, 4
      %v2759 = vsel %vm1476, %v2727, %v2758
      %v2761 = vunpack.c.l.s4 1934713408
      %v2762 = vunpack.c.0.s8 %v2761
      %v2763 = vperm.slane %v2757, %v2762
      %v2765 = vunpack.c.l.s4 1934713408
      %v2766 = vunpack.c.0.s8 %v2765
      %v2767 = vperm.slane %v2759, %v2766
      %v2768 = vrot.slane %v2731, 4
      %v2769 = vsel %vm1476, %v2768, %v2719
      %v2770 = vrot.slane %v2719, 4
      %v2771 = vsel %vm1476, %v2731, %v2770
      %v2773 = vunpack.c.l.s4 1934713408
      %v2774 = vunpack.c.0.s8 %v2773
      %v2775 = vperm.slane %v2769, %v2774
      %v2777 = vunpack.c.l.s4 1934713408
      %v2778 = vunpack.c.0.s8 %v2777
      %v2779 = vperm.slane %v2771, %v2778
      %v2780 = vrot.slane %v2751, 4
      %v2781 = vsel %vm1476, %v2780, %v2739
      %v2782 = vrot.slane %v2739, 4
      %v2783 = vsel %vm1476, %v2751, %v2782
      %v2785 = vunpack.c.l.s4 1934713408
      %v2786 = vunpack.c.0.s8 %v2785
      %v2787 = vperm.slane %v2781, %v2786
      %v2789 = vunpack.c.l.s4 1934713408
      %v2790 = vunpack.c.0.s8 %v2789
      %v2791 = vperm.slane %v2783, %v2790
      %v2792 = vrot.slane %v2755, 4
      %v2793 = vsel %vm1476, %v2792, %v2743
      %v2794 = vrot.slane %v2743, 4
      %v2795 = vsel %vm1476, %v2755, %v2794
      %v2797 = vunpack.c.l.s4 1934713408
      %v2798 = vunpack.c.0.s8 %v2797
      %v2799 = vperm.slane %v2793, %v2798
      %v2801 = vunpack.c.l.s4 1934713408
      %v2802 = vunpack.c.0.s8 %v2801
      %v2803 = vperm.slane %v2795, %v2802
      %v2804 = vrot.slane %v2787, 4
      %v2805 = vsel %vm1476, %v2804, %v2763
      %v2806 = vrot.slane %v2763, 4
      %v2807 = vsel %vm1476, %v2787, %v2806
      %v2808 = vrot.slane %v2791, 4
      %v2809 = vsel %vm1476, %v2808, %v2767
      %v2810 = vrot.slane %v2767, 4
      %v2811 = vsel %vm1476, %v2791, %v2810
      %v2812 = vrot.slane %v2799, 4
      %v2813 = vsel %vm1476, %v2812, %v2775
      %v2814 = vrot.slane %v2775, 4
      %v2815 = vsel %vm1476, %v2799, %v2814
      %v2816 = vrot.slane %v2803, 4
      %v2817 = vsel %vm1476, %v2816, %v2779
      %v2818 = vrot.slane %v2779, 4
      %v2819 = vsel %vm1476, %v2803, %v2818
      %v2820 = vrot.slane %v2081, 4
      %v2821 = vsel %vm1476, %v2820, %v2077
      %v2822 = vrot.slane %v2077, 4
      %v2823 = vsel %vm1476, %v2081, %v2822
      %v2825 = vunpack.c.l.s4 1983009808
      %v2826 = vunpack.c.0.s8 %v2825
      %v2827 = vperm.slane %v2821, %v2826
      %v2829 = vunpack.c.l.s4 1983009808
      %v2830 = vunpack.c.0.s8 %v2829
      %v2831 = vperm.slane %v2823, %v2830
      %v2832 = vrot.slane %v2083, 4
      %v2833 = vsel %vm1476, %v2832, %v2079
      %v2834 = vrot.slane %v2079, 4
      %v2835 = vsel %vm1476, %v2083, %v2834
      %v2837 = vunpack.c.l.s4 1983009808
      %v2838 = vunpack.c.0.s8 %v2837
      %v2839 = vperm.slane %v2833, %v2838
      %v2841 = vunpack.c.l.s4 1983009808
      %v2842 = vunpack.c.0.s8 %v2841
      %v2843 = vperm.slane %v2835, %v2842
      %v2844 = vrot.slane %v2089, 4
      %v2845 = vsel %vm1476, %v2844, %v2085
      %v2846 = vrot.slane %v2085, 4
      %v2847 = vsel %vm1476, %v2089, %v2846
      %v2849 = vunpack.c.l.s4 1983009808
      %v2850 = vunpack.c.0.s8 %v2849
      %v2851 = vperm.slane %v2845, %v2850
      %v2853 = vunpack.c.l.s4 1983009808
      %v2854 = vunpack.c.0.s8 %v2853
      %v2855 = vperm.slane %v2847, %v2854
      %v2856 = vrot.slane %v2091, 4
      %v2857 = vsel %vm1476, %v2856, %v2087
      %v2858 = vrot.slane %v2087, 4
      %v2859 = vsel %vm1476, %v2091, %v2858
      %v2861 = vunpack.c.l.s4 1983009808
      %v2862 = vunpack.c.0.s8 %v2861
      %v2863 = vperm.slane %v2857, %v2862
      %v2865 = vunpack.c.l.s4 1983009808
      %v2866 = vunpack.c.0.s8 %v2865
      %v2867 = vperm.slane %v2859, %v2866
      %v2868 = vrot.slane %v2839, 4
      %v2869 = vsel %vm1476, %v2868, %v2827
      %v2870 = vrot.slane %v2827, 4
      %v2871 = vsel %vm1476, %v2839, %v2870
      %v2873 = vunpack.c.l.s4 1934713408
      %v2874 = vunpack.c.0.s8 %v2873
      %v2875 = vperm.slane %v2869, %v2874
      %v2877 = vunpack.c.l.s4 1934713408
      %v2878 = vunpack.c.0.s8 %v2877
      %v2879 = vperm.slane %v2871, %v2878
      %v2880 = vrot.slane %v2843, 4
      %v2881 = vsel %vm1476, %v2880, %v2831
      %v2882 = vrot.slane %v2831, 4
      %v2883 = vsel %vm1476, %v2843, %v2882
      %v2885 = vunpack.c.l.s4 1934713408
      %v2886 = vunpack.c.0.s8 %v2885
      %v2887 = vperm.slane %v2881, %v2886
      %v2889 = vunpack.c.l.s4 1934713408
      %v2890 = vunpack.c.0.s8 %v2889
      %v2891 = vperm.slane %v2883, %v2890
      %v2892 = vrot.slane %v2863, 4
      %v2893 = vsel %vm1476, %v2892, %v2851
      %v2894 = vrot.slane %v2851, 4
      %v2895 = vsel %vm1476, %v2863, %v2894
      %v2897 = vunpack.c.l.s4 1934713408
      %v2898 = vunpack.c.0.s8 %v2897
      %v2899 = vperm.slane %v2893, %v2898
      %v2901 = vunpack.c.l.s4 1934713408
      %v2902 = vunpack.c.0.s8 %v2901
      %v2903 = vperm.slane %v2895, %v2902
      %v2904 = vrot.slane %v2867, 4
      %v2905 = vsel %vm1476, %v2904, %v2855
      %v2906 = vrot.slane %v2855, 4
      %v2907 = vsel %vm1476, %v2867, %v2906
      %v2909 = vunpack.c.l.s4 1934713408
      %v2910 = vunpack.c.0.s8 %v2909
      %v2911 = vperm.slane %v2905, %v2910
      %v2913 = vunpack.c.l.s4 1934713408
      %v2914 = vunpack.c.0.s8 %v2913
      %v2915 = vperm.slane %v2907, %v2914
      %v2916 = vrot.slane %v2899, 4
      %v2917 = vsel %vm1476, %v2916, %v2875
      %v2918 = vrot.slane %v2875, 4
      %v2919 = vsel %vm1476, %v2899, %v2918
      %v2920 = vrot.slane %v2903, 4
      %v2921 = vsel %vm1476, %v2920, %v2879
      %v2922 = vrot.slane %v2879, 4
      %v2923 = vsel %vm1476, %v2903, %v2922
      %v2924 = vrot.slane %v2911, 4
      %v2925 = vsel %vm1476, %v2924, %v2887
      %v2926 = vrot.slane %v2887, 4
      %v2927 = vsel %vm1476, %v2911, %v2926
      %v2928 = vrot.slane %v2915, 4
      %v2929 = vsel %vm1476, %v2928, %v2891
      %v2930 = vrot.slane %v2891, 4
      %v2931 = vsel %vm1476, %v2915, %v2930
      %v2932 = vrot.slane %v2249, 4
      %v2933 = vsel %vm1476, %v2932, %v2245
      %v2934 = vrot.slane %v2245, 4
      %v2935 = vsel %vm1476, %v2249, %v2934
      %v2937 = vunpack.c.l.s4 1983009808
      %v2938 = vunpack.c.0.s8 %v2937
      %v2939 = vperm.slane %v2933, %v2938
      %v2941 = vunpack.c.l.s4 1983009808
      %v2942 = vunpack.c.0.s8 %v2941
      %v2943 = vperm.slane %v2935, %v2942
      %v2944 = vrot.slane %v2251, 4
      %v2945 = vsel %vm1476, %v2944, %v2247
      %v2946 = vrot.slane %v2247, 4
      %v2947 = vsel %vm1476, %v2251, %v2946
      %v2949 = vunpack.c.l.s4 1983009808
      %v2950 = vunpack.c.0.s8 %v2949
      %v2951 = vperm.slane %v2945, %v2950
      %v2953 = vunpack.c.l.s4 1983009808
      %v2954 = vunpack.c.0.s8 %v2953
      %v2955 = vperm.slane %v2947, %v2954
      %v2956 = vrot.slane %v2257, 4
      %v2957 = vsel %vm1476, %v2956, %v2253
      %v2958 = vrot.slane %v2253, 4
      %v2959 = vsel %vm1476, %v2257, %v2958
      %v2961 = vunpack.c.l.s4 1983009808
      %v2962 = vunpack.c.0.s8 %v2961
      %v2963 = vperm.slane %v2957, %v2962
      %v2965 = vunpack.c.l.s4 1983009808
      %v2966 = vunpack.c.0.s8 %v2965
      %v2967 = vperm.slane %v2959, %v2966
      %v2968 = vrot.slane %v2259, 4
      %v2969 = vsel %vm1476, %v2968, %v2255
      %v2970 = vrot.slane %v2255, 4
      %v2971 = vsel %vm1476, %v2259, %v2970
      %v2973 = vunpack.c.l.s4 1983009808
      %v2974 = vunpack.c.0.s8 %v2973
      %v2975 = vperm.slane %v2969, %v2974
      %v2977 = vunpack.c.l.s4 1983009808
      %v2978 = vunpack.c.0.s8 %v2977
      %v2979 = vperm.slane %v2971, %v2978
      %v2980 = vrot.slane %v2951, 4
      %v2981 = vsel %vm1476, %v2980, %v2939
      %v2982 = vrot.slane %v2939, 4
      %v2983 = vsel %vm1476, %v2951, %v2982
      %v2985 = vunpack.c.l.s4 1934713408
      %v2986 = vunpack.c.0.s8 %v2985
      %v2987 = vperm.slane %v2981, %v2986
      %v2989 = vunpack.c.l.s4 1934713408
      %v2990 = vunpack.c.0.s8 %v2989
      %v2991 = vperm.slane %v2983, %v2990
      %v2992 = vrot.slane %v2955, 4
      %v2993 = vsel %vm1476, %v2992, %v2943
      %v2994 = vrot.slane %v2943, 4
      %v2995 = vsel %vm1476, %v2955, %v2994
      %v2997 = vunpack.c.l.s4 1934713408
      %v2998 = vunpack.c.0.s8 %v2997
      %v2999 = vperm.slane %v2993, %v2998
      %v3001 = vunpack.c.l.s4 1934713408
      %v3002 = vunpack.c.0.s8 %v3001
      %v3003 = vperm.slane %v2995, %v3002
      %v3004 = vrot.slane %v2975, 4
      %v3005 = vsel %vm1476, %v3004, %v2963
      %v3006 = vrot.slane %v2963, 4
      %v3007 = vsel %vm1476, %v2975, %v3006
      %v3009 = vunpack.c.l.s4 1934713408
      %v3010 = vunpack.c.0.s8 %v3009
      %v3011 = vperm.slane %v3005, %v3010
      %v3013 = vunpack.c.l.s4 1934713408
      %v3014 = vunpack.c.0.s8 %v3013
      %v3015 = vperm.slane %v3007, %v3014
      %v3016 = vrot.slane %v2979, 4
      %v3017 = vsel %vm1476, %v3016, %v2967
      %v3018 = vrot.slane %v2967, 4
      %v3019 = vsel %vm1476, %v2979, %v3018
      %v3021 = vunpack.c.l.s4 1934713408
      %v3022 = vunpack.c.0.s8 %v3021
      %v3023 = vperm.slane %v3017, %v3022
      %v3025 = vunpack.c.l.s4 1934713408
      %v3026 = vunpack.c.0.s8 %v3025
      %v3027 = vperm.slane %v3019, %v3026
      %v3028 = vrot.slane %v3011, 4
      %v3029 = vsel %vm1476, %v3028, %v2987
      %v3030 = vrot.slane %v2987, 4
      %v3031 = vsel %vm1476, %v3011, %v3030
      %v3032 = vrot.slane %v3015, 4
      %v3033 = vsel %vm1476, %v3032, %v2991
      %v3034 = vrot.slane %v2991, 4
      %v3035 = vsel %vm1476, %v3015, %v3034
      %v3036 = vrot.slane %v3023, 4
      %v3037 = vsel %vm1476, %v3036, %v2999
      %v3038 = vrot.slane %v2999, 4
      %v3039 = vsel %vm1476, %v3023, %v3038
      %v3040 = vrot.slane %v3027, 4
      %v3041 = vsel %vm1476, %v3040, %v3003
      %v3042 = vrot.slane %v3003, 4
      %v3043 = vsel %vm1476, %v3027, %v3042
      %v3044 = vrot.slane %v2417, 4
      %v3045 = vsel %vm1476, %v3044, %v2413
      %v3046 = vrot.slane %v2413, 4
      %v3047 = vsel %vm1476, %v2417, %v3046
      %v3049 = vunpack.c.l.s4 1983009808
      %v3050 = vunpack.c.0.s8 %v3049
      %v3051 = vperm.slane %v3045, %v3050
      %v3053 = vunpack.c.l.s4 1983009808
      %v3054 = vunpack.c.0.s8 %v3053
      %v3055 = vperm.slane %v3047, %v3054
      %v3056 = vrot.slane %v2419, 4
      %v3057 = vsel %vm1476, %v3056, %v2415
      %v3058 = vrot.slane %v2415, 4
      %v3059 = vsel %vm1476, %v2419, %v3058
      %v3061 = vunpack.c.l.s4 1983009808
      %v3062 = vunpack.c.0.s8 %v3061
      %v3063 = vperm.slane %v3057, %v3062
      %v3065 = vunpack.c.l.s4 1983009808
      %v3066 = vunpack.c.0.s8 %v3065
      %v3067 = vperm.slane %v3059, %v3066
      %v3068 = vrot.slane %v2425, 4
      %v3069 = vsel %vm1476, %v3068, %v2421
      %v3070 = vrot.slane %v2421, 4
      %v3071 = vsel %vm1476, %v2425, %v3070
      %v3073 = vunpack.c.l.s4 1983009808
      %v3074 = vunpack.c.0.s8 %v3073
      %v3075 = vperm.slane %v3069, %v3074
      %v3077 = vunpack.c.l.s4 1983009808
      %v3078 = vunpack.c.0.s8 %v3077
      %v3079 = vperm.slane %v3071, %v3078
      %v3080 = vrot.slane %v2427, 4
      %v3081 = vsel %vm1476, %v3080, %v2423
      %v3082 = vrot.slane %v2423, 4
      %v3083 = vsel %vm1476, %v2427, %v3082
      %v3085 = vunpack.c.l.s4 1983009808
      %v3086 = vunpack.c.0.s8 %v3085
      %v3087 = vperm.slane %v3081, %v3086
      %v3089 = vunpack.c.l.s4 1983009808
      %v3090 = vunpack.c.0.s8 %v3089
      %v3091 = vperm.slane %v3083, %v3090
      %v3092 = vrot.slane %v3063, 4
      %v3093 = vsel %vm1476, %v3092, %v3051
      %v3094 = vrot.slane %v3051, 4
      %v3095 = vsel %vm1476, %v3063, %v3094
      %v3097 = vunpack.c.l.s4 1934713408
      %v3098 = vunpack.c.0.s8 %v3097
      %v3099 = vperm.slane %v3093, %v3098
      %v3101 = vunpack.c.l.s4 1934713408
      %v3102 = vunpack.c.0.s8 %v3101
      %v3103 = vperm.slane %v3095, %v3102
      %v3104 = vrot.slane %v3067, 4
      %v3105 = vsel %vm1476, %v3104, %v3055
      %v3106 = vrot.slane %v3055, 4
      %v3107 = vsel %vm1476, %v3067, %v3106
      %v3109 = vunpack.c.l.s4 1934713408
      %v3110 = vunpack.c.0.s8 %v3109
      %v3111 = vperm.slane %v3105, %v3110
      %v3113 = vunpack.c.l.s4 1934713408
      %v3114 = vunpack.c.0.s8 %v3113
      %v3115 = vperm.slane %v3107, %v3114
      %v3116 = vrot.slane %v3087, 4
      %v3117 = vsel %vm1476, %v3116, %v3075
      %v3118 = vrot.slane %v3075, 4
      %v3119 = vsel %vm1476, %v3087, %v3118
      %v3121 = vunpack.c.l.s4 1934713408
      %v3122 = vunpack.c.0.s8 %v3121
      %v3123 = vperm.slane %v3117, %v3122
      %v3125 = vunpack.c.l.s4 1934713408
      %v3126 = vunpack.c.0.s8 %v3125
      %v3127 = vperm.slane %v3119, %v3126
      %v3128 = vrot.slane %v3091, 4
      %v3129 = vsel %vm1476, %v3128, %v3079
      %v3130 = vrot.slane %v3079, 4
      %v3131 = vsel %vm1476, %v3091, %v3130
      %v3133 = vunpack.c.l.s4 1934713408
      %v3134 = vunpack.c.0.s8 %v3133
      %v3135 = vperm.slane %v3129, %v3134
      %v3137 = vunpack.c.l.s4 1934713408
      %v3138 = vunpack.c.0.s8 %v3137
      %v3139 = vperm.slane %v3131, %v3138
      %v3140 = vrot.slane %v3123, 4
      %v3141 = vsel %vm1476, %v3140, %v3099
      %v3142 = vrot.slane %v3099, 4
      %v3143 = vsel %vm1476, %v3123, %v3142
      %v3144 = vrot.slane %v3127, 4
      %v3145 = vsel %vm1476, %v3144, %v3103
      %v3146 = vrot.slane %v3103, 4
      %v3147 = vsel %vm1476, %v3127, %v3146
      %v3148 = vrot.slane %v3135, 4
      %v3149 = vsel %vm1476, %v3148, %v3111
      %v3150 = vrot.slane %v3111, 4
      %v3151 = vsel %vm1476, %v3135, %v3150
      %v3152 = vrot.slane %v3139, 4
      %v3153 = vsel %vm1476, %v3152, %v3115
      %v3154 = vrot.slane %v3115, 4
      %v3155 = vsel %vm1476, %v3139, %v3154
      %v3156 = vsel %vm1476, %v1638, %v1619
      %v3158 = vunpack.c.l.s4 1983009808
      %v3159 = vunpack.c.0.s8 %v3158
      %v3160 = vperm.slane %v3156, %v3159
      %v3161 = vrot.slane %v1639, 4
      %v3162 = vsel %vm1476, %v3161, %v1637
      %v3164 = vunpack.c.l.s4 1983009808
      %v3165 = vunpack.c.0.s8 %v3164
      %v3166 = vperm.slane %v3162, %v3165
      %v3167 = vsel %vm1476, %v1642, %v1631
      %v3169 = vunpack.c.l.s4 1983009808
      %v3170 = vunpack.c.0.s8 %v3169
      %v3171 = vperm.slane %v3167, %v3170
      %v3172 = vrot.slane %v1643, 4
      %v3173 = vsel %vm1476, %v3172, %v1641
      %v3175 = vunpack.c.l.s4 1983009808
      %v3176 = vunpack.c.0.s8 %v3175
      %v3177 = vperm.slane %v3173, %v3176
      %v3178 = vrot.slane %v3166, 4
      %v3179 = vsel %vm1476, %v3178, %v3160
      %v3180 = vrot.slane %v3160, 4
      %v3181 = vsel %vm1476, %v3166, %v3180
      %v3183 = vunpack.c.l.s4 1934713408
      %v3184 = vunpack.c.0.s8 %v3183
      %v3185 = vperm.slane %v3179, %v3184
      %v3187 = vunpack.c.l.s4 1934713408
      %v3188 = vunpack.c.0.s8 %v3187
      %v3189 = vperm.slane %v3181, %v3188
      %v3190 = vrot.slane %v3177, 4
      %v3191 = vsel %vm1476, %v3190, %v3171
      %v3192 = vrot.slane %v3171, 4
      %v3193 = vsel %vm1476, %v3177, %v3192
      %v3195 = vunpack.c.l.s4 1934713408
      %v3196 = vunpack.c.0.s8 %v3195
      %v3197 = vperm.slane %v3191, %v3196
      %v3199 = vunpack.c.l.s4 1934713408
      %v3200 = vunpack.c.0.s8 %v3199
      %v3201 = vperm.slane %v3193, %v3200
      %v3202 = vrot.slane %v3197, 4
      %v3203 = vsel %vm1476, %v3202, %v3185
      %v3204 = vrot.slane %v3185, 4
      %v3205 = vsel %vm1476, %v3197, %v3204
      %v3206 = vrot.slane %v3201, 4
      %v3207 = vsel %vm1476, %v3206, %v3189
      %v3208 = vrot.slane %v3189, 4
      %v3209 = vsel %vm1476, %v3201, %v3208
      %v3210 = vsel %vm1476, %v1806, %v1787
      %v3212 = vunpack.c.l.s4 1983009808
      %v3213 = vunpack.c.0.s8 %v3212
      %v3214 = vperm.slane %v3210, %v3213
      %v3215 = vrot.slane %v1807, 4
      %v3216 = vsel %vm1476, %v3215, %v1805
      %v3218 = vunpack.c.l.s4 1983009808
      %v3219 = vunpack.c.0.s8 %v3218
      %v3220 = vperm.slane %v3216, %v3219
      %v3221 = vsel %vm1476, %v1810, %v1799
      %v3223 = vunpack.c.l.s4 1983009808
      %v3224 = vunpack.c.0.s8 %v3223
      %v3225 = vperm.slane %v3221, %v3224
      %v3226 = vrot.slane %v1811, 4
      %v3227 = vsel %vm1476, %v3226, %v1809
      %v3229 = vunpack.c.l.s4 1983009808
      %v3230 = vunpack.c.0.s8 %v3229
      %v3231 = vperm.slane %v3227, %v3230
      %v3232 = vrot.slane %v3220, 4
      %v3233 = vsel %vm1476, %v3232, %v3214
      %v3234 = vrot.slane %v3214, 4
      %v3235 = vsel %vm1476, %v3220, %v3234
      %v3237 = vunpack.c.l.s4 1934713408
      %v3238 = vunpack.c.0.s8 %v3237
      %v3239 = vperm.slane %v3233, %v3238
      %v3241 = vunpack.c.l.s4 1934713408
      %v3242 = vunpack.c.0.s8 %v3241
      %v3243 = vperm.slane %v3235, %v3242
      %v3244 = vrot.slane %v3231, 4
      %v3245 = vsel %vm1476, %v3244, %v3225
      %v3246 = vrot.slane %v3225, 4
      %v3247 = vsel %vm1476, %v3231, %v3246
      %v3249 = vunpack.c.l.s4 1934713408
      %v3250 = vunpack.c.0.s8 %v3249
      %v3251 = vperm.slane %v3245, %v3250
      %v3253 = vunpack.c.l.s4 1934713408
      %v3254 = vunpack.c.0.s8 %v3253
      %v3255 = vperm.slane %v3247, %v3254
      %v3256 = vrot.slane %v3251, 4
      %v3257 = vsel %vm1476, %v3256, %v3239
      %v3258 = vrot.slane %v3239, 4
      %v3259 = vsel %vm1476, %v3251, %v3258
      %v3260 = vrot.slane %v3255, 4
      %v3261 = vsel %vm1476, %v3260, %v3243
      %v3262 = vrot.slane %v3243, 4
      %v3263 = vsel %vm1476, %v3255, %v3262
      %v3264 = vsel %vm1476, %v1974, %v1955
      %v3266 = vunpack.c.l.s4 1983009808
      %v3267 = vunpack.c.0.s8 %v3266
      %v3268 = vperm.slane %v3264, %v3267
      %v3269 = vrot.slane %v1975, 4
      %v3270 = vsel %vm1476, %v3269, %v1973
      %v3272 = vunpack.c.l.s4 1983009808
      %v3273 = vunpack.c.0.s8 %v3272
      %v3274 = vperm.slane %v3270, %v3273
      %v3275 = vsel %vm1476, %v1978, %v1967
      %v3277 = vunpack.c.l.s4 1983009808
      %v3278 = vunpack.c.0.s8 %v3277
      %v3279 = vperm.slane %v3275, %v3278
      %v3280 = vrot.slane %v1979, 4
      %v3281 = vsel %vm1476, %v3280, %v1977
      %v3283 = vunpack.c.l.s4 1983009808
      %v3284 = vunpack.c.0.s8 %v3283
      %v3285 = vperm.slane %v3281, %v3284
      %v3286 = vrot.slane %v3274, 4
      %v3287 = vsel %vm1476, %v3286, %v3268
      %v3288 = vrot.slane %v3268, 4
      %v3289 = vsel %vm1476, %v3274, %v3288
      %v3291 = vunpack.c.l.s4 1934713408
      %v3292 = vunpack.c.0.s8 %v3291
      %v3293 = vperm.slane %v3287, %v3292
      %v3295 = vunpack.c.l.s4 1934713408
      %v3296 = vunpack.c.0.s8 %v3295
      %v3297 = vperm.slane %v3289, %v3296
      %v3298 = vrot.slane %v3285, 4
      %v3299 = vsel %vm1476, %v3298, %v3279
      %v3300 = vrot.slane %v3279, 4
      %v3301 = vsel %vm1476, %v3285, %v3300
      %v3303 = vunpack.c.l.s4 1934713408
      %v3304 = vunpack.c.0.s8 %v3303
      %v3305 = vperm.slane %v3299, %v3304
      %v3307 = vunpack.c.l.s4 1934713408
      %v3308 = vunpack.c.0.s8 %v3307
      %v3309 = vperm.slane %v3301, %v3308
      %v3310 = vrot.slane %v3305, 4
      %v3311 = vsel %vm1476, %v3310, %v3293
      %v3312 = vrot.slane %v3293, 4
      %v3313 = vsel %vm1476, %v3305, %v3312
      %v3314 = vrot.slane %v3309, 4
      %v3315 = vsel %vm1476, %v3314, %v3297
      %v3316 = vrot.slane %v3297, 4
      %v3317 = vsel %vm1476, %v3309, %v3316
      %v3318 = vsel %vm1476, %v2142, %v2123
      %v3320 = vunpack.c.l.s4 1983009808
      %v3321 = vunpack.c.0.s8 %v3320
      %v3322 = vperm.slane %v3318, %v3321
      %v3323 = vrot.slane %v2143, 4
      %v3324 = vsel %vm1476, %v3323, %v2141
      %v3326 = vunpack.c.l.s4 1983009808
      %v3327 = vunpack.c.0.s8 %v3326
      %v3328 = vperm.slane %v3324, %v3327
      %v3329 = vsel %vm1476, %v2146, %v2135
      %v3331 = vunpack.c.l.s4 1983009808
      %v3332 = vunpack.c.0.s8 %v3331
      %v3333 = vperm.slane %v3329, %v3332
      %v3334 = vrot.slane %v2147, 4
      %v3335 = vsel %vm1476, %v3334, %v2145
      %v3337 = vunpack.c.l.s4 1983009808
      %v3338 = vunpack.c.0.s8 %v3337
      %v3339 = vperm.slane %v3335, %v3338
      %v3340 = vrot.slane %v3328, 4
      %v3341 = vsel %vm1476, %v3340, %v3322
      %v3342 = vrot.slane %v3322, 4
      %v3343 = vsel %vm1476, %v3328, %v3342
      %v3345 = vunpack.c.l.s4 1934713408
      %v3346 = vunpack.c.0.s8 %v3345
      %v3347 = vperm.slane %v3341, %v3346
      %v3349 = vunpack.c.l.s4 1934713408
      %v3350 = vunpack.c.0.s8 %v3349
      %v3351 = vperm.slane %v3343, %v3350
      %v3352 = vrot.slane %v3339, 4
      %v3353 = vsel %vm1476, %v3352, %v3333
      %v3354 = vrot.slane %v3333, 4
      %v3355 = vsel %vm1476, %v3339, %v3354
      %v3357 = vunpack.c.l.s4 1934713408
      %v3358 = vunpack.c.0.s8 %v3357
      %v3359 = vperm.slane %v3353, %v3358
      %v3361 = vunpack.c.l.s4 1934713408
      %v3362 = vunpack.c.0.s8 %v3361
      %v3363 = vperm.slane %v3355, %v3362
      %v3364 = vrot.slane %v3359, 4
      %v3365 = vsel %vm1476, %v3364, %v3347
      %v3366 = vrot.slane %v3347, 4
      %v3367 = vsel %vm1476, %v3359, %v3366
      %v3368 = vrot.slane %v3363, 4
      %v3369 = vsel %vm1476, %v3368, %v3351
      %v3370 = vrot.slane %v3351, 4
      %v3371 = vsel %vm1476, %v3363, %v3370
      %v3372 = vsel %vm1476, %v2310, %v2291
      %v3374 = vunpack.c.l.s4 1983009808
      %v3375 = vunpack.c.0.s8 %v3374
      %v3376 = vperm.slane %v3372, %v3375
      %v3377 = vrot.slane %v2311, 4
      %v3378 = vsel %vm1476, %v3377, %v2309
      %v3380 = vunpack.c.l.s4 1983009808
      %v3381 = vunpack.c.0.s8 %v3380
      %v3382 = vperm.slane %v3378, %v3381
      %v3383 = vsel %vm1476, %v2314, %v2303
      %v3385 = vunpack.c.l.s4 1983009808
      %v3386 = vunpack.c.0.s8 %v3385
      %v3387 = vperm.slane %v3383, %v3386
      %v3388 = vrot.slane %v2315, 4
      %v3389 = vsel %vm1476, %v3388, %v2313
      %v3391 = vunpack.c.l.s4 1983009808
      %v3392 = vunpack.c.0.s8 %v3391
      %v3393 = vperm.slane %v3389, %v3392
      %v3394 = vrot.slane %v3382, 4
      %v3395 = vsel %vm1476, %v3394, %v3376
      %v3396 = vrot.slane %v3376, 4
      %v3397 = vsel %vm1476, %v3382, %v3396
      %v3399 = vunpack.c.l.s4 1934713408
      %v3400 = vunpack.c.0.s8 %v3399
      %v3401 = vperm.slane %v3395, %v3400
      %v3403 = vunpack.c.l.s4 1934713408
      %v3404 = vunpack.c.0.s8 %v3403
      %v3405 = vperm.slane %v3397, %v3404
      %v3406 = vrot.slane %v3393, 4
      %v3407 = vsel %vm1476, %v3406, %v3387
      %v3408 = vrot.slane %v3387, 4
      %v3409 = vsel %vm1476, %v3393, %v3408
      %v3411 = vunpack.c.l.s4 1934713408
      %v3412 = vunpack.c.0.s8 %v3411
      %v3413 = vperm.slane %v3407, %v3412
      %v3415 = vunpack.c.l.s4 1934713408
      %v3416 = vunpack.c.0.s8 %v3415
      %v3417 = vperm.slane %v3409, %v3416
      %v3418 = vrot.slane %v3413, 4
      %v3419 = vsel %vm1476, %v3418, %v3401
      %v3420 = vrot.slane %v3401, 4
      %v3421 = vsel %vm1476, %v3413, %v3420
      %v3422 = vrot.slane %v3417, 4
      %v3423 = vsel %vm1476, %v3422, %v3405
      %v3424 = vrot.slane %v3405, 4
      %v3425 = vsel %vm1476, %v3417, %v3424
      %v3426 = vsel %vm1476, %v2478, %v2459
      %v3428 = vunpack.c.l.s4 1983009808
      %v3429 = vunpack.c.0.s8 %v3428
      %v3430 = vperm.slane %v3426, %v3429
      %v3431 = vrot.slane %v2479, 4
      %v3432 = vsel %vm1476, %v3431, %v2477
      %v3434 = vunpack.c.l.s4 1983009808
      %v3435 = vunpack.c.0.s8 %v3434
      %v3436 = vperm.slane %v3432, %v3435
      %v3437 = vsel %vm1476, %v2482, %v2471
      %v3439 = vunpack.c.l.s4 1983009808
      %v3440 = vunpack.c.0.s8 %v3439
      %v3441 = vperm.slane %v3437, %v3440
      %v3442 = vrot.slane %v2483, 4
      %v3443 = vsel %vm1476, %v3442, %v2481
      %v3445 = vunpack.c.l.s4 1983009808
      %v3446 = vunpack.c.0.s8 %v3445
      %v3447 = vperm.slane %v3443, %v3446
      %v3448 = vrot.slane %v3436, 4
      %v3449 = vsel %vm1476, %v3448, %v3430
      %v3450 = vrot.slane %v3430, 4
      %v3451 = vsel %vm1476, %v3436, %v3450
      %v3453 = vunpack.c.l.s4 1934713408
      %v3454 = vunpack.c.0.s8 %v3453
      %v3455 = vperm.slane %v3449, %v3454
      %v3457 = vunpack.c.l.s4 1934713408
      %v3458 = vunpack.c.0.s8 %v3457
      %v3459 = vperm.slane %v3451, %v3458
      %v3460 = vrot.slane %v3447, 4
      %v3461 = vsel %vm1476, %v3460, %v3441
      %v3462 = vrot.slane %v3441, 4
      %v3463 = vsel %vm1476, %v3447, %v3462
      %v3465 = vunpack.c.l.s4 1934713408
      %v3466 = vunpack.c.0.s8 %v3465
      %v3467 = vperm.slane %v3461, %v3466
      %v3469 = vunpack.c.l.s4 1934713408
      %v3470 = vunpack.c.0.s8 %v3469
      %v3471 = vperm.slane %v3463, %v3470
      %v3472 = vrot.slane %v3467, 4
      %v3473 = vsel %vm1476, %v3472, %v3455
      %v3474 = vrot.slane %v3455, 4
      %v3475 = vsel %vm1476, %v3467, %v3474
      %v3476 = vrot.slane %v3471, 4
      %v3477 = vsel %vm1476, %v3476, %v3459
      %v3478 = vrot.slane %v3459, 4
      %v3479 = vsel %vm1476, %v3471, %v3478
      %v3480 = vpack.c.bf16 %v2581, %v2581
      %v3481 = vpack.c.bf16 %v2693, %v2693
      %v3482 = vpack.c.bf16 %v2805, %v2805
      %v3483 = vpack.c.bf16 %v2917, %v2917
      %v3484 = vpack.c.bf16 %v3029, %v3029
      %v3485 = vpack.c.bf16 %v3141, %v3141
      %v3486 = vpack.c.bf16 %v2583, %v2583
      %v3487 = vpack.c.bf16 %v2695, %v2695
      %v3488 = vpack.c.bf16 %v2807, %v2807
      %v3489 = vpack.c.bf16 %v2919, %v2919
      %v3490 = vpack.c.bf16 %v3031, %v3031
      %v3491 = vpack.c.bf16 %v3143, %v3143
      %v3492 = vpack.c.bf16 %v2585, %v2585
      %v3493 = vpack.c.bf16 %v2697, %v2697
      %v3494 = vpack.c.bf16 %v2809, %v2809
      %v3495 = vpack.c.bf16 %v2921, %v2921
      %v3496 = vpack.c.bf16 %v3033, %v3033
      %v3497 = vpack.c.bf16 %v3145, %v3145
      %v3498 = vpack.c.bf16 %v2587, %v2587
      %v3499 = vpack.c.bf16 %v2699, %v2699
      %v3500 = vpack.c.bf16 %v2811, %v2811
      %v3501 = vpack.c.bf16 %v2923, %v2923
      %v3502 = vpack.c.bf16 %v3035, %v3035
      %v3503 = vpack.c.bf16 %v3147, %v3147
      %v3504 = vpack.c.bf16 %v2589, %v2589
      %v3505 = vpack.c.bf16 %v2701, %v2701
      %v3506 = vpack.c.bf16 %v2813, %v2813
      %v3507 = vpack.c.bf16 %v2925, %v2925
      %v3508 = vpack.c.bf16 %v3037, %v3037
      %v3509 = vpack.c.bf16 %v3149, %v3149
      %v3510 = vpack.c.bf16 %v2591, %v2591
      %v3511 = vpack.c.bf16 %v2703, %v2703
      %v3512 = vpack.c.bf16 %v2815, %v2815
      %v3513 = vpack.c.bf16 %v2927, %v2927
      %v3514 = vpack.c.bf16 %v3039, %v3039
      %v3515 = vpack.c.bf16 %v3151, %v3151
      %v3516 = vpack.c.bf16 %v2593, %v2593
      %v3517 = vpack.c.bf16 %v2705, %v2705
      %v3518 = vpack.c.bf16 %v2817, %v2817
      %v3519 = vpack.c.bf16 %v2929, %v2929
      %v3520 = vpack.c.bf16 %v3041, %v3041
      %v3521 = vpack.c.bf16 %v3153, %v3153
      %v3522 = vpack.c.bf16 %v2595, %v2595
      %v3523 = vpack.c.bf16 %v2707, %v2707
      %v3524 = vpack.c.bf16 %v2819, %v2819
      %v3525 = vpack.c.bf16 %v2931, %v2931
      %v3526 = vpack.c.bf16 %v3043, %v3043
      %v3527 = vpack.c.bf16 %v3155, %v3155
      %v3528 = vpack.c.bf16 %v3203, %v3203
      %v3529 = vpack.c.bf16 %v3257, %v3257
      %v3530 = vpack.c.bf16 %v3311, %v3311
      %v3531 = vpack.c.bf16 %v3365, %v3365
      %v3532 = vpack.c.bf16 %v3419, %v3419
      %v3533 = vpack.c.bf16 %v3473, %v3473
      %v3534 = vpack.c.bf16 %v3205, %v3205
      %v3535 = vpack.c.bf16 %v3259, %v3259
      %v3536 = vpack.c.bf16 %v3313, %v3313
      %v3537 = vpack.c.bf16 %v3367, %v3367
      %v3538 = vpack.c.bf16 %v3421, %v3421
      %v3539 = vpack.c.bf16 %v3475, %v3475
      %v3540 = vpack.c.bf16 %v3207, %v3207
      %v3541 = vpack.c.bf16 %v3261, %v3261
      %v3542 = vpack.c.bf16 %v3315, %v3315
      %v3543 = vpack.c.bf16 %v3369, %v3369
      %v3544 = vpack.c.bf16 %v3423, %v3423
      %v3545 = vpack.c.bf16 %v3477, %v3477
      %v3546 = vpack.c.bf16 %v3209, %v3209
      %v3547 = vpack.c.bf16 %v3263, %v3263
      %v3548 = vpack.c.bf16 %v3317, %v3317
      %v3549 = vpack.c.bf16 %v3371, %v3371
      %v3550 = vpack.c.bf16 %v3425, %v3425
      %v3551 = vpack.c.bf16 %v3479, %v3479
      %v3558 = vunpack.c.l.b16 %v3480
      %v3559 = vunpack.c.l.b16 %v3481
      %v3560 = vunpack.c.l.b16 %v3482
      %v3561 = vunpack.c.l.b16 %v3483
      %v3562 = vunpack.c.l.b16 %v3484
      %v3563 = vunpack.c.l.b16 %v3485
      %v3564 = vpack.c.b16 %v3559, %v3558
      %v3565 = vpack.c.b16 %v3561, %v3560
      %v3566 = vpack.c.b16 %v3563, %v3562
      %v3573 = vunpack.c.l.b16 %v3504
      %v3574 = vunpack.c.l.b16 %v3505
      %v3575 = vunpack.c.l.b16 %v3506
      %v3576 = vunpack.c.l.b16 %v3507
      %v3577 = vunpack.c.l.b16 %v3508
      %v3578 = vunpack.c.l.b16 %v3509
      %v3579 = vpack.c.b16 %v3574, %v3573
      %v3580 = vpack.c.b16 %v3576, %v3575
      %v3581 = vpack.c.b16 %v3578, %v3577
      %vm3582 = vcmask 261120
      %v3584 = vsel %vm3582, %v3564, 0
      %v3587 = vsel %vm3582, %v3565, 0
      %v3590 = vsel %vm3582, %v3566, 0
      %v3593 = vsel %vm3582, %v3579, 0
      %v3596 = vsel %vm3582, %v3580, 0
      %v3599 = vsel %vm3582, %v3581, 0
      %3601 = vmatpush.bf16.xpose.msra.mxu0 0
      %3602 = vmatpush.bf16.xpose.msra.mxu0 0
      %3603 = vmatpush.bf16.xpose.msra.mxu0 0
      %3604 = vmatpush.bf16.xpose.msra.mxu0 0
      %3605 = vmatpush.bf16.xpose.msra.mxu0 0
      %3606 = vmatpush.bf16.xpose.msra.mxu0 %v3599
      %3607 = vmatpush.bf16.xpose.msra.mxu0 %v3596
      %3608 = vmatpush.bf16.xpose.msra.mxu0 %v3593
      %3609 = vmatmul.bf16.gmra.mxu0 %v3584
      %v3610 = vpop.f32.mrf.mxu0
      %v3611 = vadd.f32 0.0, %v3610
      %v3612 = vpop.f32.mrf.mxu0
      %v3613 = vadd.f32 0.0, %v3612
      %3614 = vmatmul.bf16.gmra.mxu0 %v3587
      %v3615 = vpop.f32.mrf.mxu0
      %v3616 = vadd.f32 0.0, %v3615
      %v3617 = vpop.f32.mrf.mxu0
      %v3618 = vadd.f32 0.0, %v3617
      %3619 = vmatmul.bf16.gmra.mxu0 %v3590
      %v3620 = vpop.f32.mrf.mxu0
      %v3621 = vadd.f32 0.0, %v3620
      %v3622 = vpop.f32.mrf.mxu0
      %v3623 = vadd.f32 0.0, %v3622
      %3624 = vdwg.mxu0
      %v3631 = vunpack.c.l.b16 %v3486
      %v3632 = vunpack.c.l.b16 %v3487
      %v3633 = vunpack.c.l.b16 %v3488
      %v3634 = vunpack.c.l.b16 %v3489
      %v3635 = vunpack.c.l.b16 %v3490
      %v3636 = vunpack.c.l.b16 %v3491
      %v3637 = vpack.c.b16 %v3632, %v3631
      %v3638 = vpack.c.b16 %v3634, %v3633
      %v3639 = vpack.c.b16 %v3636, %v3635
      %v3646 = vunpack.c.l.b16 %v3510
      %v3647 = vunpack.c.l.b16 %v3511
      %v3648 = vunpack.c.l.b16 %v3512
      %v3649 = vunpack.c.l.b16 %v3513
      %v3650 = vunpack.c.l.b16 %v3514
      %v3651 = vunpack.c.l.b16 %v3515
      %v3652 = vpack.c.b16 %v3647, %v3646
      %v3653 = vpack.c.b16 %v3649, %v3648
      %v3654 = vpack.c.b16 %v3651, %v3650
      %v3656 = vsel %vm3582, %v3637, 0
      %v3659 = vsel %vm3582, %v3638, 0
      %v3662 = vsel %vm3582, %v3639, 0
      %v3665 = vsel %vm3582, %v3652, 0
      %v3668 = vsel %vm3582, %v3653, 0
      %v3671 = vsel %vm3582, %v3654, 0
      %3673 = vmatpush.bf16.xpose.msra.mxu0 0
      %3674 = vmatpush.bf16.xpose.msra.mxu0 0
      %3675 = vmatpush.bf16.xpose.msra.mxu0 0
      %3676 = vmatpush.bf16.xpose.msra.mxu0 0
      %3677 = vmatpush.bf16.xpose.msra.mxu0 0
      %3678 = vmatpush.bf16.xpose.msra.mxu0 %v3671
      %3679 = vmatpush.bf16.xpose.msra.mxu0 %v3668
      %3680 = vmatpush.bf16.xpose.msra.mxu0 %v3665
      %3681 = vmatmul.bf16.gmra.mxu0 %v3656
      %v3682 = vpop.f32.mrf.mxu0
      %v3683 = vadd.f32 0.0, %v3682
      %v3684 = vpop.f32.mrf.mxu0
      %v3685 = vadd.f32 0.0, %v3684
      %3686 = vmatmul.bf16.gmra.mxu0 %v3659
      %v3687 = vpop.f32.mrf.mxu0
      %v3688 = vadd.f32 0.0, %v3687
      %v3689 = vpop.f32.mrf.mxu0
      %v3690 = vadd.f32 0.0, %v3689
      %3691 = vmatmul.bf16.gmra.mxu0 %v3662
      %v3692 = vpop.f32.mrf.mxu0
      %v3693 = vadd.f32 0.0, %v3692
      %v3694 = vpop.f32.mrf.mxu0
      %v3695 = vadd.f32 0.0, %v3694
      %3696 = vdwg.mxu0
      %v3703 = vunpack.c.l.b16 %v3492
      %v3704 = vunpack.c.l.b16 %v3493
      %v3705 = vunpack.c.l.b16 %v3494
      %v3706 = vunpack.c.l.b16 %v3495
      %v3707 = vunpack.c.l.b16 %v3496
      %v3708 = vunpack.c.l.b16 %v3497
      %v3709 = vpack.c.b16 %v3704, %v3703
      %v3710 = vpack.c.b16 %v3706, %v3705
      %v3711 = vpack.c.b16 %v3708, %v3707
      %v3718 = vunpack.c.l.b16 %v3516
      %v3719 = vunpack.c.l.b16 %v3517
      %v3720 = vunpack.c.l.b16 %v3518
      %v3721 = vunpack.c.l.b16 %v3519
      %v3722 = vunpack.c.l.b16 %v3520
      %v3723 = vunpack.c.l.b16 %v3521
      %v3724 = vpack.c.b16 %v3719, %v3718
      %v3725 = vpack.c.b16 %v3721, %v3720
      %v3726 = vpack.c.b16 %v3723, %v3722
      %v3728 = vsel %vm3582, %v3709, 0
      %v3731 = vsel %vm3582, %v3710, 0
      %v3734 = vsel %vm3582, %v3711, 0
      %v3737 = vsel %vm3582, %v3724, 0
      %v3740 = vsel %vm3582, %v3725, 0
      %v3743 = vsel %vm3582, %v3726, 0
      %3745 = vmatpush.bf16.xpose.msra.mxu0 0
      %3746 = vmatpush.bf16.xpose.msra.mxu0 0
      %3747 = vmatpush.bf16.xpose.msra.mxu0 0
      %3748 = vmatpush.bf16.xpose.msra.mxu0 0
      %3749 = vmatpush.bf16.xpose.msra.mxu0 0
      %3750 = vmatpush.bf16.xpose.msra.mxu0 %v3743
      %3751 = vmatpush.bf16.xpose.msra.mxu0 %v3740
      %3752 = vmatpush.bf16.xpose.msra.mxu0 %v3737
      %3753 = vmatmul.bf16.gmra.mxu0 %v3728
      %v3754 = vpop.f32.mrf.mxu0
      %v3755 = vadd.f32 0.0, %v3754
      %v3756 = vpop.f32.mrf.mxu0
      %v3757 = vadd.f32 0.0, %v3756
      %3758 = vmatmul.bf16.gmra.mxu0 %v3731
      %v3759 = vpop.f32.mrf.mxu0
      %v3760 = vadd.f32 0.0, %v3759
      %v3761 = vpop.f32.mrf.mxu0
      %v3762 = vadd.f32 0.0, %v3761
      %3763 = vmatmul.bf16.gmra.mxu0 %v3734
      %v3764 = vpop.f32.mrf.mxu0
      %v3765 = vadd.f32 0.0, %v3764
      %v3766 = vpop.f32.mrf.mxu0
      %v3767 = vadd.f32 0.0, %v3766
      %3768 = vdwg.mxu0
      %v3775 = vunpack.c.l.b16 %v3498
      %v3776 = vunpack.c.l.b16 %v3499
      %v3777 = vunpack.c.l.b16 %v3500
      %v3778 = vunpack.c.l.b16 %v3501
      %v3779 = vunpack.c.l.b16 %v3502
      %v3780 = vunpack.c.l.b16 %v3503
      %v3781 = vpack.c.b16 %v3776, %v3775
      %v3782 = vpack.c.b16 %v3778, %v3777
      %v3783 = vpack.c.b16 %v3780, %v3779
      %v3790 = vunpack.c.l.b16 %v3522
      %v3791 = vunpack.c.l.b16 %v3523
      %v3792 = vunpack.c.l.b16 %v3524
      %v3793 = vunpack.c.l.b16 %v3525
      %v3794 = vunpack.c.l.b16 %v3526
      %v3795 = vunpack.c.l.b16 %v3527
      %v3796 = vpack.c.b16 %v3791, %v3790
      %v3797 = vpack.c.b16 %v3793, %v3792
      %v3798 = vpack.c.b16 %v3795, %v3794
      %v3800 = vsel %vm3582, %v3781, 0
      %v3803 = vsel %vm3582, %v3782, 0
      %v3806 = vsel %vm3582, %v3783, 0
      %v3809 = vsel %vm3582, %v3796, 0
      %v3812 = vsel %vm3582, %v3797, 0
      %v3815 = vsel %vm3582, %v3798, 0
      %3817 = vmatpush.bf16.xpose.msra.mxu0 0
      %3818 = vmatpush.bf16.xpose.msra.mxu0 0
      %3819 = vmatpush.bf16.xpose.msra.mxu0 0
      %3820 = vmatpush.bf16.xpose.msra.mxu0 0
      %3821 = vmatpush.bf16.xpose.msra.mxu0 0
      %3822 = vmatpush.bf16.xpose.msra.mxu0 %v3815
      %3823 = vmatpush.bf16.xpose.msra.mxu0 %v3812
      %3824 = vmatpush.bf16.xpose.msra.mxu0 %v3809
      %3825 = vmatmul.bf16.gmra.mxu0 %v3800
      %v3826 = vpop.f32.mrf.mxu0
      %v3827 = vadd.f32 0.0, %v3826
      %v3828 = vpop.f32.mrf.mxu0
      %v3829 = vadd.f32 0.0, %v3828
      %3830 = vmatmul.bf16.gmra.mxu0 %v3803
      %v3831 = vpop.f32.mrf.mxu0
      %v3832 = vadd.f32 0.0, %v3831
      %v3833 = vpop.f32.mrf.mxu0
      %v3834 = vadd.f32 0.0, %v3833
      %3835 = vmatmul.bf16.gmra.mxu0 %v3806
      %v3836 = vpop.f32.mrf.mxu0
      %v3837 = vadd.f32 0.0, %v3836
      %v3838 = vpop.f32.mrf.mxu0
      %v3839 = vadd.f32 0.0, %v3838
      %3840 = vdwg.mxu0
      %vm3841 = vcmask 392192
      %v3842 = vsel %vm3841, %v3611, -inf
      %3843 = vmax.xlane.f32.xlu0 %v3842
      %v3844 = vpop.xlane.xlu0 %3843
      %v3845 = vsel %vm3841, %v3613, -inf
      %3846 = vmax.xlane.f32.xlu0 %v3845
      %v3847 = vpop.xlane.xlu0 %3846
      %v3848 = vsel %vm3841, %v3616, -inf
      %3849 = vmax.xlane.f32.xlu0 %v3848
      %v3850 = vpop.xlane.xlu0 %3849
      %v3851 = vsel %vm3841, %v3618, -inf
      %3852 = vmax.xlane.f32.xlu0 %v3851
      %v3853 = vpop.xlane.xlu0 %3852
      %v3854 = vsel %vm3841, %v3621, -inf
      %3855 = vmax.xlane.f32.xlu0 %v3854
      %v3856 = vpop.xlane.xlu0 %3855
      %v3857 = vsel %vm3841, %v3623, -inf
      %3858 = vmax.xlane.f32.xlu0 %v3857
      %v3859 = vpop.xlane.xlu0 %3858
      %v3860 = vsel %vm3841, %v3683, -inf
      %3861 = vmax.xlane.f32.xlu0 %v3860
      %v3862 = vpop.xlane.xlu0 %3861
      %v3863 = vsel %vm3841, %v3685, -inf
      %3864 = vmax.xlane.f32.xlu0 %v3863
      %v3865 = vpop.xlane.xlu0 %3864
      %v3866 = vsel %vm3841, %v3688, -inf
      %3867 = vmax.xlane.f32.xlu0 %v3866
      %v3868 = vpop.xlane.xlu0 %3867
      %v3869 = vsel %vm3841, %v3690, -inf
      %3870 = vmax.xlane.f32.xlu0 %v3869
      %v3871 = vpop.xlane.xlu0 %3870
      %v3872 = vsel %vm3841, %v3693, -inf
      %3873 = vmax.xlane.f32.xlu0 %v3872
      %v3874 = vpop.xlane.xlu0 %3873
      %v3875 = vsel %vm3841, %v3695, -inf
      %3876 = vmax.xlane.f32.xlu0 %v3875
      %v3877 = vpop.xlane.xlu0 %3876
      %v3878 = vsel %vm3841, %v3755, -inf
      %3879 = vmax.xlane.f32.xlu0 %v3878
      %v3880 = vpop.xlane.xlu0 %3879
      %v3881 = vsel %vm3841, %v3757, -inf
      %3882 = vmax.xlane.f32.xlu0 %v3881
      %v3883 = vpop.xlane.xlu0 %3882
      %v3884 = vsel %vm3841, %v3760, -inf
      %3885 = vmax.xlane.f32.xlu0 %v3884
      %v3886 = vpop.xlane.xlu0 %3885
      %v3887 = vsel %vm3841, %v3762, -inf
      %3888 = vmax.xlane.f32.xlu0 %v3887
      %v3889 = vpop.xlane.xlu0 %3888
      %v3890 = vsel %vm3841, %v3765, -inf
      %3891 = vmax.xlane.f32.xlu0 %v3890
      %v3892 = vpop.xlane.xlu0 %3891
      %v3893 = vsel %vm3841, %v3767, -inf
      %3894 = vmax.xlane.f32.xlu0 %v3893
      %v3895 = vpop.xlane.xlu0 %3894
      %v3896 = vsel %vm3841, %v3827, -inf
      %3897 = vmax.xlane.f32.xlu0 %v3896
      %v3898 = vpop.xlane.xlu0 %3897
      %v3899 = vsel %vm3841, %v3829, -inf
      %3900 = vmax.xlane.f32.xlu0 %v3899
      %v3901 = vpop.xlane.xlu0 %3900
      %v3902 = vsel %vm3841, %v3832, -inf
      %3903 = vmax.xlane.f32.xlu0 %v3902
      %v3904 = vpop.xlane.xlu0 %3903
      %v3905 = vsel %vm3841, %v3834, -inf
      %3906 = vmax.xlane.f32.xlu0 %v3905
      %v3907 = vpop.xlane.xlu0 %3906
      %v3908 = vsel %vm3841, %v3837, -inf
      %3909 = vmax.xlane.f32.xlu0 %v3908
      %v3910 = vpop.xlane.xlu0 %3909
      %v3911 = vsel %vm3841, %v3839, -inf
      %3912 = vmax.xlane.f32.xlu0 %v3911
      %v3913 = vpop.xlane.xlu0 %3912
      %v3914 = vsub.f32 %v3611, %v3844
      %v3915 = vsub.f32 %v3613, %v3847
      %v3916 = vsub.f32 %v3616, %v3850
      %v3917 = vsub.f32 %v3618, %v3853
      %v3918 = vsub.f32 %v3621, %v3856
      %v3919 = vsub.f32 %v3623, %v3859
      %v3920 = vsub.f32 %v3683, %v3862
      %v3921 = vsub.f32 %v3685, %v3865
      %v3922 = vsub.f32 %v3688, %v3868
      %v3923 = vsub.f32 %v3690, %v3871
      %v3924 = vsub.f32 %v3693, %v3874
      %v3925 = vsub.f32 %v3695, %v3877
      %v3926 = vsub.f32 %v3755, %v3880
      %v3927 = vsub.f32 %v3757, %v3883
      %v3928 = vsub.f32 %v3760, %v3886
      %v3929 = vsub.f32 %v3762, %v3889
      %v3930 = vsub.f32 %v3765, %v3892
      %v3931 = vsub.f32 %v3767, %v3895
      %v3932 = vsub.f32 %v3827, %v3898
      %v3933 = vsub.f32 %v3829, %v3901
      %v3934 = vsub.f32 %v3832, %v3904
      %v3935 = vsub.f32 %v3834, %v3907
      %v3936 = vsub.f32 %v3837, %v3910
      %v3937 = vsub.f32 %v3839, %v3913
      %v3938 = vmul.f32 %v3914, 1.442695
      %v3939 = vpow.pop %v3938
      %v3940 = vmul.f32 %v3915, 1.442695
      %v3941 = vpow.pop %v3940
      %v3942 = vmul.f32 %v3916, 1.442695
      %v3943 = vpow.pop %v3942
      %v3944 = vmul.f32 %v3917, 1.442695
      %v3945 = vpow.pop %v3944
      %v3946 = vmul.f32 %v3918, 1.442695
      %v3947 = vpow.pop %v3946
      %v3948 = vmul.f32 %v3919, 1.442695
      %v3949 = vpow.pop %v3948
      %v3950 = vmul.f32 %v3920, 1.442695
      %v3951 = vpow.pop %v3950
      %v3952 = vmul.f32 %v3921, 1.442695
      %v3953 = vpow.pop %v3952
      %v3954 = vmul.f32 %v3922, 1.442695
      %v3955 = vpow.pop %v3954
      %v3956 = vmul.f32 %v3923, 1.442695
      %v3957 = vpow.pop %v3956
      %v3958 = vmul.f32 %v3924, 1.442695
      %v3959 = vpow.pop %v3958
      %v3960 = vmul.f32 %v3925, 1.442695
      %v3961 = vpow.pop %v3960
      %v3962 = vmul.f32 %v3926, 1.442695
      %v3963 = vpow.pop %v3962
      %v3964 = vmul.f32 %v3927, 1.442695
      %v3965 = vpow.pop %v3964
      %v3966 = vmul.f32 %v3928, 1.442695
      %v3967 = vpow.pop %v3966
      %v3968 = vmul.f32 %v3929, 1.442695
      %v3969 = vpow.pop %v3968
      %v3970 = vmul.f32 %v3930, 1.442695
      %v3971 = vpow.pop %v3970
      %v3972 = vmul.f32 %v3931, 1.442695
      %v3973 = vpow.pop %v3972
      %v3974 = vmul.f32 %v3932, 1.442695
      %v3975 = vpow.pop %v3974
      %v3976 = vmul.f32 %v3933, 1.442695
      %v3977 = vpow.pop %v3976
      %v3978 = vmul.f32 %v3934, 1.442695
      %v3979 = vpow.pop %v3978
      %v3980 = vmul.f32 %v3935, 1.442695
      %v3981 = vpow.pop %v3980
      %v3982 = vmul.f32 %v3936, 1.442695
      %v3983 = vpow.pop %v3982
      %v3984 = vmul.f32 %v3937, 1.442695
      %v3985 = vpow.pop %v3984
      %v3986 = vsel %vm3841, %v3939, 0.0
      %3987 = vadd.xlane.f32.xlu0 %v3986
      %v3988 = vpop.xlane.xlu0 %3987
      %v3989 = vsel %vm3841, %v3941, 0.0
      %3990 = vadd.xlane.f32.xlu0 %v3989
      %v3991 = vpop.xlane.xlu0 %3990
      %v3992 = vsel %vm3841, %v3943, 0.0
      %3993 = vadd.xlane.f32.xlu0 %v3992
      %v3994 = vpop.xlane.xlu0 %3993
      %v3995 = vsel %vm3841, %v3945, 0.0
      %3996 = vadd.xlane.f32.xlu0 %v3995
      %v3997 = vpop.xlane.xlu0 %3996
      %v3998 = vsel %vm3841, %v3947, 0.0
      %3999 = vadd.xlane.f32.xlu0 %v3998
      %v4000 = vpop.xlane.xlu0 %3999
      %v4001 = vsel %vm3841, %v3949, 0.0
      %4002 = vadd.xlane.f32.xlu0 %v4001
      %v4003 = vpop.xlane.xlu0 %4002
      %v4004 = vsel %vm3841, %v3951, 0.0
      %4005 = vadd.xlane.f32.xlu0 %v4004
      %v4006 = vpop.xlane.xlu0 %4005
      %v4007 = vsel %vm3841, %v3953, 0.0
      %4008 = vadd.xlane.f32.xlu0 %v4007
      %v4009 = vpop.xlane.xlu0 %4008
      %v4010 = vsel %vm3841, %v3955, 0.0
      %4011 = vadd.xlane.f32.xlu0 %v4010
      %v4012 = vpop.xlane.xlu0 %4011
      %v4013 = vsel %vm3841, %v3957, 0.0
      %4014 = vadd.xlane.f32.xlu0 %v4013
      %v4015 = vpop.xlane.xlu0 %4014
      %v4016 = vsel %vm3841, %v3959, 0.0
      %4017 = vadd.xlane.f32.xlu0 %v4016
      %v4018 = vpop.xlane.xlu0 %4017
      %v4019 = vsel %vm3841, %v3961, 0.0
      %4020 = vadd.xlane.f32.xlu0 %v4019
      %v4021 = vpop.xlane.xlu0 %4020
      %v4022 = vsel %vm3841, %v3963, 0.0
      %4023 = vadd.xlane.f32.xlu0 %v4022
      %v4024 = vpop.xlane.xlu0 %4023
      %v4025 = vsel %vm3841, %v3965, 0.0
      %4026 = vadd.xlane.f32.xlu0 %v4025
      %v4027 = vpop.xlane.xlu0 %4026
      %v4028 = vsel %vm3841, %v3967, 0.0
      %4029 = vadd.xlane.f32.xlu0 %v4028
      %v4030 = vpop.xlane.xlu0 %4029
      %v4031 = vsel %vm3841, %v3969, 0.0
      %4032 = vadd.xlane.f32.xlu0 %v4031
      %v4033 = vpop.xlane.xlu0 %4032
      %v4034 = vsel %vm3841, %v3971, 0.0
      %4035 = vadd.xlane.f32.xlu0 %v4034
      %v4036 = vpop.xlane.xlu0 %4035
      %v4037 = vsel %vm3841, %v3973, 0.0
      %4038 = vadd.xlane.f32.xlu0 %v4037
      %v4039 = vpop.xlane.xlu0 %4038
      %v4040 = vsel %vm3841, %v3975, 0.0
      %4041 = vadd.xlane.f32.xlu0 %v4040
      %v4042 = vpop.xlane.xlu0 %4041
      %v4043 = vsel %vm3841, %v3977, 0.0
      %4044 = vadd.xlane.f32.xlu0 %v4043
      %v4045 = vpop.xlane.xlu0 %4044
      %v4046 = vsel %vm3841, %v3979, 0.0
      %4047 = vadd.xlane.f32.xlu0 %v4046
      %v4048 = vpop.xlane.xlu0 %4047
      %v4049 = vsel %vm3841, %v3981, 0.0
      %4050 = vadd.xlane.f32.xlu0 %v4049
      %v4051 = vpop.xlane.xlu0 %4050
      %v4052 = vsel %vm3841, %v3983, 0.0
      %4053 = vadd.xlane.f32.xlu0 %v4052
      %v4054 = vpop.xlane.xlu0 %4053
      %v4055 = vsel %vm3841, %v3985, 0.0
      %4056 = vadd.xlane.f32.xlu0 %v4055
      %v4057 = vpop.xlane.xlu0 %4056
      %v4058 = vrcp.pop %v3988
      %v4059 = vrcp.pop %v3991
      %v4060 = vrcp.pop %v3994
      %v4061 = vrcp.pop %v3997
      %v4062 = vrcp.pop %v4000
      %v4063 = vrcp.pop %v4003
      %v4064 = vrcp.pop %v4006
      %v4065 = vrcp.pop %v4009
      %v4066 = vrcp.pop %v4012
      %v4067 = vrcp.pop %v4015
      %v4068 = vrcp.pop %v4018
      %v4069 = vrcp.pop %v4021
      %v4070 = vrcp.pop %v4024
      %v4071 = vrcp.pop %v4027
      %v4072 = vrcp.pop %v4030
      %v4073 = vrcp.pop %v4033
      %v4074 = vrcp.pop %v4036
      %v4075 = vrcp.pop %v4039
      %v4076 = vrcp.pop %v4042
      %v4077 = vrcp.pop %v4045
      %v4078 = vrcp.pop %v4048
      %v4079 = vrcp.pop %v4051
      %v4080 = vrcp.pop %v4054
      %v4081 = vrcp.pop %v4057
      %v4082 = vmul.f32 %v3939, %v4058
      %v4083 = vmul.f32 %v3941, %v4059
      %v4084 = vmul.f32 %v3943, %v4060
      %v4085 = vmul.f32 %v3945, %v4061
      %v4086 = vmul.f32 %v3947, %v4062
      %v4087 = vmul.f32 %v3949, %v4063
      %v4088 = vmul.f32 %v3951, %v4064
      %v4089 = vmul.f32 %v3953, %v4065
      %v4090 = vmul.f32 %v3955, %v4066
      %v4091 = vmul.f32 %v3957, %v4067
      %v4092 = vmul.f32 %v3959, %v4068
      %v4093 = vmul.f32 %v3961, %v4069
      %v4094 = vmul.f32 %v3963, %v4070
      %v4095 = vmul.f32 %v3965, %v4071
      %v4096 = vmul.f32 %v3967, %v4072
      %v4097 = vmul.f32 %v3969, %v4073
      %v4098 = vmul.f32 %v3971, %v4074
      %v4099 = vmul.f32 %v3973, %v4075
      %v4100 = vmul.f32 %v3975, %v4076
      %v4101 = vmul.f32 %v3977, %v4077
      %v4102 = vmul.f32 %v3979, %v4078
      %v4103 = vmul.f32 %v3981, %v4079
      %v4104 = vmul.f32 %v3983, %v4080
      %v4105 = vmul.f32 %v3985, %v4081
      %v4106 = vpack.c.bf16 %v4082, %v4082
      %v4107 = vpack.c.bf16 %v4083, %v4083
      %v4108 = vpack.c.bf16 %v4084, %v4084
      %v4109 = vpack.c.bf16 %v4085, %v4085
      %v4110 = vpack.c.bf16 %v4086, %v4086
      %v4111 = vpack.c.bf16 %v4087, %v4087
      %v4112 = vpack.c.bf16 %v4088, %v4088
      %v4113 = vpack.c.bf16 %v4089, %v4089
      %v4114 = vpack.c.bf16 %v4090, %v4090
      %v4115 = vpack.c.bf16 %v4091, %v4091
      %v4116 = vpack.c.bf16 %v4092, %v4092
      %v4117 = vpack.c.bf16 %v4093, %v4093
      %v4118 = vpack.c.bf16 %v4094, %v4094
      %v4119 = vpack.c.bf16 %v4095, %v4095
      %v4120 = vpack.c.bf16 %v4096, %v4096
      %v4121 = vpack.c.bf16 %v4097, %v4097
      %v4122 = vpack.c.bf16 %v4098, %v4098
      %v4123 = vpack.c.bf16 %v4099, %v4099
      %v4124 = vpack.c.bf16 %v4100, %v4100
      %v4125 = vpack.c.bf16 %v4101, %v4101
      %v4126 = vpack.c.bf16 %v4102, %v4102
      %v4127 = vpack.c.bf16 %v4103, %v4103
      %v4128 = vpack.c.bf16 %v4104, %v4104
      %v4129 = vpack.c.bf16 %v4105, %v4105
      %v4136 = vunpack.c.l.b16 %v4106
      %v4137 = vunpack.c.l.b16 %v4107
      %v4138 = vunpack.c.l.b16 %v4108
      %v4139 = vunpack.c.l.b16 %v4109
      %v4140 = vunpack.c.l.b16 %v4110
      %v4141 = vunpack.c.l.b16 %v4111
      %v4142 = vpack.c.b16 %v4137, %v4136
      %v4143 = vpack.c.b16 %v4139, %v4138
      %v4144 = vpack.c.b16 %v4141, %v4140
      %v4151 = vunpack.c.l.b16 %v3528
      %v4152 = vunpack.c.l.b16 %v3529
      %v4153 = vunpack.c.l.b16 %v3530
      %v4154 = vunpack.c.l.b16 %v3531
      %v4155 = vunpack.c.l.b16 %v3532
      %v4156 = vunpack.c.l.b16 %v3533
      %v4157 = vpack.c.b16 %v4152, %v4151
      %v4158 = vpack.c.b16 %v4154, %v4153
      %v4159 = vpack.c.b16 %v4156, %v4155
      %v4164 = vsel %vm3841, %v4142, 0
      %v4167 = vsel %vm3841, %v4143, 0
      %v4170 = vsel %vm3841, %v4144, 0
      %4172 = vmatpush.bf16.msra.mxu0 0
      %4173 = vmatpush.bf16.msra.mxu0 0
      %4174 = vmatpush.bf16.msra.mxu0 0
      %4175 = vmatpush.bf16.msra.mxu0 0
      %4176 = vmatpush.bf16.msra.mxu0 0
      %4177 = vmatpush.bf16.msra.mxu0 %v4159
      %4178 = vmatpush.bf16.msra.mxu0 %v4158
      %4179 = vmatpush.bf16.msra.mxu0 %v4157
      %4180 = vmatmul.bf16.gmra.mxu0 %v4164
      %v4181 = vpop.f32.mrf.mxu0
      %v4182 = vadd.f32 0.0, %v4181
      %v4183 = vpop.f32.mrf.mxu0
      %v4184 = vadd.f32 0.0, %v4183
      %4185 = vmatmul.bf16.gmra.mxu0 %v4167
      %v4186 = vpop.f32.mrf.mxu0
      %v4187 = vadd.f32 0.0, %v4186
      %v4188 = vpop.f32.mrf.mxu0
      %v4189 = vadd.f32 0.0, %v4188
      %4190 = vmatmul.bf16.gmra.mxu0 %v4170
      %v4191 = vpop.f32.mrf.mxu0
      %v4192 = vadd.f32 0.0, %v4191
      %v4193 = vpop.f32.mrf.mxu0
      %v4194 = vadd.f32 0.0, %v4193
      %4195 = vdwg.mxu0
      %v4202 = vunpack.c.l.b16 %v4112
      %v4203 = vunpack.c.l.b16 %v4113
      %v4204 = vunpack.c.l.b16 %v4114
      %v4205 = vunpack.c.l.b16 %v4115
      %v4206 = vunpack.c.l.b16 %v4116
      %v4207 = vunpack.c.l.b16 %v4117
      %v4208 = vpack.c.b16 %v4203, %v4202
      %v4209 = vpack.c.b16 %v4205, %v4204
      %v4210 = vpack.c.b16 %v4207, %v4206
      %v4217 = vunpack.c.l.b16 %v3534
      %v4218 = vunpack.c.l.b16 %v3535
      %v4219 = vunpack.c.l.b16 %v3536
      %v4220 = vunpack.c.l.b16 %v3537
      %v4221 = vunpack.c.l.b16 %v3538
      %v4222 = vunpack.c.l.b16 %v3539
      %v4223 = vpack.c.b16 %v4218, %v4217
      %v4224 = vpack.c.b16 %v4220, %v4219
      %v4225 = vpack.c.b16 %v4222, %v4221
      %v4230 = vsel %vm3841, %v4208, 0
      %v4233 = vsel %vm3841, %v4209, 0
      %v4236 = vsel %vm3841, %v4210, 0
      %4238 = vmatpush.bf16.msra.mxu0 0
      %4239 = vmatpush.bf16.msra.mxu0 0
      %4240 = vmatpush.bf16.msra.mxu0 0
      %4241 = vmatpush.bf16.msra.mxu0 0
      %4242 = vmatpush.bf16.msra.mxu0 0
      %4243 = vmatpush.bf16.msra.mxu0 %v4225
      %4244 = vmatpush.bf16.msra.mxu0 %v4224
      %4245 = vmatpush.bf16.msra.mxu0 %v4223
      %4246 = vmatmul.bf16.gmra.mxu0 %v4230
      %v4247 = vpop.f32.mrf.mxu0
      %v4248 = vadd.f32 0.0, %v4247
      %v4249 = vpop.f32.mrf.mxu0
      %v4250 = vadd.f32 0.0, %v4249
      %4251 = vmatmul.bf16.gmra.mxu0 %v4233
      %v4252 = vpop.f32.mrf.mxu0
      %v4253 = vadd.f32 0.0, %v4252
      %v4254 = vpop.f32.mrf.mxu0
      %v4255 = vadd.f32 0.0, %v4254
      %4256 = vmatmul.bf16.gmra.mxu0 %v4236
      %v4257 = vpop.f32.mrf.mxu0
      %v4258 = vadd.f32 0.0, %v4257
      %v4259 = vpop.f32.mrf.mxu0
      %v4260 = vadd.f32 0.0, %v4259
      %4261 = vdwg.mxu0
      %v4268 = vunpack.c.l.b16 %v4118
      %v4269 = vunpack.c.l.b16 %v4119
      %v4270 = vunpack.c.l.b16 %v4120
      %v4271 = vunpack.c.l.b16 %v4121
      %v4272 = vunpack.c.l.b16 %v4122
      %v4273 = vunpack.c.l.b16 %v4123
      %v4274 = vpack.c.b16 %v4269, %v4268
      %v4275 = vpack.c.b16 %v4271, %v4270
      %v4276 = vpack.c.b16 %v4273, %v4272
      %v4283 = vunpack.c.l.b16 %v3540
      %v4284 = vunpack.c.l.b16 %v3541
      %v4285 = vunpack.c.l.b16 %v3542
      %v4286 = vunpack.c.l.b16 %v3543
      %v4287 = vunpack.c.l.b16 %v3544
      %v4288 = vunpack.c.l.b16 %v3545
      %v4289 = vpack.c.b16 %v4284, %v4283
      %v4290 = vpack.c.b16 %v4286, %v4285
      %v4291 = vpack.c.b16 %v4288, %v4287
      %v4296 = vsel %vm3841, %v4274, 0
      %v4299 = vsel %vm3841, %v4275, 0
      %v4302 = vsel %vm3841, %v4276, 0
      %4304 = vmatpush.bf16.msra.mxu0 0
      %4305 = vmatpush.bf16.msra.mxu0 0
      %4306 = vmatpush.bf16.msra.mxu0 0
      %4307 = vmatpush.bf16.msra.mxu0 0
      %4308 = vmatpush.bf16.msra.mxu0 0
      %4309 = vmatpush.bf16.msra.mxu0 %v4291
      %4310 = vmatpush.bf16.msra.mxu0 %v4290
      %4311 = vmatpush.bf16.msra.mxu0 %v4289
      %4312 = vmatmul.bf16.gmra.mxu0 %v4296
      %v4313 = vpop.f32.mrf.mxu0
      %v4314 = vadd.f32 0.0, %v4313
      %v4315 = vpop.f32.mrf.mxu0
      %v4316 = vadd.f32 0.0, %v4315
      %4317 = vmatmul.bf16.gmra.mxu0 %v4299
      %v4318 = vpop.f32.mrf.mxu0
      %v4319 = vadd.f32 0.0, %v4318
      %v4320 = vpop.f32.mrf.mxu0
      %v4321 = vadd.f32 0.0, %v4320
      %4322 = vmatmul.bf16.gmra.mxu0 %v4302
      %v4323 = vpop.f32.mrf.mxu0
      %v4324 = vadd.f32 0.0, %v4323
      %v4325 = vpop.f32.mrf.mxu0
      %v4326 = vadd.f32 0.0, %v4325
      %4327 = vdwg.mxu0
      %v4334 = vunpack.c.l.b16 %v4124
      %v4335 = vunpack.c.l.b16 %v4125
      %v4336 = vunpack.c.l.b16 %v4126
      %v4337 = vunpack.c.l.b16 %v4127
      %v4338 = vunpack.c.l.b16 %v4128
      %v4339 = vunpack.c.l.b16 %v4129
      %v4340 = vpack.c.b16 %v4335, %v4334
      %v4341 = vpack.c.b16 %v4337, %v4336
      %v4342 = vpack.c.b16 %v4339, %v4338
      %v4349 = vunpack.c.l.b16 %v3546
      %v4350 = vunpack.c.l.b16 %v3547
      %v4351 = vunpack.c.l.b16 %v3548
      %v4352 = vunpack.c.l.b16 %v3549
      %v4353 = vunpack.c.l.b16 %v3550
      %v4354 = vunpack.c.l.b16 %v3551
      %v4355 = vpack.c.b16 %v4350, %v4349
      %v4356 = vpack.c.b16 %v4352, %v4351
      %v4357 = vpack.c.b16 %v4354, %v4353
      %v4362 = vsel %vm3841, %v4340, 0
      %v4365 = vsel %vm3841, %v4341, 0
      %v4368 = vsel %vm3841, %v4342, 0
      %4370 = vmatpush.bf16.msra.mxu0 0
      %4371 = vmatpush.bf16.msra.mxu0 0
      %4372 = vmatpush.bf16.msra.mxu0 0
      %4373 = vmatpush.bf16.msra.mxu0 0
      %4374 = vmatpush.bf16.msra.mxu0 0
      %4375 = vmatpush.bf16.msra.mxu0 %v4357
      %4376 = vmatpush.bf16.msra.mxu0 %v4356
      %4377 = vmatpush.bf16.msra.mxu0 %v4355
      %4378 = vmatmul.bf16.gmra.mxu0 %v4362
      %v4379 = vpop.f32.mrf.mxu0
      %v4380 = vadd.f32 0.0, %v4379
      %v4381 = vpop.f32.mrf.mxu0
      %v4382 = vadd.f32 0.0, %v4381
      %4383 = vmatmul.bf16.gmra.mxu0 %v4365
      %v4384 = vpop.f32.mrf.mxu0
      %v4385 = vadd.f32 0.0, %v4384
      %v4386 = vpop.f32.mrf.mxu0
      %v4387 = vadd.f32 0.0, %v4386
      %4388 = vmatmul.bf16.gmra.mxu0 %v4368
      %v4389 = vpop.f32.mrf.mxu0
      %v4390 = vadd.f32 0.0, %v4389
      %v4391 = vpop.f32.mrf.mxu0
      %v4392 = vadd.f32 0.0, %v4391
      %4393 = vdwg.mxu0
      %v4394 = vpack.c.bf16 %v4182, %v4182
      %v4395 = vpack.c.bf16 %v4184, %v4184
      %v4396 = vpack.c.bf16 %v4187, %v4187
      %v4397 = vpack.c.bf16 %v4189, %v4189
      %v4398 = vpack.c.bf16 %v4192, %v4192
      %v4399 = vpack.c.bf16 %v4194, %v4194
      %v4400 = vpack.c.bf16 %v4248, %v4248
      %v4401 = vpack.c.bf16 %v4250, %v4250
      %v4402 = vpack.c.bf16 %v4253, %v4253
      %v4403 = vpack.c.bf16 %v4255, %v4255
      %v4404 = vpack.c.bf16 %v4258, %v4258
      %v4405 = vpack.c.bf16 %v4260, %v4260
      %v4406 = vpack.c.bf16 %v4314, %v4314
      %v4407 = vpack.c.bf16 %v4316, %v4316
      %v4408 = vpack.c.bf16 %v4319, %v4319
      %v4409 = vpack.c.bf16 %v4321, %v4321
      %v4410 = vpack.c.bf16 %v4324, %v4324
      %v4411 = vpack.c.bf16 %v4326, %v4326
      %v4412 = vpack.c.bf16 %v4380, %v4380
      %v4413 = vpack.c.bf16 %v4382, %v4382
      %v4414 = vpack.c.bf16 %v4385, %v4385
      %v4415 = vpack.c.bf16 %v4387, %v4387
      %v4416 = vpack.c.bf16 %v4390, %v4390
      %v4417 = vpack.c.bf16 %v4392, %v4392
      %v4424 = vunpack.c.l.b16 %v4394
      %v4425 = vunpack.c.l.b16 %v4395
      %v4426 = vunpack.c.l.b16 %v4396
      %v4427 = vunpack.c.l.b16 %v4397
      %v4428 = vunpack.c.l.b16 %v4398
      %v4429 = vunpack.c.l.b16 %v4399
      %v4430 = vpack.c.b16 %v4425, %v4424
      %v4431 = vpack.c.b16 %v4427, %v4426
      %v4432 = vpack.c.b16 %v4429, %v4428
      %v4437 = vunpack.c.l.b16 %v1279
      %v4438 = vunpack.c.l.b16 %v1280
      %v4439 = vunpack.c.l.b16 %v1281
      %v4440 = vunpack.c.l.b16 %v1282
      %v4441 = vpack.c.b16 %v4438, %v4437
      %v4442 = vpack.c.b16 %v4440, %v4439
      %v4446 = vsel %vm3582, %v4430, 0
      %v4449 = vsel %vm3582, %v4431, 0
      %v4452 = vsel %vm3582, %v4432, 0
      %4454 = vmatpush.bf16.msra.mxu0 0
      %4455 = vmatpush.bf16.msra.mxu0 0
      %4456 = vmatpush.bf16.msra.mxu0 0
      %4457 = vmatpush.bf16.msra.mxu0 0
      %4458 = vmatpush.bf16.msra.mxu0 0
      %4459 = vmatpush.bf16.msra.mxu0 0
      %4460 = vmatpush.bf16.msra.mxu0 %v4442
      %4461 = vmatpush.bf16.msra.mxu0 %v4441
      %4462 = vmatmul.bf16.gmra.mxu0 %v4446
      %v4463 = vpop.f32.mrf.mxu0
      %v4464 = vadd.f32 0.0, %v4463
      %v4465 = vpop.f32.mrf.mxu0
      %v4466 = vadd.f32 0.0, %v4465
      %4467 = vmatmul.bf16.gmra.mxu0 %v4449
      %v4468 = vpop.f32.mrf.mxu0
      %v4469 = vadd.f32 0.0, %v4468
      %v4470 = vpop.f32.mrf.mxu0
      %v4471 = vadd.f32 0.0, %v4470
      %4472 = vmatmul.bf16.gmra.mxu0 %v4452
      %v4473 = vpop.f32.mrf.mxu0
      %v4474 = vadd.f32 0.0, %v4473
      %v4475 = vpop.f32.mrf.mxu0
      %v4476 = vadd.f32 0.0, %v4475
      %4477 = vdwg.mxu0
      %v4484 = vunpack.c.l.b16 %v4400
      %v4485 = vunpack.c.l.b16 %v4401
      %v4486 = vunpack.c.l.b16 %v4402
      %v4487 = vunpack.c.l.b16 %v4403
      %v4488 = vunpack.c.l.b16 %v4404
      %v4489 = vunpack.c.l.b16 %v4405
      %v4490 = vpack.c.b16 %v4485, %v4484
      %v4491 = vpack.c.b16 %v4487, %v4486
      %v4492 = vpack.c.b16 %v4489, %v4488
      %v4497 = vunpack.c.l.b16 %v1283
      %v4498 = vunpack.c.l.b16 %v1284
      %v4499 = vunpack.c.l.b16 %v1285
      %v4500 = vunpack.c.l.b16 %v1286
      %v4501 = vpack.c.b16 %v4498, %v4497
      %v4502 = vpack.c.b16 %v4500, %v4499
      %v4506 = vsel %vm3582, %v4490, 0
      %v4509 = vsel %vm3582, %v4491, 0
      %v4512 = vsel %vm3582, %v4492, 0
      %4514 = vmatpush.bf16.msra.mxu0 0
      %4515 = vmatpush.bf16.msra.mxu0 0
      %4516 = vmatpush.bf16.msra.mxu0 0
      %4517 = vmatpush.bf16.msra.mxu0 0
      %4518 = vmatpush.bf16.msra.mxu0 0
      %4519 = vmatpush.bf16.msra.mxu0 0
      %4520 = vmatpush.bf16.msra.mxu0 %v4502
      %4521 = vmatpush.bf16.msra.mxu0 %v4501
      %4522 = vmatmul.bf16.gmra.mxu0 %v4506
      %v4523 = vpop.f32.mrf.mxu0
      %v4524 = vadd.f32 0.0, %v4523
      %v4525 = vpop.f32.mrf.mxu0
      %v4526 = vadd.f32 0.0, %v4525
      %4527 = vmatmul.bf16.gmra.mxu0 %v4509
      %v4528 = vpop.f32.mrf.mxu0
      %v4529 = vadd.f32 0.0, %v4528
      %v4530 = vpop.f32.mrf.mxu0
      %v4531 = vadd.f32 0.0, %v4530
      %4532 = vmatmul.bf16.gmra.mxu0 %v4512
      %v4533 = vpop.f32.mrf.mxu0
      %v4534 = vadd.f32 0.0, %v4533
      %v4535 = vpop.f32.mrf.mxu0
      %v4536 = vadd.f32 0.0, %v4535
      %4537 = vdwg.mxu0
      %v4544 = vunpack.c.l.b16 %v4406
      %v4545 = vunpack.c.l.b16 %v4407
      %v4546 = vunpack.c.l.b16 %v4408
      %v4547 = vunpack.c.l.b16 %v4409
      %v4548 = vunpack.c.l.b16 %v4410
      %v4549 = vunpack.c.l.b16 %v4411
      %v4550 = vpack.c.b16 %v4545, %v4544
      %v4551 = vpack.c.b16 %v4547, %v4546
      %v4552 = vpack.c.b16 %v4549, %v4548
      %v4557 = vunpack.c.l.b16 %v1287
      %v4558 = vunpack.c.l.b16 %v1288
      %v4559 = vunpack.c.l.b16 %v1289
      %v4560 = vunpack.c.l.b16 %v1290
      %v4561 = vpack.c.b16 %v4558, %v4557
      %v4562 = vpack.c.b16 %v4560, %v4559
      %v4566 = vsel %vm3582, %v4550, 0
      %v4569 = vsel %vm3582, %v4551, 0
      %v4572 = vsel %vm3582, %v4552, 0
      %4574 = vmatpush.bf16.msra.mxu0 0
      %4575 = vmatpush.bf16.msra.mxu0 0
      %4576 = vmatpush.bf16.msra.mxu0 0
      %4577 = vmatpush.bf16.msra.mxu0 0
      %4578 = vmatpush.bf16.msra.mxu0 0
      %4579 = vmatpush.bf16.msra.mxu0 0
      %4580 = vmatpush.bf16.msra.mxu0 %v4562
      %4581 = vmatpush.bf16.msra.mxu0 %v4561
      %4582 = vmatmul.bf16.gmra.mxu0 %v4566
      %v4583 = vpop.f32.mrf.mxu0
      %v4584 = vadd.f32 0.0, %v4583
      %v4585 = vpop.f32.mrf.mxu0
      %v4586 = vadd.f32 0.0, %v4585
      %4587 = vmatmul.bf16.gmra.mxu0 %v4569
      %v4588 = vpop.f32.mrf.mxu0
      %v4589 = vadd.f32 0.0, %v4588
      %v4590 = vpop.f32.mrf.mxu0
      %v4591 = vadd.f32 0.0, %v4590
      %4592 = vmatmul.bf16.gmra.mxu0 %v4572
      %v4593 = vpop.f32.mrf.mxu0
      %v4594 = vadd.f32 0.0, %v4593
      %v4595 = vpop.f32.mrf.mxu0
      %v4596 = vadd.f32 0.0, %v4595
      %4597 = vdwg.mxu0
      %v4604 = vunpack.c.l.b16 %v4412
      %v4605 = vunpack.c.l.b16 %v4413
      %v4606 = vunpack.c.l.b16 %v4414
      %v4607 = vunpack.c.l.b16 %v4415
      %v4608 = vunpack.c.l.b16 %v4416
      %v4609 = vunpack.c.l.b16 %v4417
      %v4610 = vpack.c.b16 %v4605, %v4604
      %v4611 = vpack.c.b16 %v4607, %v4606
      %v4612 = vpack.c.b16 %v4609, %v4608
      %v4617 = vunpack.c.l.b16 %v1291
      %v4618 = vunpack.c.l.b16 %v1292
      %v4619 = vunpack.c.l.b16 %v1293
      %v4620 = vunpack.c.l.b16 %v1294
      %v4621 = vpack.c.b16 %v4618, %v4617
      %v4622 = vpack.c.b16 %v4620, %v4619
      %v4626 = vsel %vm3582, %v4610, 0
      %v4629 = vsel %vm3582, %v4611, 0
      %v4632 = vsel %vm3582, %v4612, 0
      %4634 = vmatpush.bf16.msra.mxu0 0
      %4635 = vmatpush.bf16.msra.mxu0 0
      %4636 = vmatpush.bf16.msra.mxu0 0
      %4637 = vmatpush.bf16.msra.mxu0 0
      %4638 = vmatpush.bf16.msra.mxu0 0
      %4639 = vmatpush.bf16.msra.mxu0 0
      %4640 = vmatpush.bf16.msra.mxu0 %v4622
      %4641 = vmatpush.bf16.msra.mxu0 %v4621
      %4642 = vmatmul.bf16.gmra.mxu0 %v4626
      %v4643 = vpop.f32.mrf.mxu0
      %v4644 = vadd.f32 0.0, %v4643
      %v4645 = vpop.f32.mrf.mxu0
      %v4646 = vadd.f32 0.0, %v4645
      %4647 = vmatmul.bf16.gmra.mxu0 %v4629
      %v4648 = vpop.f32.mrf.mxu0
      %v4649 = vadd.f32 0.0, %v4648
      %v4650 = vpop.f32.mrf.mxu0
      %v4651 = vadd.f32 0.0, %v4650
      %4652 = vmatmul.bf16.gmra.mxu0 %v4632
      %v4653 = vpop.f32.mrf.mxu0
      %v4654 = vadd.f32 0.0, %v4653
      %v4655 = vpop.f32.mrf.mxu0
      %v4656 = vadd.f32 0.0, %v4655
      %4657 = vdwg.mxu0
      %v4658 = vadd.f32 %v4464, %v4524
      %v4659 = vadd.f32 %v4658, %v4584
      %v4660 = vadd.f32 %v4659, %v4644
      %v4661 = vadd.f32 %v4466, %v4526
      %v4662 = vadd.f32 %v4661, %v4586
      %v4663 = vadd.f32 %v4662, %v4646
      %v4664 = vadd.f32 %v4469, %v4529
      %v4665 = vadd.f32 %v4664, %v4589
      %v4666 = vadd.f32 %v4665, %v4649
      %v4667 = vadd.f32 %v4471, %v4531
      %v4668 = vadd.f32 %v4667, %v4591
      %v4669 = vadd.f32 %v4668, %v4651
      %v4670 = vadd.f32 %v4474, %v4534
      %v4671 = vadd.f32 %v4670, %v4594
      %v4672 = vadd.f32 %v4671, %v4654
      %v4673 = vadd.f32 %v4476, %v4536
      %v4674 = vadd.f32 %v4673, %v4596
      %v4675 = vadd.f32 %v4674, %v4656
      %v4676 = vld [vmem:[%s634] sm:$0x1]
      %v4678 = vperm.slane %v4676, 0
      %v4680 = vadd.f32 %v4660, %v4678
      %v4681 = vadd.f32 %v4663, %v4678
      %v4682 = vadd.f32 %v4666, %v4678
      %v4683 = vadd.f32 %v4669, %v4678
      %v4684 = vadd.f32 %v4672, %v4678
      %v4685 = vadd.f32 %v4675, %v4678
      %v4686 = vld [vmem:[#allocation2] sm:$0xff]
      %v4687 = vld [vmem:[#allocation2 + $0x8] sm:$0xff]
      %v4688 = vld [vmem:[#allocation2 + $0x10] sm:$0xff]
      %v4689 = vld [vmem:[#allocation2 + $0x18] sm:$0xff]
      %v4690 = vld [vmem:[#allocation2 + $0x20] sm:$0xff]
      %v4691 = vld [vmem:[#allocation2 + $0x28] sm:$0xff]
      %v4692 = vadd.f32 %v4686, %v4680
      %v4693 = vadd.f32 %v4687, %v4681
      %v4694 = vadd.f32 %v4688, %v4682
      %v4695 = vadd.f32 %v4689, %v4683
      %v4696 = vadd.f32 %v4690, %v4684
      %v4697 = vadd.f32 %v4691, %v4685
      %4698 = vst [vmem:[#allocation2] sm:$0xff] %v4692
      %4699 = vst [vmem:[#allocation2 + $0x8] sm:$0xff] %v4693
      %4700 = vst [vmem:[#allocation2 + $0x10] sm:$0xff] %v4694
      %4701 = vst [vmem:[#allocation2 + $0x18] sm:$0xff] %v4695
      %4702 = vst [vmem:[#allocation2 + $0x20] sm:$0xff] %v4696
      %4703 = vst [vmem:[#allocation2 + $0x28] sm:$0xff] %v4697
      %4710 = vrot.lane.b32.xlu0 %v1187, 96
      %v4711 = vpop.permute.xlu0 %4710
      %4712 = vrot.lane.b32.xlu0 %v1189, 96
      %v4713 = vpop.permute.xlu0 %4712
      %4714 = vrot.lane.b32.xlu0 %v1192, 96
      %v4715 = vpop.permute.xlu0 %4714
      %4716 = vrot.lane.b32.xlu0 %v1194, 96
      %v4717 = vpop.permute.xlu0 %4716
      %4718 = vrot.lane.b32.xlu0 %v1197, 96
      %v4719 = vpop.permute.xlu0 %4718
      %4720 = vrot.lane.b32.xlu0 %v1199, 96
      %v4721 = vpop.permute.xlu0 %4720
      %4728 = vrot.lane.b32.xlu0 %v1187, 64
      %v4729 = vpop.permute.xlu0 %4728
      %4730 = vrot.lane.b32.xlu0 %v1189, 64
      %v4731 = vpop.permute.xlu0 %4730
      %4732 = vrot.lane.b32.xlu0 %v1192, 64
      %v4733 = vpop.permute.xlu0 %4732
      %4734 = vrot.lane.b32.xlu0 %v1194, 64
      %v4735 = vpop.permute.xlu0 %4734
      %4736 = vrot.lane.b32.xlu0 %v1197, 64
      %v4737 = vpop.permute.xlu0 %4736
      %4738 = vrot.lane.b32.xlu0 %v1199, 64
      %v4739 = vpop.permute.xlu0 %4738
      %4746 = vrot.lane.b32.xlu0 %v1187, 32
      %v4747 = vpop.permute.xlu0 %4746
      %4748 = vrot.lane.b32.xlu0 %v1189, 32
      %v4749 = vpop.permute.xlu0 %4748
      %4750 = vrot.lane.b32.xlu0 %v1192, 32
      %v4751 = vpop.permute.xlu0 %4750
      %4752 = vrot.lane.b32.xlu0 %v1194, 32
      %v4753 = vpop.permute.xlu0 %4752
      %4754 = vrot.lane.b32.xlu0 %v1197, 32
      %v4755 = vpop.permute.xlu0 %4754
      %4756 = vrot.lane.b32.xlu0 %v1199, 32
      %v4757 = vpop.permute.xlu0 %4756
      %4770 = vrot.lane.b32.xlu0 %v1226, 96
      %v4771 = vpop.permute.xlu0 %4770
      %4772 = vrot.lane.b32.xlu0 %v1228, 96
      %v4773 = vpop.permute.xlu0 %4772
      %4774 = vrot.lane.b32.xlu0 %v1231, 96
      %v4775 = vpop.permute.xlu0 %4774
      %4776 = vrot.lane.b32.xlu0 %v1233, 96
      %v4777 = vpop.permute.xlu0 %4776
      %4778 = vrot.lane.b32.xlu0 %v1236, 96
      %v4779 = vpop.permute.xlu0 %4778
      %4780 = vrot.lane.b32.xlu0 %v1238, 96
      %v4781 = vpop.permute.xlu0 %4780
      %4788 = vrot.lane.b32.xlu0 %v1226, 64
      %v4789 = vpop.permute.xlu0 %4788
      %4790 = vrot.lane.b32.xlu0 %v1228, 64
      %v4791 = vpop.permute.xlu0 %4790
      %4792 = vrot.lane.b32.xlu0 %v1231, 64
      %v4793 = vpop.permute.xlu0 %4792
      %4794 = vrot.lane.b32.xlu0 %v1233, 64
      %v4795 = vpop.permute.xlu0 %4794
      %4796 = vrot.lane.b32.xlu0 %v1236, 64
      %v4797 = vpop.permute.xlu0 %4796
      %4798 = vrot.lane.b32.xlu0 %v1238, 64
      %v4799 = vpop.permute.xlu0 %4798
      %4806 = vrot.lane.b32.xlu0 %v1226, 32
      %v4807 = vpop.permute.xlu0 %4806
      %4808 = vrot.lane.b32.xlu0 %v1228, 32
      %v4809 = vpop.permute.xlu0 %4808
      %4810 = vrot.lane.b32.xlu0 %v1231, 32
      %v4811 = vpop.permute.xlu0 %4810
      %4812 = vrot.lane.b32.xlu0 %v1233, 32
      %v4813 = vpop.permute.xlu0 %4812
      %4814 = vrot.lane.b32.xlu0 %v1236, 32
      %v4815 = vpop.permute.xlu0 %4814
      %4816 = vrot.lane.b32.xlu0 %v1238, 32
      %v4817 = vpop.permute.xlu0 %4816
      %4830 = vrot.lane.b32.xlu0 %v1265, 96
      %v4831 = vpop.permute.xlu0 %4830
      %4832 = vrot.lane.b32.xlu0 %v1267, 96
      %v4833 = vpop.permute.xlu0 %4832
      %4834 = vrot.lane.b32.xlu0 %v1270, 96
      %v4835 = vpop.permute.xlu0 %4834
      %4836 = vrot.lane.b32.xlu0 %v1272, 96
      %v4837 = vpop.permute.xlu0 %4836
      %4838 = vrot.lane.b32.xlu0 %v1275, 96
      %v4839 = vpop.permute.xlu0 %4838
      %4840 = vrot.lane.b32.xlu0 %v1277, 96
      %v4841 = vpop.permute.xlu0 %4840
      %4848 = vrot.lane.b32.xlu0 %v1265, 64
      %v4849 = vpop.permute.xlu0 %4848
      %4850 = vrot.lane.b32.xlu0 %v1267, 64
      %v4851 = vpop.permute.xlu0 %4850
      %4852 = vrot.lane.b32.xlu0 %v1270, 64
      %v4853 = vpop.permute.xlu0 %4852
      %4854 = vrot.lane.b32.xlu0 %v1272, 64
      %v4855 = vpop.permute.xlu0 %4854
      %4856 = vrot.lane.b32.xlu0 %v1275, 64
      %v4857 = vpop.permute.xlu0 %4856
      %4858 = vrot.lane.b32.xlu0 %v1277, 64
      %v4859 = vpop.permute.xlu0 %4858
      %4866 = vrot.lane.b32.xlu0 %v1265, 32
      %v4867 = vpop.permute.xlu0 %4866
      %4868 = vrot.lane.b32.xlu0 %v1267, 32
      %v4869 = vpop.permute.xlu0 %4868
      %4870 = vrot.lane.b32.xlu0 %v1270, 32
      %v4871 = vpop.permute.xlu0 %4870
      %4872 = vrot.lane.b32.xlu0 %v1272, 32
      %v4873 = vpop.permute.xlu0 %4872
      %4874 = vrot.lane.b32.xlu0 %v1275, 32
      %v4875 = vpop.permute.xlu0 %4874
      %4876 = vrot.lane.b32.xlu0 %v1277, 32
      %v4877 = vpop.permute.xlu0 %4876
      %v4884 = vrot.slane %v4729, 4
      %v4885 = vsel %vm1476, %v4884, %v1187
      %v4886 = vrot.slane %v1187, 4
      %v4887 = vsel %vm1476, %v4729, %v4886
      %v4889 = vunpack.c.l.s4 1983009808
      %v4890 = vunpack.c.0.s8 %v4889
      %v4891 = vperm.slane %v4885, %v4890
      %v4893 = vunpack.c.l.s4 1983009808
      %v4894 = vunpack.c.0.s8 %v4893
      %v4895 = vperm.slane %v4887, %v4894
      %v4896 = vrot.slane %v4747, 4
      %v4897 = vsel %vm1476, %v4896, %v4711
      %v4898 = vrot.slane %v4711, 4
      %v4899 = vsel %vm1476, %v4747, %v4898
      %v4901 = vunpack.c.l.s4 1983009808
      %v4902 = vunpack.c.0.s8 %v4901
      %v4903 = vperm.slane %v4897, %v4902
      %v4905 = vunpack.c.l.s4 1983009808
      %v4906 = vunpack.c.0.s8 %v4905
      %v4907 = vperm.slane %v4899, %v4906
      %v4908 = vrot.slane %v4789, 4
      %v4909 = vsel %vm1476, %v4908, %v1226
      %v4910 = vrot.slane %v1226, 4
      %v4911 = vsel %vm1476, %v4789, %v4910
      %v4913 = vunpack.c.l.s4 1983009808
      %v4914 = vunpack.c.0.s8 %v4913
      %v4915 = vperm.slane %v4909, %v4914
      %v4917 = vunpack.c.l.s4 1983009808
      %v4918 = vunpack.c.0.s8 %v4917
      %v4919 = vperm.slane %v4911, %v4918
      %v4920 = vrot.slane %v4807, 4
      %v4921 = vsel %vm1476, %v4920, %v4771
      %v4922 = vrot.slane %v4771, 4
      %v4923 = vsel %vm1476, %v4807, %v4922
      %v4925 = vunpack.c.l.s4 1983009808
      %v4926 = vunpack.c.0.s8 %v4925
      %v4927 = vperm.slane %v4921, %v4926
      %v4929 = vunpack.c.l.s4 1983009808
      %v4930 = vunpack.c.0.s8 %v4929
      %v4931 = vperm.slane %v4923, %v4930
      %v4932 = vrot.slane %v4903, 4
      %v4933 = vsel %vm1476, %v4932, %v4891
      %v4934 = vrot.slane %v4891, 4
      %v4935 = vsel %vm1476, %v4903, %v4934
      %v4937 = vunpack.c.l.s4 1934713408
      %v4938 = vunpack.c.0.s8 %v4937
      %v4939 = vperm.slane %v4933, %v4938
      %v4941 = vunpack.c.l.s4 1934713408
      %v4942 = vunpack.c.0.s8 %v4941
      %v4943 = vperm.slane %v4935, %v4942
      %v4944 = vrot.slane %v4907, 4
      %v4945 = vsel %vm1476, %v4944, %v4895
      %v4946 = vrot.slane %v4895, 4
      %v4947 = vsel %vm1476, %v4907, %v4946
      %v4949 = vunpack.c.l.s4 1934713408
      %v4950 = vunpack.c.0.s8 %v4949
      %v4951 = vperm.slane %v4945, %v4950
      %v4953 = vunpack.c.l.s4 1934713408
      %v4954 = vunpack.c.0.s8 %v4953
      %v4955 = vperm.slane %v4947, %v4954
      %v4956 = vrot.slane %v4927, 4
      %v4957 = vsel %vm1476, %v4956, %v4915
      %v4958 = vrot.slane %v4915, 4
      %v4959 = vsel %vm1476, %v4927, %v4958
      %v4961 = vunpack.c.l.s4 1934713408
      %v4962 = vunpack.c.0.s8 %v4961
      %v4963 = vperm.slane %v4957, %v4962
      %v4965 = vunpack.c.l.s4 1934713408
      %v4966 = vunpack.c.0.s8 %v4965
      %v4967 = vperm.slane %v4959, %v4966
      %v4968 = vrot.slane %v4931, 4
      %v4969 = vsel %vm1476, %v4968, %v4919
      %v4970 = vrot.slane %v4919, 4
      %v4971 = vsel %vm1476, %v4931, %v4970
      %v4973 = vunpack.c.l.s4 1934713408
      %v4974 = vunpack.c.0.s8 %v4973
      %v4975 = vperm.slane %v4969, %v4974
      %v4977 = vunpack.c.l.s4 1934713408
      %v4978 = vunpack.c.0.s8 %v4977
      %v4979 = vperm.slane %v4971, %v4978
      %v4980 = vrot.slane %v4963, 4
      %v4981 = vsel %vm1476, %v4980, %v4939
      %v4982 = vrot.slane %v4939, 4
      %v4983 = vsel %vm1476, %v4963, %v4982
      %v4984 = vrot.slane %v4967, 4
      %v4985 = vsel %vm1476, %v4984, %v4943
      %v4986 = vrot.slane %v4943, 4
      %v4987 = vsel %vm1476, %v4967, %v4986
      %v4988 = vrot.slane %v4975, 4
      %v4989 = vsel %vm1476, %v4988, %v4951
      %v4990 = vrot.slane %v4951, 4
      %v4991 = vsel %vm1476, %v4975, %v4990
      %v4992 = vrot.slane %v4979, 4
      %v4993 = vsel %vm1476, %v4992, %v4955
      %v4994 = vrot.slane %v4955, 4
      %v4995 = vsel %vm1476, %v4979, %v4994
      %v4996 = vrot.slane %v4849, 4
      %v4997 = vsel %vm1476, %v4996, %v1265
      %v4998 = vrot.slane %v1265, 4
      %v4999 = vsel %vm1476, %v4849, %v4998
      %v5001 = vunpack.c.l.s4 1983009808
      %v5002 = vunpack.c.0.s8 %v5001
      %v5003 = vperm.slane %v4997, %v5002
      %v5005 = vunpack.c.l.s4 1983009808
      %v5006 = vunpack.c.0.s8 %v5005
      %v5007 = vperm.slane %v4999, %v5006
      %v5008 = vrot.slane %v4867, 4
      %v5009 = vsel %vm1476, %v5008, %v4831
      %v5010 = vrot.slane %v4831, 4
      %v5011 = vsel %vm1476, %v4867, %v5010
      %v5013 = vunpack.c.l.s4 1983009808
      %v5014 = vunpack.c.0.s8 %v5013
      %v5015 = vperm.slane %v5009, %v5014
      %v5017 = vunpack.c.l.s4 1983009808
      %v5018 = vunpack.c.0.s8 %v5017
      %v5019 = vperm.slane %v5011, %v5018
      %v5020 = vrot.slane %v5015, 4
      %v5021 = vsel %vm1476, %v5020, %v5003
      %v5022 = vrot.slane %v5003, 4
      %v5023 = vsel %vm1476, %v5015, %v5022
      %v5025 = vunpack.c.l.s4 1934713408
      %v5026 = vunpack.c.0.s8 %v5025
      %v5027 = vperm.slane %v5021, %v5026
      %v5029 = vunpack.c.l.s4 1934713408
      %v5030 = vunpack.c.0.s8 %v5029
      %v5031 = vperm.slane %v5023, %v5030
      %v5032 = vrot.slane %v5019, 4
      %v5033 = vsel %vm1476, %v5032, %v5007
      %v5034 = vrot.slane %v5007, 4
      %v5035 = vsel %vm1476, %v5019, %v5034
      %v5037 = vunpack.c.l.s4 1934713408
      %v5038 = vunpack.c.0.s8 %v5037
      %v5039 = vperm.slane %v5033, %v5038
      %v5041 = vunpack.c.l.s4 1934713408
      %v5042 = vunpack.c.0.s8 %v5041
      %v5043 = vperm.slane %v5035, %v5042
      %v5044 = vrot.slane %v5027, 4
      %v5045 = vsel %vm1476, 0.0, %v5044
      %v5046 = vrot.slane %v5031, 4
      %v5047 = vsel %vm1476, 0.0, %v5046
      %v5048 = vrot.slane %v5039, 4
      %v5049 = vsel %vm1476, 0.0, %v5048
      %v5050 = vrot.slane %v5043, 4
      %v5051 = vsel %vm1476, 0.0, %v5050
      %v5052 = vrot.slane %v4731, 4
      %v5053 = vsel %vm1476, %v5052, %v1189
      %v5054 = vrot.slane %v1189, 4
      %v5055 = vsel %vm1476, %v4731, %v5054
      %v5057 = vunpack.c.l.s4 1983009808
      %v5058 = vunpack.c.0.s8 %v5057
      %v5059 = vperm.slane %v5053, %v5058
      %v5061 = vunpack.c.l.s4 1983009808
      %v5062 = vunpack.c.0.s8 %v5061
      %v5063 = vperm.slane %v5055, %v5062
      %v5064 = vrot.slane %v4749, 4
      %v5065 = vsel %vm1476, %v5064, %v4713
      %v5066 = vrot.slane %v4713, 4
      %v5067 = vsel %vm1476, %v4749, %v5066
      %v5069 = vunpack.c.l.s4 1983009808
      %v5070 = vunpack.c.0.s8 %v5069
      %v5071 = vperm.slane %v5065, %v5070
      %v5073 = vunpack.c.l.s4 1983009808
      %v5074 = vunpack.c.0.s8 %v5073
      %v5075 = vperm.slane %v5067, %v5074
      %v5076 = vrot.slane %v4791, 4
      %v5077 = vsel %vm1476, %v5076, %v1228
      %v5078 = vrot.slane %v1228, 4
      %v5079 = vsel %vm1476, %v4791, %v5078
      %v5081 = vunpack.c.l.s4 1983009808
      %v5082 = vunpack.c.0.s8 %v5081
      %v5083 = vperm.slane %v5077, %v5082
      %v5085 = vunpack.c.l.s4 1983009808
      %v5086 = vunpack.c.0.s8 %v5085
      %v5087 = vperm.slane %v5079, %v5086
      %v5088 = vrot.slane %v4809, 4
      %v5089 = vsel %vm1476, %v5088, %v4773
      %v5090 = vrot.slane %v4773, 4
      %v5091 = vsel %vm1476, %v4809, %v5090
      %v5093 = vunpack.c.l.s4 1983009808
      %v5094 = vunpack.c.0.s8 %v5093
      %v5095 = vperm.slane %v5089, %v5094
      %v5097 = vunpack.c.l.s4 1983009808
      %v5098 = vunpack.c.0.s8 %v5097
      %v5099 = vperm.slane %v5091, %v5098
      %v5100 = vrot.slane %v5071, 4
      %v5101 = vsel %vm1476, %v5100, %v5059
      %v5102 = vrot.slane %v5059, 4
      %v5103 = vsel %vm1476, %v5071, %v5102
      %v5105 = vunpack.c.l.s4 1934713408
      %v5106 = vunpack.c.0.s8 %v5105
      %v5107 = vperm.slane %v5101, %v5106
      %v5109 = vunpack.c.l.s4 1934713408
      %v5110 = vunpack.c.0.s8 %v5109
      %v5111 = vperm.slane %v5103, %v5110
      %v5112 = vrot.slane %v5075, 4
      %v5113 = vsel %vm1476, %v5112, %v5063
      %v5114 = vrot.slane %v5063, 4
      %v5115 = vsel %vm1476, %v5075, %v5114
      %v5117 = vunpack.c.l.s4 1934713408
      %v5118 = vunpack.c.0.s8 %v5117
      %v5119 = vperm.slane %v5113, %v5118
      %v5121 = vunpack.c.l.s4 1934713408
      %v5122 = vunpack.c.0.s8 %v5121
      %v5123 = vperm.slane %v5115, %v5122
      %v5124 = vrot.slane %v5095, 4
      %v5125 = vsel %vm1476, %v5124, %v5083
      %v5126 = vrot.slane %v5083, 4
      %v5127 = vsel %vm1476, %v5095, %v5126
      %v5129 = vunpack.c.l.s4 1934713408
      %v5130 = vunpack.c.0.s8 %v5129
      %v5131 = vperm.slane %v5125, %v5130
      %v5133 = vunpack.c.l.s4 1934713408
      %v5134 = vunpack.c.0.s8 %v5133
      %v5135 = vperm.slane %v5127, %v5134
      %v5136 = vrot.slane %v5099, 4
      %v5137 = vsel %vm1476, %v5136, %v5087
      %v5138 = vrot.slane %v5087, 4
      %v5139 = vsel %vm1476, %v5099, %v5138
      %v5141 = vunpack.c.l.s4 1934713408
      %v5142 = vunpack.c.0.s8 %v5141
      %v5143 = vperm.slane %v5137, %v5142
      %v5145 = vunpack.c.l.s4 1934713408
      %v5146 = vunpack.c.0.s8 %v5145
      %v5147 = vperm.slane %v5139, %v5146
      %v5148 = vrot.slane %v5131, 4
      %v5149 = vsel %vm1476, %v5148, %v5107
      %v5150 = vrot.slane %v5107, 4
      %v5151 = vsel %vm1476, %v5131, %v5150
      %v5152 = vrot.slane %v5135, 4
      %v5153 = vsel %vm1476, %v5152, %v5111
      %v5154 = vrot.slane %v5111, 4
      %v5155 = vsel %vm1476, %v5135, %v5154
      %v5156 = vrot.slane %v5143, 4
      %v5157 = vsel %vm1476, %v5156, %v5119
      %v5158 = vrot.slane %v5119, 4
      %v5159 = vsel %vm1476, %v5143, %v5158
      %v5160 = vrot.slane %v5147, 4
      %v5161 = vsel %vm1476, %v5160, %v5123
      %v5162 = vrot.slane %v5123, 4
      %v5163 = vsel %vm1476, %v5147, %v5162
      %v5164 = vrot.slane %v4851, 4
      %v5165 = vsel %vm1476, %v5164, %v1267
      %v5166 = vrot.slane %v1267, 4
      %v5167 = vsel %vm1476, %v4851, %v5166
      %v5169 = vunpack.c.l.s4 1983009808
      %v5170 = vunpack.c.0.s8 %v5169
      %v5171 = vperm.slane %v5165, %v5170
      %v5173 = vunpack.c.l.s4 1983009808
      %v5174 = vunpack.c.0.s8 %v5173
      %v5175 = vperm.slane %v5167, %v5174
      %v5176 = vrot.slane %v4869, 4
      %v5177 = vsel %vm1476, %v5176, %v4833
      %v5178 = vrot.slane %v4833, 4
      %v5179 = vsel %vm1476, %v4869, %v5178
      %v5181 = vunpack.c.l.s4 1983009808
      %v5182 = vunpack.c.0.s8 %v5181
      %v5183 = vperm.slane %v5177, %v5182
      %v5185 = vunpack.c.l.s4 1983009808
      %v5186 = vunpack.c.0.s8 %v5185
      %v5187 = vperm.slane %v5179, %v5186
      %v5188 = vrot.slane %v5183, 4
      %v5189 = vsel %vm1476, %v5188, %v5171
      %v5190 = vrot.slane %v5171, 4
      %v5191 = vsel %vm1476, %v5183, %v5190
      %v5193 = vunpack.c.l.s4 1934713408
      %v5194 = vunpack.c.0.s8 %v5193
      %v5195 = vperm.slane %v5189, %v5194
      %v5197 = vunpack.c.l.s4 1934713408
      %v5198 = vunpack.c.0.s8 %v5197
      %v5199 = vperm.slane %v5191, %v5198
      %v5200 = vrot.slane %v5187, 4
      %v5201 = vsel %vm1476, %v5200, %v5175
      %v5202 = vrot.slane %v5175, 4
      %v5203 = vsel %vm1476, %v5187, %v5202
      %v5205 = vunpack.c.l.s4 1934713408
      %v5206 = vunpack.c.0.s8 %v5205
      %v5207 = vperm.slane %v5201, %v5206
      %v5209 = vunpack.c.l.s4 1934713408
      %v5210 = vunpack.c.0.s8 %v5209
      %v5211 = vperm.slane %v5203, %v5210
      %v5212 = vrot.slane %v5195, 4
      %v5213 = vsel %vm1476, 0.0, %v5212
      %v5214 = vrot.slane %v5199, 4
      %v5215 = vsel %vm1476, 0.0, %v5214
      %v5216 = vrot.slane %v5207, 4
      %v5217 = vsel %vm1476, 0.0, %v5216
      %v5218 = vrot.slane %v5211, 4
      %v5219 = vsel %vm1476, 0.0, %v5218
      %v5220 = vrot.slane %v4733, 4
      %v5221 = vsel %vm1476, %v5220, %v1192
      %v5222 = vrot.slane %v1192, 4
      %v5223 = vsel %vm1476, %v4733, %v5222
      %v5225 = vunpack.c.l.s4 1983009808
      %v5226 = vunpack.c.0.s8 %v5225
      %v5227 = vperm.slane %v5221, %v5226
      %v5229 = vunpack.c.l.s4 1983009808
      %v5230 = vunpack.c.0.s8 %v5229
      %v5231 = vperm.slane %v5223, %v5230
      %v5232 = vrot.slane %v4751, 4
      %v5233 = vsel %vm1476, %v5232, %v4715
      %v5234 = vrot.slane %v4715, 4
      %v5235 = vsel %vm1476, %v4751, %v5234
      %v5237 = vunpack.c.l.s4 1983009808
      %v5238 = vunpack.c.0.s8 %v5237
      %v5239 = vperm.slane %v5233, %v5238
      %v5241 = vunpack.c.l.s4 1983009808
      %v5242 = vunpack.c.0.s8 %v5241
      %v5243 = vperm.slane %v5235, %v5242
      %v5244 = vrot.slane %v4793, 4
      %v5245 = vsel %vm1476, %v5244, %v1231
      %v5246 = vrot.slane %v1231, 4
      %v5247 = vsel %vm1476, %v4793, %v5246
      %v5249 = vunpack.c.l.s4 1983009808
      %v5250 = vunpack.c.0.s8 %v5249
      %v5251 = vperm.slane %v5245, %v5250
      %v5253 = vunpack.c.l.s4 1983009808
      %v5254 = vunpack.c.0.s8 %v5253
      %v5255 = vperm.slane %v5247, %v5254
      %v5256 = vrot.slane %v4811, 4
      %v5257 = vsel %vm1476, %v5256, %v4775
      %v5258 = vrot.slane %v4775, 4
      %v5259 = vsel %vm1476, %v4811, %v5258
      %v5261 = vunpack.c.l.s4 1983009808
      %v5262 = vunpack.c.0.s8 %v5261
      %v5263 = vperm.slane %v5257, %v5262
      %v5265 = vunpack.c.l.s4 1983009808
      %v5266 = vunpack.c.0.s8 %v5265
      %v5267 = vperm.slane %v5259, %v5266
      %v5268 = vrot.slane %v5239, 4
      %v5269 = vsel %vm1476, %v5268, %v5227
      %v5270 = vrot.slane %v5227, 4
      %v5271 = vsel %vm1476, %v5239, %v5270
      %v5273 = vunpack.c.l.s4 1934713408
      %v5274 = vunpack.c.0.s8 %v5273
      %v5275 = vperm.slane %v5269, %v5274
      %v5277 = vunpack.c.l.s4 1934713408
      %v5278 = vunpack.c.0.s8 %v5277
      %v5279 = vperm.slane %v5271, %v5278
      %v5280 = vrot.slane %v5243, 4
      %v5281 = vsel %vm1476, %v5280, %v5231
      %v5282 = vrot.slane %v5231, 4
      %v5283 = vsel %vm1476, %v5243, %v5282
      %v5285 = vunpack.c.l.s4 1934713408
      %v5286 = vunpack.c.0.s8 %v5285
      %v5287 = vperm.slane %v5281, %v5286
      %v5289 = vunpack.c.l.s4 1934713408
      %v5290 = vunpack.c.0.s8 %v5289
      %v5291 = vperm.slane %v5283, %v5290
      %v5292 = vrot.slane %v5263, 4
      %v5293 = vsel %vm1476, %v5292, %v5251
      %v5294 = vrot.slane %v5251, 4
      %v5295 = vsel %vm1476, %v5263, %v5294
      %v5297 = vunpack.c.l.s4 1934713408
      %v5298 = vunpack.c.0.s8 %v5297
      %v5299 = vperm.slane %v5293, %v5298
      %v5301 = vunpack.c.l.s4 1934713408
      %v5302 = vunpack.c.0.s8 %v5301
      %v5303 = vperm.slane %v5295, %v5302
      %v5304 = vrot.slane %v5267, 4
      %v5305 = vsel %vm1476, %v5304, %v5255
      %v5306 = vrot.slane %v5255, 4
      %v5307 = vsel %vm1476, %v5267, %v5306
      %v5309 = vunpack.c.l.s4 1934713408
      %v5310 = vunpack.c.0.s8 %v5309
      %v5311 = vperm.slane %v5305, %v5310
      %v5313 = vunpack.c.l.s4 1934713408
      %v5314 = vunpack.c.0.s8 %v5313
      %v5315 = vperm.slane %v5307, %v5314
      %v5316 = vrot.slane %v5299, 4
      %v5317 = vsel %vm1476, %v5316, %v5275
      %v5318 = vrot.slane %v5275, 4
      %v5319 = vsel %vm1476, %v5299, %v5318
      %v5320 = vrot.slane %v5303, 4
      %v5321 = vsel %vm1476, %v5320, %v5279
      %v5322 = vrot.slane %v5279, 4
      %v5323 = vsel %vm1476, %v5303, %v5322
      %v5324 = vrot.slane %v5311, 4
      %v5325 = vsel %vm1476, %v5324, %v5287
      %v5326 = vrot.slane %v5287, 4
      %v5327 = vsel %vm1476, %v5311, %v5326
      %v5328 = vrot.slane %v5315, 4
      %v5329 = vsel %vm1476, %v5328, %v5291
      %v5330 = vrot.slane %v5291, 4
      %v5331 = vsel %vm1476, %v5315, %v5330
      %v5332 = vrot.slane %v4853, 4
      %v5333 = vsel %vm1476, %v5332, %v1270
      %v5334 = vrot.slane %v1270, 4
      %v5335 = vsel %vm1476, %v4853, %v5334
      %v5337 = vunpack.c.l.s4 1983009808
      %v5338 = vunpack.c.0.s8 %v5337
      %v5339 = vperm.slane %v5333, %v5338
      %v5341 = vunpack.c.l.s4 1983009808
      %v5342 = vunpack.c.0.s8 %v5341
      %v5343 = vperm.slane %v5335, %v5342
      %v5344 = vrot.slane %v4871, 4
      %v5345 = vsel %vm1476, %v5344, %v4835
      %v5346 = vrot.slane %v4835, 4
      %v5347 = vsel %vm1476, %v4871, %v5346
      %v5349 = vunpack.c.l.s4 1983009808
      %v5350 = vunpack.c.0.s8 %v5349
      %v5351 = vperm.slane %v5345, %v5350
      %v5353 = vunpack.c.l.s4 1983009808
      %v5354 = vunpack.c.0.s8 %v5353
      %v5355 = vperm.slane %v5347, %v5354
      %v5356 = vrot.slane %v5351, 4
      %v5357 = vsel %vm1476, %v5356, %v5339
      %v5358 = vrot.slane %v5339, 4
      %v5359 = vsel %vm1476, %v5351, %v5358
      %v5361 = vunpack.c.l.s4 1934713408
      %v5362 = vunpack.c.0.s8 %v5361
      %v5363 = vperm.slane %v5357, %v5362
      %v5365 = vunpack.c.l.s4 1934713408
      %v5366 = vunpack.c.0.s8 %v5365
      %v5367 = vperm.slane %v5359, %v5366
      %v5368 = vrot.slane %v5355, 4
      %v5369 = vsel %vm1476, %v5368, %v5343
      %v5370 = vrot.slane %v5343, 4
      %v5371 = vsel %vm1476, %v5355, %v5370
      %v5373 = vunpack.c.l.s4 1934713408
      %v5374 = vunpack.c.0.s8 %v5373
      %v5375 = vperm.slane %v5369, %v5374
      %v5377 = vunpack.c.l.s4 1934713408
      %v5378 = vunpack.c.0.s8 %v5377
      %v5379 = vperm.slane %v5371, %v5378
      %v5380 = vrot.slane %v5363, 4
      %v5381 = vsel %vm1476, 0.0, %v5380
      %v5382 = vrot.slane %v5367, 4
      %v5383 = vsel %vm1476, 0.0, %v5382
      %v5384 = vrot.slane %v5375, 4
      %v5385 = vsel %vm1476, 0.0, %v5384
      %v5386 = vrot.slane %v5379, 4
      %v5387 = vsel %vm1476, 0.0, %v5386
      %v5388 = vrot.slane %v4735, 4
      %v5389 = vsel %vm1476, %v5388, %v1194
      %v5390 = vrot.slane %v1194, 4
      %v5391 = vsel %vm1476, %v4735, %v5390
      %v5393 = vunpack.c.l.s4 1983009808
      %v5394 = vunpack.c.0.s8 %v5393
      %v5395 = vperm.slane %v5389, %v5394
      %v5397 = vunpack.c.l.s4 1983009808
      %v5398 = vunpack.c.0.s8 %v5397
      %v5399 = vperm.slane %v5391, %v5398
      %v5400 = vrot.slane %v4753, 4
      %v5401 = vsel %vm1476, %v5400, %v4717
      %v5402 = vrot.slane %v4717, 4
      %v5403 = vsel %vm1476, %v4753, %v5402
      %v5405 = vunpack.c.l.s4 1983009808
      %v5406 = vunpack.c.0.s8 %v5405
      %v5407 = vperm.slane %v5401, %v5406
      %v5409 = vunpack.c.l.s4 1983009808
      %v5410 = vunpack.c.0.s8 %v5409
      %v5411 = vperm.slane %v5403, %v5410
      %v5412 = vrot.slane %v4795, 4
      %v5413 = vsel %vm1476, %v5412, %v1233
      %v5414 = vrot.slane %v1233, 4
      %v5415 = vsel %vm1476, %v4795, %v5414
      %v5417 = vunpack.c.l.s4 1983009808
      %v5418 = vunpack.c.0.s8 %v5417
      %v5419 = vperm.slane %v5413, %v5418
      %v5421 = vunpack.c.l.s4 1983009808
      %v5422 = vunpack.c.0.s8 %v5421
      %v5423 = vperm.slane %v5415, %v5422
      %v5424 = vrot.slane %v4813, 4
      %v5425 = vsel %vm1476, %v5424, %v4777
      %v5426 = vrot.slane %v4777, 4
      %v5427 = vsel %vm1476, %v4813, %v5426
      %v5429 = vunpack.c.l.s4 1983009808
      %v5430 = vunpack.c.0.s8 %v5429
      %v5431 = vperm.slane %v5425, %v5430
      %v5433 = vunpack.c.l.s4 1983009808
      %v5434 = vunpack.c.0.s8 %v5433
      %v5435 = vperm.slane %v5427, %v5434
      %v5436 = vrot.slane %v5407, 4
      %v5437 = vsel %vm1476, %v5436, %v5395
      %v5438 = vrot.slane %v5395, 4
      %v5439 = vsel %vm1476, %v5407, %v5438
      %v5441 = vunpack.c.l.s4 1934713408
      %v5442 = vunpack.c.0.s8 %v5441
      %v5443 = vperm.slane %v5437, %v5442
      %v5445 = vunpack.c.l.s4 1934713408
      %v5446 = vunpack.c.0.s8 %v5445
      %v5447 = vperm.slane %v5439, %v5446
      %v5448 = vrot.slane %v5411, 4
      %v5449 = vsel %vm1476, %v5448, %v5399
      %v5450 = vrot.slane %v5399, 4
      %v5451 = vsel %vm1476, %v5411, %v5450
      %v5453 = vunpack.c.l.s4 1934713408
      %v5454 = vunpack.c.0.s8 %v5453
      %v5455 = vperm.slane %v5449, %v5454
      %v5457 = vunpack.c.l.s4 1934713408
      %v5458 = vunpack.c.0.s8 %v5457
      %v5459 = vperm.slane %v5451, %v5458
      %v5460 = vrot.slane %v5431, 4
      %v5461 = vsel %vm1476, %v5460, %v5419
      %v5462 = vrot.slane %v5419, 4
      %v5463 = vsel %vm1476, %v5431, %v5462
      %v5465 = vunpack.c.l.s4 1934713408
      %v5466 = vunpack.c.0.s8 %v5465
      %v5467 = vperm.slane %v5461, %v5466
      %v5469 = vunpack.c.l.s4 1934713408
      %v5470 = vunpack.c.0.s8 %v5469
      %v5471 = vperm.slane %v5463, %v5470
      %v5472 = vrot.slane %v5435, 4
      %v5473 = vsel %vm1476, %v5472, %v5423
      %v5474 = vrot.slane %v5423, 4
      %v5475 = vsel %vm1476, %v5435, %v5474
      %v5477 = vunpack.c.l.s4 1934713408
      %v5478 = vunpack.c.0.s8 %v5477
      %v5479 = vperm.slane %v5473, %v5478
      %v5481 = vunpack.c.l.s4 1934713408
      %v5482 = vunpack.c.0.s8 %v5481
      %v5483 = vperm.slane %v5475, %v5482
      %v5484 = vrot.slane %v5467, 4
      %v5485 = vsel %vm1476, %v5484, %v5443
      %v5486 = vrot.slane %v5443, 4
      %v5487 = vsel %vm1476, %v5467, %v5486
      %v5488 = vrot.slane %v5471, 4
      %v5489 = vsel %vm1476, %v5488, %v5447
      %v5490 = vrot.slane %v5447, 4
      %v5491 = vsel %vm1476, %v5471, %v5490
      %v5492 = vrot.slane %v5479, 4
      %v5493 = vsel %vm1476, %v5492, %v5455
      %v5494 = vrot.slane %v5455, 4
      %v5495 = vsel %vm1476, %v5479, %v5494
      %v5496 = vrot.slane %v5483, 4
      %v5497 = vsel %vm1476, %v5496, %v5459
      %v5498 = vrot.slane %v5459, 4
      %v5499 = vsel %vm1476, %v5483, %v5498
      %v5500 = vrot.slane %v4855, 4
      %v5501 = vsel %vm1476, %v5500, %v1272
      %v5502 = vrot.slane %v1272, 4
      %v5503 = vsel %vm1476, %v4855, %v5502
      %v5505 = vunpack.c.l.s4 1983009808
      %v5506 = vunpack.c.0.s8 %v5505
      %v5507 = vperm.slane %v5501, %v5506
      %v5509 = vunpack.c.l.s4 1983009808
      %v5510 = vunpack.c.0.s8 %v5509
      %v5511 = vperm.slane %v5503, %v5510
      %v5512 = vrot.slane %v4873, 4
      %v5513 = vsel %vm1476, %v5512, %v4837
      %v5514 = vrot.slane %v4837, 4
      %v5515 = vsel %vm1476, %v4873, %v5514
      %v5517 = vunpack.c.l.s4 1983009808
      %v5518 = vunpack.c.0.s8 %v5517
      %v5519 = vperm.slane %v5513, %v5518
      %v5521 = vunpack.c.l.s4 1983009808
      %v5522 = vunpack.c.0.s8 %v5521
      %v5523 = vperm.slane %v5515, %v5522
      %v5524 = vrot.slane %v5519, 4
      %v5525 = vsel %vm1476, %v5524, %v5507
      %v5526 = vrot.slane %v5507, 4
      %v5527 = vsel %vm1476, %v5519, %v5526
      %v5529 = vunpack.c.l.s4 1934713408
      %v5530 = vunpack.c.0.s8 %v5529
      %v5531 = vperm.slane %v5525, %v5530
      %v5533 = vunpack.c.l.s4 1934713408
      %v5534 = vunpack.c.0.s8 %v5533
      %v5535 = vperm.slane %v5527, %v5534
      %v5536 = vrot.slane %v5523, 4
      %v5537 = vsel %vm1476, %v5536, %v5511
      %v5538 = vrot.slane %v5511, 4
      %v5539 = vsel %vm1476, %v5523, %v5538
      %v5541 = vunpack.c.l.s4 1934713408
      %v5542 = vunpack.c.0.s8 %v5541
      %v5543 = vperm.slane %v5537, %v5542
      %v5545 = vunpack.c.l.s4 1934713408
      %v5546 = vunpack.c.0.s8 %v5545
      %v5547 = vperm.slane %v5539, %v5546
      %v5548 = vrot.slane %v5531, 4
      %v5549 = vsel %vm1476, 0.0, %v5548
      %v5550 = vrot.slane %v5535, 4
      %v5551 = vsel %vm1476, 0.0, %v5550
      %v5552 = vrot.slane %v5543, 4
      %v5553 = vsel %vm1476, 0.0, %v5552
      %v5554 = vrot.slane %v5547, 4
      %v5555 = vsel %vm1476, 0.0, %v5554
      %v5556 = vrot.slane %v4737, 4
      %v5557 = vsel %vm1476, %v5556, %v1197
      %v5558 = vrot.slane %v1197, 4
      %v5559 = vsel %vm1476, %v4737, %v5558
      %v5561 = vunpack.c.l.s4 1983009808
      %v5562 = vunpack.c.0.s8 %v5561
      %v5563 = vperm.slane %v5557, %v5562
      %v5565 = vunpack.c.l.s4 1983009808
      %v5566 = vunpack.c.0.s8 %v5565
      %v5567 = vperm.slane %v5559, %v5566
      %v5568 = vrot.slane %v4755, 4
      %v5569 = vsel %vm1476, %v5568, %v4719
      %v5570 = vrot.slane %v4719, 4
      %v5571 = vsel %vm1476, %v4755, %v5570
      %v5573 = vunpack.c.l.s4 1983009808
      %v5574 = vunpack.c.0.s8 %v5573
      %v5575 = vperm.slane %v5569, %v5574
      %v5577 = vunpack.c.l.s4 1983009808
      %v5578 = vunpack.c.0.s8 %v5577
      %v5579 = vperm.slane %v5571, %v5578
      %v5580 = vrot.slane %v4797, 4
      %v5581 = vsel %vm1476, %v5580, %v1236
      %v5582 = vrot.slane %v1236, 4
      %v5583 = vsel %vm1476, %v4797, %v5582
      %v5585 = vunpack.c.l.s4 1983009808
      %v5586 = vunpack.c.0.s8 %v5585
      %v5587 = vperm.slane %v5581, %v5586
      %v5589 = vunpack.c.l.s4 1983009808
      %v5590 = vunpack.c.0.s8 %v5589
      %v5591 = vperm.slane %v5583, %v5590
      %v5592 = vrot.slane %v4815, 4
      %v5593 = vsel %vm1476, %v5592, %v4779
      %v5594 = vrot.slane %v4779, 4
      %v5595 = vsel %vm1476, %v4815, %v5594
      %v5597 = vunpack.c.l.s4 1983009808
      %v5598 = vunpack.c.0.s8 %v5597
      %v5599 = vperm.slane %v5593, %v5598
      %v5601 = vunpack.c.l.s4 1983009808
      %v5602 = vunpack.c.0.s8 %v5601
      %v5603 = vperm.slane %v5595, %v5602
      %v5604 = vrot.slane %v5575, 4
      %v5605 = vsel %vm1476, %v5604, %v5563
      %v5606 = vrot.slane %v5563, 4
      %v5607 = vsel %vm1476, %v5575, %v5606
      %v5609 = vunpack.c.l.s4 1934713408
      %v5610 = vunpack.c.0.s8 %v5609
      %v5611 = vperm.slane %v5605, %v5610
      %v5613 = vunpack.c.l.s4 1934713408
      %v5614 = vunpack.c.0.s8 %v5613
      %v5615 = vperm.slane %v5607, %v5614
      %v5616 = vrot.slane %v5579, 4
      %v5617 = vsel %vm1476, %v5616, %v5567
      %v5618 = vrot.slane %v5567, 4
      %v5619 = vsel %vm1476, %v5579, %v5618
      %v5621 = vunpack.c.l.s4 1934713408
      %v5622 = vunpack.c.0.s8 %v5621
      %v5623 = vperm.slane %v5617, %v5622
      %v5625 = vunpack.c.l.s4 1934713408
      %v5626 = vunpack.c.0.s8 %v5625
      %v5627 = vperm.slane %v5619, %v5626
      %v5628 = vrot.slane %v5599, 4
      %v5629 = vsel %vm1476, %v5628, %v5587
      %v5630 = vrot.slane %v5587, 4
      %v5631 = vsel %vm1476, %v5599, %v5630
      %v5633 = vunpack.c.l.s4 1934713408
      %v5634 = vunpack.c.0.s8 %v5633
      %v5635 = vperm.slane %v5629, %v5634
      %v5637 = vunpack.c.l.s4 1934713408
      %v5638 = vunpack.c.0.s8 %v5637
      %v5639 = vperm.slane %v5631, %v5638
      %v5640 = vrot.slane %v5603, 4
      %v5641 = vsel %vm1476, %v5640, %v5591
      %v5642 = vrot.slane %v5591, 4
      %v5643 = vsel %vm1476, %v5603, %v5642
      %v5645 = vunpack.c.l.s4 1934713408
      %v5646 = vunpack.c.0.s8 %v5645
      %v5647 = vperm.slane %v5641, %v5646
      %v5649 = vunpack.c.l.s4 1934713408
      %v5650 = vunpack.c.0.s8 %v5649
      %v5651 = vperm.slane %v5643, %v5650
      %v5652 = vrot.slane %v5635, 4
      %v5653 = vsel %vm1476, %v5652, %v5611
      %v5654 = vrot.slane %v5611, 4
      %v5655 = vsel %vm1476, %v5635, %v5654
      %v5656 = vrot.slane %v5639, 4
      %v5657 = vsel %vm1476, %v5656, %v5615
      %v5658 = vrot.slane %v5615, 4
      %v5659 = vsel %vm1476, %v5639, %v5658
      %v5660 = vrot.slane %v5647, 4
      %v5661 = vsel %vm1476, %v5660, %v5623
      %v5662 = vrot.slane %v5623, 4
      %v5663 = vsel %vm1476, %v5647, %v5662
      %v5664 = vrot.slane %v5651, 4
      %v5665 = vsel %vm1476, %v5664, %v5627
      %v5666 = vrot.slane %v5627, 4
      %v5667 = vsel %vm1476, %v5651, %v5666
      %v5668 = vrot.slane %v4857, 4
      %v5669 = vsel %vm1476, %v5668, %v1275
      %v5670 = vrot.slane %v1275, 4
      %v5671 = vsel %vm1476, %v4857, %v5670
      %v5673 = vunpack.c.l.s4 1983009808
      %v5674 = vunpack.c.0.s8 %v5673
      %v5675 = vperm.slane %v5669, %v5674
      %v5677 = vunpack.c.l.s4 1983009808
      %v5678 = vunpack.c.0.s8 %v5677
      %v5679 = vperm.slane %v5671, %v5678
      %v5680 = vrot.slane %v4875, 4
      %v5681 = vsel %vm1476, %v5680, %v4839
      %v5682 = vrot.slane %v4839, 4
      %v5683 = vsel %vm1476, %v4875, %v5682
      %v5685 = vunpack.c.l.s4 1983009808
      %v5686 = vunpack.c.0.s8 %v5685
      %v5687 = vperm.slane %v5681, %v5686
      %v5689 = vunpack.c.l.s4 1983009808
      %v5690 = vunpack.c.0.s8 %v5689
      %v5691 = vperm.slane %v5683, %v5690
      %v5692 = vrot.slane %v5687, 4
      %v5693 = vsel %vm1476, %v5692, %v5675
      %v5694 = vrot.slane %v5675, 4
      %v5695 = vsel %vm1476, %v5687, %v5694
      %v5697 = vunpack.c.l.s4 1934713408
      %v5698 = vunpack.c.0.s8 %v5697
      %v5699 = vperm.slane %v5693, %v5698
      %v5701 = vunpack.c.l.s4 1934713408
      %v5702 = vunpack.c.0.s8 %v5701
      %v5703 = vperm.slane %v5695, %v5702
      %v5704 = vrot.slane %v5691, 4
      %v5705 = vsel %vm1476, %v5704, %v5679
      %v5706 = vrot.slane %v5679, 4
      %v5707 = vsel %vm1476, %v5691, %v5706
      %v5709 = vunpack.c.l.s4 1934713408
      %v5710 = vunpack.c.0.s8 %v5709
      %v5711 = vperm.slane %v5705, %v5710
      %v5713 = vunpack.c.l.s4 1934713408
      %v5714 = vunpack.c.0.s8 %v5713
      %v5715 = vperm.slane %v5707, %v5714
      %v5716 = vrot.slane %v5699, 4
      %v5717 = vsel %vm1476, 0.0, %v5716
      %v5718 = vrot.slane %v5703, 4
      %v5719 = vsel %vm1476, 0.0, %v5718
      %v5720 = vrot.slane %v5711, 4
      %v5721 = vsel %vm1476, 0.0, %v5720
      %v5722 = vrot.slane %v5715, 4
      %v5723 = vsel %vm1476, 0.0, %v5722
      %v5724 = vrot.slane %v4739, 4
      %v5725 = vsel %vm1476, %v5724, %v1199
      %v5726 = vrot.slane %v1199, 4
      %v5727 = vsel %vm1476, %v4739, %v5726
      %v5729 = vunpack.c.l.s4 1983009808
      %v5730 = vunpack.c.0.s8 %v5729
      %v5731 = vperm.slane %v5725, %v5730
      %v5733 = vunpack.c.l.s4 1983009808
      %v5734 = vunpack.c.0.s8 %v5733
      %v5735 = vperm.slane %v5727, %v5734
      %v5736 = vrot.slane %v4757, 4
      %v5737 = vsel %vm1476, %v5736, %v4721
      %v5738 = vrot.slane %v4721, 4
      %v5739 = vsel %vm1476, %v4757, %v5738
      %v5741 = vunpack.c.l.s4 1983009808
      %v5742 = vunpack.c.0.s8 %v5741
      %v5743 = vperm.slane %v5737, %v5742
      %v5745 = vunpack.c.l.s4 1983009808
      %v5746 = vunpack.c.0.s8 %v5745
      %v5747 = vperm.slane %v5739, %v5746
      %v5748 = vrot.slane %v4799, 4
      %v5749 = vsel %vm1476, %v5748, %v1238
      %v5750 = vrot.slane %v1238, 4
      %v5751 = vsel %vm1476, %v4799, %v5750
      %v5753 = vunpack.c.l.s4 1983009808
      %v5754 = vunpack.c.0.s8 %v5753
      %v5755 = vperm.slane %v5749, %v5754
      %v5757 = vunpack.c.l.s4 1983009808
      %v5758 = vunpack.c.0.s8 %v5757
      %v5759 = vperm.slane %v5751, %v5758
      %v5760 = vrot.slane %v4817, 4
      %v5761 = vsel %vm1476, %v5760, %v4781
      %v5762 = vrot.slane %v4781, 4
      %v5763 = vsel %vm1476, %v4817, %v5762
      %v5765 = vunpack.c.l.s4 1983009808
      %v5766 = vunpack.c.0.s8 %v5765
      %v5767 = vperm.slane %v5761, %v5766
      %v5769 = vunpack.c.l.s4 1983009808
      %v5770 = vunpack.c.0.s8 %v5769
      %v5771 = vperm.slane %v5763, %v5770
      %v5772 = vrot.slane %v5743, 4
      %v5773 = vsel %vm1476, %v5772, %v5731
      %v5774 = vrot.slane %v5731, 4
      %v5775 = vsel %vm1476, %v5743, %v5774
      %v5777 = vunpack.c.l.s4 1934713408
      %v5778 = vunpack.c.0.s8 %v5777
      %v5779 = vperm.slane %v5773, %v5778
      %v5781 = vunpack.c.l.s4 1934713408
      %v5782 = vunpack.c.0.s8 %v5781
      %v5783 = vperm.slane %v5775, %v5782
      %v5784 = vrot.slane %v5747, 4
      %v5785 = vsel %vm1476, %v5784, %v5735
      %v5786 = vrot.slane %v5735, 4
      %v5787 = vsel %vm1476, %v5747, %v5786
      %v5789 = vunpack.c.l.s4 1934713408
      %v5790 = vunpack.c.0.s8 %v5789
      %v5791 = vperm.slane %v5785, %v5790
      %v5793 = vunpack.c.l.s4 1934713408
      %v5794 = vunpack.c.0.s8 %v5793
      %v5795 = vperm.slane %v5787, %v5794
      %v5796 = vrot.slane %v5767, 4
      %v5797 = vsel %vm1476, %v5796, %v5755
      %v5798 = vrot.slane %v5755, 4
      %v5799 = vsel %vm1476, %v5767, %v5798
      %v5801 = vunpack.c.l.s4 1934713408
      %v5802 = vunpack.c.0.s8 %v5801
      %v5803 = vperm.slane %v5797, %v5802
      %v5805 = vunpack.c.l.s4 1934713408
      %v5806 = vunpack.c.0.s8 %v5805
      %v5807 = vperm.slane %v5799, %v5806
      %v5808 = vrot.slane %v5771, 4
      %v5809 = vsel %vm1476, %v5808, %v5759
      %v5810 = vrot.slane %v5759, 4
      %v5811 = vsel %vm1476, %v5771, %v5810
      %v5813 = vunpack.c.l.s4 1934713408
      %v5814 = vunpack.c.0.s8 %v5813
      %v5815 = vperm.slane %v5809, %v5814
      %v5817 = vunpack.c.l.s4 1934713408
      %v5818 = vunpack.c.0.s8 %v5817
      %v5819 = vperm.slane %v5811, %v5818
      %v5820 = vrot.slane %v5803, 4
      %v5821 = vsel %vm1476, %v5820, %v5779
      %v5822 = vrot.slane %v5779, 4
      %v5823 = vsel %vm1476, %v5803, %v5822
      %v5824 = vrot.slane %v5807, 4
      %v5825 = vsel %vm1476, %v5824, %v5783
      %v5826 = vrot.slane %v5783, 4
      %v5827 = vsel %vm1476, %v5807, %v5826
      %v5828 = vrot.slane %v5815, 4
      %v5829 = vsel %vm1476, %v5828, %v5791
      %v5830 = vrot.slane %v5791, 4
      %v5831 = vsel %vm1476, %v5815, %v5830
      %v5832 = vrot.slane %v5819, 4
      %v5833 = vsel %vm1476, %v5832, %v5795
      %v5834 = vrot.slane %v5795, 4
      %v5835 = vsel %vm1476, %v5819, %v5834
      %v5836 = vrot.slane %v4859, 4
      %v5837 = vsel %vm1476, %v5836, %v1277
      %v5838 = vrot.slane %v1277, 4
      %v5839 = vsel %vm1476, %v4859, %v5838
      %v5841 = vunpack.c.l.s4 1983009808
      %v5842 = vunpack.c.0.s8 %v5841
      %v5843 = vperm.slane %v5837, %v5842
      %v5845 = vunpack.c.l.s4 1983009808
      %v5846 = vunpack.c.0.s8 %v5845
      %v5847 = vperm.slane %v5839, %v5846
      %v5848 = vrot.slane %v4877, 4
      %v5849 = vsel %vm1476, %v5848, %v4841
      %v5850 = vrot.slane %v4841, 4
      %v5851 = vsel %vm1476, %v4877, %v5850
      %v5853 = vunpack.c.l.s4 1983009808
      %v5854 = vunpack.c.0.s8 %v5853
      %v5855 = vperm.slane %v5849, %v5854
      %v5857 = vunpack.c.l.s4 1983009808
      %v5858 = vunpack.c.0.s8 %v5857
      %v5859 = vperm.slane %v5851, %v5858
      %v5860 = vrot.slane %v5855, 4
      %v5861 = vsel %vm1476, %v5860, %v5843
      %v5862 = vrot.slane %v5843, 4
      %v5863 = vsel %vm1476, %v5855, %v5862
      %v5865 = vunpack.c.l.s4 1934713408
      %v5866 = vunpack.c.0.s8 %v5865
      %v5867 = vperm.slane %v5861, %v5866
      %v5869 = vunpack.c.l.s4 1934713408
      %v5870 = vunpack.c.0.s8 %v5869
      %v5871 = vperm.slane %v5863, %v5870
      %v5872 = vrot.slane %v5859, 4
      %v5873 = vsel %vm1476, %v5872, %v5847
      %v5874 = vrot.slane %v5847, 4
      %v5875 = vsel %vm1476, %v5859, %v5874
      %v5877 = vunpack.c.l.s4 1934713408
      %v5878 = vunpack.c.0.s8 %v5877
      %v5879 = vperm.slane %v5873, %v5878
      %v5881 = vunpack.c.l.s4 1934713408
      %v5882 = vunpack.c.0.s8 %v5881
      %v5883 = vperm.slane %v5875, %v5882
      %v5884 = vrot.slane %v5867, 4
      %v5885 = vsel %vm1476, 0.0, %v5884
      %v5886 = vrot.slane %v5871, 4
      %v5887 = vsel %vm1476, 0.0, %v5886
      %v5888 = vrot.slane %v5879, 4
      %v5889 = vsel %vm1476, 0.0, %v5888
      %v5890 = vrot.slane %v5883, 4
      %v5891 = vsel %vm1476, 0.0, %v5890
      %v5892 = vrot.slane %v4985, 4
      %v5893 = vsel %vm1476, %v5892, %v4981
      %v5894 = vrot.slane %v4981, 4
      %v5895 = vsel %vm1476, %v4985, %v5894
      %v5897 = vunpack.c.l.s4 1983009808
      %v5898 = vunpack.c.0.s8 %v5897
      %v5899 = vperm.slane %v5893, %v5898
      %v5901 = vunpack.c.l.s4 1983009808
      %v5902 = vunpack.c.0.s8 %v5901
      %v5903 = vperm.slane %v5895, %v5902
      %v5904 = vrot.slane %v4987, 4
      %v5905 = vsel %vm1476, %v5904, %v4983
      %v5906 = vrot.slane %v4983, 4
      %v5907 = vsel %vm1476, %v4987, %v5906
      %v5909 = vunpack.c.l.s4 1983009808
      %v5910 = vunpack.c.0.s8 %v5909
      %v5911 = vperm.slane %v5905, %v5910
      %v5913 = vunpack.c.l.s4 1983009808
      %v5914 = vunpack.c.0.s8 %v5913
      %v5915 = vperm.slane %v5907, %v5914
      %v5916 = vrot.slane %v4993, 4
      %v5917 = vsel %vm1476, %v5916, %v4989
      %v5918 = vrot.slane %v4989, 4
      %v5919 = vsel %vm1476, %v4993, %v5918
      %v5921 = vunpack.c.l.s4 1983009808
      %v5922 = vunpack.c.0.s8 %v5921
      %v5923 = vperm.slane %v5917, %v5922
      %v5925 = vunpack.c.l.s4 1983009808
      %v5926 = vunpack.c.0.s8 %v5925
      %v5927 = vperm.slane %v5919, %v5926
      %v5928 = vrot.slane %v4995, 4
      %v5929 = vsel %vm1476, %v5928, %v4991
      %v5930 = vrot.slane %v4991, 4
      %v5931 = vsel %vm1476, %v4995, %v5930
      %v5933 = vunpack.c.l.s4 1983009808
      %v5934 = vunpack.c.0.s8 %v5933
      %v5935 = vperm.slane %v5929, %v5934
      %v5937 = vunpack.c.l.s4 1983009808
      %v5938 = vunpack.c.0.s8 %v5937
      %v5939 = vperm.slane %v5931, %v5938
      %v5940 = vrot.slane %v5911, 4
      %v5941 = vsel %vm1476, %v5940, %v5899
      %v5942 = vrot.slane %v5899, 4
      %v5943 = vsel %vm1476, %v5911, %v5942
      %v5945 = vunpack.c.l.s4 1934713408
      %v5946 = vunpack.c.0.s8 %v5945
      %v5947 = vperm.slane %v5941, %v5946
      %v5949 = vunpack.c.l.s4 1934713408
      %v5950 = vunpack.c.0.s8 %v5949
      %v5951 = vperm.slane %v5943, %v5950
      %v5952 = vrot.slane %v5915, 4
      %v5953 = vsel %vm1476, %v5952, %v5903
      %v5954 = vrot.slane %v5903, 4
      %v5955 = vsel %vm1476, %v5915, %v5954
      %v5957 = vunpack.c.l.s4 1934713408
      %v5958 = vunpack.c.0.s8 %v5957
      %v5959 = vperm.slane %v5953, %v5958
      %v5961 = vunpack.c.l.s4 1934713408
      %v5962 = vunpack.c.0.s8 %v5961
      %v5963 = vperm.slane %v5955, %v5962
      %v5964 = vrot.slane %v5935, 4
      %v5965 = vsel %vm1476, %v5964, %v5923
      %v5966 = vrot.slane %v5923, 4
      %v5967 = vsel %vm1476, %v5935, %v5966
      %v5969 = vunpack.c.l.s4 1934713408
      %v5970 = vunpack.c.0.s8 %v5969
      %v5971 = vperm.slane %v5965, %v5970
      %v5973 = vunpack.c.l.s4 1934713408
      %v5974 = vunpack.c.0.s8 %v5973
      %v5975 = vperm.slane %v5967, %v5974
      %v5976 = vrot.slane %v5939, 4
      %v5977 = vsel %vm1476, %v5976, %v5927
      %v5978 = vrot.slane %v5927, 4
      %v5979 = vsel %vm1476, %v5939, %v5978
      %v5981 = vunpack.c.l.s4 1934713408
      %v5982 = vunpack.c.0.s8 %v5981
      %v5983 = vperm.slane %v5977, %v5982
      %v5985 = vunpack.c.l.s4 1934713408
      %v5986 = vunpack.c.0.s8 %v5985
      %v5987 = vperm.slane %v5979, %v5986
      %v5988 = vrot.slane %v5971, 4
      %v5989 = vsel %vm1476, %v5988, %v5947
      %v5990 = vrot.slane %v5947, 4
      %v5991 = vsel %vm1476, %v5971, %v5990
      %v5992 = vrot.slane %v5975, 4
      %v5993 = vsel %vm1476, %v5992, %v5951
      %v5994 = vrot.slane %v5951, 4
      %v5995 = vsel %vm1476, %v5975, %v5994
      %v5996 = vrot.slane %v5983, 4
      %v5997 = vsel %vm1476, %v5996, %v5959
      %v5998 = vrot.slane %v5959, 4
      %v5999 = vsel %vm1476, %v5983, %v5998
      %v6000 = vrot.slane %v5987, 4
      %v6001 = vsel %vm1476, %v6000, %v5963
      %v6002 = vrot.slane %v5963, 4
      %v6003 = vsel %vm1476, %v5987, %v6002
      %v6004 = vrot.slane %v5153, 4
      %v6005 = vsel %vm1476, %v6004, %v5149
      %v6006 = vrot.slane %v5149, 4
      %v6007 = vsel %vm1476, %v5153, %v6006
      %v6009 = vunpack.c.l.s4 1983009808
      %v6010 = vunpack.c.0.s8 %v6009
      %v6011 = vperm.slane %v6005, %v6010
      %v6013 = vunpack.c.l.s4 1983009808
      %v6014 = vunpack.c.0.s8 %v6013
      %v6015 = vperm.slane %v6007, %v6014
      %v6016 = vrot.slane %v5155, 4
      %v6017 = vsel %vm1476, %v6016, %v5151
      %v6018 = vrot.slane %v5151, 4
      %v6019 = vsel %vm1476, %v5155, %v6018
      %v6021 = vunpack.c.l.s4 1983009808
      %v6022 = vunpack.c.0.s8 %v6021
      %v6023 = vperm.slane %v6017, %v6022
      %v6025 = vunpack.c.l.s4 1983009808
      %v6026 = vunpack.c.0.s8 %v6025
      %v6027 = vperm.slane %v6019, %v6026
      %v6028 = vrot.slane %v5161, 4
      %v6029 = vsel %vm1476, %v6028, %v5157
      %v6030 = vrot.slane %v5157, 4
      %v6031 = vsel %vm1476, %v5161, %v6030
      %v6033 = vunpack.c.l.s4 1983009808
      %v6034 = vunpack.c.0.s8 %v6033
      %v6035 = vperm.slane %v6029, %v6034
      %v6037 = vunpack.c.l.s4 1983009808
      %v6038 = vunpack.c.0.s8 %v6037
      %v6039 = vperm.slane %v6031, %v6038
      %v6040 = vrot.slane %v5163, 4
      %v6041 = vsel %vm1476, %v6040, %v5159
      %v6042 = vrot.slane %v5159, 4
      %v6043 = vsel %vm1476, %v5163, %v6042
      %v6045 = vunpack.c.l.s4 1983009808
      %v6046 = vunpack.c.0.s8 %v6045
      %v6047 = vperm.slane %v6041, %v6046
      %v6049 = vunpack.c.l.s4 1983009808
      %v6050 = vunpack.c.0.s8 %v6049
      %v6051 = vperm.slane %v6043, %v6050
      %v6052 = vrot.slane %v6023, 4
      %v6053 = vsel %vm1476, %v6052, %v6011
      %v6054 = vrot.slane %v6011, 4
      %v6055 = vsel %vm1476, %v6023, %v6054
      %v6057 = vunpack.c.l.s4 1934713408
      %v6058 = vunpack.c.0.s8 %v6057
      %v6059 = vperm.slane %v6053, %v6058
      %v6061 = vunpack.c.l.s4 1934713408
      %v6062 = vunpack.c.0.s8 %v6061
      %v6063 = vperm.slane %v6055, %v6062
      %v6064 = vrot.slane %v6027, 4
      %v6065 = vsel %vm1476, %v6064, %v6015
      %v6066 = vrot.slane %v6015, 4
      %v6067 = vsel %vm1476, %v6027, %v6066
      %v6069 = vunpack.c.l.s4 1934713408
      %v6070 = vunpack.c.0.s8 %v6069
      %v6071 = vperm.slane %v6065, %v6070
      %v6073 = vunpack.c.l.s4 1934713408
      %v6074 = vunpack.c.0.s8 %v6073
      %v6075 = vperm.slane %v6067, %v6074
      %v6076 = vrot.slane %v6047, 4
      %v6077 = vsel %vm1476, %v6076, %v6035
      %v6078 = vrot.slane %v6035, 4
      %v6079 = vsel %vm1476, %v6047, %v6078
      %v6081 = vunpack.c.l.s4 1934713408
      %v6082 = vunpack.c.0.s8 %v6081
      %v6083 = vperm.slane %v6077, %v6082
      %v6085 = vunpack.c.l.s4 1934713408
      %v6086 = vunpack.c.0.s8 %v6085
      %v6087 = vperm.slane %v6079, %v6086
      %v6088 = vrot.slane %v6051, 4
      %v6089 = vsel %vm1476, %v6088, %v6039
      %v6090 = vrot.slane %v6039, 4
      %v6091 = vsel %vm1476, %v6051, %v6090
      %v6093 = vunpack.c.l.s4 1934713408
      %v6094 = vunpack.c.0.s8 %v6093
      %v6095 = vperm.slane %v6089, %v6094
      %v6097 = vunpack.c.l.s4 1934713408
      %v6098 = vunpack.c.0.s8 %v6097
      %v6099 = vperm.slane %v6091, %v6098
      %v6100 = vrot.slane %v6083, 4
      %v6101 = vsel %vm1476, %v6100, %v6059
      %v6102 = vrot.slane %v6059, 4
      %v6103 = vsel %vm1476, %v6083, %v6102
      %v6104 = vrot.slane %v6087, 4
      %v6105 = vsel %vm1476, %v6104, %v6063
      %v6106 = vrot.slane %v6063, 4
      %v6107 = vsel %vm1476, %v6087, %v6106
      %v6108 = vrot.slane %v6095, 4
      %v6109 = vsel %vm1476, %v6108, %v6071
      %v6110 = vrot.slane %v6071, 4
      %v6111 = vsel %vm1476, %v6095, %v6110
      %v6112 = vrot.slane %v6099, 4
      %v6113 = vsel %vm1476, %v6112, %v6075
      %v6114 = vrot.slane %v6075, 4
      %v6115 = vsel %vm1476, %v6099, %v6114
      %v6116 = vrot.slane %v5321, 4
      %v6117 = vsel %vm1476, %v6116, %v5317
      %v6118 = vrot.slane %v5317, 4
      %v6119 = vsel %vm1476, %v5321, %v6118
      %v6121 = vunpack.c.l.s4 1983009808
      %v6122 = vunpack.c.0.s8 %v6121
      %v6123 = vperm.slane %v6117, %v6122
      %v6125 = vunpack.c.l.s4 1983009808
      %v6126 = vunpack.c.0.s8 %v6125
      %v6127 = vperm.slane %v6119, %v6126
      %v6128 = vrot.slane %v5323, 4
      %v6129 = vsel %vm1476, %v6128, %v5319
      %v6130 = vrot.slane %v5319, 4
      %v6131 = vsel %vm1476, %v5323, %v6130
      %v6133 = vunpack.c.l.s4 1983009808
      %v6134 = vunpack.c.0.s8 %v6133
      %v6135 = vperm.slane %v6129, %v6134
      %v6137 = vunpack.c.l.s4 1983009808
      %v6138 = vunpack.c.0.s8 %v6137
      %v6139 = vperm.slane %v6131, %v6138
      %v6140 = vrot.slane %v5329, 4
      %v6141 = vsel %vm1476, %v6140, %v5325
      %v6142 = vrot.slane %v5325, 4
      %v6143 = vsel %vm1476, %v5329, %v6142
      %v6145 = vunpack.c.l.s4 1983009808
      %v6146 = vunpack.c.0.s8 %v6145
      %v6147 = vperm.slane %v6141, %v6146
      %v6149 = vunpack.c.l.s4 1983009808
      %v6150 = vunpack.c.0.s8 %v6149
      %v6151 = vperm.slane %v6143, %v6150
      %v6152 = vrot.slane %v5331, 4
      %v6153 = vsel %vm1476, %v6152, %v5327
      %v6154 = vrot.slane %v5327, 4
      %v6155 = vsel %vm1476, %v5331, %v6154
      %v6157 = vunpack.c.l.s4 1983009808
      %v6158 = vunpack.c.0.s8 %v6157
      %v6159 = vperm.slane %v6153, %v6158
      %v6161 = vunpack.c.l.s4 1983009808
      %v6162 = vunpack.c.0.s8 %v6161
      %v6163 = vperm.slane %v6155, %v6162
      %v6164 = vrot.slane %v6135, 4
      %v6165 = vsel %vm1476, %v6164, %v6123
      %v6166 = vrot.slane %v6123, 4
      %v6167 = vsel %vm1476, %v6135, %v6166
      %v6169 = vunpack.c.l.s4 1934713408
      %v6170 = vunpack.c.0.s8 %v6169
      %v6171 = vperm.slane %v6165, %v6170
      %v6173 = vunpack.c.l.s4 1934713408
      %v6174 = vunpack.c.0.s8 %v6173
      %v6175 = vperm.slane %v6167, %v6174
      %v6176 = vrot.slane %v6139, 4
      %v6177 = vsel %vm1476, %v6176, %v6127
      %v6178 = vrot.slane %v6127, 4
      %v6179 = vsel %vm1476, %v6139, %v6178
      %v6181 = vunpack.c.l.s4 1934713408
      %v6182 = vunpack.c.0.s8 %v6181
      %v6183 = vperm.slane %v6177, %v6182
      %v6185 = vunpack.c.l.s4 1934713408
      %v6186 = vunpack.c.0.s8 %v6185
      %v6187 = vperm.slane %v6179, %v6186
      %v6188 = vrot.slane %v6159, 4
      %v6189 = vsel %vm1476, %v6188, %v6147
      %v6190 = vrot.slane %v6147, 4
      %v6191 = vsel %vm1476, %v6159, %v6190
      %v6193 = vunpack.c.l.s4 1934713408
      %v6194 = vunpack.c.0.s8 %v6193
      %v6195 = vperm.slane %v6189, %v6194
      %v6197 = vunpack.c.l.s4 1934713408
      %v6198 = vunpack.c.0.s8 %v6197
      %v6199 = vperm.slane %v6191, %v6198
      %v6200 = vrot.slane %v6163, 4
      %v6201 = vsel %vm1476, %v6200, %v6151
      %v6202 = vrot.slane %v6151, 4
      %v6203 = vsel %vm1476, %v6163, %v6202
      %v6205 = vunpack.c.l.s4 1934713408
      %v6206 = vunpack.c.0.s8 %v6205
      %v6207 = vperm.slane %v6201, %v6206
      %v6209 = vunpack.c.l.s4 1934713408
      %v6210 = vunpack.c.0.s8 %v6209
      %v6211 = vperm.slane %v6203, %v6210
      %v6212 = vrot.slane %v6195, 4
      %v6213 = vsel %vm1476, %v6212, %v6171
      %v6214 = vrot.slane %v6171, 4
      %v6215 = vsel %vm1476, %v6195, %v6214
      %v6216 = vrot.slane %v6199, 4
      %v6217 = vsel %vm1476, %v6216, %v6175
      %v6218 = vrot.slane %v6175, 4
      %v6219 = vsel %vm1476, %v6199, %v6218
      %v6220 = vrot.slane %v6207, 4
      %v6221 = vsel %vm1476, %v6220, %v6183
      %v6222 = vrot.slane %v6183, 4
      %v6223 = vsel %vm1476, %v6207, %v6222
      %v6224 = vrot.slane %v6211, 4
      %v6225 = vsel %vm1476, %v6224, %v6187
      %v6226 = vrot.slane %v6187, 4
      %v6227 = vsel %vm1476, %v6211, %v6226
      %v6228 = vrot.slane %v5489, 4
      %v6229 = vsel %vm1476, %v6228, %v5485
      %v6230 = vrot.slane %v5485, 4
      %v6231 = vsel %vm1476, %v5489, %v6230
      %v6233 = vunpack.c.l.s4 1983009808
      %v6234 = vunpack.c.0.s8 %v6233
      %v6235 = vperm.slane %v6229, %v6234
      %v6237 = vunpack.c.l.s4 1983009808
      %v6238 = vunpack.c.0.s8 %v6237
      %v6239 = vperm.slane %v6231, %v6238
      %v6240 = vrot.slane %v5491, 4
      %v6241 = vsel %vm1476, %v6240, %v5487
      %v6242 = vrot.slane %v5487, 4
      %v6243 = vsel %vm1476, %v5491, %v6242
      %v6245 = vunpack.c.l.s4 1983009808
      %v6246 = vunpack.c.0.s8 %v6245
      %v6247 = vperm.slane %v6241, %v6246
      %v6249 = vunpack.c.l.s4 1983009808
      %v6250 = vunpack.c.0.s8 %v6249
      %v6251 = vperm.slane %v6243, %v6250
      %v6252 = vrot.slane %v5497, 4
      %v6253 = vsel %vm1476, %v6252, %v5493
      %v6254 = vrot.slane %v5493, 4
      %v6255 = vsel %vm1476, %v5497, %v6254
      %v6257 = vunpack.c.l.s4 1983009808
      %v6258 = vunpack.c.0.s8 %v6257
      %v6259 = vperm.slane %v6253, %v6258
      %v6261 = vunpack.c.l.s4 1983009808
      %v6262 = vunpack.c.0.s8 %v6261
      %v6263 = vperm.slane %v6255, %v6262
      %v6264 = vrot.slane %v5499, 4
      %v6265 = vsel %vm1476, %v6264, %v5495
      %v6266 = vrot.slane %v5495, 4
      %v6267 = vsel %vm1476, %v5499, %v6266
      %v6269 = vunpack.c.l.s4 1983009808
      %v6270 = vunpack.c.0.s8 %v6269
      %v6271 = vperm.slane %v6265, %v6270
      %v6273 = vunpack.c.l.s4 1983009808
      %v6274 = vunpack.c.0.s8 %v6273
      %v6275 = vperm.slane %v6267, %v6274
      %v6276 = vrot.slane %v6247, 4
      %v6277 = vsel %vm1476, %v6276, %v6235
      %v6278 = vrot.slane %v6235, 4
      %v6279 = vsel %vm1476, %v6247, %v6278
      %v6281 = vunpack.c.l.s4 1934713408
      %v6282 = vunpack.c.0.s8 %v6281
      %v6283 = vperm.slane %v6277, %v6282
      %v6285 = vunpack.c.l.s4 1934713408
      %v6286 = vunpack.c.0.s8 %v6285
      %v6287 = vperm.slane %v6279, %v6286
      %v6288 = vrot.slane %v6251, 4
      %v6289 = vsel %vm1476, %v6288, %v6239
      %v6290 = vrot.slane %v6239, 4
      %v6291 = vsel %vm1476, %v6251, %v6290
      %v6293 = vunpack.c.l.s4 1934713408
      %v6294 = vunpack.c.0.s8 %v6293
      %v6295 = vperm.slane %v6289, %v6294
      %v6297 = vunpack.c.l.s4 1934713408
      %v6298 = vunpack.c.0.s8 %v6297
      %v6299 = vperm.slane %v6291, %v6298
      %v6300 = vrot.slane %v6271, 4
      %v6301 = vsel %vm1476, %v6300, %v6259
      %v6302 = vrot.slane %v6259, 4
      %v6303 = vsel %vm1476, %v6271, %v6302
      %v6305 = vunpack.c.l.s4 1934713408
      %v6306 = vunpack.c.0.s8 %v6305
      %v6307 = vperm.slane %v6301, %v6306
      %v6309 = vunpack.c.l.s4 1934713408
      %v6310 = vunpack.c.0.s8 %v6309
      %v6311 = vperm.slane %v6303, %v6310
      %v6312 = vrot.slane %v6275, 4
      %v6313 = vsel %vm1476, %v6312, %v6263
      %v6314 = vrot.slane %v6263, 4
      %v6315 = vsel %vm1476, %v6275, %v6314
      %v6317 = vunpack.c.l.s4 1934713408
      %v6318 = vunpack.c.0.s8 %v6317
      %v6319 = vperm.slane %v6313, %v6318
      %v6321 = vunpack.c.l.s4 1934713408
      %v6322 = vunpack.c.0.s8 %v6321
      %v6323 = vperm.slane %v6315, %v6322
      %v6324 = vrot.slane %v6307, 4
      %v6325 = vsel %vm1476, %v6324, %v6283
      %v6326 = vrot.slane %v6283, 4
      %v6327 = vsel %vm1476, %v6307, %v6326
      %v6328 = vrot.slane %v6311, 4
      %v6329 = vsel %vm1476, %v6328, %v6287
      %v6330 = vrot.slane %v6287, 4
      %v6331 = vsel %vm1476, %v6311, %v6330
      %v6332 = vrot.slane %v6319, 4
      %v6333 = vsel %vm1476, %v6332, %v6295
      %v6334 = vrot.slane %v6295, 4
      %v6335 = vsel %vm1476, %v6319, %v6334
      %v6336 = vrot.slane %v6323, 4
      %v6337 = vsel %vm1476, %v6336, %v6299
      %v6338 = vrot.slane %v6299, 4
      %v6339 = vsel %vm1476, %v6323, %v6338
      %v6340 = vrot.slane %v5657, 4
      %v6341 = vsel %vm1476, %v6340, %v5653
      %v6342 = vrot.slane %v5653, 4
      %v6343 = vsel %vm1476, %v5657, %v6342
      %v6345 = vunpack.c.l.s4 1983009808
      %v6346 = vunpack.c.0.s8 %v6345
      %v6347 = vperm.slane %v6341, %v6346
      %v6349 = vunpack.c.l.s4 1983009808
      %v6350 = vunpack.c.0.s8 %v6349
      %v6351 = vperm.slane %v6343, %v6350
      %v6352 = vrot.slane %v5659, 4
      %v6353 = vsel %vm1476, %v6352, %v5655
      %v6354 = vrot.slane %v5655, 4
      %v6355 = vsel %vm1476, %v5659, %v6354
      %v6357 = vunpack.c.l.s4 1983009808
      %v6358 = vunpack.c.0.s8 %v6357
      %v6359 = vperm.slane %v6353, %v6358
      %v6361 = vunpack.c.l.s4 1983009808
      %v6362 = vunpack.c.0.s8 %v6361
      %v6363 = vperm.slane %v6355, %v6362
      %v6364 = vrot.slane %v5665, 4
      %v6365 = vsel %vm1476, %v6364, %v5661
      %v6366 = vrot.slane %v5661, 4
      %v6367 = vsel %vm1476, %v5665, %v6366
      %v6369 = vunpack.c.l.s4 1983009808
      %v6370 = vunpack.c.0.s8 %v6369
      %v6371 = vperm.slane %v6365, %v6370
      %v6373 = vunpack.c.l.s4 1983009808
      %v6374 = vunpack.c.0.s8 %v6373
      %v6375 = vperm.slane %v6367, %v6374
      %v6376 = vrot.slane %v5667, 4
      %v6377 = vsel %vm1476, %v6376, %v5663
      %v6378 = vrot.slane %v5663, 4
      %v6379 = vsel %vm1476, %v5667, %v6378
      %v6381 = vunpack.c.l.s4 1983009808
      %v6382 = vunpack.c.0.s8 %v6381
      %v6383 = vperm.slane %v6377, %v6382
      %v6385 = vunpack.c.l.s4 1983009808
      %v6386 = vunpack.c.0.s8 %v6385
      %v6387 = vperm.slane %v6379, %v6386
      %v6388 = vrot.slane %v6359, 4
      %v6389 = vsel %vm1476, %v6388, %v6347
      %v6390 = vrot.slane %v6347, 4
      %v6391 = vsel %vm1476, %v6359, %v6390
      %v6393 = vunpack.c.l.s4 1934713408
      %v6394 = vunpack.c.0.s8 %v6393
      %v6395 = vperm.slane %v6389, %v6394
      %v6397 = vunpack.c.l.s4 1934713408
      %v6398 = vunpack.c.0.s8 %v6397
      %v6399 = vperm.slane %v6391, %v6398
      %v6400 = vrot.slane %v6363, 4
      %v6401 = vsel %vm1476, %v6400, %v6351
      %v6402 = vrot.slane %v6351, 4
      %v6403 = vsel %vm1476, %v6363, %v6402
      %v6405 = vunpack.c.l.s4 1934713408
      %v6406 = vunpack.c.0.s8 %v6405
      %v6407 = vperm.slane %v6401, %v6406
      %v6409 = vunpack.c.l.s4 1934713408
      %v6410 = vunpack.c.0.s8 %v6409
      %v6411 = vperm.slane %v6403, %v6410
      %v6412 = vrot.slane %v6383, 4
      %v6413 = vsel %vm1476, %v6412, %v6371
      %v6414 = vrot.slane %v6371, 4
      %v6415 = vsel %vm1476, %v6383, %v6414
      %v6417 = vunpack.c.l.s4 1934713408
      %v6418 = vunpack.c.0.s8 %v6417
      %v6419 = vperm.slane %v6413, %v6418
      %v6421 = vunpack.c.l.s4 1934713408
      %v6422 = vunpack.c.0.s8 %v6421
      %v6423 = vperm.slane %v6415, %v6422
      %v6424 = vrot.slane %v6387, 4
      %v6425 = vsel %vm1476, %v6424, %v6375
      %v6426 = vrot.slane %v6375, 4
      %v6427 = vsel %vm1476, %v6387, %v6426
      %v6429 = vunpack.c.l.s4 1934713408
      %v6430 = vunpack.c.0.s8 %v6429
      %v6431 = vperm.slane %v6425, %v6430
      %v6433 = vunpack.c.l.s4 1934713408
      %v6434 = vunpack.c.0.s8 %v6433
      %v6435 = vperm.slane %v6427, %v6434
      %v6436 = vrot.slane %v6419, 4
      %v6437 = vsel %vm1476, %v6436, %v6395
      %v6438 = vrot.slane %v6395, 4
      %v6439 = vsel %vm1476, %v6419, %v6438
      %v6440 = vrot.slane %v6423, 4
      %v6441 = vsel %vm1476, %v6440, %v6399
      %v6442 = vrot.slane %v6399, 4
      %v6443 = vsel %vm1476, %v6423, %v6442
      %v6444 = vrot.slane %v6431, 4
      %v6445 = vsel %vm1476, %v6444, %v6407
      %v6446 = vrot.slane %v6407, 4
      %v6447 = vsel %vm1476, %v6431, %v6446
      %v6448 = vrot.slane %v6435, 4
      %v6449 = vsel %vm1476, %v6448, %v6411
      %v6450 = vrot.slane %v6411, 4
      %v6451 = vsel %vm1476, %v6435, %v6450
      %v6452 = vrot.slane %v5825, 4
      %v6453 = vsel %vm1476, %v6452, %v5821
      %v6454 = vrot.slane %v5821, 4
      %v6455 = vsel %vm1476, %v5825, %v6454
      %v6457 = vunpack.c.l.s4 1983009808
      %v6458 = vunpack.c.0.s8 %v6457
      %v6459 = vperm.slane %v6453, %v6458
      %v6461 = vunpack.c.l.s4 1983009808
      %v6462 = vunpack.c.0.s8 %v6461
      %v6463 = vperm.slane %v6455, %v6462
      %v6464 = vrot.slane %v5827, 4
      %v6465 = vsel %vm1476, %v6464, %v5823
      %v6466 = vrot.slane %v5823, 4
      %v6467 = vsel %vm1476, %v5827, %v6466
      %v6469 = vunpack.c.l.s4 1983009808
      %v6470 = vunpack.c.0.s8 %v6469
      %v6471 = vperm.slane %v6465, %v6470
      %v6473 = vunpack.c.l.s4 1983009808
      %v6474 = vunpack.c.0.s8 %v6473
      %v6475 = vperm.slane %v6467, %v6474
      %v6476 = vrot.slane %v5833, 4
      %v6477 = vsel %vm1476, %v6476, %v5829
      %v6478 = vrot.slane %v5829, 4
      %v6479 = vsel %vm1476, %v5833, %v6478
      %v6481 = vunpack.c.l.s4 1983009808
      %v6482 = vunpack.c.0.s8 %v6481
      %v6483 = vperm.slane %v6477, %v6482
      %v6485 = vunpack.c.l.s4 1983009808
      %v6486 = vunpack.c.0.s8 %v6485
      %v6487 = vperm.slane %v6479, %v6486
      %v6488 = vrot.slane %v5835, 4
      %v6489 = vsel %vm1476, %v6488, %v5831
      %v6490 = vrot.slane %v5831, 4
      %v6491 = vsel %vm1476, %v5835, %v6490
      %v6493 = vunpack.c.l.s4 1983009808
      %v6494 = vunpack.c.0.s8 %v6493
      %v6495 = vperm.slane %v6489, %v6494
      %v6497 = vunpack.c.l.s4 1983009808
      %v6498 = vunpack.c.0.s8 %v6497
      %v6499 = vperm.slane %v6491, %v6498
      %v6500 = vrot.slane %v6471, 4
      %v6501 = vsel %vm1476, %v6500, %v6459
      %v6502 = vrot.slane %v6459, 4
      %v6503 = vsel %vm1476, %v6471, %v6502
      %v6505 = vunpack.c.l.s4 1934713408
      %v6506 = vunpack.c.0.s8 %v6505
      %v6507 = vperm.slane %v6501, %v6506
      %v6509 = vunpack.c.l.s4 1934713408
      %v6510 = vunpack.c.0.s8 %v6509
      %v6511 = vperm.slane %v6503, %v6510
      %v6512 = vrot.slane %v6475, 4
      %v6513 = vsel %vm1476, %v6512, %v6463
      %v6514 = vrot.slane %v6463, 4
      %v6515 = vsel %vm1476, %v6475, %v6514
      %v6517 = vunpack.c.l.s4 1934713408
      %v6518 = vunpack.c.0.s8 %v6517
      %v6519 = vperm.slane %v6513, %v6518
      %v6521 = vunpack.c.l.s4 1934713408
      %v6522 = vunpack.c.0.s8 %v6521
      %v6523 = vperm.slane %v6515, %v6522
      %v6524 = vrot.slane %v6495, 4
      %v6525 = vsel %vm1476, %v6524, %v6483
      %v6526 = vrot.slane %v6483, 4
      %v6527 = vsel %vm1476, %v6495, %v6526
      %v6529 = vunpack.c.l.s4 1934713408
      %v6530 = vunpack.c.0.s8 %v6529
      %v6531 = vperm.slane %v6525, %v6530
      %v6533 = vunpack.c.l.s4 1934713408
      %v6534 = vunpack.c.0.s8 %v6533
      %v6535 = vperm.slane %v6527, %v6534
      %v6536 = vrot.slane %v6499, 4
      %v6537 = vsel %vm1476, %v6536, %v6487
      %v6538 = vrot.slane %v6487, 4
      %v6539 = vsel %vm1476, %v6499, %v6538
      %v6541 = vunpack.c.l.s4 1934713408
      %v6542 = vunpack.c.0.s8 %v6541
      %v6543 = vperm.slane %v6537, %v6542
      %v6545 = vunpack.c.l.s4 1934713408
      %v6546 = vunpack.c.0.s8 %v6545
      %v6547 = vperm.slane %v6539, %v6546
      %v6548 = vrot.slane %v6531, 4
      %v6549 = vsel %vm1476, %v6548, %v6507
      %v6550 = vrot.slane %v6507, 4
      %v6551 = vsel %vm1476, %v6531, %v6550
      %v6552 = vrot.slane %v6535, 4
      %v6553 = vsel %vm1476, %v6552, %v6511
      %v6554 = vrot.slane %v6511, 4
      %v6555 = vsel %vm1476, %v6535, %v6554
      %v6556 = vrot.slane %v6543, 4
      %v6557 = vsel %vm1476, %v6556, %v6519
      %v6558 = vrot.slane %v6519, 4
      %v6559 = vsel %vm1476, %v6543, %v6558
      %v6560 = vrot.slane %v6547, 4
      %v6561 = vsel %vm1476, %v6560, %v6523
      %v6562 = vrot.slane %v6523, 4
      %v6563 = vsel %vm1476, %v6547, %v6562
      %v6564 = vsel %vm1476, %v5046, %v5027
      %v6566 = vunpack.c.l.s4 1983009808
      %v6567 = vunpack.c.0.s8 %v6566
      %v6568 = vperm.slane %v6564, %v6567
      %v6569 = vrot.slane %v5047, 4
      %v6570 = vsel %vm1476, %v6569, %v5045
      %v6572 = vunpack.c.l.s4 1983009808
      %v6573 = vunpack.c.0.s8 %v6572
      %v6574 = vperm.slane %v6570, %v6573
      %v6575 = vsel %vm1476, %v5050, %v5039
      %v6577 = vunpack.c.l.s4 1983009808
      %v6578 = vunpack.c.0.s8 %v6577
      %v6579 = vperm.slane %v6575, %v6578
      %v6580 = vrot.slane %v5051, 4
      %v6581 = vsel %vm1476, %v6580, %v5049
      %v6583 = vunpack.c.l.s4 1983009808
      %v6584 = vunpack.c.0.s8 %v6583
      %v6585 = vperm.slane %v6581, %v6584
      %v6586 = vrot.slane %v6574, 4
      %v6587 = vsel %vm1476, %v6586, %v6568
      %v6588 = vrot.slane %v6568, 4
      %v6589 = vsel %vm1476, %v6574, %v6588
      %v6591 = vunpack.c.l.s4 1934713408
      %v6592 = vunpack.c.0.s8 %v6591
      %v6593 = vperm.slane %v6587, %v6592
      %v6595 = vunpack.c.l.s4 1934713408
      %v6596 = vunpack.c.0.s8 %v6595
      %v6597 = vperm.slane %v6589, %v6596
      %v6598 = vrot.slane %v6585, 4
      %v6599 = vsel %vm1476, %v6598, %v6579
      %v6600 = vrot.slane %v6579, 4
      %v6601 = vsel %vm1476, %v6585, %v6600
      %v6603 = vunpack.c.l.s4 1934713408
      %v6604 = vunpack.c.0.s8 %v6603
      %v6605 = vperm.slane %v6599, %v6604
      %v6607 = vunpack.c.l.s4 1934713408
      %v6608 = vunpack.c.0.s8 %v6607
      %v6609 = vperm.slane %v6601, %v6608
      %v6610 = vrot.slane %v6605, 4
      %v6611 = vsel %vm1476, %v6610, %v6593
      %v6612 = vrot.slane %v6593, 4
      %v6613 = vsel %vm1476, %v6605, %v6612
      %v6614 = vrot.slane %v6609, 4
      %v6615 = vsel %vm1476, %v6614, %v6597
      %v6616 = vrot.slane %v6597, 4
      %v6617 = vsel %vm1476, %v6609, %v6616
      %v6618 = vsel %vm1476, %v5214, %v5195
      %v6620 = vunpack.c.l.s4 1983009808
      %v6621 = vunpack.c.0.s8 %v6620
      %v6622 = vperm.slane %v6618, %v6621
      %v6623 = vrot.slane %v5215, 4
      %v6624 = vsel %vm1476, %v6623, %v5213
      %v6626 = vunpack.c.l.s4 1983009808
      %v6627 = vunpack.c.0.s8 %v6626
      %v6628 = vperm.slane %v6624, %v6627
      %v6629 = vsel %vm1476, %v5218, %v5207
      %v6631 = vunpack.c.l.s4 1983009808
      %v6632 = vunpack.c.0.s8 %v6631
      %v6633 = vperm.slane %v6629, %v6632
      %v6634 = vrot.slane %v5219, 4
      %v6635 = vsel %vm1476, %v6634, %v5217
      %v6637 = vunpack.c.l.s4 1983009808
      %v6638 = vunpack.c.0.s8 %v6637
      %v6639 = vperm.slane %v6635, %v6638
      %v6640 = vrot.slane %v6628, 4
      %v6641 = vsel %vm1476, %v6640, %v6622
      %v6642 = vrot.slane %v6622, 4
      %v6643 = vsel %vm1476, %v6628, %v6642
      %v6645 = vunpack.c.l.s4 1934713408
      %v6646 = vunpack.c.0.s8 %v6645
      %v6647 = vperm.slane %v6641, %v6646
      %v6649 = vunpack.c.l.s4 1934713408
      %v6650 = vunpack.c.0.s8 %v6649
      %v6651 = vperm.slane %v6643, %v6650
      %v6652 = vrot.slane %v6639, 4
      %v6653 = vsel %vm1476, %v6652, %v6633
      %v6654 = vrot.slane %v6633, 4
      %v6655 = vsel %vm1476, %v6639, %v6654
      %v6657 = vunpack.c.l.s4 1934713408
      %v6658 = vunpack.c.0.s8 %v6657
      %v6659 = vperm.slane %v6653, %v6658
      %v6661 = vunpack.c.l.s4 1934713408
      %v6662 = vunpack.c.0.s8 %v6661
      %v6663 = vperm.slane %v6655, %v6662
      %v6664 = vrot.slane %v6659, 4
      %v6665 = vsel %vm1476, %v6664, %v6647
      %v6666 = vrot.slane %v6647, 4
      %v6667 = vsel %vm1476, %v6659, %v6666
      %v6668 = vrot.slane %v6663, 4
      %v6669 = vsel %vm1476, %v6668, %v6651
      %v6670 = vrot.slane %v6651, 4
      %v6671 = vsel %vm1476, %v6663, %v6670
      %v6672 = vsel %vm1476, %v5382, %v5363
      %v6674 = vunpack.c.l.s4 1983009808
      %v6675 = vunpack.c.0.s8 %v6674
      %v6676 = vperm.slane %v6672, %v6675
      %v6677 = vrot.slane %v5383, 4
      %v6678 = vsel %vm1476, %v6677, %v5381
      %v6680 = vunpack.c.l.s4 1983009808
      %v6681 = vunpack.c.0.s8 %v6680
      %v6682 = vperm.slane %v6678, %v6681
      %v6683 = vsel %vm1476, %v5386, %v5375
      %v6685 = vunpack.c.l.s4 1983009808
      %v6686 = vunpack.c.0.s8 %v6685
      %v6687 = vperm.slane %v6683, %v6686
      %v6688 = vrot.slane %v5387, 4
      %v6689 = vsel %vm1476, %v6688, %v5385
      %v6691 = vunpack.c.l.s4 1983009808
      %v6692 = vunpack.c.0.s8 %v6691
      %v6693 = vperm.slane %v6689, %v6692
      %v6694 = vrot.slane %v6682, 4
      %v6695 = vsel %vm1476, %v6694, %v6676
      %v6696 = vrot.slane %v6676, 4
      %v6697 = vsel %vm1476, %v6682, %v6696
      %v6699 = vunpack.c.l.s4 1934713408
      %v6700 = vunpack.c.0.s8 %v6699
      %v6701 = vperm.slane %v6695, %v6700
      %v6703 = vunpack.c.l.s4 1934713408
      %v6704 = vunpack.c.0.s8 %v6703
      %v6705 = vperm.slane %v6697, %v6704
      %v6706 = vrot.slane %v6693, 4
      %v6707 = vsel %vm1476, %v6706, %v6687
      %v6708 = vrot.slane %v6687, 4
      %v6709 = vsel %vm1476, %v6693, %v6708
      %v6711 = vunpack.c.l.s4 1934713408
      %v6712 = vunpack.c.0.s8 %v6711
      %v6713 = vperm.slane %v6707, %v6712
      %v6715 = vunpack.c.l.s4 1934713408
      %v6716 = vunpack.c.0.s8 %v6715
      %v6717 = vperm.slane %v6709, %v6716
      %v6718 = vrot.slane %v6713, 4
      %v6719 = vsel %vm1476, %v6718, %v6701
      %v6720 = vrot.slane %v6701, 4
      %v6721 = vsel %vm1476, %v6713, %v6720
      %v6722 = vrot.slane %v6717, 4
      %v6723 = vsel %vm1476, %v6722, %v6705
      %v6724 = vrot.slane %v6705, 4
      %v6725 = vsel %vm1476, %v6717, %v6724
      %v6726 = vsel %vm1476, %v5550, %v5531
      %v6728 = vunpack.c.l.s4 1983009808
      %v6729 = vunpack.c.0.s8 %v6728
      %v6730 = vperm.slane %v6726, %v6729
      %v6731 = vrot.slane %v5551, 4
      %v6732 = vsel %vm1476, %v6731, %v5549
      %v6734 = vunpack.c.l.s4 1983009808
      %v6735 = vunpack.c.0.s8 %v6734
      %v6736 = vperm.slane %v6732, %v6735
      %v6737 = vsel %vm1476, %v5554, %v5543
      %v6739 = vunpack.c.l.s4 1983009808
      %v6740 = vunpack.c.0.s8 %v6739
      %v6741 = vperm.slane %v6737, %v6740
      %v6742 = vrot.slane %v5555, 4
      %v6743 = vsel %vm1476, %v6742, %v5553
      %v6745 = vunpack.c.l.s4 1983009808
      %v6746 = vunpack.c.0.s8 %v6745
      %v6747 = vperm.slane %v6743, %v6746
      %v6748 = vrot.slane %v6736, 4
      %v6749 = vsel %vm1476, %v6748, %v6730
      %v6750 = vrot.slane %v6730, 4
      %v6751 = vsel %vm1476, %v6736, %v6750
      %v6753 = vunpack.c.l.s4 1934713408
      %v6754 = vunpack.c.0.s8 %v6753
      %v6755 = vperm.slane %v6749, %v6754
      %v6757 = vunpack.c.l.s4 1934713408
      %v6758 = vunpack.c.0.s8 %v6757
      %v6759 = vperm.slane %v6751, %v6758
      %v6760 = vrot.slane %v6747, 4
      %v6761 = vsel %vm1476, %v6760, %v6741
      %v6762 = vrot.slane %v6741, 4
      %v6763 = vsel %vm1476, %v6747, %v6762
      %v6765 = vunpack.c.l.s4 1934713408
      %v6766 = vunpack.c.0.s8 %v6765
      %v6767 = vperm.slane %v6761, %v6766
      %v6769 = vunpack.c.l.s4 1934713408
      %v6770 = vunpack.c.0.s8 %v6769
      %v6771 = vperm.slane %v6763, %v6770
      %v6772 = vrot.slane %v6767, 4
      %v6773 = vsel %vm1476, %v6772, %v6755
      %v6774 = vrot.slane %v6755, 4
      %v6775 = vsel %vm1476, %v6767, %v6774
      %v6776 = vrot.slane %v6771, 4
      %v6777 = vsel %vm1476, %v6776, %v6759
      %v6778 = vrot.slane %v6759, 4
      %v6779 = vsel %vm1476, %v6771, %v6778
      %v6780 = vsel %vm1476, %v5718, %v5699
      %v6782 = vunpack.c.l.s4 1983009808
      %v6783 = vunpack.c.0.s8 %v6782
      %v6784 = vperm.slane %v6780, %v6783
      %v6785 = vrot.slane %v5719, 4
      %v6786 = vsel %vm1476, %v6785, %v5717
      %v6788 = vunpack.c.l.s4 1983009808
      %v6789 = vunpack.c.0.s8 %v6788
      %v6790 = vperm.slane %v6786, %v6789
      %v6791 = vsel %vm1476, %v5722, %v5711
      %v6793 = vunpack.c.l.s4 1983009808
      %v6794 = vunpack.c.0.s8 %v6793
      %v6795 = vperm.slane %v6791, %v6794
      %v6796 = vrot.slane %v5723, 4
      %v6797 = vsel %vm1476, %v6796, %v5721
      %v6799 = vunpack.c.l.s4 1983009808
      %v6800 = vunpack.c.0.s8 %v6799
      %v6801 = vperm.slane %v6797, %v6800
      %v6802 = vrot.slane %v6790, 4
      %v6803 = vsel %vm1476, %v6802, %v6784
      %v6804 = vrot.slane %v6784, 4
      %v6805 = vsel %vm1476, %v6790, %v6804
      %v6807 = vunpack.c.l.s4 1934713408
      %v6808 = vunpack.c.0.s8 %v6807
      %v6809 = vperm.slane %v6803, %v6808
      %v6811 = vunpack.c.l.s4 1934713408
      %v6812 = vunpack.c.0.s8 %v6811
      %v6813 = vperm.slane %v6805, %v6812
      %v6814 = vrot.slane %v6801, 4
      %v6815 = vsel %vm1476, %v6814, %v6795
      %v6816 = vrot.slane %v6795, 4
      %v6817 = vsel %vm1476, %v6801, %v6816
      %v6819 = vunpack.c.l.s4 1934713408
      %v6820 = vunpack.c.0.s8 %v6819
      %v6821 = vperm.slane %v6815, %v6820
      %v6823 = vunpack.c.l.s4 1934713408
      %v6824 = vunpack.c.0.s8 %v6823
      %v6825 = vperm.slane %v6817, %v6824
      %v6826 = vrot.slane %v6821, 4
      %v6827 = vsel %vm1476, %v6826, %v6809
      %v6828 = vrot.slane %v6809, 4
      %v6829 = vsel %vm1476, %v6821, %v6828
      %v6830 = vrot.slane %v6825, 4
      %v6831 = vsel %vm1476, %v6830, %v6813
      %v6832 = vrot.slane %v6813, 4
      %v6833 = vsel %vm1476, %v6825, %v6832
      %v6834 = vsel %vm1476, %v5886, %v5867
      %v6836 = vunpack.c.l.s4 1983009808
      %v6837 = vunpack.c.0.s8 %v6836
      %v6838 = vperm.slane %v6834, %v6837
      %v6839 = vrot.slane %v5887, 4
      %v6840 = vsel %vm1476, %v6839, %v5885
      %v6842 = vunpack.c.l.s4 1983009808
      %v6843 = vunpack.c.0.s8 %v6842
      %v6844 = vperm.slane %v6840, %v6843
      %v6845 = vsel %vm1476, %v5890, %v5879
      %v6847 = vunpack.c.l.s4 1983009808
      %v6848 = vunpack.c.0.s8 %v6847
      %v6849 = vperm.slane %v6845, %v6848
      %v6850 = vrot.slane %v5891, 4
      %v6851 = vsel %vm1476, %v6850, %v5889
      %v6853 = vunpack.c.l.s4 1983009808
      %v6854 = vunpack.c.0.s8 %v6853
      %v6855 = vperm.slane %v6851, %v6854
      %v6856 = vrot.slane %v6844, 4
      %v6857 = vsel %vm1476, %v6856, %v6838
      %v6858 = vrot.slane %v6838, 4
      %v6859 = vsel %vm1476, %v6844, %v6858
      %v6861 = vunpack.c.l.s4 1934713408
      %v6862 = vunpack.c.0.s8 %v6861
      %v6863 = vperm.slane %v6857, %v6862
      %v6865 = vunpack.c.l.s4 1934713408
      %v6866 = vunpack.c.0.s8 %v6865
      %v6867 = vperm.slane %v6859, %v6866
      %v6868 = vrot.slane %v6855, 4
      %v6869 = vsel %vm1476, %v6868, %v6849
      %v6870 = vrot.slane %v6849, 4
      %v6871 = vsel %vm1476, %v6855, %v6870
      %v6873 = vunpack.c.l.s4 1934713408
      %v6874 = vunpack.c.0.s8 %v6873
      %v6875 = vperm.slane %v6869, %v6874
      %v6877 = vunpack.c.l.s4 1934713408
      %v6878 = vunpack.c.0.s8 %v6877
      %v6879 = vperm.slane %v6871, %v6878
      %v6880 = vrot.slane %v6875, 4
      %v6881 = vsel %vm1476, %v6880, %v6863
      %v6882 = vrot.slane %v6863, 4
      %v6883 = vsel %vm1476, %v6875, %v6882
      %v6884 = vrot.slane %v6879, 4
      %v6885 = vsel %vm1476, %v6884, %v6867
      %v6886 = vrot.slane %v6867, 4
      %v6887 = vsel %vm1476, %v6879, %v6886
      %v6888 = vpack.c.bf16 %v5989, %v5989
      %v6889 = vpack.c.bf16 %v6101, %v6101
      %v6890 = vpack.c.bf16 %v6213, %v6213
      %v6891 = vpack.c.bf16 %v6325, %v6325
      %v6892 = vpack.c.bf16 %v6437, %v6437
      %v6893 = vpack.c.bf16 %v6549, %v6549
      %v6894 = vpack.c.bf16 %v5991, %v5991
      %v6895 = vpack.c.bf16 %v6103, %v6103
      %v6896 = vpack.c.bf16 %v6215, %v6215
      %v6897 = vpack.c.bf16 %v6327, %v6327
      %v6898 = vpack.c.bf16 %v6439, %v6439
      %v6899 = vpack.c.bf16 %v6551, %v6551
      %v6900 = vpack.c.bf16 %v5993, %v5993
      %v6901 = vpack.c.bf16 %v6105, %v6105
      %v6902 = vpack.c.bf16 %v6217, %v6217
      %v6903 = vpack.c.bf16 %v6329, %v6329
      %v6904 = vpack.c.bf16 %v6441, %v6441
      %v6905 = vpack.c.bf16 %v6553, %v6553
      %v6906 = vpack.c.bf16 %v5995, %v5995
      %v6907 = vpack.c.bf16 %v6107, %v6107
      %v6908 = vpack.c.bf16 %v6219, %v6219
      %v6909 = vpack.c.bf16 %v6331, %v6331
      %v6910 = vpack.c.bf16 %v6443, %v6443
      %v6911 = vpack.c.bf16 %v6555, %v6555
      %v6912 = vpack.c.bf16 %v5997, %v5997
      %v6913 = vpack.c.bf16 %v6109, %v6109
      %v6914 = vpack.c.bf16 %v6221, %v6221
      %v6915 = vpack.c.bf16 %v6333, %v6333
      %v6916 = vpack.c.bf16 %v6445, %v6445
      %v6917 = vpack.c.bf16 %v6557, %v6557
      %v6918 = vpack.c.bf16 %v5999, %v5999
      %v6919 = vpack.c.bf16 %v6111, %v6111
      %v6920 = vpack.c.bf16 %v6223, %v6223
      %v6921 = vpack.c.bf16 %v6335, %v6335
      %v6922 = vpack.c.bf16 %v6447, %v6447
      %v6923 = vpack.c.bf16 %v6559, %v6559
      %v6924 = vpack.c.bf16 %v6001, %v6001
      %v6925 = vpack.c.bf16 %v6113, %v6113
      %v6926 = vpack.c.bf16 %v6225, %v6225
      %v6927 = vpack.c.bf16 %v6337, %v6337
      %v6928 = vpack.c.bf16 %v6449, %v6449
      %v6929 = vpack.c.bf16 %v6561, %v6561
      %v6930 = vpack.c.bf16 %v6003, %v6003
      %v6931 = vpack.c.bf16 %v6115, %v6115
      %v6932 = vpack.c.bf16 %v6227, %v6227
      %v6933 = vpack.c.bf16 %v6339, %v6339
      %v6934 = vpack.c.bf16 %v6451, %v6451
      %v6935 = vpack.c.bf16 %v6563, %v6563
      %v6936 = vpack.c.bf16 %v6611, %v6611
      %v6937 = vpack.c.bf16 %v6665, %v6665
      %v6938 = vpack.c.bf16 %v6719, %v6719
      %v6939 = vpack.c.bf16 %v6773, %v6773
      %v6940 = vpack.c.bf16 %v6827, %v6827
      %v6941 = vpack.c.bf16 %v6881, %v6881
      %v6942 = vpack.c.bf16 %v6613, %v6613
      %v6943 = vpack.c.bf16 %v6667, %v6667
      %v6944 = vpack.c.bf16 %v6721, %v6721
      %v6945 = vpack.c.bf16 %v6775, %v6775
      %v6946 = vpack.c.bf16 %v6829, %v6829
      %v6947 = vpack.c.bf16 %v6883, %v6883
      %v6948 = vpack.c.bf16 %v6615, %v6615
      %v6949 = vpack.c.bf16 %v6669, %v6669
      %v6950 = vpack.c.bf16 %v6723, %v6723
      %v6951 = vpack.c.bf16 %v6777, %v6777
      %v6952 = vpack.c.bf16 %v6831, %v6831
      %v6953 = vpack.c.bf16 %v6885, %v6885
      %v6954 = vpack.c.bf16 %v6617, %v6617
      %v6955 = vpack.c.bf16 %v6671, %v6671
      %v6956 = vpack.c.bf16 %v6725, %v6725
      %v6957 = vpack.c.bf16 %v6779, %v6779
      %v6958 = vpack.c.bf16 %v6833, %v6833
      %v6959 = vpack.c.bf16 %v6887, %v6887
      %v6966 = vunpack.c.l.b16 %v6888
      %v6967 = vunpack.c.l.b16 %v6889
      %v6968 = vunpack.c.l.b16 %v6890
      %v6969 = vunpack.c.l.b16 %v6891
      %v6970 = vunpack.c.l.b16 %v6892
      %v6971 = vunpack.c.l.b16 %v6893
      %v6972 = vpack.c.b16 %v6967, %v6966
      %v6973 = vpack.c.b16 %v6969, %v6968
      %v6974 = vpack.c.b16 %v6971, %v6970
      %v6981 = vunpack.c.l.b16 %v6912
      %v6982 = vunpack.c.l.b16 %v6913
      %v6983 = vunpack.c.l.b16 %v6914
      %v6984 = vunpack.c.l.b16 %v6915
      %v6985 = vunpack.c.l.b16 %v6916
      %v6986 = vunpack.c.l.b16 %v6917
      %v6987 = vpack.c.b16 %v6982, %v6981
      %v6988 = vpack.c.b16 %v6984, %v6983
      %v6989 = vpack.c.b16 %v6986, %v6985
      %v6991 = vsel %vm3582, %v6972, 0
      %v6994 = vsel %vm3582, %v6973, 0
      %v6997 = vsel %vm3582, %v6974, 0
      %v7000 = vsel %vm3582, %v6987, 0
      %v7003 = vsel %vm3582, %v6988, 0
      %v7006 = vsel %vm3582, %v6989, 0
      %7008 = vmatpush.bf16.xpose.msra.mxu0 0
      %7009 = vmatpush.bf16.xpose.msra.mxu0 0
      %7010 = vmatpush.bf16.xpose.msra.mxu0 0
      %7011 = vmatpush.bf16.xpose.msra.mxu0 0
      %7012 = vmatpush.bf16.xpose.msra.mxu0 0
      %7013 = vmatpush.bf16.xpose.msra.mxu0 %v7006
      %7014 = vmatpush.bf16.xpose.msra.mxu0 %v7003
      %7015 = vmatpush.bf16.xpose.msra.mxu0 %v7000
      %7016 = vmatmul.bf16.gmra.mxu0 %v6991
      %v7017 = vpop.f32.mrf.mxu0
      %v7018 = vadd.f32 0.0, %v7017
      %v7019 = vpop.f32.mrf.mxu0
      %v7020 = vadd.f32 0.0, %v7019
      %7021 = vmatmul.bf16.gmra.mxu0 %v6994
      %v7022 = vpop.f32.mrf.mxu0
      %v7023 = vadd.f32 0.0, %v7022
      %v7024 = vpop.f32.mrf.mxu0
      %v7025 = vadd.f32 0.0, %v7024
      %7026 = vmatmul.bf16.gmra.mxu0 %v6997
      %v7027 = vpop.f32.mrf.mxu0
      %v7028 = vadd.f32 0.0, %v7027
      %v7029 = vpop.f32.mrf.mxu0
      %v7030 = vadd.f32 0.0, %v7029
      %7031 = vdwg.mxu0
      %v7038 = vunpack.c.l.b16 %v6894
      %v7039 = vunpack.c.l.b16 %v6895
      %v7040 = vunpack.c.l.b16 %v6896
      %v7041 = vunpack.c.l.b16 %v6897
      %v7042 = vunpack.c.l.b16 %v6898
      %v7043 = vunpack.c.l.b16 %v6899
      %v7044 = vpack.c.b16 %v7039, %v7038
      %v7045 = vpack.c.b16 %v7041, %v7040
      %v7046 = vpack.c.b16 %v7043, %v7042
      %v7053 = vunpack.c.l.b16 %v6918
      %v7054 = vunpack.c.l.b16 %v6919
      %v7055 = vunpack.c.l.b16 %v6920
      %v7056 = vunpack.c.l.b16 %v6921
      %v7057 = vunpack.c.l.b16 %v6922
      %v7058 = vunpack.c.l.b16 %v6923
      %v7059 = vpack.c.b16 %v7054, %v7053
      %v7060 = vpack.c.b16 %v7056, %v7055
      %v7061 = vpack.c.b16 %v7058, %v7057
      %v7063 = vsel %vm3582, %v7044, 0
      %v7066 = vsel %vm3582, %v7045, 0
      %v7069 = vsel %vm3582, %v7046, 0
      %v7072 = vsel %vm3582, %v7059, 0
      %v7075 = vsel %vm3582, %v7060, 0
      %v7078 = vsel %vm3582, %v7061, 0
      %7080 = vmatpush.bf16.xpose.msra.mxu0 0
      %7081 = vmatpush.bf16.xpose.msra.mxu0 0
      %7082 = vmatpush.bf16.xpose.msra.mxu0 0
      %7083 = vmatpush.bf16.xpose.msra.mxu0 0
      %7084 = vmatpush.bf16.xpose.msra.mxu0 0
      %7085 = vmatpush.bf16.xpose.msra.mxu0 %v7078
      %7086 = vmatpush.bf16.xpose.msra.mxu0 %v7075
      %7087 = vmatpush.bf16.xpose.msra.mxu0 %v7072
      %7088 = vmatmul.bf16.gmra.mxu0 %v7063
      %v7089 = vpop.f32.mrf.mxu0
      %v7090 = vadd.f32 0.0, %v7089
      %v7091 = vpop.f32.mrf.mxu0
      %v7092 = vadd.f32 0.0, %v7091
      %7093 = vmatmul.bf16.gmra.mxu0 %v7066
      %v7094 = vpop.f32.mrf.mxu0
      %v7095 = vadd.f32 0.0, %v7094
      %v7096 = vpop.f32.mrf.mxu0
      %v7097 = vadd.f32 0.0, %v7096
      %7098 = vmatmul.bf16.gmra.mxu0 %v7069
      %v7099 = vpop.f32.mrf.mxu0
      %v7100 = vadd.f32 0.0, %v7099
      %v7101 = vpop.f32.mrf.mxu0
      %v7102 = vadd.f32 0.0, %v7101
      %7103 = vdwg.mxu0
      %v7110 = vunpack.c.l.b16 %v6900
      %v7111 = vunpack.c.l.b16 %v6901
      %v7112 = vunpack.c.l.b16 %v6902
      %v7113 = vunpack.c.l.b16 %v6903
      %v7114 = vunpack.c.l.b16 %v6904
      %v7115 = vunpack.c.l.b16 %v6905
      %v7116 = vpack.c.b16 %v7111, %v7110
      %v7117 = vpack.c.b16 %v7113, %v7112
      %v7118 = vpack.c.b16 %v7115, %v7114
      %v7125 = vunpack.c.l.b16 %v6924
      %v7126 = vunpack.c.l.b16 %v6925
      %v7127 = vunpack.c.l.b16 %v6926
      %v7128 = vunpack.c.l.b16 %v6927
      %v7129 = vunpack.c.l.b16 %v6928
      %v7130 = vunpack.c.l.b16 %v6929
      %v7131 = vpack.c.b16 %v7126, %v7125
      %v7132 = vpack.c.b16 %v7128, %v7127
      %v7133 = vpack.c.b16 %v7130, %v7129
      %v7135 = vsel %vm3582, %v7116, 0
      %v7138 = vsel %vm3582, %v7117, 0
      %v7141 = vsel %vm3582, %v7118, 0
      %v7144 = vsel %vm3582, %v7131, 0
      %v7147 = vsel %vm3582, %v7132, 0
      %v7150 = vsel %vm3582, %v7133, 0
      %7152 = vmatpush.bf16.xpose.msra.mxu0 0
      %7153 = vmatpush.bf16.xpose.msra.mxu0 0
      %7154 = vmatpush.bf16.xpose.msra.mxu0 0
      %7155 = vmatpush.bf16.xpose.msra.mxu0 0
      %7156 = vmatpush.bf16.xpose.msra.mxu0 0
      %7157 = vmatpush.bf16.xpose.msra.mxu0 %v7150
      %7158 = vmatpush.bf16.xpose.msra.mxu0 %v7147
      %7159 = vmatpush.bf16.xpose.msra.mxu0 %v7144
      %7160 = vmatmul.bf16.gmra.mxu0 %v7135
      %v7161 = vpop.f32.mrf.mxu0
      %v7162 = vadd.f32 0.0, %v7161
      %v7163 = vpop.f32.mrf.mxu0
      %v7164 = vadd.f32 0.0, %v7163
      %7165 = vmatmul.bf16.gmra.mxu0 %v7138
      %v7166 = vpop.f32.mrf.mxu0
      %v7167 = vadd.f32 0.0, %v7166
      %v7168 = vpop.f32.mrf.mxu0
      %v7169 = vadd.f32 0.0, %v7168
      %7170 = vmatmul.bf16.gmra.mxu0 %v7141
      %v7171 = vpop.f32.mrf.mxu0
      %v7172 = vadd.f32 0.0, %v7171
      %v7173 = vpop.f32.mrf.mxu0
      %v7174 = vadd.f32 0.0, %v7173
      %7175 = vdwg.mxu0
      %v7182 = vunpack.c.l.b16 %v6906
      %v7183 = vunpack.c.l.b16 %v6907
      %v7184 = vunpack.c.l.b16 %v6908
      %v7185 = vunpack.c.l.b16 %v6909
      %v7186 = vunpack.c.l.b16 %v6910
      %v7187 = vunpack.c.l.b16 %v6911
      %v7188 = vpack.c.b16 %v7183, %v7182
      %v7189 = vpack.c.b16 %v7185, %v7184
      %v7190 = vpack.c.b16 %v7187, %v7186
      %v7197 = vunpack.c.l.b16 %v6930
      %v7198 = vunpack.c.l.b16 %v6931
      %v7199 = vunpack.c.l.b16 %v6932
      %v7200 = vunpack.c.l.b16 %v6933
      %v7201 = vunpack.c.l.b16 %v6934
      %v7202 = vunpack.c.l.b16 %v6935
      %v7203 = vpack.c.b16 %v7198, %v7197
      %v7204 = vpack.c.b16 %v7200, %v7199
      %v7205 = vpack.c.b16 %v7202, %v7201
      %v7207 = vsel %vm3582, %v7188, 0
      %v7210 = vsel %vm3582, %v7189, 0
      %v7213 = vsel %vm3582, %v7190, 0
      %v7216 = vsel %vm3582, %v7203, 0
      %v7219 = vsel %vm3582, %v7204, 0
      %v7222 = vsel %vm3582, %v7205, 0
      %7224 = vmatpush.bf16.xpose.msra.mxu0 0
      %7225 = vmatpush.bf16.xpose.msra.mxu0 0
      %7226 = vmatpush.bf16.xpose.msra.mxu0 0
      %7227 = vmatpush.bf16.xpose.msra.mxu0 0
      %7228 = vmatpush.bf16.xpose.msra.mxu0 0
      %7229 = vmatpush.bf16.xpose.msra.mxu0 %v7222
      %7230 = vmatpush.bf16.xpose.msra.mxu0 %v7219
      %7231 = vmatpush.bf16.xpose.msra.mxu0 %v7216
      %7232 = vmatmul.bf16.gmra.mxu0 %v7207
      %v7233 = vpop.f32.mrf.mxu0
      %v7234 = vadd.f32 0.0, %v7233
      %v7235 = vpop.f32.mrf.mxu0
      %v7236 = vadd.f32 0.0, %v7235
      %7237 = vmatmul.bf16.gmra.mxu0 %v7210
      %v7238 = vpop.f32.mrf.mxu0
      %v7239 = vadd.f32 0.0, %v7238
      %v7240 = vpop.f32.mrf.mxu0
      %v7241 = vadd.f32 0.0, %v7240
      %7242 = vmatmul.bf16.gmra.mxu0 %v7213
      %v7243 = vpop.f32.mrf.mxu0
      %v7244 = vadd.f32 0.0, %v7243
      %v7245 = vpop.f32.mrf.mxu0
      %v7246 = vadd.f32 0.0, %v7245
      %7247 = vdwg.mxu0
      %v7248 = vsel %vm3841, %v7018, -inf
      %7249 = vmax.xlane.f32.xlu0 %v7248
      %v7250 = vpop.xlane.xlu0 %7249
      %v7251 = vsel %vm3841, %v7020, -inf
      %7252 = vmax.xlane.f32.xlu0 %v7251
      %v7253 = vpop.xlane.xlu0 %7252
      %v7254 = vsel %vm3841, %v7023, -inf
      %7255 = vmax.xlane.f32.xlu0 %v7254
      %v7256 = vpop.xlane.xlu0 %7255
      %v7257 = vsel %vm3841, %v7025, -inf
      %7258 = vmax.xlane.f32.xlu0 %v7257
      %v7259 = vpop.xlane.xlu0 %7258
      %v7260 = vsel %vm3841, %v7028, -inf
      %7261 = vmax.xlane.f32.xlu0 %v7260
      %v7262 = vpop.xlane.xlu0 %7261
      %v7263 = vsel %vm3841, %v7030, -inf
      %7264 = vmax.xlane.f32.xlu0 %v7263
      %v7265 = vpop.xlane.xlu0 %7264
      %v7266 = vsel %vm3841, %v7090, -inf
      %7267 = vmax.xlane.f32.xlu0 %v7266
      %v7268 = vpop.xlane.xlu0 %7267
      %v7269 = vsel %vm3841, %v7092, -inf
      %7270 = vmax.xlane.f32.xlu0 %v7269
      %v7271 = vpop.xlane.xlu0 %7270
      %v7272 = vsel %vm3841, %v7095, -inf
      %7273 = vmax.xlane.f32.xlu0 %v7272
      %v7274 = vpop.xlane.xlu0 %7273
      %v7275 = vsel %vm3841, %v7097, -inf
      %7276 = vmax.xlane.f32.xlu0 %v7275
      %v7277 = vpop.xlane.xlu0 %7276
      %v7278 = vsel %vm3841, %v7100, -inf
      %7279 = vmax.xlane.f32.xlu0 %v7278
      %v7280 = vpop.xlane.xlu0 %7279
      %v7281 = vsel %vm3841, %v7102, -inf
      %7282 = vmax.xlane.f32.xlu0 %v7281
      %v7283 = vpop.xlane.xlu0 %7282
      %v7284 = vsel %vm3841, %v7162, -inf
      %7285 = vmax.xlane.f32.xlu0 %v7284
      %v7286 = vpop.xlane.xlu0 %7285
      %v7287 = vsel %vm3841, %v7164, -inf
      %7288 = vmax.xlane.f32.xlu0 %v7287
      %v7289 = vpop.xlane.xlu0 %7288
      %v7290 = vsel %vm3841, %v7167, -inf
      %7291 = vmax.xlane.f32.xlu0 %v7290
      %v7292 = vpop.xlane.xlu0 %7291
      %v7293 = vsel %vm3841, %v7169, -inf
      %7294 = vmax.xlane.f32.xlu0 %v7293
      %v7295 = vpop.xlane.xlu0 %7294
      %v7296 = vsel %vm3841, %v7172, -inf
      %7297 = vmax.xlane.f32.xlu0 %v7296
      %v7298 = vpop.xlane.xlu0 %7297
      %v7299 = vsel %vm3841, %v7174, -inf
      %7300 = vmax.xlane.f32.xlu0 %v7299
      %v7301 = vpop.xlane.xlu0 %7300
      %v7302 = vsel %vm3841, %v7234, -inf
      %7303 = vmax.xlane.f32.xlu0 %v7302
      %v7304 = vpop.xlane.xlu0 %7303
      %v7305 = vsel %vm3841, %v7236, -inf
      %7306 = vmax.xlane.f32.xlu0 %v7305
      %v7307 = vpop.xlane.xlu0 %7306
      %v7308 = vsel %vm3841, %v7239, -inf
      %7309 = vmax.xlane.f32.xlu0 %v7308
      %v7310 = vpop.xlane.xlu0 %7309
      %v7311 = vsel %vm3841, %v7241, -inf
      %7312 = vmax.xlane.f32.xlu0 %v7311
      %v7313 = vpop.xlane.xlu0 %7312
      %v7314 = vsel %vm3841, %v7244, -inf
      %7315 = vmax.xlane.f32.xlu0 %v7314
      %v7316 = vpop.xlane.xlu0 %7315
      %v7317 = vsel %vm3841, %v7246, -inf
      %7318 = vmax.xlane.f32.xlu0 %v7317
      %v7319 = vpop.xlane.xlu0 %7318
      %v7320 = vsub.f32 %v7018, %v7250
      %v7321 = vsub.f32 %v7020, %v7253
      %v7322 = vsub.f32 %v7023, %v7256
      %v7323 = vsub.f32 %v7025, %v7259
      %v7324 = vsub.f32 %v7028, %v7262
      %v7325 = vsub.f32 %v7030, %v7265
      %v7326 = vsub.f32 %v7090, %v7268
      %v7327 = vsub.f32 %v7092, %v7271
      %v7328 = vsub.f32 %v7095, %v7274
      %v7329 = vsub.f32 %v7097, %v7277
      %v7330 = vsub.f32 %v7100, %v7280
      %v7331 = vsub.f32 %v7102, %v7283
      %v7332 = vsub.f32 %v7162, %v7286
      %v7333 = vsub.f32 %v7164, %v7289
      %v7334 = vsub.f32 %v7167, %v7292
      %v7335 = vsub.f32 %v7169, %v7295
      %v7336 = vsub.f32 %v7172, %v7298
      %v7337 = vsub.f32 %v7174, %v7301
      %v7338 = vsub.f32 %v7234, %v7304
      %v7339 = vsub.f32 %v7236, %v7307
      %v7340 = vsub.f32 %v7239, %v7310
      %v7341 = vsub.f32 %v7241, %v7313
      %v7342 = vsub.f32 %v7244, %v7316
      %v7343 = vsub.f32 %v7246, %v7319
      %v7344 = vmul.f32 %v7320, 1.442695
      %v7345 = vpow.pop %v7344
      %v7346 = vmul.f32 %v7321, 1.442695
      %v7347 = vpow.pop %v7346
      %v7348 = vmul.f32 %v7322, 1.442695
      %v7349 = vpow.pop %v7348
      %v7350 = vmul.f32 %v7323, 1.442695
      %v7351 = vpow.pop %v7350
      %v7352 = vmul.f32 %v7324, 1.442695
      %v7353 = vpow.pop %v7352
      %v7354 = vmul.f32 %v7325, 1.442695
      %v7355 = vpow.pop %v7354
      %v7356 = vmul.f32 %v7326, 1.442695
      %v7357 = vpow.pop %v7356
      %v7358 = vmul.f32 %v7327, 1.442695
      %v7359 = vpow.pop %v7358
      %v7360 = vmul.f32 %v7328, 1.442695
      %v7361 = vpow.pop %v7360
      %v7362 = vmul.f32 %v7329, 1.442695
      %v7363 = vpow.pop %v7362
      %v7364 = vmul.f32 %v7330, 1.442695
      %v7365 = vpow.pop %v7364
      %v7366 = vmul.f32 %v7331, 1.442695
      %v7367 = vpow.pop %v7366
      %v7368 = vmul.f32 %v7332, 1.442695
      %v7369 = vpow.pop %v7368
      %v7370 = vmul.f32 %v7333, 1.442695
      %v7371 = vpow.pop %v7370
      %v7372 = vmul.f32 %v7334, 1.442695
      %v7373 = vpow.pop %v7372
      %v7374 = vmul.f32 %v7335, 1.442695
      %v7375 = vpow.pop %v7374
      %v7376 = vmul.f32 %v7336, 1.442695
      %v7377 = vpow.pop %v7376
      %v7378 = vmul.f32 %v7337, 1.442695
      %v7379 = vpow.pop %v7378
      %v7380 = vmul.f32 %v7338, 1.442695
      %v7381 = vpow.pop %v7380
      %v7382 = vmul.f32 %v7339, 1.442695
      %v7383 = vpow.pop %v7382
      %v7384 = vmul.f32 %v7340, 1.442695
      %v7385 = vpow.pop %v7384
      %v7386 = vmul.f32 %v7341, 1.442695
      %v7387 = vpow.pop %v7386
      %v7388 = vmul.f32 %v7342, 1.442695
      %v7389 = vpow.pop %v7388
      %v7390 = vmul.f32 %v7343, 1.442695
      %v7391 = vpow.pop %v7390
      %v7392 = vsel %vm3841, %v7345, 0.0
      %7393 = vadd.xlane.f32.xlu0 %v7392
      %v7394 = vpop.xlane.xlu0 %7393
      %v7395 = vsel %vm3841, %v7347, 0.0
      %7396 = vadd.xlane.f32.xlu0 %v7395
      %v7397 = vpop.xlane.xlu0 %7396
      %v7398 = vsel %vm3841, %v7349, 0.0
      %7399 = vadd.xlane.f32.xlu0 %v7398
      %v7400 = vpop.xlane.xlu0 %7399
      %v7401 = vsel %vm3841, %v7351, 0.0
      %7402 = vadd.xlane.f32.xlu0 %v7401
      %v7403 = vpop.xlane.xlu0 %7402
      %v7404 = vsel %vm3841, %v7353, 0.0
      %7405 = vadd.xlane.f32.xlu0 %v7404
      %v7406 = vpop.xlane.xlu0 %7405
      %v7407 = vsel %vm3841, %v7355, 0.0
      %7408 = vadd.xlane.f32.xlu0 %v7407
      %v7409 = vpop.xlane.xlu0 %7408
      %v7410 = vsel %vm3841, %v7357, 0.0
      %7411 = vadd.xlane.f32.xlu0 %v7410
      %v7412 = vpop.xlane.xlu0 %7411
      %v7413 = vsel %vm3841, %v7359, 0.0
      %7414 = vadd.xlane.f32.xlu0 %v7413
      %v7415 = vpop.xlane.xlu0 %7414
      %v7416 = vsel %vm3841, %v7361, 0.0
      %7417 = vadd.xlane.f32.xlu0 %v7416
      %v7418 = vpop.xlane.xlu0 %7417
      %v7419 = vsel %vm3841, %v7363, 0.0
      %7420 = vadd.xlane.f32.xlu0 %v7419
      %v7421 = vpop.xlane.xlu0 %7420
      %v7422 = vsel %vm3841, %v7365, 0.0
      %7423 = vadd.xlane.f32.xlu0 %v7422
      %v7424 = vpop.xlane.xlu0 %7423
      %v7425 = vsel %vm3841, %v7367, 0.0
      %7426 = vadd.xlane.f32.xlu0 %v7425
      %v7427 = vpop.xlane.xlu0 %7426
      %v7428 = vsel %vm3841, %v7369, 0.0
      %7429 = vadd.xlane.f32.xlu0 %v7428
      %v7430 = vpop.xlane.xlu0 %7429
      %v7431 = vsel %vm3841, %v7371, 0.0
      %7432 = vadd.xlane.f32.xlu0 %v7431
      %v7433 = vpop.xlane.xlu0 %7432
      %v7434 = vsel %vm3841, %v7373, 0.0
      %7435 = vadd.xlane.f32.xlu0 %v7434
      %v7436 = vpop.xlane.xlu0 %7435
      %v7437 = vsel %vm3841, %v7375, 0.0
      %7438 = vadd.xlane.f32.xlu0 %v7437
      %v7439 = vpop.xlane.xlu0 %7438
      %v7440 = vsel %vm3841, %v7377, 0.0
      %7441 = vadd.xlane.f32.xlu0 %v7440
      %v7442 = vpop.xlane.xlu0 %7441
      %v7443 = vsel %vm3841, %v7379, 0.0
      %7444 = vadd.xlane.f32.xlu0 %v7443
      %v7445 = vpop.xlane.xlu0 %7444
      %v7446 = vsel %vm3841, %v7381, 0.0
      %7447 = vadd.xlane.f32.xlu0 %v7446
      %v7448 = vpop.xlane.xlu0 %7447
      %v7449 = vsel %vm3841, %v7383, 0.0
      %7450 = vadd.xlane.f32.xlu0 %v7449
      %v7451 = vpop.xlane.xlu0 %7450
      %v7452 = vsel %vm3841, %v7385, 0.0
      %7453 = vadd.xlane.f32.xlu0 %v7452
      %v7454 = vpop.xlane.xlu0 %7453
      %v7455 = vsel %vm3841, %v7387, 0.0
      %7456 = vadd.xlane.f32.xlu0 %v7455
      %v7457 = vpop.xlane.xlu0 %7456
      %v7458 = vsel %vm3841, %v7389, 0.0
      %7459 = vadd.xlane.f32.xlu0 %v7458
      %v7460 = vpop.xlane.xlu0 %7459
      %v7461 = vsel %vm3841, %v7391, 0.0
      %7462 = vadd.xlane.f32.xlu0 %v7461
      %v7463 = vpop.xlane.xlu0 %7462
      %v7464 = vrcp.pop %v7394
      %v7465 = vrcp.pop %v7397
      %v7466 = vrcp.pop %v7400
      %v7467 = vrcp.pop %v7403
      %v7468 = vrcp.pop %v7406
      %v7469 = vrcp.pop %v7409
      %v7470 = vrcp.pop %v7412
      %v7471 = vrcp.pop %v7415
      %v7472 = vrcp.pop %v7418
      %v7473 = vrcp.pop %v7421
      %v7474 = vrcp.pop %v7424
      %v7475 = vrcp.pop %v7427
      %v7476 = vrcp.pop %v7430
      %v7477 = vrcp.pop %v7433
      %v7478 = vrcp.pop %v7436
      %v7479 = vrcp.pop %v7439
      %v7480 = vrcp.pop %v7442
      %v7481 = vrcp.pop %v7445
      %v7482 = vrcp.pop %v7448
      %v7483 = vrcp.pop %v7451
      %v7484 = vrcp.pop %v7454
      %v7485 = vrcp.pop %v7457
      %v7486 = vrcp.pop %v7460
      %v7487 = vrcp.pop %v7463
      %v7488 = vmul.f32 %v7345, %v7464
      %v7489 = vmul.f32 %v7347, %v7465
      %v7490 = vmul.f32 %v7349, %v7466
      %v7491 = vmul.f32 %v7351, %v7467
      %v7492 = vmul.f32 %v7353, %v7468
      %v7493 = vmul.f32 %v7355, %v7469
      %v7494 = vmul.f32 %v7357, %v7470
      %v7495 = vmul.f32 %v7359, %v7471
      %v7496 = vmul.f32 %v7361, %v7472
      %v7497 = vmul.f32 %v7363, %v7473
      %v7498 = vmul.f32 %v7365, %v7474
      %v7499 = vmul.f32 %v7367, %v7475
      %v7500 = vmul.f32 %v7369, %v7476
      %v7501 = vmul.f32 %v7371, %v7477
      %v7502 = vmul.f32 %v7373, %v7478
      %v7503 = vmul.f32 %v7375, %v7479
      %v7504 = vmul.f32 %v7377, %v7480
      %v7505 = vmul.f32 %v7379, %v7481
      %v7506 = vmul.f32 %v7381, %v7482
      %v7507 = vmul.f32 %v7383, %v7483
      %v7508 = vmul.f32 %v7385, %v7484
      %v7509 = vmul.f32 %v7387, %v7485
      %v7510 = vmul.f32 %v7389, %v7486
      %v7511 = vmul.f32 %v7391, %v7487
      %v7512 = vpack.c.bf16 %v7488, %v7488
      %v7513 = vpack.c.bf16 %v7489, %v7489
      %v7514 = vpack.c.bf16 %v7490, %v7490
      %v7515 = vpack.c.bf16 %v7491, %v7491
      %v7516 = vpack.c.bf16 %v7492, %v7492
      %v7517 = vpack.c.bf16 %v7493, %v7493
      %v7518 = vpack.c.bf16 %v7494, %v7494
      %v7519 = vpack.c.bf16 %v7495, %v7495
      %v7520 = vpack.c.bf16 %v7496, %v7496
      %v7521 = vpack.c.bf16 %v7497, %v7497
      %v7522 = vpack.c.bf16 %v7498, %v7498
      %v7523 = vpack.c.bf16 %v7499, %v7499
      %v7524 = vpack.c.bf16 %v7500, %v7500
      %v7525 = vpack.c.bf16 %v7501, %v7501
      %v7526 = vpack.c.bf16 %v7502, %v7502
      %v7527 = vpack.c.bf16 %v7503, %v7503
      %v7528 = vpack.c.bf16 %v7504, %v7504
      %v7529 = vpack.c.bf16 %v7505, %v7505
      %v7530 = vpack.c.bf16 %v7506, %v7506
      %v7531 = vpack.c.bf16 %v7507, %v7507
      %v7532 = vpack.c.bf16 %v7508, %v7508
      %v7533 = vpack.c.bf16 %v7509, %v7509
      %v7534 = vpack.c.bf16 %v7510, %v7510
      %v7535 = vpack.c.bf16 %v7511, %v7511
      %v7542 = vunpack.c.l.b16 %v7512
      %v7543 = vunpack.c.l.b16 %v7513
      %v7544 = vunpack.c.l.b16 %v7514
      %v7545 = vunpack.c.l.b16 %v7515
      %v7546 = vunpack.c.l.b16 %v7516
      %v7547 = vunpack.c.l.b16 %v7517
      %v7548 = vpack.c.b16 %v7543, %v7542
      %v7549 = vpack.c.b16 %v7545, %v7544
      %v7550 = vpack.c.b16 %v7547, %v7546
      %v7557 = vunpack.c.l.b16 %v6936
      %v7558 = vunpack.c.l.b16 %v6937
      %v7559 = vunpack.c.l.b16 %v6938
      %v7560 = vunpack.c.l.b16 %v6939
      %v7561 = vunpack.c.l.b16 %v6940
      %v7562 = vunpack.c.l.b16 %v6941
      %v7563 = vpack.c.b16 %v7558, %v7557
      %v7564 = vpack.c.b16 %v7560, %v7559
      %v7565 = vpack.c.b16 %v7562, %v7561
      %v7570 = vsel %vm3841, %v7548, 0
      %v7573 = vsel %vm3841, %v7549, 0
      %v7576 = vsel %vm3841, %v7550, 0
      %7578 = vmatpush.bf16.msra.mxu0 0
      %7579 = vmatpush.bf16.msra.mxu0 0
      %7580 = vmatpush.bf16.msra.mxu0 0
      %7581 = vmatpush.bf16.msra.mxu0 0
      %7582 = vmatpush.bf16.msra.mxu0 0
      %7583 = vmatpush.bf16.msra.mxu0 %v7565
      %7584 = vmatpush.bf16.msra.mxu0 %v7564
      %7585 = vmatpush.bf16.msra.mxu0 %v7563
      %7586 = vmatmul.bf16.gmra.mxu0 %v7570
      %v7587 = vpop.f32.mrf.mxu0
      %v7588 = vadd.f32 0.0, %v7587
      %v7589 = vpop.f32.mrf.mxu0
      %v7590 = vadd.f32 0.0, %v7589
      %7591 = vmatmul.bf16.gmra.mxu0 %v7573
      %v7592 = vpop.f32.mrf.mxu0
      %v7593 = vadd.f32 0.0, %v7592
      %v7594 = vpop.f32.mrf.mxu0
      %v7595 = vadd.f32 0.0, %v7594
      %7596 = vmatmul.bf16.gmra.mxu0 %v7576
      %v7597 = vpop.f32.mrf.mxu0
      %v7598 = vadd.f32 0.0, %v7597
      %v7599 = vpop.f32.mrf.mxu0
      %v7600 = vadd.f32 0.0, %v7599
      %7601 = vdwg.mxu0
      %v7608 = vunpack.c.l.b16 %v7518
      %v7609 = vunpack.c.l.b16 %v7519
      %v7610 = vunpack.c.l.b16 %v7520
      %v7611 = vunpack.c.l.b16 %v7521
      %v7612 = vunpack.c.l.b16 %v7522
      %v7613 = vunpack.c.l.b16 %v7523
      %v7614 = vpack.c.b16 %v7609, %v7608
      %v7615 = vpack.c.b16 %v7611, %v7610
      %v7616 = vpack.c.b16 %v7613, %v7612
      %v7623 = vunpack.c.l.b16 %v6942
      %v7624 = vunpack.c.l.b16 %v6943
      %v7625 = vunpack.c.l.b16 %v6944
      %v7626 = vunpack.c.l.b16 %v6945
      %v7627 = vunpack.c.l.b16 %v6946
      %v7628 = vunpack.c.l.b16 %v6947
      %v7629 = vpack.c.b16 %v7624, %v7623
      %v7630 = vpack.c.b16 %v7626, %v7625
      %v7631 = vpack.c.b16 %v7628, %v7627
      %v7636 = vsel %vm3841, %v7614, 0
      %v7639 = vsel %vm3841, %v7615, 0
      %v7642 = vsel %vm3841, %v7616, 0
      %7644 = vmatpush.bf16.msra.mxu0 0
      %7645 = vmatpush.bf16.msra.mxu0 0
      %7646 = vmatpush.bf16.msra.mxu0 0
      %7647 = vmatpush.bf16.msra.mxu0 0
      %7648 = vmatpush.bf16.msra.mxu0 0
      %7649 = vmatpush.bf16.msra.mxu0 %v7631
      %7650 = vmatpush.bf16.msra.mxu0 %v7630
      %7651 = vmatpush.bf16.msra.mxu0 %v7629
      %7652 = vmatmul.bf16.gmra.mxu0 %v7636
      %v7653 = vpop.f32.mrf.mxu0
      %v7654 = vadd.f32 0.0, %v7653
      %v7655 = vpop.f32.mrf.mxu0
      %v7656 = vadd.f32 0.0, %v7655
      %7657 = vmatmul.bf16.gmra.mxu0 %v7639
      %v7658 = vpop.f32.mrf.mxu0
      %v7659 = vadd.f32 0.0, %v7658
      %v7660 = vpop.f32.mrf.mxu0
      %v7661 = vadd.f32 0.0, %v7660
      %7662 = vmatmul.bf16.gmra.mxu0 %v7642
      %v7663 = vpop.f32.mrf.mxu0
      %v7664 = vadd.f32 0.0, %v7663
      %v7665 = vpop.f32.mrf.mxu0
      %v7666 = vadd.f32 0.0, %v7665
      %7667 = vdwg.mxu0
      %v7674 = vunpack.c.l.b16 %v7524
      %v7675 = vunpack.c.l.b16 %v7525
      %v7676 = vunpack.c.l.b16 %v7526
      %v7677 = vunpack.c.l.b16 %v7527
      %v7678 = vunpack.c.l.b16 %v7528
      %v7679 = vunpack.c.l.b16 %v7529
      %v7680 = vpack.c.b16 %v7675, %v7674
      %v7681 = vpack.c.b16 %v7677, %v7676
      %v7682 = vpack.c.b16 %v7679, %v7678
      %v7689 = vunpack.c.l.b16 %v6948
      %v7690 = vunpack.c.l.b16 %v6949
      %v7691 = vunpack.c.l.b16 %v6950
      %v7692 = vunpack.c.l.b16 %v6951
      %v7693 = vunpack.c.l.b16 %v6952
      %v7694 = vunpack.c.l.b16 %v6953
      %v7695 = vpack.c.b16 %v7690, %v7689
      %v7696 = vpack.c.b16 %v7692, %v7691
      %v7697 = vpack.c.b16 %v7694, %v7693
      %v7702 = vsel %vm3841, %v7680, 0
      %v7705 = vsel %vm3841, %v7681, 0
      %v7708 = vsel %vm3841, %v7682, 0
      %7710 = vmatpush.bf16.msra.mxu0 0
      %7711 = vmatpush.bf16.msra.mxu0 0
      %7712 = vmatpush.bf16.msra.mxu0 0
      %7713 = vmatpush.bf16.msra.mxu0 0
      %7714 = vmatpush.bf16.msra.mxu0 0
      %7715 = vmatpush.bf16.msra.mxu0 %v7697
      %7716 = vmatpush.bf16.msra.mxu0 %v7696
      %7717 = vmatpush.bf16.msra.mxu0 %v7695
      %7718 = vmatmul.bf16.gmra.mxu0 %v7702
      %v7719 = vpop.f32.mrf.mxu0
      %v7720 = vadd.f32 0.0, %v7719
      %v7721 = vpop.f32.mrf.mxu0
      %v7722 = vadd.f32 0.0, %v7721
      %7723 = vmatmul.bf16.gmra.mxu0 %v7705
      %v7724 = vpop.f32.mrf.mxu0
      %v7725 = vadd.f32 0.0, %v7724
      %v7726 = vpop.f32.mrf.mxu0
      %v7727 = vadd.f32 0.0, %v7726
      %7728 = vmatmul.bf16.gmra.mxu0 %v7708
      %v7729 = vpop.f32.mrf.mxu0
      %v7730 = vadd.f32 0.0, %v7729
      %v7731 = vpop.f32.mrf.mxu0
      %v7732 = vadd.f32 0.0, %v7731
      %7733 = vdwg.mxu0
      %v7740 = vunpack.c.l.b16 %v7530
      %v7741 = vunpack.c.l.b16 %v7531
      %v7742 = vunpack.c.l.b16 %v7532
      %v7743 = vunpack.c.l.b16 %v7533
      %v7744 = vunpack.c.l.b16 %v7534
      %v7745 = vunpack.c.l.b16 %v7535
      %v7746 = vpack.c.b16 %v7741, %v7740
      %v7747 = vpack.c.b16 %v7743, %v7742
      %v7748 = vpack.c.b16 %v7745, %v7744
      %v7755 = vunpack.c.l.b16 %v6954
      %v7756 = vunpack.c.l.b16 %v6955
      %v7757 = vunpack.c.l.b16 %v6956
      %v7758 = vunpack.c.l.b16 %v6957
      %v7759 = vunpack.c.l.b16 %v6958
      %v7760 = vunpack.c.l.b16 %v6959
      %v7761 = vpack.c.b16 %v7756, %v7755
      %v7762 = vpack.c.b16 %v7758, %v7757
      %v7763 = vpack.c.b16 %v7760, %v7759
      %v7768 = vsel %vm3841, %v7746, 0
      %v7771 = vsel %vm3841, %v7747, 0
      %v7774 = vsel %vm3841, %v7748, 0
      %7776 = vmatpush.bf16.msra.mxu0 0
      %7777 = vmatpush.bf16.msra.mxu0 0
      %7778 = vmatpush.bf16.msra.mxu0 0
      %7779 = vmatpush.bf16.msra.mxu0 0
      %7780 = vmatpush.bf16.msra.mxu0 0
      %7781 = vmatpush.bf16.msra.mxu0 %v7763
      %7782 = vmatpush.bf16.msra.mxu0 %v7762
      %7783 = vmatpush.bf16.msra.mxu0 %v7761
      %7784 = vmatmul.bf16.gmra.mxu0 %v7768
      %v7785 = vpop.f32.mrf.mxu0
      %v7786 = vadd.f32 0.0, %v7785
      %v7787 = vpop.f32.mrf.mxu0
      %v7788 = vadd.f32 0.0, %v7787
      %7789 = vmatmul.bf16.gmra.mxu0 %v7771
      %v7790 = vpop.f32.mrf.mxu0
      %v7791 = vadd.f32 0.0, %v7790
      %v7792 = vpop.f32.mrf.mxu0
      %v7793 = vadd.f32 0.0, %v7792
      %7794 = vmatmul.bf16.gmra.mxu0 %v7774
      %v7795 = vpop.f32.mrf.mxu0
      %v7796 = vadd.f32 0.0, %v7795
      %v7797 = vpop.f32.mrf.mxu0
      %v7798 = vadd.f32 0.0, %v7797
      %7799 = vdwg.mxu0
      %v7800 = vpack.c.bf16 %v7588, %v7588
      %v7801 = vpack.c.bf16 %v7590, %v7590
      %v7802 = vpack.c.bf16 %v7593, %v7593
      %v7803 = vpack.c.bf16 %v7595, %v7595
      %v7804 = vpack.c.bf16 %v7598, %v7598
      %v7805 = vpack.c.bf16 %v7600, %v7600
      %v7806 = vpack.c.bf16 %v7654, %v7654
      %v7807 = vpack.c.bf16 %v7656, %v7656
      %v7808 = vpack.c.bf16 %v7659, %v7659
      %v7809 = vpack.c.bf16 %v7661, %v7661
      %v7810 = vpack.c.bf16 %v7664, %v7664
      %v7811 = vpack.c.bf16 %v7666, %v7666
      %v7812 = vpack.c.bf16 %v7720, %v7720
      %v7813 = vpack.c.bf16 %v7722, %v7722
      %v7814 = vpack.c.bf16 %v7725, %v7725
      %v7815 = vpack.c.bf16 %v7727, %v7727
      %v7816 = vpack.c.bf16 %v7730, %v7730
      %v7817 = vpack.c.bf16 %v7732, %v7732
      %v7818 = vpack.c.bf16 %v7786, %v7786
      %v7819 = vpack.c.bf16 %v7788, %v7788
      %v7820 = vpack.c.bf16 %v7791, %v7791
      %v7821 = vpack.c.bf16 %v7793, %v7793
      %v7822 = vpack.c.bf16 %v7796, %v7796
      %v7823 = vpack.c.bf16 %v7798, %v7798
      %v7830 = vunpack.c.l.b16 %v7800
      %v7831 = vunpack.c.l.b16 %v7801
      %v7832 = vunpack.c.l.b16 %v7802
      %v7833 = vunpack.c.l.b16 %v7803
      %v7834 = vunpack.c.l.b16 %v7804
      %v7835 = vunpack.c.l.b16 %v7805
      %v7836 = vpack.c.b16 %v7831, %v7830
      %v7837 = vpack.c.b16 %v7833, %v7832
      %v7838 = vpack.c.b16 %v7835, %v7834
      %v7840 = vsel %vm3582, %v7836, 0
      %v7843 = vsel %vm3582, %v7837, 0
      %v7846 = vsel %vm3582, %v7838, 0
      %7848 = vmatpush.bf16.msra.mxu0 0
      %7849 = vmatpush.bf16.msra.mxu0 0
      %7850 = vmatpush.bf16.msra.mxu0 0
      %7851 = vmatpush.bf16.msra.mxu0 0
      %7852 = vmatpush.bf16.msra.mxu0 0
      %7853 = vmatpush.bf16.msra.mxu0 0
      %7854 = vmatpush.bf16.msra.mxu0 %v4442
      %7855 = vmatpush.bf16.msra.mxu0 %v4441
      %7856 = vmatmul.bf16.gmra.mxu0 %v7840
      %v7857 = vpop.f32.mrf.mxu0
      %v7858 = vadd.f32 0.0, %v7857
      %v7859 = vpop.f32.mrf.mxu0
      %v7860 = vadd.f32 0.0, %v7859
      %7861 = vmatmul.bf16.gmra.mxu0 %v7843
      %v7862 = vpop.f32.mrf.mxu0
      %v7863 = vadd.f32 0.0, %v7862
      %v7864 = vpop.f32.mrf.mxu0
      %v7865 = vadd.f32 0.0, %v7864
      %7866 = vmatmul.bf16.gmra.mxu0 %v7846
      %v7867 = vpop.f32.mrf.mxu0
      %v7868 = vadd.f32 0.0, %v7867
      %v7869 = vpop.f32.mrf.mxu0
      %v7870 = vadd.f32 0.0, %v7869
      %7871 = vdwg.mxu0
      %v7878 = vunpack.c.l.b16 %v7806
      %v7879 = vunpack.c.l.b16 %v7807
      %v7880 = vunpack.c.l.b16 %v7808
      %v7881 = vunpack.c.l.b16 %v7809
      %v7882 = vunpack.c.l.b16 %v7810
      %v7883 = vunpack.c.l.b16 %v7811
      %v7884 = vpack.c.b16 %v7879, %v7878
      %v7885 = vpack.c.b16 %v7881, %v7880
      %v7886 = vpack.c.b16 %v7883, %v7882
      %v7888 = vsel %vm3582, %v7884, 0
      %v7891 = vsel %vm3582, %v7885, 0
      %v7894 = vsel %vm3582, %v7886, 0
      %7896 = vmatpush.bf16.msra.mxu0 0
      %7897 = vmatpush.bf16.msra.mxu0 0
      %7898 = vmatpush.bf16.msra.mxu0 0
      %7899 = vmatpush.bf16.msra.mxu0 0
      %7900 = vmatpush.bf16.msra.mxu0 0
      %7901 = vmatpush.bf16.msra.mxu0 0
      %7902 = vmatpush.bf16.msra.mxu0 %v4502
      %7903 = vmatpush.bf16.msra.mxu0 %v4501
      %7904 = vmatmul.bf16.gmra.mxu0 %v7888
      %v7905 = vpop.f32.mrf.mxu0
      %v7906 = vadd.f32 0.0, %v7905
      %v7907 = vpop.f32.mrf.mxu0
      %v7908 = vadd.f32 0.0, %v7907
      %7909 = vmatmul.bf16.gmra.mxu0 %v7891
      %v7910 = vpop.f32.mrf.mxu0
      %v7911 = vadd.f32 0.0, %v7910
      %v7912 = vpop.f32.mrf.mxu0
      %v7913 = vadd.f32 0.0, %v7912
      %7914 = vmatmul.bf16.gmra.mxu0 %v7894
      %v7915 = vpop.f32.mrf.mxu0
      %v7916 = vadd.f32 0.0, %v7915
      %v7917 = vpop.f32.mrf.mxu0
      %v7918 = vadd.f32 0.0, %v7917
      %7919 = vdwg.mxu0
      %v7926 = vunpack.c.l.b16 %v7812
      %v7927 = vunpack.c.l.b16 %v7813
      %v7928 = vunpack.c.l.b16 %v7814
      %v7929 = vunpack.c.l.b16 %v7815
      %v7930 = vunpack.c.l.b16 %v7816
      %v7931 = vunpack.c.l.b16 %v7817
      %v7932 = vpack.c.b16 %v7927, %v7926
      %v7933 = vpack.c.b16 %v7929, %v7928
      %v7934 = vpack.c.b16 %v7931, %v7930
      %v7936 = vsel %vm3582, %v7932, 0
      %v7939 = vsel %vm3582, %v7933, 0
      %v7942 = vsel %vm3582, %v7934, 0
      %7944 = vmatpush.bf16.msra.mxu0 0
      %7945 = vmatpush.bf16.msra.mxu0 0
      %7946 = vmatpush.bf16.msra.mxu0 0
      %7947 = vmatpush.bf16.msra.mxu0 0
      %7948 = vmatpush.bf16.msra.mxu0 0
      %7949 = vmatpush.bf16.msra.mxu0 0
      %7950 = vmatpush.bf16.msra.mxu0 %v4562
      %7951 = vmatpush.bf16.msra.mxu0 %v4561
      %7952 = vmatmul.bf16.gmra.mxu0 %v7936
      %v7953 = vpop.f32.mrf.mxu0
      %v7954 = vadd.f32 0.0, %v7953
      %v7955 = vpop.f32.mrf.mxu0
      %v7956 = vadd.f32 0.0, %v7955
      %7957 = vmatmul.bf16.gmra.mxu0 %v7939
      %v7958 = vpop.f32.mrf.mxu0
      %v7959 = vadd.f32 0.0, %v7958
      %v7960 = vpop.f32.mrf.mxu0
      %v7961 = vadd.f32 0.0, %v7960
      %7962 = vmatmul.bf16.gmra.mxu0 %v7942
      %v7963 = vpop.f32.mrf.mxu0
      %v7964 = vadd.f32 0.0, %v7963
      %v7965 = vpop.f32.mrf.mxu0
      %v7966 = vadd.f32 0.0, %v7965
      %7967 = vdwg.mxu0
      %v7974 = vunpack.c.l.b16 %v7818
      %v7975 = vunpack.c.l.b16 %v7819
      %v7976 = vunpack.c.l.b16 %v7820
      %v7977 = vunpack.c.l.b16 %v7821
      %v7978 = vunpack.c.l.b16 %v7822
      %v7979 = vunpack.c.l.b16 %v7823
      %v7980 = vpack.c.b16 %v7975, %v7974
      %v7981 = vpack.c.b16 %v7977, %v7976
      %v7982 = vpack.c.b16 %v7979, %v7978
      %v7984 = vsel %vm3582, %v7980, 0
      %v7987 = vsel %vm3582, %v7981, 0
      %v7990 = vsel %vm3582, %v7982, 0
      %7992 = vmatpush.bf16.msra.mxu0 0
      %7993 = vmatpush.bf16.msra.mxu0 0
      %7994 = vmatpush.bf16.msra.mxu0 0
      %7995 = vmatpush.bf16.msra.mxu0 0
      %7996 = vmatpush.bf16.msra.mxu0 0
      %7997 = vmatpush.bf16.msra.mxu0 0
      %7998 = vmatpush.bf16.msra.mxu0 %v4622
      %7999 = vmatpush.bf16.msra.mxu0 %v4621
      %8000 = vmatmul.bf16.gmra.mxu0 %v7984
      %v8001 = vpop.f32.mrf.mxu0
      %v8002 = vadd.f32 0.0, %v8001
      %v8003 = vpop.f32.mrf.mxu0
      %v8004 = vadd.f32 0.0, %v8003
      %8005 = vmatmul.bf16.gmra.mxu0 %v7987
      %v8006 = vpop.f32.mrf.mxu0
      %v8007 = vadd.f32 0.0, %v8006
      %v8008 = vpop.f32.mrf.mxu0
      %v8009 = vadd.f32 0.0, %v8008
      %8010 = vmatmul.bf16.gmra.mxu0 %v7990
      %v8011 = vpop.f32.mrf.mxu0
      %v8012 = vadd.f32 0.0, %v8011
      %v8013 = vpop.f32.mrf.mxu0
      %v8014 = vadd.f32 0.0, %v8013
      %8015 = vdwg.mxu0
      %v8016 = vadd.f32 %v7858, %v7906
      %v8017 = vadd.f32 %v8016, %v7954
      %v8018 = vadd.f32 %v8017, %v8002
      %v8019 = vadd.f32 %v7860, %v7908
      %v8020 = vadd.f32 %v8019, %v7956
      %v8021 = vadd.f32 %v8020, %v8004
      %v8022 = vadd.f32 %v7863, %v7911
      %v8023 = vadd.f32 %v8022, %v7959
      %v8024 = vadd.f32 %v8023, %v8007
      %v8025 = vadd.f32 %v7865, %v7913
      %v8026 = vadd.f32 %v8025, %v7961
      %v8027 = vadd.f32 %v8026, %v8009
      %v8028 = vadd.f32 %v7868, %v7916
      %v8029 = vadd.f32 %v8028, %v7964
      %v8030 = vadd.f32 %v8029, %v8012
      %v8031 = vadd.f32 %v7870, %v7918
      %v8032 = vadd.f32 %v8031, %v7966
      %v8033 = vadd.f32 %v8032, %v8014
      %v8034 = vld [vmem:[%s634] sm:$0x1]
      %v8036 = vperm.slane %v8034, 0
      %v8038 = vadd.f32 %v8018, %v8036
      %v8039 = vadd.f32 %v8021, %v8036
      %v8040 = vadd.f32 %v8024, %v8036
      %v8041 = vadd.f32 %v8027, %v8036
      %v8042 = vadd.f32 %v8030, %v8036
      %v8043 = vadd.f32 %v8033, %v8036
      %v8044 = vld [vmem:[#allocation2 + $0x30] sm:$0xff]
      %v8045 = vld [vmem:[#allocation2 + $0x38] sm:$0xff]
      %v8046 = vld [vmem:[#allocation2 + $0x40] sm:$0xff]
      %v8047 = vld [vmem:[#allocation2 + $0x48] sm:$0xff]
      %v8048 = vld [vmem:[#allocation2 + $0x50] sm:$0xff]
      %v8049 = vld [vmem:[#allocation2 + $0x58] sm:$0xff]
      %v8050 = vadd.f32 %v8044, %v8038
      %v8051 = vadd.f32 %v8045, %v8039
      %v8052 = vadd.f32 %v8046, %v8040
      %v8053 = vadd.f32 %v8047, %v8041
      %v8054 = vadd.f32 %v8048, %v8042
      %v8055 = vadd.f32 %v8049, %v8043
      %8056 = vst [vmem:[#allocation2 + $0x30] sm:$0xff] %v8050
      %8057 = vst [vmem:[#allocation2 + $0x38] sm:$0xff] %v8051
      %8058 = vst [vmem:[#allocation2 + $0x40] sm:$0xff] %v8052
      %8059 = vst [vmem:[#allocation2 + $0x48] sm:$0xff] %v8053
      %8060 = vst [vmem:[#allocation2 + $0x50] sm:$0xff] %v8054
      %8061 = vst [vmem:[#allocation2 + $0x58] sm:$0xff] %v8055
      %v8062 = vld [vmem:[#allocation2] sm:$0xff]
      %v8063 = vld [vmem:[#allocation2 + $0x8] sm:$0xff]
      %v8064 = vld [vmem:[#allocation2 + $0x10] sm:$0xff]
      %v8065 = vld [vmem:[#allocation2 + $0x18] sm:$0xff]
      %v8066 = vld [vmem:[#allocation2 + $0x20] sm:$0xff]
      %v8067 = vld [vmem:[#allocation2 + $0x28] sm:$0xff]
      %v8068 = vld [vmem:[#allocation2 + $0x30] sm:$0xff]
      %v8069 = vld [vmem:[#allocation2 + $0x38] sm:$0xff]
      %v8070 = vld [vmem:[#allocation2 + $0x40] sm:$0xff]
      %v8071 = vld [vmem:[#allocation2 + $0x48] sm:$0xff]
      %v8072 = vld [vmem:[#allocation2 + $0x50] sm:$0xff]
      %v8073 = vld [vmem:[#allocation2 + $0x58] sm:$0xff]
      %v8074 = vld [vmem:[%s637] sm:$0x1]
      %v8075 = vld [vmem:[%s640] sm:$0x1]
      %8076 = vadd.xlane.f32.xlu0 %v8062
      %v8077 = vpop.xlane.xlu0 %8076
      %8078 = vadd.xlane.f32.xlu0 %v8063
      %v8079 = vpop.xlane.xlu0 %8078
      %8080 = vadd.xlane.f32.xlu0 %v8064
      %v8081 = vpop.xlane.xlu0 %8080
      %8082 = vadd.xlane.f32.xlu0 %v8065
      %v8083 = vpop.xlane.xlu0 %8082
      %8084 = vadd.xlane.f32.xlu0 %v8066
      %v8085 = vpop.xlane.xlu0 %8084
      %8086 = vadd.xlane.f32.xlu0 %v8067
      %v8087 = vpop.xlane.xlu0 %8086
      %8088 = vadd.xlane.f32.xlu0 %v8068
      %v8089 = vpop.xlane.xlu0 %8088
      %8090 = vadd.xlane.f32.xlu0 %v8069
      %v8091 = vpop.xlane.xlu0 %8090
      %8092 = vadd.xlane.f32.xlu0 %v8070
      %v8093 = vpop.xlane.xlu0 %8092
      %8094 = vadd.xlane.f32.xlu0 %v8071
      %v8095 = vpop.xlane.xlu0 %8094
      %8096 = vadd.xlane.f32.xlu0 %v8072
      %v8097 = vpop.xlane.xlu0 %8096
      %8098 = vadd.xlane.f32.xlu0 %v8073
      %v8099 = vpop.xlane.xlu0 %8098
      %v8100 = vmul.f32 %v8077, %v749
      %v8101 = vmul.f32 %v8079, %v749
      %v8102 = vmul.f32 %v8081, %v749
      %v8103 = vmul.f32 %v8083, %v749
      %v8104 = vmul.f32 %v8085, %v749
      %v8105 = vmul.f32 %v8087, %v749
      %v8106 = vmul.f32 %v8089, %v749
      %v8107 = vmul.f32 %v8091, %v749
      %v8108 = vmul.f32 %v8093, %v749
      %v8109 = vmul.f32 %v8095, %v749
      %v8110 = vmul.f32 %v8097, %v749
      %v8111 = vmul.f32 %v8099, %v749
      %v8112 = vsub.f32 %v8062, %v8100
      %v8113 = vsub.f32 %v8063, %v8101
      %v8114 = vsub.f32 %v8064, %v8102
      %v8115 = vsub.f32 %v8065, %v8103
      %v8116 = vsub.f32 %v8066, %v8104
      %v8117 = vsub.f32 %v8067, %v8105
      %v8118 = vsub.f32 %v8068, %v8106
      %v8119 = vsub.f32 %v8069, %v8107
      %v8120 = vsub.f32 %v8070, %v8108
      %v8121 = vsub.f32 %v8071, %v8109
      %v8122 = vsub.f32 %v8072, %v8110
      %v8123 = vsub.f32 %v8073, %v8111
      %v8124 = vmul.f32 %v8112, %v8112
      %v8125 = vmul.f32 %v8113, %v8113
      %v8126 = vmul.f32 %v8114, %v8114
      %v8127 = vmul.f32 %v8115, %v8115
      %v8128 = vmul.f32 %v8116, %v8116
      %v8129 = vmul.f32 %v8117, %v8117
      %v8130 = vmul.f32 %v8118, %v8118
      %v8131 = vmul.f32 %v8119, %v8119
      %v8132 = vmul.f32 %v8120, %v8120
      %v8133 = vmul.f32 %v8121, %v8121
      %v8134 = vmul.f32 %v8122, %v8122
      %v8135 = vmul.f32 %v8123, %v8123
      %8136 = vadd.xlane.f32.xlu0 %v8124
      %v8137 = vpop.xlane.xlu0 %8136
      %8138 = vadd.xlane.f32.xlu0 %v8125
      %v8139 = vpop.xlane.xlu0 %8138
      %8140 = vadd.xlane.f32.xlu0 %v8126
      %v8141 = vpop.xlane.xlu0 %8140
      %8142 = vadd.xlane.f32.xlu0 %v8127
      %v8143 = vpop.xlane.xlu0 %8142
      %8144 = vadd.xlane.f32.xlu0 %v8128
      %v8145 = vpop.xlane.xlu0 %8144
      %8146 = vadd.xlane.f32.xlu0 %v8129
      %v8147 = vpop.xlane.xlu0 %8146
      %8148 = vadd.xlane.f32.xlu0 %v8130
      %v8149 = vpop.xlane.xlu0 %8148
      %8150 = vadd.xlane.f32.xlu0 %v8131
      %v8151 = vpop.xlane.xlu0 %8150
      %8152 = vadd.xlane.f32.xlu0 %v8132
      %v8153 = vpop.xlane.xlu0 %8152
      %8154 = vadd.xlane.f32.xlu0 %v8133
      %v8155 = vpop.xlane.xlu0 %8154
      %8156 = vadd.xlane.f32.xlu0 %v8134
      %v8157 = vpop.xlane.xlu0 %8156
      %8158 = vadd.xlane.f32.xlu0 %v8135
      %v8159 = vpop.xlane.xlu0 %8158
      %v8160 = vmul.f32 %v8137, %v749
      %v8161 = vmul.f32 %v8139, %v749
      %v8162 = vmul.f32 %v8141, %v749
      %v8163 = vmul.f32 %v8143, %v749
      %v8164 = vmul.f32 %v8145, %v749
      %v8165 = vmul.f32 %v8147, %v749
      %v8166 = vmul.f32 %v8149, %v749
      %v8167 = vmul.f32 %v8151, %v749
      %v8168 = vmul.f32 %v8153, %v749
      %v8169 = vmul.f32 %v8155, %v749
      %v8170 = vmul.f32 %v8157, %v749
      %v8171 = vmul.f32 %v8159, %v749
      %v8172 = vadd.f32 %v8160, 1e-05
      %v8173 = vadd.f32 %v8161, 1e-05
      %v8174 = vadd.f32 %v8162, 1e-05
      %v8175 = vadd.f32 %v8163, 1e-05
      %v8176 = vadd.f32 %v8164, 1e-05
      %v8177 = vadd.f32 %v8165, 1e-05
      %v8178 = vadd.f32 %v8166, 1e-05
      %v8179 = vadd.f32 %v8167, 1e-05
      %v8180 = vadd.f32 %v8168, 1e-05
      %v8181 = vadd.f32 %v8169, 1e-05
      %v8182 = vadd.f32 %v8170, 1e-05
      %v8183 = vadd.f32 %v8171, 1e-05
      %v8184 = vrsqrt.pop %v8172
      %v8185 = vmul.f32 %v8184, %v8172
      %v8186 = vmul.f32 %v8185, %v8184
      %v8187 = vmul.f32 0.5, %v8186
      %v8188 = vsub.f32 1.5, %v8187
      %v8189 = vmul.f32 %v8184, %v8188
      %vm8190 = vweird.f32 %v8172
      %vm8191 = vweird.f32 %v8184
      %vm8192 = vmor %vm8190, %vm8191
      %v8193 = vsel %vm8192, %v8184, %v8189
      %v8194 = vrsqrt.pop %v8173
      %v8195 = vmul.f32 %v8194, %v8173
      %v8196 = vmul.f32 %v8195, %v8194
      %v8197 = vmul.f32 0.5, %v8196
      %v8198 = vsub.f32 1.5, %v8197
      %v8199 = vmul.f32 %v8194, %v8198
      %vm8200 = vweird.f32 %v8173
      %vm8201 = vweird.f32 %v8194
      %vm8202 = vmor %vm8200, %vm8201
      %v8203 = vsel %vm8202, %v8194, %v8199
      %v8204 = vrsqrt.pop %v8174
      %v8205 = vmul.f32 %v8204, %v8174
      %v8206 = vmul.f32 %v8205, %v8204
      %v8207 = vmul.f32 0.5, %v8206
      %v8208 = vsub.f32 1.5, %v8207
      %v8209 = vmul.f32 %v8204, %v8208
      %vm8210 = vweird.f32 %v8174
      %vm8211 = vweird.f32 %v8204
      %vm8212 = vmor %vm8210, %vm8211
      %v8213 = vsel %vm8212, %v8204, %v8209
      %v8214 = vrsqrt.pop %v8175
      %v8215 = vmul.f32 %v8214, %v8175
      %v8216 = vmul.f32 %v8215, %v8214
      %v8217 = vmul.f32 0.5, %v8216
      %v8218 = vsub.f32 1.5, %v8217
      %v8219 = vmul.f32 %v8214, %v8218
      %vm8220 = vweird.f32 %v8175
      %vm8221 = vweird.f32 %v8214
      %vm8222 = vmor %vm8220, %vm8221
      %v8223 = vsel %vm8222, %v8214, %v8219
      %v8224 = vrsqrt.pop %v8176
      %v8225 = vmul.f32 %v8224, %v8176
      %v8226 = vmul.f32 %v8225, %v8224
      %v8227 = vmul.f32 0.5, %v8226
      %v8228 = vsub.f32 1.5, %v8227
      %v8229 = vmul.f32 %v8224, %v8228
      %vm8230 = vweird.f32 %v8176
      %vm8231 = vweird.f32 %v8224
      %vm8232 = vmor %vm8230, %vm8231
      %v8233 = vsel %vm8232, %v8224, %v8229
      %v8234 = vrsqrt.pop %v8177
      %v8235 = vmul.f32 %v8234, %v8177
      %v8236 = vmul.f32 %v8235, %v8234
      %v8237 = vmul.f32 0.5, %v8236
      %v8238 = vsub.f32 1.5, %v8237
      %v8239 = vmul.f32 %v8234, %v8238
      %vm8240 = vweird.f32 %v8177
      %vm8241 = vweird.f32 %v8234
      %vm8242 = vmor %vm8240, %vm8241
      %v8243 = vsel %vm8242, %v8234, %v8239
      %v8244 = vrsqrt.pop %v8178
      %v8245 = vmul.f32 %v8244, %v8178
      %v8246 = vmul.f32 %v8245, %v8244
      %v8247 = vmul.f32 0.5, %v8246
      %v8248 = vsub.f32 1.5, %v8247
      %v8249 = vmul.f32 %v8244, %v8248
      %vm8250 = vweird.f32 %v8178
      %vm8251 = vweird.f32 %v8244
      %vm8252 = vmor %vm8250, %vm8251
      %v8253 = vsel %vm8252, %v8244, %v8249
      %v8254 = vrsqrt.pop %v8179
      %v8255 = vmul.f32 %v8254, %v8179
      %v8256 = vmul.f32 %v8255, %v8254
      %v8257 = vmul.f32 0.5, %v8256
      %v8258 = vsub.f32 1.5, %v8257
      %v8259 = vmul.f32 %v8254, %v8258
      %vm8260 = vweird.f32 %v8179
      %vm8261 = vweird.f32 %v8254
      %vm8262 = vmor %vm8260, %vm8261
      %v8263 = vsel %vm8262, %v8254, %v8259
      %v8264 = vrsqrt.pop %v8180
      %v8265 = vmul.f32 %v8264, %v8180
      %v8266 = vmul.f32 %v8265, %v8264
      %v8267 = vmul.f32 0.5, %v8266
      %v8268 = vsub.f32 1.5, %v8267
      %v8269 = vmul.f32 %v8264, %v8268
      %vm8270 = vweird.f32 %v8180
      %vm8271 = vweird.f32 %v8264
      %vm8272 = vmor %vm8270, %vm8271
      %v8273 = vsel %vm8272, %v8264, %v8269
      %v8274 = vrsqrt.pop %v8181
      %v8275 = vmul.f32 %v8274, %v8181
      %v8276 = vmul.f32 %v8275, %v8274
      %v8277 = vmul.f32 0.5, %v8276
      %v8278 = vsub.f32 1.5, %v8277
      %v8279 = vmul.f32 %v8274, %v8278
      %vm8280 = vweird.f32 %v8181
      %vm8281 = vweird.f32 %v8274
      %vm8282 = vmor %vm8280, %vm8281
      %v8283 = vsel %vm8282, %v8274, %v8279
      %v8284 = vrsqrt.pop %v8182
      %v8285 = vmul.f32 %v8284, %v8182
      %v8286 = vmul.f32 %v8285, %v8284
      %v8287 = vmul.f32 0.5, %v8286
      %v8288 = vsub.f32 1.5, %v8287
      %v8289 = vmul.f32 %v8284, %v8288
      %vm8290 = vweird.f32 %v8182
      %vm8291 = vweird.f32 %v8284
      %vm8292 = vmor %vm8290, %vm8291
      %v8293 = vsel %vm8292, %v8284, %v8289
      %v8294 = vrsqrt.pop %v8183
      %v8295 = vmul.f32 %v8294, %v8183
      %v8296 = vmul.f32 %v8295, %v8294
      %v8297 = vmul.f32 0.5, %v8296
      %v8298 = vsub.f32 1.5, %v8297
      %v8299 = vmul.f32 %v8294, %v8298
      %vm8300 = vweird.f32 %v8183
      %vm8301 = vweird.f32 %v8294
      %vm8302 = vmor %vm8300, %vm8301
      %v8303 = vsel %vm8302, %v8294, %v8299
      %v8304 = vmul.f32 %v8112, %v8193
      %v8305 = vmul.f32 %v8113, %v8203
      %v8306 = vmul.f32 %v8114, %v8213
      %v8307 = vmul.f32 %v8115, %v8223
      %v8308 = vmul.f32 %v8116, %v8233
      %v8309 = vmul.f32 %v8117, %v8243
      %v8310 = vmul.f32 %v8118, %v8253
      %v8311 = vmul.f32 %v8119, %v8263
      %v8312 = vmul.f32 %v8120, %v8273
      %v8313 = vmul.f32 %v8121, %v8283
      %v8314 = vmul.f32 %v8122, %v8293
      %v8315 = vmul.f32 %v8123, %v8303
      %v8317 = vperm.slane %v8074, 0
      %v8319 = vmul.f32 %v8304, %v8317
      %v8320 = vmul.f32 %v8305, %v8317
      %v8321 = vmul.f32 %v8306, %v8317
      %v8322 = vmul.f32 %v8307, %v8317
      %v8323 = vmul.f32 %v8308, %v8317
      %v8324 = vmul.f32 %v8309, %v8317
      %v8325 = vmul.f32 %v8310, %v8317
      %v8326 = vmul.f32 %v8311, %v8317
      %v8327 = vmul.f32 %v8312, %v8317
      %v8328 = vmul.f32 %v8313, %v8317
      %v8329 = vmul.f32 %v8314, %v8317
      %v8330 = vmul.f32 %v8315, %v8317
      %v8332 = vperm.slane %v8075, 0
      %v8334 = vadd.f32 %v8319, %v8332
      %v8335 = vadd.f32 %v8320, %v8332
      %v8336 = vadd.f32 %v8321, %v8332
      %v8337 = vadd.f32 %v8322, %v8332
      %v8338 = vadd.f32 %v8323, %v8332
      %v8339 = vadd.f32 %v8324, %v8332
      %v8340 = vadd.f32 %v8325, %v8332
      %v8341 = vadd.f32 %v8326, %v8332
      %v8342 = vadd.f32 %v8327, %v8332
      %v8343 = vadd.f32 %v8328, %v8332
      %v8344 = vadd.f32 %v8329, %v8332
      %v8345 = vadd.f32 %v8330, %v8332
      %v8346 = vpack.c.bf16 %v8335, %v8334
      %v8347 = vpack.c.bf16 %v8337, %v8336
      %v8348 = vpack.c.bf16 %v8339, %v8338
      %v8349 = vpack.c.bf16 %v8341, %v8340
      %v8350 = vpack.c.bf16 %v8343, %v8342
      %v8351 = vpack.c.bf16 %v8345, %v8344
      %v8352 = vld [vmem:[%s645] sm:$0xff]
      %v8353 = vld [vmem:[%s645 + $0x8] sm:$0xff]
      %v8354 = vld [vmem:[%s645 + $0x10] sm:$0xff]
      %v8355 = vld [vmem:[%s645 + $0x18] sm:$0xff]
      %v8356 = vld [vmem:[%s645 + $0x20] sm:$0xff]
      %v8357 = vld [vmem:[%s645 + $0x28] sm:$0xff]
      %v8358 = vld [vmem:[%s645 + $0x30] sm:$0xff]
      %v8359 = vld [vmem:[%s645 + $0x38] sm:$0xff]
      %v8360 = vld [vmem:[%s645 + $0x40] sm:$0xff]
      %v8361 = vld [vmem:[%s645 + $0x48] sm:$0xff]
      %v8362 = vld [vmem:[%s645 + $0x50] sm:$0xff]
      %v8363 = vld [vmem:[%s645 + $0x58] sm:$0xff]
      %v8364 = vld [vmem:[%s645 + $0x60] sm:$0xff]
      %v8365 = vld [vmem:[%s645 + $0x68] sm:$0xff]
      %v8366 = vld [vmem:[%s645 + $0x70] sm:$0xff]
      %v8367 = vld [vmem:[%s645 + $0x78] sm:$0xff]
      %v8368 = vld [vmem:[%s649] sm:$0x3]
      %v8370 = vperm.slane %v8368, 0
      %v8371 = vperm.slane %v8368, 1
      %v8390 = vunpack.c.l.b16 %v8352
      %v8391 = vunpack.c.h.b16 %v8352
      %v8392 = vunpack.c.l.b16 %v8353
      %v8393 = vunpack.c.h.b16 %v8353
      %v8394 = vunpack.c.l.b16 %v8354
      %v8395 = vunpack.c.h.b16 %v8354
      %v8396 = vunpack.c.l.b16 %v8355
      %v8397 = vunpack.c.h.b16 %v8355
      %v8398 = vunpack.c.l.b16 %v8356
      %v8399 = vunpack.c.h.b16 %v8356
      %v8400 = vunpack.c.l.b16 %v8357
      %v8401 = vunpack.c.h.b16 %v8357
      %v8402 = vunpack.c.l.b16 %v8358
      %v8403 = vunpack.c.h.b16 %v8358
      %v8404 = vunpack.c.l.b16 %v8359
      %v8405 = vunpack.c.h.b16 %v8359
      %v8406 = vunpack.c.l.b16 %v8360
      %v8407 = vunpack.c.h.b16 %v8360
      %v8408 = vunpack.c.l.b16 %v8361
      %v8409 = vunpack.c.h.b16 %v8361
      %v8410 = vunpack.c.l.b16 %v8362
      %v8411 = vunpack.c.h.b16 %v8362
      %v8412 = vunpack.c.l.b16 %v8363
      %v8413 = vunpack.c.h.b16 %v8363
      %v8414 = vunpack.c.l.b16 %v8364
      %v8415 = vunpack.c.h.b16 %v8364
      %v8416 = vunpack.c.l.b16 %v8365
      %v8417 = vunpack.c.h.b16 %v8365
      %v8418 = vunpack.c.l.b16 %v8366
      %v8419 = vunpack.c.h.b16 %v8366
      %v8420 = vunpack.c.l.b16 %v8367
      %v8421 = vunpack.c.h.b16 %v8367
      %v8422 = vpack.c.b16 %v8392, %v8390
      %v8423 = vpack.c.b16 %v8393, %v8391
      %v8424 = vpack.c.b16 %v8396, %v8394
      %v8425 = vpack.c.b16 %v8397, %v8395
      %v8426 = vpack.c.b16 %v8400, %v8398
      %v8427 = vpack.c.b16 %v8401, %v8399
      %v8428 = vpack.c.b16 %v8404, %v8402
      %v8429 = vpack.c.b16 %v8405, %v8403
      %v8430 = vpack.c.b16 %v8408, %v8406
      %v8431 = vpack.c.b16 %v8409, %v8407
      %v8432 = vpack.c.b16 %v8412, %v8410
      %v8433 = vpack.c.b16 %v8413, %v8411
      %v8434 = vpack.c.b16 %v8416, %v8414
      %v8435 = vpack.c.b16 %v8417, %v8415
      %v8436 = vpack.c.b16 %v8420, %v8418
      %v8437 = vpack.c.b16 %v8421, %v8419
      %8454 = vmatpush.bf16.msra.mxu0 %v8436
      %8455 = vmatpush.bf16.msra.mxu0 %v8434
      %8456 = vmatpush.bf16.msra.mxu0 %v8432
      %8457 = vmatpush.bf16.msra.mxu0 %v8430
      %8458 = vmatpush.bf16.msra.mxu0 %v8428
      %8459 = vmatpush.bf16.msra.mxu0 %v8426
      %8460 = vmatpush.bf16.msra.mxu0 %v8424
      %8461 = vmatpush.bf16.msra.mxu0 %v8422
      %8462 = vmatmul.bf16.gmra.mxu0 %v8346
      %v8463 = vpop.f32.mrf.mxu0
      %v8464 = vadd.f32 %v8370, %v8463
      %v8465 = vpop.f32.mrf.mxu0
      %v8466 = vadd.f32 %v8370, %v8465
      %8467 = vmatmul.bf16.gmra.mxu0 %v8347
      %v8468 = vpop.f32.mrf.mxu0
      %v8469 = vadd.f32 %v8370, %v8468
      %v8470 = vpop.f32.mrf.mxu0
      %v8471 = vadd.f32 %v8370, %v8470
      %8472 = vmatmul.bf16.gmra.mxu0 %v8348
      %v8473 = vpop.f32.mrf.mxu0
      %v8474 = vadd.f32 %v8370, %v8473
      %v8475 = vpop.f32.mrf.mxu0
      %v8476 = vadd.f32 %v8370, %v8475
      %8477 = vmatmul.bf16.gmra.mxu0 %v8349
      %v8478 = vpop.f32.mrf.mxu0
      %v8479 = vadd.f32 %v8370, %v8478
      %v8480 = vpop.f32.mrf.mxu0
      %v8481 = vadd.f32 %v8370, %v8480
      %8482 = vmatmul.bf16.gmra.mxu0 %v8350
      %v8483 = vpop.f32.mrf.mxu0
      %v8484 = vadd.f32 %v8370, %v8483
      %v8485 = vpop.f32.mrf.mxu0
      %v8486 = vadd.f32 %v8370, %v8485
      %8487 = vmatmul.bf16.gmra.mxu0 %v8351
      %v8488 = vpop.f32.mrf.mxu0
      %v8489 = vadd.f32 %v8370, %v8488
      %v8490 = vpop.f32.mrf.mxu0
      %v8491 = vadd.f32 %v8370, %v8490
      %8492 = vdwg.mxu0
      %8493 = vmatpush.bf16.msra.mxu0 %v8437
      %8494 = vmatpush.bf16.msra.mxu0 %v8435
      %8495 = vmatpush.bf16.msra.mxu0 %v8433
      %8496 = vmatpush.bf16.msra.mxu0 %v8431
      %8497 = vmatpush.bf16.msra.mxu0 %v8429
      %8498 = vmatpush.bf16.msra.mxu0 %v8427
      %8499 = vmatpush.bf16.msra.mxu0 %v8425
      %8500 = vmatpush.bf16.msra.mxu0 %v8423
      %8501 = vmatmul.bf16.gmra.mxu0 %v8346
      %v8502 = vpop.f32.mrf.mxu0
      %v8503 = vadd.f32 %v8371, %v8502
      %v8504 = vpop.f32.mrf.mxu0
      %v8505 = vadd.f32 %v8371, %v8504
      %8506 = vmatmul.bf16.gmra.mxu0 %v8347
      %v8507 = vpop.f32.mrf.mxu0
      %v8508 = vadd.f32 %v8371, %v8507
      %v8509 = vpop.f32.mrf.mxu0
      %v8510 = vadd.f32 %v8371, %v8509
      %8511 = vmatmul.bf16.gmra.mxu0 %v8348
      %v8512 = vpop.f32.mrf.mxu0
      %v8513 = vadd.f32 %v8371, %v8512
      %v8514 = vpop.f32.mrf.mxu0
      %v8515 = vadd.f32 %v8371, %v8514
      %8516 = vmatmul.bf16.gmra.mxu0 %v8349
      %v8517 = vpop.f32.mrf.mxu0
      %v8518 = vadd.f32 %v8371, %v8517
      %v8519 = vpop.f32.mrf.mxu0
      %v8520 = vadd.f32 %v8371, %v8519
      %8521 = vmatmul.bf16.gmra.mxu0 %v8350
      %v8522 = vpop.f32.mrf.mxu0
      %v8523 = vadd.f32 %v8371, %v8522
      %v8524 = vpop.f32.mrf.mxu0
      %v8525 = vadd.f32 %v8371, %v8524
      %8526 = vmatmul.bf16.gmra.mxu0 %v8351
      %v8527 = vpop.f32.mrf.mxu0
      %v8528 = vadd.f32 %v8371, %v8527
      %v8529 = vpop.f32.mrf.mxu0
      %v8530 = vadd.f32 %v8371, %v8529
      %8531 = vdwg.mxu0
      %v8532 = vmul.f32 %v8464, 0.5
      %v8533 = vmul.f32 %v8503, 0.5
      %v8534 = vmul.f32 %v8466, 0.5
      %v8535 = vmul.f32 %v8505, 0.5
      %v8536 = vmul.f32 %v8469, 0.5
      %v8537 = vmul.f32 %v8508, 0.5
      %v8538 = vmul.f32 %v8471, 0.5
      %v8539 = vmul.f32 %v8510, 0.5
      %v8540 = vmul.f32 %v8474, 0.5
      %v8541 = vmul.f32 %v8513, 0.5
      %v8542 = vmul.f32 %v8476, 0.5
      %v8543 = vmul.f32 %v8515, 0.5
      %v8544 = vmul.f32 %v8479, 0.5
      %v8545 = vmul.f32 %v8518, 0.5
      %v8546 = vmul.f32 %v8481, 0.5
      %v8547 = vmul.f32 %v8520, 0.5
      %v8548 = vmul.f32 %v8484, 0.5
      %v8549 = vmul.f32 %v8523, 0.5
      %v8550 = vmul.f32 %v8486, 0.5
      %v8551 = vmul.f32 %v8525, 0.5
      %v8552 = vmul.f32 %v8489, 0.5
      %v8553 = vmul.f32 %v8528, 0.5
      %v8554 = vmul.f32 %v8491, 0.5
      %v8555 = vmul.f32 %v8530, 0.5
      %v8556 = vmul.f32 %v8464, 0.044715
      %v8557 = vmul.f32 %v8503, 0.044715
      %v8558 = vmul.f32 %v8466, 0.044715
      %v8559 = vmul.f32 %v8505, 0.044715
      %v8560 = vmul.f32 %v8469, 0.044715
      %v8561 = vmul.f32 %v8508, 0.044715
      %v8562 = vmul.f32 %v8471, 0.044715
      %v8563 = vmul.f32 %v8510, 0.044715
      %v8564 = vmul.f32 %v8474, 0.044715
      %v8565 = vmul.f32 %v8513, 0.044715
      %v8566 = vmul.f32 %v8476, 0.044715
      %v8567 = vmul.f32 %v8515, 0.044715
      %v8568 = vmul.f32 %v8479, 0.044715
      %v8569 = vmul.f32 %v8518, 0.044715
      %v8570 = vmul.f32 %v8481, 0.044715
      %v8571 = vmul.f32 %v8520, 0.044715
      %v8572 = vmul.f32 %v8484, 0.044715
      %v8573 = vmul.f32 %v8523, 0.044715
      %v8574 = vmul.f32 %v8486, 0.044715
      %v8575 = vmul.f32 %v8525, 0.044715
      %v8576 = vmul.f32 %v8489, 0.044715
      %v8577 = vmul.f32 %v8528, 0.044715
      %v8578 = vmul.f32 %v8491, 0.044715
      %v8579 = vmul.f32 %v8530, 0.044715
      %v8580 = vmul.f32 %v8556, %v8464
      %v8581 = vmul.f32 %v8557, %v8503
      %v8582 = vmul.f32 %v8558, %v8466
      %v8583 = vmul.f32 %v8559, %v8505
      %v8584 = vmul.f32 %v8560, %v8469
      %v8585 = vmul.f32 %v8561, %v8508
      %v8586 = vmul.f32 %v8562, %v8471
      %v8587 = vmul.f32 %v8563, %v8510
      %v8588 = vmul.f32 %v8564, %v8474
      %v8589 = vmul.f32 %v8565, %v8513
      %v8590 = vmul.f32 %v8566, %v8476
      %v8591 = vmul.f32 %v8567, %v8515
      %v8592 = vmul.f32 %v8568, %v8479
      %v8593 = vmul.f32 %v8569, %v8518
      %v8594 = vmul.f32 %v8570, %v8481
      %v8595 = vmul.f32 %v8571, %v8520
      %v8596 = vmul.f32 %v8572, %v8484
      %v8597 = vmul.f32 %v8573, %v8523
      %v8598 = vmul.f32 %v8574, %v8486
      %v8599 = vmul.f32 %v8575, %v8525
      %v8600 = vmul.f32 %v8576, %v8489
      %v8601 = vmul.f32 %v8577, %v8528
      %v8602 = vmul.f32 %v8578, %v8491
      %v8603 = vmul.f32 %v8579, %v8530
      %v8604 = vmul.f32 %v8580, %v8464
      %v8605 = vmul.f32 %v8581, %v8503
      %v8606 = vmul.f32 %v8582, %v8466
      %v8607 = vmul.f32 %v8583, %v8505
      %v8608 = vmul.f32 %v8584, %v8469
      %v8609 = vmul.f32 %v8585, %v8508
      %v8610 = vmul.f32 %v8586, %v8471
      %v8611 = vmul.f32 %v8587, %v8510
      %v8612 = vmul.f32 %v8588, %v8474
      %v8613 = vmul.f32 %v8589, %v8513
      %v8614 = vmul.f32 %v8590, %v8476
      %v8615 = vmul.f32 %v8591, %v8515
      %v8616 = vmul.f32 %v8592, %v8479
      %v8617 = vmul.f32 %v8593, %v8518
      %v8618 = vmul.f32 %v8594, %v8481
      %v8619 = vmul.f32 %v8595, %v8520
      %v8620 = vmul.f32 %v8596, %v8484
      %v8621 = vmul.f32 %v8597, %v8523
      %v8622 = vmul.f32 %v8598, %v8486
      %v8623 = vmul.f32 %v8599, %v8525
      %v8624 = vmul.f32 %v8600, %v8489
      %v8625 = vmul.f32 %v8601, %v8528
      %v8626 = vmul.f32 %v8602, %v8491
      %v8627 = vmul.f32 %v8603, %v8530
      %v8628 = vadd.f32 %v8464, %v8604
      %v8629 = vadd.f32 %v8503, %v8605
      %v8630 = vadd.f32 %v8466, %v8606
      %v8631 = vadd.f32 %v8505, %v8607
      %v8632 = vadd.f32 %v8469, %v8608
      %v8633 = vadd.f32 %v8508, %v8609
      %v8634 = vadd.f32 %v8471, %v8610
      %v8635 = vadd.f32 %v8510, %v8611
      %v8636 = vadd.f32 %v8474, %v8612
      %v8637 = vadd.f32 %v8513, %v8613
      %v8638 = vadd.f32 %v8476, %v8614
      %v8639 = vadd.f32 %v8515, %v8615
      %v8640 = vadd.f32 %v8479, %v8616
      %v8641 = vadd.f32 %v8518, %v8617
      %v8642 = vadd.f32 %v8481, %v8618
      %v8643 = vadd.f32 %v8520, %v8619
      %v8644 = vadd.f32 %v8484, %v8620
      %v8645 = vadd.f32 %v8523, %v8621
      %v8646 = vadd.f32 %v8486, %v8622
      %v8647 = vadd.f32 %v8525, %v8623
      %v8648 = vadd.f32 %v8489, %v8624
      %v8649 = vadd.f32 %v8528, %v8625
      %v8650 = vadd.f32 %v8491, %v8626
      %v8651 = vadd.f32 %v8530, %v8627
      %v8652 = vmul.f32 %v8628, 0.7978846
      %v8653 = vmul.f32 %v8629, 0.7978846
      %v8654 = vmul.f32 %v8630, 0.7978846
      %v8655 = vmul.f32 %v8631, 0.7978846
      %v8656 = vmul.f32 %v8632, 0.7978846
      %v8657 = vmul.f32 %v8633, 0.7978846
      %v8658 = vmul.f32 %v8634, 0.7978846
      %v8659 = vmul.f32 %v8635, 0.7978846
      %v8660 = vmul.f32 %v8636, 0.7978846
      %v8661 = vmul.f32 %v8637, 0.7978846
      %v8662 = vmul.f32 %v8638, 0.7978846
      %v8663 = vmul.f32 %v8639, 0.7978846
      %v8664 = vmul.f32 %v8640, 0.7978846
      %v8665 = vmul.f32 %v8641, 0.7978846
      %v8666 = vmul.f32 %v8642, 0.7978846
      %v8667 = vmul.f32 %v8643, 0.7978846
      %v8668 = vmul.f32 %v8644, 0.7978846
      %v8669 = vmul.f32 %v8645, 0.7978846
      %v8670 = vmul.f32 %v8646, 0.7978846
      %v8671 = vmul.f32 %v8647, 0.7978846
      %v8672 = vmul.f32 %v8648, 0.7978846
      %v8673 = vmul.f32 %v8649, 0.7978846
      %v8674 = vmul.f32 %v8650, 0.7978846
      %v8675 = vmul.f32 %v8651, 0.7978846
      %v8676 = vtanh.pop %v8652
      %v8677 = vtanh.pop %v8653
      %v8678 = vtanh.pop %v8654
      %v8679 = vtanh.pop %v8655
      %v8680 = vtanh.pop %v8656
      %v8681 = vtanh.pop %v8657
      %v8682 = vtanh.pop %v8658
      %v8683 = vtanh.pop %v8659
      %v8684 = vtanh.pop %v8660
      %v8685 = vtanh.pop %v8661
      %v8686 = vtanh.pop %v8662
      %v8687 = vtanh.pop %v8663
      %v8688 = vtanh.pop %v8664
      %v8689 = vtanh.pop %v8665
      %v8690 = vtanh.pop %v8666
      %v8691 = vtanh.pop %v8667
      %v8692 = vtanh.pop %v8668
      %v8693 = vtanh.pop %v8669
      %v8694 = vtanh.pop %v8670
      %v8695 = vtanh.pop %v8671
      %v8696 = vtanh.pop %v8672
      %v8697 = vtanh.pop %v8673
      %v8698 = vtanh.pop %v8674
      %v8699 = vtanh.pop %v8675
      %v8700 = vadd.f32 %v8676, 1.0
      %v8701 = vadd.f32 %v8677, 1.0
      %v8702 = vadd.f32 %v8678, 1.0
      %v8703 = vadd.f32 %v8679, 1.0
      %v8704 = vadd.f32 %v8680, 1.0
      %v8705 = vadd.f32 %v8681, 1.0
      %v8706 = vadd.f32 %v8682, 1.0
      %v8707 = vadd.f32 %v8683, 1.0
      %v8708 = vadd.f32 %v8684, 1.0
      %v8709 = vadd.f32 %v8685, 1.0
      %v8710 = vadd.f32 %v8686, 1.0
      %v8711 = vadd.f32 %v8687, 1.0
      %v8712 = vadd.f32 %v8688, 1.0
      %v8713 = vadd.f32 %v8689, 1.0
      %v8714 = vadd.f32 %v8690, 1.0
      %v8715 = vadd.f32 %v8691, 1.0
      %v8716 = vadd.f32 %v8692, 1.0
      %v8717 = vadd.f32 %v8693, 1.0
      %v8718 = vadd.f32 %v8694, 1.0
      %v8719 = vadd.f32 %v8695, 1.0
      %v8720 = vadd.f32 %v8696, 1.0
      %v8721 = vadd.f32 %v8697, 1.0
      %v8722 = vadd.f32 %v8698, 1.0
      %v8723 = vadd.f32 %v8699, 1.0
      %v8724 = vmul.f32 %v8532, %v8700
      %v8725 = vmul.f32 %v8533, %v8701
      %v8726 = vmul.f32 %v8534, %v8702
      %v8727 = vmul.f32 %v8535, %v8703
      %v8728 = vmul.f32 %v8536, %v8704
      %v8729 = vmul.f32 %v8537, %v8705
      %v8730 = vmul.f32 %v8538, %v8706
      %v8731 = vmul.f32 %v8539, %v8707
      %v8732 = vmul.f32 %v8540, %v8708
      %v8733 = vmul.f32 %v8541, %v8709
      %v8734 = vmul.f32 %v8542, %v8710
      %v8735 = vmul.f32 %v8543, %v8711
      %v8736 = vmul.f32 %v8544, %v8712
      %v8737 = vmul.f32 %v8545, %v8713
      %v8738 = vmul.f32 %v8546, %v8714
      %v8739 = vmul.f32 %v8547, %v8715
      %v8740 = vmul.f32 %v8548, %v8716
      %v8741 = vmul.f32 %v8549, %v8717
      %v8742 = vmul.f32 %v8550, %v8718
      %v8743 = vmul.f32 %v8551, %v8719
      %v8744 = vmul.f32 %v8552, %v8720
      %v8745 = vmul.f32 %v8553, %v8721
      %v8746 = vmul.f32 %v8554, %v8722
      %v8747 = vmul.f32 %v8555, %v8723
      %v8748 = vpack.c.bf16 %v8726, %v8724
      %v8749 = vpack.c.bf16 %v8727, %v8725
      %v8750 = vpack.c.bf16 %v8730, %v8728
      %v8751 = vpack.c.bf16 %v8731, %v8729
      %v8752 = vpack.c.bf16 %v8734, %v8732
      %v8753 = vpack.c.bf16 %v8735, %v8733
      %v8754 = vpack.c.bf16 %v8738, %v8736
      %v8755 = vpack.c.bf16 %v8739, %v8737
      %v8756 = vpack.c.bf16 %v8742, %v8740
      %v8757 = vpack.c.bf16 %v8743, %v8741
      %v8758 = vpack.c.bf16 %v8746, %v8744
      %v8759 = vpack.c.bf16 %v8747, %v8745
      %v8760 = vld [vmem:[%s654] sm:$0xf]
      %v8761 = vld [vmem:[%s654 + $0x4] sm:$0xf]
      %v8762 = vld [vmem:[%s654 + $0x8] sm:$0xf]
      %v8763 = vld [vmem:[%s654 + $0xc] sm:$0xf]
      %v8764 = vld [vmem:[%s654 + $0x10] sm:$0xf]
      %v8765 = vld [vmem:[%s654 + $0x14] sm:$0xf]
      %v8766 = vld [vmem:[%s654 + $0x18] sm:$0xf]
      %v8767 = vld [vmem:[%s654 + $0x1c] sm:$0xf]
      %v8768 = vld [vmem:[%s654 + $0x20] sm:$0xf]
      %v8769 = vld [vmem:[%s654 + $0x24] sm:$0xf]
      %v8770 = vld [vmem:[%s654 + $0x28] sm:$0xf]
      %v8771 = vld [vmem:[%s654 + $0x2c] sm:$0xf]
      %v8772 = vld [vmem:[%s654 + $0x30] sm:$0xf]
      %v8773 = vld [vmem:[%s654 + $0x34] sm:$0xf]
      %v8774 = vld [vmem:[%s654 + $0x38] sm:$0xf]
      %v8775 = vld [vmem:[%s654 + $0x3c] sm:$0xf]
      %v8776 = vld [vmem:[%s654 + $0x40] sm:$0xf]
      %v8777 = vld [vmem:[%s654 + $0x44] sm:$0xf]
      %v8778 = vld [vmem:[%s654 + $0x48] sm:$0xf]
      %v8779 = vld [vmem:[%s654 + $0x4c] sm:$0xf]
      %v8780 = vld [vmem:[%s654 + $0x50] sm:$0xf]
      %v8781 = vld [vmem:[%s654 + $0x54] sm:$0xf]
      %v8782 = vld [vmem:[%s654 + $0x58] sm:$0xf]
      %v8783 = vld [vmem:[%s654 + $0x5c] sm:$0xf]
      %v8784 = vld [vmem:[%s654 + $0x60] sm:$0xf]
      %v8785 = vld [vmem:[%s654 + $0x64] sm:$0xf]
      %v8786 = vld [vmem:[%s654 + $0x68] sm:$0xf]
      %v8787 = vld [vmem:[%s654 + $0x6c] sm:$0xf]
      %v8788 = vld [vmem:[%s654 + $0x70] sm:$0xf]
      %v8789 = vld [vmem:[%s654 + $0x74] sm:$0xf]
      %v8790 = vld [vmem:[%s654 + $0x78] sm:$0xf]
      %v8791 = vld [vmem:[%s654 + $0x7c] sm:$0xf]
      %v8792 = vld [vmem:[%s657] sm:$0x1]
      %v8794 = vperm.slane %v8792, 0
      %v8828 = vunpack.c.l.b16 %v8760
      %v8829 = vunpack.c.l.b16 %v8761
      %v8830 = vunpack.c.l.b16 %v8762
      %v8831 = vunpack.c.l.b16 %v8763
      %v8832 = vunpack.c.l.b16 %v8764
      %v8833 = vunpack.c.l.b16 %v8765
      %v8834 = vunpack.c.l.b16 %v8766
      %v8835 = vunpack.c.l.b16 %v8767
      %v8836 = vunpack.c.l.b16 %v8768
      %v8837 = vunpack.c.l.b16 %v8769
      %v8838 = vunpack.c.l.b16 %v8770
      %v8839 = vunpack.c.l.b16 %v8771
      %v8840 = vunpack.c.l.b16 %v8772
      %v8841 = vunpack.c.l.b16 %v8773
      %v8842 = vunpack.c.l.b16 %v8774
      %v8843 = vunpack.c.l.b16 %v8775
      %v8844 = vunpack.c.l.b16 %v8776
      %v8845 = vunpack.c.l.b16 %v8777
      %v8846 = vunpack.c.l.b16 %v8778
      %v8847 = vunpack.c.l.b16 %v8779
      %v8848 = vunpack.c.l.b16 %v8780
      %v8849 = vunpack.c.l.b16 %v8781
      %v8850 = vunpack.c.l.b16 %v8782
      %v8851 = vunpack.c.l.b16 %v8783
      %v8852 = vunpack.c.l.b16 %v8784
      %v8853 = vunpack.c.l.b16 %v8785
      %v8854 = vunpack.c.l.b16 %v8786
      %v8855 = vunpack.c.l.b16 %v8787
      %v8856 = vunpack.c.l.b16 %v8788
      %v8857 = vunpack.c.l.b16 %v8789
      %v8858 = vunpack.c.l.b16 %v8790
      %v8859 = vunpack.c.l.b16 %v8791
      %v8860 = vpack.c.b16 %v8829, %v8828
      %v8861 = vpack.c.b16 %v8831, %v8830
      %v8862 = vpack.c.b16 %v8833, %v8832
      %v8863 = vpack.c.b16 %v8835, %v8834
      %v8864 = vpack.c.b16 %v8837, %v8836
      %v8865 = vpack.c.b16 %v8839, %v8838
      %v8866 = vpack.c.b16 %v8841, %v8840
      %v8867 = vpack.c.b16 %v8843, %v8842
      %v8868 = vpack.c.b16 %v8845, %v8844
      %v8869 = vpack.c.b16 %v8847, %v8846
      %v8870 = vpack.c.b16 %v8849, %v8848
      %v8871 = vpack.c.b16 %v8851, %v8850
      %v8872 = vpack.c.b16 %v8853, %v8852
      %v8873 = vpack.c.b16 %v8855, %v8854
      %v8874 = vpack.c.b16 %v8857, %v8856
      %v8875 = vpack.c.b16 %v8859, %v8858
      %8892 = vmatpush.bf16.msra.mxu0 %v8867
      %8893 = vmatpush.bf16.msra.mxu0 %v8866
      %8894 = vmatpush.bf16.msra.mxu0 %v8865
      %8895 = vmatpush.bf16.msra.mxu0 %v8864
      %8896 = vmatpush.bf16.msra.mxu0 %v8863
      %8897 = vmatpush.bf16.msra.mxu0 %v8862
      %8898 = vmatpush.bf16.msra.mxu0 %v8861
      %8899 = vmatpush.bf16.msra.mxu0 %v8860
      %8900 = vmatmul.bf16.gmra.mxu0 %v8748
      %v8901 = vpop.f32.mrf.mxu0
      %v8902 = vadd.f32 %v8794, %v8901
      %v8903 = vpop.f32.mrf.mxu0
      %v8904 = vadd.f32 %v8794, %v8903
      %8905 = vmatmul.bf16.gmra.mxu0 %v8750
      %v8906 = vpop.f32.mrf.mxu0
      %v8907 = vadd.f32 %v8794, %v8906
      %v8908 = vpop.f32.mrf.mxu0
      %v8909 = vadd.f32 %v8794, %v8908
      %8910 = vmatmul.bf16.gmra.mxu0 %v8752
      %v8911 = vpop.f32.mrf.mxu0
      %v8912 = vadd.f32 %v8794, %v8911
      %v8913 = vpop.f32.mrf.mxu0
      %v8914 = vadd.f32 %v8794, %v8913
      %8915 = vmatmul.bf16.gmra.mxu0 %v8754
      %v8916 = vpop.f32.mrf.mxu0
      %v8917 = vadd.f32 %v8794, %v8916
      %v8918 = vpop.f32.mrf.mxu0
      %v8919 = vadd.f32 %v8794, %v8918
      %8920 = vmatmul.bf16.gmra.mxu0 %v8756
      %v8921 = vpop.f32.mrf.mxu0
      %v8922 = vadd.f32 %v8794, %v8921
      %v8923 = vpop.f32.mrf.mxu0
      %v8924 = vadd.f32 %v8794, %v8923
      %8925 = vmatmul.bf16.gmra.mxu0 %v8758
      %v8926 = vpop.f32.mrf.mxu0
      %v8927 = vadd.f32 %v8794, %v8926
      %v8928 = vpop.f32.mrf.mxu0
      %v8929 = vadd.f32 %v8794, %v8928
      %8930 = vdwg.mxu0
      %8931 = vmatpush.bf16.msra.mxu0 %v8875
      %8932 = vmatpush.bf16.msra.mxu0 %v8874
      %8933 = vmatpush.bf16.msra.mxu0 %v8873
      %8934 = vmatpush.bf16.msra.mxu0 %v8872
      %8935 = vmatpush.bf16.msra.mxu0 %v8871
      %8936 = vmatpush.bf16.msra.mxu0 %v8870
      %8937 = vmatpush.bf16.msra.mxu0 %v8869
      %8938 = vmatpush.bf16.msra.mxu0 %v8868
      %8939 = vmatmul.bf16.gmra.mxu0 %v8749
      %v8940 = vpop.f32.mrf.mxu0
      %v8941 = vadd.f32 %v8902, %v8940
      %v8942 = vpop.f32.mrf.mxu0
      %v8943 = vadd.f32 %v8904, %v8942
      %8944 = vmatmul.bf16.gmra.mxu0 %v8751
      %v8945 = vpop.f32.mrf.mxu0
      %v8946 = vadd.f32 %v8907, %v8945
      %v8947 = vpop.f32.mrf.mxu0
      %v8948 = vadd.f32 %v8909, %v8947
      %8949 = vmatmul.bf16.gmra.mxu0 %v8753
      %v8950 = vpop.f32.mrf.mxu0
      %v8951 = vadd.f32 %v8912, %v8950
      %v8952 = vpop.f32.mrf.mxu0
      %v8953 = vadd.f32 %v8914, %v8952
      %8954 = vmatmul.bf16.gmra.mxu0 %v8755
      %v8955 = vpop.f32.mrf.mxu0
      %v8956 = vadd.f32 %v8917, %v8955
      %v8957 = vpop.f32.mrf.mxu0
      %v8958 = vadd.f32 %v8919, %v8957
      %8959 = vmatmul.bf16.gmra.mxu0 %v8757
      %v8960 = vpop.f32.mrf.mxu0
      %v8961 = vadd.f32 %v8922, %v8960
      %v8962 = vpop.f32.mrf.mxu0
      %v8963 = vadd.f32 %v8924, %v8962
      %8964 = vmatmul.bf16.gmra.mxu0 %v8759
      %v8965 = vpop.f32.mrf.mxu0
      %v8966 = vadd.f32 %v8927, %v8965
      %v8967 = vpop.f32.mrf.mxu0
      %v8968 = vadd.f32 %v8929, %v8967
      %8969 = vdwg.mxu0
      %v8970 = vadd.f32 %v8062, %v8941
      %v8971 = vadd.f32 %v8063, %v8943
      %v8972 = vadd.f32 %v8064, %v8946
      %v8973 = vadd.f32 %v8065, %v8948
      %v8974 = vadd.f32 %v8066, %v8951
      %v8975 = vadd.f32 %v8067, %v8953
      %v8976 = vadd.f32 %v8068, %v8956
      %v8977 = vadd.f32 %v8069, %v8958
      %v8978 = vadd.f32 %v8070, %v8961
      %v8979 = vadd.f32 %v8071, %v8963
      %v8980 = vadd.f32 %v8072, %v8966
      %v8981 = vadd.f32 %v8073, %v8968
      %8982 = vst [vmem:[#allocation2] sm:$0xff] %v8970
      %8983 = vst [vmem:[#allocation2 + $0x8] sm:$0xff] %v8971
      %8984 = vst [vmem:[#allocation2 + $0x10] sm:$0xff] %v8972
      %8985 = vst [vmem:[#allocation2 + $0x18] sm:$0xff] %v8973
      %8986 = vst [vmem:[#allocation2 + $0x20] sm:$0xff] %v8974
      %8987 = vst [vmem:[#allocation2 + $0x28] sm:$0xff] %v8975
      %8988 = vst [vmem:[#allocation2 + $0x30] sm:$0xff] %v8976
      %8989 = vst [vmem:[#allocation2 + $0x38] sm:$0xff] %v8977
      %8990 = vst [vmem:[#allocation2 + $0x40] sm:$0xff] %v8978
      %8991 = vst [vmem:[#allocation2 + $0x48] sm:$0xff] %v8979
      %8992 = vst [vmem:[#allocation2 + $0x50] sm:$0xff] %v8980
      %8993 = vst [vmem:[#allocation2 + $0x58] sm:$0xff] %v8981
      %p8994 = scmp.eq.s32.totalorder %s30, 1
      // Predicated region
      $region81: #{vision_processor_forward.3} parent=75 // pred_check
        %p8995 = pneg %p8994
      $region82: #{vision_processor_forward.3} parent=75 // pred_check_branch
        %8997 = sbr.rel (%p8995) target = $region84
      $region83: #{vision_processor_forward.3} parent=75 // pred_region
        %v8998 = vld [vmem:[#allocation2] sm:$0xff]
        %v8999 = vld [vmem:[#allocation2 + $0x8] sm:$0xff]
        %v9000 = vld [vmem:[#allocation2 + $0x10] sm:$0xff]
        %v9001 = vld [vmem:[#allocation2 + $0x18] sm:$0xff]
        %v9002 = vld [vmem:[#allocation2 + $0x20] sm:$0xff]
        %v9003 = vld [vmem:[#allocation2 + $0x28] sm:$0xff]
        %v9004 = vld [vmem:[#allocation2 + $0x30] sm:$0xff]
        %v9005 = vld [vmem:[#allocation2 + $0x38] sm:$0xff]
        %v9006 = vld [vmem:[#allocation2 + $0x40] sm:$0xff]
        %v9007 = vld [vmem:[#allocation2 + $0x48] sm:$0xff]
        %v9008 = vld [vmem:[#allocation2 + $0x50] sm:$0xff]
        %v9009 = vld [vmem:[#allocation2 + $0x58] sm:$0xff]
        %v9010 = vld [vmem:[%s12] sm:$0x1]
        %v9011 = vld [vmem:[%s13] sm:$0x1]
        %9012 = vadd.xlane.f32.xlu0 %v8998
        %v9013 = vpop.xlane.xlu0 %9012
        %9014 = vadd.xlane.f32.xlu0 %v8999
        %v9015 = vpop.xlane.xlu0 %9014
        %9016 = vadd.xlane.f32.xlu0 %v9000
        %v9017 = vpop.xlane.xlu0 %9016
        %9018 = vadd.xlane.f32.xlu0 %v9001
        %v9019 = vpop.xlane.xlu0 %9018
        %9020 = vadd.xlane.f32.xlu0 %v9002
        %v9021 = vpop.xlane.xlu0 %9020
        %9022 = vadd.xlane.f32.xlu0 %v9003
        %v9023 = vpop.xlane.xlu0 %9022
        %9024 = vadd.xlane.f32.xlu0 %v9004
        %v9025 = vpop.xlane.xlu0 %9024
        %9026 = vadd.xlane.f32.xlu0 %v9005
        %v9027 = vpop.xlane.xlu0 %9026
        %9028 = vadd.xlane.f32.xlu0 %v9006
        %v9029 = vpop.xlane.xlu0 %9028
        %9030 = vadd.xlane.f32.xlu0 %v9007
        %v9031 = vpop.xlane.xlu0 %9030
        %9032 = vadd.xlane.f32.xlu0 %v9008
        %v9033 = vpop.xlane.xlu0 %9032
        %9034 = vadd.xlane.f32.xlu0 %v9009
        %v9035 = vpop.xlane.xlu0 %9034
        %v9036 = vmul.f32 %v9013, %v749
        %v9037 = vmul.f32 %v9015, %v749
        %v9038 = vmul.f32 %v9017, %v749
        %v9039 = vmul.f32 %v9019, %v749
        %v9040 = vmul.f32 %v9021, %v749
        %v9041 = vmul.f32 %v9023, %v749
        %v9042 = vmul.f32 %v9025, %v749
        %v9043 = vmul.f32 %v9027, %v749
        %v9044 = vmul.f32 %v9029, %v749
        %v9045 = vmul.f32 %v9031, %v749
        %v9046 = vmul.f32 %v9033, %v749
        %v9047 = vmul.f32 %v9035, %v749
        %v9048 = vsub.f32 %v8998, %v9036
        %v9049 = vsub.f32 %v8999, %v9037
        %v9050 = vsub.f32 %v9000, %v9038
        %v9051 = vsub.f32 %v9001, %v9039
        %v9052 = vsub.f32 %v9002, %v9040
        %v9053 = vsub.f32 %v9003, %v9041
        %v9054 = vsub.f32 %v9004, %v9042
        %v9055 = vsub.f32 %v9005, %v9043
        %v9056 = vsub.f32 %v9006, %v9044
        %v9057 = vsub.f32 %v9007, %v9045
        %v9058 = vsub.f32 %v9008, %v9046
        %v9059 = vsub.f32 %v9009, %v9047
        %v9060 = vmul.f32 %v9048, %v9048
        %v9061 = vmul.f32 %v9049, %v9049
        %v9062 = vmul.f32 %v9050, %v9050
        %v9063 = vmul.f32 %v9051, %v9051
        %v9064 = vmul.f32 %v9052, %v9052
        %v9065 = vmul.f32 %v9053, %v9053
        %v9066 = vmul.f32 %v9054, %v9054
        %v9067 = vmul.f32 %v9055, %v9055
        %v9068 = vmul.f32 %v9056, %v9056
        %v9069 = vmul.f32 %v9057, %v9057
        %v9070 = vmul.f32 %v9058, %v9058
        %v9071 = vmul.f32 %v9059, %v9059
        %9072 = vadd.xlane.f32.xlu0 %v9060
        %v9073 = vpop.xlane.xlu0 %9072
        %9074 = vadd.xlane.f32.xlu0 %v9061
        %v9075 = vpop.xlane.xlu0 %9074
        %9076 = vadd.xlane.f32.xlu0 %v9062
        %v9077 = vpop.xlane.xlu0 %9076
        %9078 = vadd.xlane.f32.xlu0 %v9063
        %v9079 = vpop.xlane.xlu0 %9078
        %9080 = vadd.xlane.f32.xlu0 %v9064
        %v9081 = vpop.xlane.xlu0 %9080
        %9082 = vadd.xlane.f32.xlu0 %v9065
        %v9083 = vpop.xlane.xlu0 %9082
        %9084 = vadd.xlane.f32.xlu0 %v9066
        %v9085 = vpop.xlane.xlu0 %9084
        %9086 = vadd.xlane.f32.xlu0 %v9067
        %v9087 = vpop.xlane.xlu0 %9086
        %9088 = vadd.xlane.f32.xlu0 %v9068
        %v9089 = vpop.xlane.xlu0 %9088
        %9090 = vadd.xlane.f32.xlu0 %v9069
        %v9091 = vpop.xlane.xlu0 %9090
        %9092 = vadd.xlane.f32.xlu0 %v9070
        %v9093 = vpop.xlane.xlu0 %9092
        %9094 = vadd.xlane.f32.xlu0 %v9071
        %v9095 = vpop.xlane.xlu0 %9094
        %v9096 = vmul.f32 %v9073, %v749
        %v9097 = vmul.f32 %v9075, %v749
        %v9098 = vmul.f32 %v9077, %v749
        %v9099 = vmul.f32 %v9079, %v749
        %v9100 = vmul.f32 %v9081, %v749
        %v9101 = vmul.f32 %v9083, %v749
        %v9102 = vmul.f32 %v9085, %v749
        %v9103 = vmul.f32 %v9087, %v749
        %v9104 = vmul.f32 %v9089, %v749
        %v9105 = vmul.f32 %v9091, %v749
        %v9106 = vmul.f32 %v9093, %v749
        %v9107 = vmul.f32 %v9095, %v749
        %v9108 = vadd.f32 %v9096, 1e-05
        %v9109 = vadd.f32 %v9097, 1e-05
        %v9110 = vadd.f32 %v9098, 1e-05
        %v9111 = vadd.f32 %v9099, 1e-05
        %v9112 = vadd.f32 %v9100, 1e-05
        %v9113 = vadd.f32 %v9101, 1e-05
        %v9114 = vadd.f32 %v9102, 1e-05
        %v9115 = vadd.f32 %v9103, 1e-05
        %v9116 = vadd.f32 %v9104, 1e-05
        %v9117 = vadd.f32 %v9105, 1e-05
        %v9118 = vadd.f32 %v9106, 1e-05
        %v9119 = vadd.f32 %v9107, 1e-05
        %v9120 = vrsqrt.pop %v9108
        %v9121 = vmul.f32 %v9120, %v9108
        %v9122 = vmul.f32 %v9121, %v9120
        %v9123 = vmul.f32 0.5, %v9122
        %v9124 = vsub.f32 1.5, %v9123
        %v9125 = vmul.f32 %v9120, %v9124
        %vm9126 = vweird.f32 %v9108
        %vm9127 = vweird.f32 %v9120
        %vm9128 = vmor %vm9126, %vm9127
        %v9129 = vsel %vm9128, %v9120, %v9125
        %v9130 = vrsqrt.pop %v9109
        %v9131 = vmul.f32 %v9130, %v9109
        %v9132 = vmul.f32 %v9131, %v9130
        %v9133 = vmul.f32 0.5, %v9132
        %v9134 = vsub.f32 1.5, %v9133
        %v9135 = vmul.f32 %v9130, %v9134
        %vm9136 = vweird.f32 %v9109
        %vm9137 = vweird.f32 %v9130
        %vm9138 = vmor %vm9136, %vm9137
        %v9139 = vsel %vm9138, %v9130, %v9135
        %v9140 = vrsqrt.pop %v9110
        %v9141 = vmul.f32 %v9140, %v9110
        %v9142 = vmul.f32 %v9141, %v9140
        %v9143 = vmul.f32 0.5, %v9142
        %v9144 = vsub.f32 1.5, %v9143
        %v9145 = vmul.f32 %v9140, %v9144
        %vm9146 = vweird.f32 %v9110
        %vm9147 = vweird.f32 %v9140
        %vm9148 = vmor %vm9146, %vm9147
        %v9149 = vsel %vm9148, %v9140, %v9145
        %v9150 = vrsqrt.pop %v9111
        %v9151 = vmul.f32 %v9150, %v9111
        %v9152 = vmul.f32 %v9151, %v9150
        %v9153 = vmul.f32 0.5, %v9152
        %v9154 = vsub.f32 1.5, %v9153
        %v9155 = vmul.f32 %v9150, %v9154
        %vm9156 = vweird.f32 %v9111
        %vm9157 = vweird.f32 %v9150
        %vm9158 = vmor %vm9156, %vm9157
        %v9159 = vsel %vm9158, %v9150, %v9155
        %v9160 = vrsqrt.pop %v9112
        %v9161 = vmul.f32 %v9160, %v9112
        %v9162 = vmul.f32 %v9161, %v9160
        %v9163 = vmul.f32 0.5, %v9162
        %v9164 = vsub.f32 1.5, %v9163
        %v9165 = vmul.f32 %v9160, %v9164
        %vm9166 = vweird.f32 %v9112
        %vm9167 = vweird.f32 %v9160
        %vm9168 = vmor %vm9166, %vm9167
        %v9169 = vsel %vm9168, %v9160, %v9165
        %v9170 = vrsqrt.pop %v9113
        %v9171 = vmul.f32 %v9170, %v9113
        %v9172 = vmul.f32 %v9171, %v9170
        %v9173 = vmul.f32 0.5, %v9172
        %v9174 = vsub.f32 1.5, %v9173
        %v9175 = vmul.f32 %v9170, %v9174
        %vm9176 = vweird.f32 %v9113
        %vm9177 = vweird.f32 %v9170
        %vm9178 = vmor %vm9176, %vm9177
        %v9179 = vsel %vm9178, %v9170, %v9175
        %v9180 = vrsqrt.pop %v9114
        %v9181 = vmul.f32 %v9180, %v9114
        %v9182 = vmul.f32 %v9181, %v9180
        %v9183 = vmul.f32 0.5, %v9182
        %v9184 = vsub.f32 1.5, %v9183
        %v9185 = vmul.f32 %v9180, %v9184
        %vm9186 = vweird.f32 %v9114
        %vm9187 = vweird.f32 %v9180
        %vm9188 = vmor %vm9186, %vm9187
        %v9189 = vsel %vm9188, %v9180, %v9185
        %v9190 = vrsqrt.pop %v9115
        %v9191 = vmul.f32 %v9190, %v9115
        %v9192 = vmul.f32 %v9191, %v9190
        %v9193 = vmul.f32 0.5, %v9192
        %v9194 = vsub.f32 1.5, %v9193
        %v9195 = vmul.f32 %v9190, %v9194
        %vm9196 = vweird.f32 %v9115
        %vm9197 = vweird.f32 %v9190
        %vm9198 = vmor %vm9196, %vm9197
        %v9199 = vsel %vm9198, %v9190, %v9195
        %v9200 = vrsqrt.pop %v9116
        %v9201 = vmul.f32 %v9200, %v9116
        %v9202 = vmul.f32 %v9201, %v9200
        %v9203 = vmul.f32 0.5, %v9202
        %v9204 = vsub.f32 1.5, %v9203
        %v9205 = vmul.f32 %v9200, %v9204
        %vm9206 = vweird.f32 %v9116
        %vm9207 = vweird.f32 %v9200
        %vm9208 = vmor %vm9206, %vm9207
        %v9209 = vsel %vm9208, %v9200, %v9205
        %v9210 = vrsqrt.pop %v9117
        %v9211 = vmul.f32 %v9210, %v9117
        %v9212 = vmul.f32 %v9211, %v9210
        %v9213 = vmul.f32 0.5, %v9212
        %v9214 = vsub.f32 1.5, %v9213
        %v9215 = vmul.f32 %v9210, %v9214
        %vm9216 = vweird.f32 %v9117
        %vm9217 = vweird.f32 %v9210
        %vm9218 = vmor %vm9216, %vm9217
        %v9219 = vsel %vm9218, %v9210, %v9215
        %v9220 = vrsqrt.pop %v9118
        %v9221 = vmul.f32 %v9220, %v9118
        %v9222 = vmul.f32 %v9221, %v9220
        %v9223 = vmul.f32 0.5, %v9222
        %v9224 = vsub.f32 1.5, %v9223
        %v9225 = vmul.f32 %v9220, %v9224
        %vm9226 = vweird.f32 %v9118
        %vm9227 = vweird.f32 %v9220
        %vm9228 = vmor %vm9226, %vm9227
        %v9229 = vsel %vm9228, %v9220, %v9225
        %v9230 = vrsqrt.pop %v9119
        %v9231 = vmul.f32 %v9230, %v9119
        %v9232 = vmul.f32 %v9231, %v9230
        %v9233 = vmul.f32 0.5, %v9232
        %v9234 = vsub.f32 1.5, %v9233
        %v9235 = vmul.f32 %v9230, %v9234
        %vm9236 = vweird.f32 %v9119
        %vm9237 = vweird.f32 %v9230
        %vm9238 = vmor %vm9236, %vm9237
        %v9239 = vsel %vm9238, %v9230, %v9235
        %v9240 = vmul.f32 %v9048, %v9129
        %v9241 = vmul.f32 %v9049, %v9139
        %v9242 = vmul.f32 %v9050, %v9149
        %v9243 = vmul.f32 %v9051, %v9159
        %v9244 = vmul.f32 %v9052, %v9169
        %v9245 = vmul.f32 %v9053, %v9179
        %v9246 = vmul.f32 %v9054, %v9189
        %v9247 = vmul.f32 %v9055, %v9199
        %v9248 = vmul.f32 %v9056, %v9209
        %v9249 = vmul.f32 %v9057, %v9219
        %v9250 = vmul.f32 %v9058, %v9229
        %v9251 = vmul.f32 %v9059, %v9239
        %v9253 = vperm.slane %v9010, 0
        %v9255 = vmul.f32 %v9240, %v9253
        %v9256 = vmul.f32 %v9241, %v9253
        %v9257 = vmul.f32 %v9242, %v9253
        %v9258 = vmul.f32 %v9243, %v9253
        %v9259 = vmul.f32 %v9244, %v9253
        %v9260 = vmul.f32 %v9245, %v9253
        %v9261 = vmul.f32 %v9246, %v9253
        %v9262 = vmul.f32 %v9247, %v9253
        %v9263 = vmul.f32 %v9248, %v9253
        %v9264 = vmul.f32 %v9249, %v9253
        %v9265 = vmul.f32 %v9250, %v9253
        %v9266 = vmul.f32 %v9251, %v9253
        %v9268 = vperm.slane %v9011, 0
        %v9270 = vadd.f32 %v9255, %v9268
        %v9271 = vadd.f32 %v9256, %v9268
        %v9272 = vadd.f32 %v9257, %v9268
        %v9273 = vadd.f32 %v9258, %v9268
        %v9274 = vadd.f32 %v9259, %v9268
        %v9275 = vadd.f32 %v9260, %v9268
        %v9276 = vadd.f32 %v9261, %v9268
        %v9277 = vadd.f32 %v9262, %v9268
        %v9278 = vadd.f32 %v9263, %v9268
        %v9279 = vadd.f32 %v9264, %v9268
        %v9280 = vadd.f32 %v9265, %v9268
        %v9281 = vadd.f32 %v9266, %v9268
        %v9282 = vpack.c.bf16 %v9270, %v9270
        %v9283 = vpack.c.bf16 %v9271, %v9271
        %v9284 = vpack.c.bf16 %v9272, %v9272
        %v9285 = vpack.c.bf16 %v9273, %v9273
        %v9286 = vpack.c.bf16 %v9274, %v9274
        %v9287 = vpack.c.bf16 %v9275, %v9275
        %v9288 = vpack.c.bf16 %v9276, %v9276
        %v9289 = vpack.c.bf16 %v9277, %v9277
        %v9290 = vpack.c.bf16 %v9278, %v9278
        %v9291 = vpack.c.bf16 %v9279, %v9279
        %v9292 = vpack.c.bf16 %v9280, %v9280
        %v9293 = vpack.c.bf16 %v9281, %v9281
        %9294 = vst [vmem:[%s662] sm:$0xf] %v9282
        %9295 = vst [vmem:[%s662 + $0x4] sm:$0xf] %v9283
        %9296 = vst [vmem:[%s662 + $0x8] sm:$0xf] %v9284
        %9297 = vst [vmem:[%s662 + $0xc] sm:$0xf] %v9285
        %9298 = vst [vmem:[%s662 + $0x10] sm:$0xf] %v9286
        %9299 = vst [vmem:[%s662 + $0x14] sm:$0xf] %v9287
        %9300 = vst [vmem:[%s662 + $0x18] sm:$0xf] %v9288
        %9301 = vst [vmem:[%s662 + $0x1c] sm:$0xf] %v9289
        %9302 = vst [vmem:[%s662 + $0x20] sm:$0xf] %v9290
        %9303 = vst [vmem:[%s662 + $0x24] sm:$0xf] %v9291
        %9304 = vst [vmem:[%s662 + $0x28] sm:$0xf] %v9292
        %9305 = vst [vmem:[%s662 + $0x2c] sm:$0xf] %v9293
      $region84: #{vision_processor_forward.3} parent=75 // pred_fallthru
        _
      %s9306 = smul.u32 12, %s29
      %p9307 = scmp.lt.s32.totalorder %s9306, 11
      %s9308 = scalar_select %p9307, %s9306, 11
      %s9309 = smul.addr %s9308, 4
      %s9310 = scalar_lea.vmem %s14, %s9309
      // Predicated region
      $region85: #{vision_processor_forward.3} parent=75 // pred_check
        %p9311 = pneg %p409
      $region86: #{vision_processor_forward.3} parent=75 // pred_check_branch
        %9313 = sbr.rel (%p9311) target = $region88
      $region87: #{vision_processor_forward.3} parent=75 // pred_region
        %s9314 = smul.u32 12, %s29
      $region88: #{vision_processor_forward.3} parent=75 // pred_fallthru
        _
      // Predicated region
      $region89: #{vision_processor_forward.3} parent=75 // pred_check
        %p9315 = pneg %p409
      $region90: #{vision_processor_forward.3} parent=75 // pred_check_branch
        %9317 = sbr.rel (%p9315) target = $region92
      $region91: #{vision_processor_forward.3} parent=75 // pred_region
        %s9318 = smul.u32 12, %s29
        %p9319 = scmp.lt.s32.totalorder %s9318, 11
        %s9320 = scalar_select %p9319, %s9318, 11
        %s9321 = smul.addr %s9320, 4
        %s9322 = scalar_lea.vmem %s14, %s9321
      $region92: #{vision_processor_forward.3} parent=75 // pred_fallthru
        _
    $region76: #{vision_processor_forward.3} parent=5 // pred_fallthru
      _
    %p9323 = scmp.le.s32.totalorder 2, %s20
    // Predicated region
    $region93: #{vision_processor_forward.3} parent=5 // pred_check
      %p9324 = pneg %p9323
    $region94: #{vision_processor_forward.3} parent=5 // pred_check_branch
      %9326 = sbr.rel (%p9324) target = $region96
    $region95: #{vision_processor_forward.3} parent=5 // pred_region
      %s9327 = ssub.s32 %s20, 2
    $region96: #{vision_processor_forward.3} parent=5 // pred_fallthru
      _
  $region6: #{vision_processor_forward.3} parent=0 // loop_footer
    %s24 = sadd.s32 1, %s20
  $region7: #{vision_processor_forward.3} parent=0 // loop_footer_branch
    %19 = sbr.rel target = $region3
  $region8: #{vision_processor_forward.3} parent=0 // loop_exit
    _

</llo_original>
